<compile_context>
chip_gen: v7x
topology: tpu7x:2x2x1
jax: 0.10.0
libtpu: 0.0.40
codegen_flags: <defaults>
</compile_context>

<pallas_src>
import jax
import jax.numpy as jnp
from jax.experimental import pallas as pl
from jax.experimental.pallas import tpu as pltpu

HIDDEN = 32
SUB = 8            # sublane rows per tile -> sublane-dense output blocks
LANES = 1024       # lanes per row; sweep 512..2048 (cap ~512-1024 on v5e)
BLOCK = SUB * LANES            # batch points handled per grid step
HIDDEN_MATMUL_BF16 = True      # bf16 operands (f32 accumulate) for fc2..fc5 matmuls


def pinn_kernel(x_ref, w1_ref, wh_ref, bh_ref, w6_ref, b6_ref, o_ref):
    # x_ref : (1, SUB, LANES) f32     batch on lanes (SUB sublane rows per step)
    # w1_ref: (32, 1)  f32            fc1 weight (out, in)
    # wh_ref: (4, 32, 32) bf16|f32    stacked fc2..fc5 weights (out, in)
    # bh_ref: (5, 32, 1) f32          stacked biases fc1..fc5 (column vectors)
    # w6_ref: (32, 1)  f32            fc6 weight transposed to a column
    # b6_ref: (1, 1)   f32            fc6 bias
    # o_ref : (1, SUB, LANES) f32
    w1 = w1_ref[...]
    b1 = bh_ref[0]
    w6 = w6_ref[...]
    b6 = b6_ref[...]
    whs = [wh_ref[j] for j in range(4)]
    bhs = [bh_ref[j + 1] for j in range(4)]
    x = x_ref[0]                                             # (SUB, LANES)

    for s in range(SUB):                                     # unrolled straight-line code
        xs = x[s:s + 1, :]                                   # (1, LANES)
        # fc1: K=1 outer product -> keep off the MXU (VPU broadcast multiply).
        h = jnp.tanh(w1 * xs + b1)                           # (32, LANES) f32
        # fc2..fc5: 32x32 matmuls, lane-dense N=LANES, bf16 operands / f32 accumulate.
        for wj, bj in zip(whs, bhs):
            h = jnp.tanh(
                jnp.dot(wj, h.astype(wj.dtype), preferred_element_type=jnp.float32)
                + bj)                                        # (32, LANES) f32
        # fc6: N=1 -> elementwise multiply + sublane reduction (XLU), lane-dense.
        y = jnp.sum(w6 * h, axis=0, keepdims=True) + b6      # (1, LANES)
        o_ref[0, s:s + 1, :] = y


@jax.jit
def pinn_forward(x, params):
    """x: (N, 1) float32; params: PyTorch-layout ((out, in) weights, (out,) biases)."""
    n = x.shape[0]
    (w1, b1), (w2, b2), (w3, b3), (w4, b4), (w5, b5), (w6, b6) = params

    # Consolidate operands (tiny, done once per call).
    wh = jnp.stack([w2, w3, w4, w5])                         # (4, 32, 32)
    if HIDDEN_MATMUL_BF16:
        wh = wh.astype(jnp.bfloat16)                         # cast weights once, outside kernel
    bh = jnp.stack([b1, b2, b3, b4, b5])[:, :, None]         # (5, 32, 1)
    w6t = w6.T                                               # (32, 1)
    b6r = b6.reshape(1, 1)                                   # (1, 1)

    # Lay batch out as (g, SUB, LANES); pad only if needed.
    g = pl.cdiv(n, BLOCK)
    n_pad = g * BLOCK
    xf = x.reshape(-1)
    if n_pad != n:
        xf = jnp.pad(xf, (0, n_pad - n))
    xf = xf.reshape(g, SUB, LANES)

    out = pl.pallas_call(
        pinn_kernel,
        out_shape=jax.ShapeDtypeStruct((g, SUB, LANES), jnp.float32),
        grid=(g,),
        in_specs=[
            pl.BlockSpec((1, SUB, LANES), lambda i: (i, 0, 0)),       # x tile
            pl.BlockSpec((HIDDEN, 1), lambda i: (0, 0)),              # w1 (resident)
            pl.BlockSpec((4, HIDDEN, HIDDEN), lambda i: (0, 0, 0)),   # fc2..fc5 weights
            pl.BlockSpec((5, HIDDEN, 1), lambda i: (0, 0, 0)),        # fc1..fc5 biases
            pl.BlockSpec((HIDDEN, 1), lambda i: (0, 0)),              # w6^T
            pl.BlockSpec((1, 1), lambda i: (0, 0)),                   # b6
        ],
        out_specs=pl.BlockSpec((1, SUB, LANES), lambda i: (i, 0, 0)),
        compiler_params=pltpu.CompilerParams(
            dimension_semantics=("parallel",)),   # batch axis shards across v7x TensorCores
    )(xf, w1, wh, bh, w6t, b6r)

    y = out.reshape(-1)
    if n_pad != n:
        y = y[:n]
    return y.reshape(n, 1)


def init_params(key):
    """Xavier-normal weights (PyTorch (out, in) layout), zero biases (matches _init_weights)."""
    sizes = [(HIDDEN, 1), (HIDDEN, HIDDEN), (HIDDEN, HIDDEN),
             (HIDDEN, HIDDEN), (HIDDEN, HIDDEN), (1, HIDDEN)]
    params = []
    for (fan_out, fan_in) in sizes:
        key, sub = jax.random.split(key)
        std = (2.0 / (fan_in + fan_out)) ** 0.5
        w = std * jax.random.normal(sub, (fan_out, fan_in), dtype=jnp.float32)
        b = jnp.zeros((fan_out,), dtype=jnp.float32)
        params.append((w, b))
    return tuple(params)


def pinn_forward_ref(x, params, bf16_hidden=False):
    """Plain-JAX reference; bf16_hidden mirrors the kernel's bf16 matmul operands."""
    h = x
    for i, (w, b) in enumerate(params):
        if bf16_hidden and 1 <= i <= 4:
            h = jnp.dot(h.astype(jnp.bfloat16), w.T.astype(jnp.bfloat16),
                        preferred_element_type=jnp.float32) + b
        else:
            h = h @ w.T + b
        if i < len(params) - 1:
            h = jnp.tanh(h)
    return h


if __name__ == "__main__":
    key = jax.random.PRNGKey(0)
    kp, kx = jax.random.split(key)
    params = init_params(kp)

    # N=10_000: 2 grid steps (even grid -> both v7x TCs) + ragged tail padding.
    # N=100: tiny single-step case.
    for n in (10_000, 100):
        kx, sub = jax.random.split(kx)
        x = jax.random.uniform(sub, (n, 1), dtype=jnp.float32)

        out = jax.block_until_ready(pinn_forward(x, params))
        assert out.shape == (n, 1)

        # Strict check against a reference using the exact same bf16 casting.
        ref_matched = pinn_forward_ref(x, params, bf16_hidden=HIDDEN_MATMUL_BF16)
        assert jnp.allclose(out, ref_matched, atol=2e-4, rtol=2e-4), (
            float(jnp.max(jnp.abs(out - ref_matched))))

        # Sanity bound against the strict-f32 forward (bf16 hidden matmuls only).
        ref_f32 = pinn_forward_ref(x, params, bf16_hidden=False)
        max_f32_diff = float(jnp.max(jnp.abs(out - ref_f32)))
        assert max_f32_diff < 5e-2, max_f32_diff

    # TODO(synk): compute_derivatives (dy/dx, d2y/dx2) requires differentiating through
    # pallas_call (custom_vjp) or a plain-JAX twin of the forward; not implemented here.
    print("KERNEL_OK")
</pallas_src>

<mosaic_0001>
module attributes {stable_mosaic.version = 11 : i64} {
  func.func @pinn_kernel(%arg0: i32, %arg1: memref<1x8x1024xf32, #tpu.memory_space<vmem>>, %arg2: memref<32x1xf32, #tpu.memory_space<vmem>>, %arg3: memref<4x32x32xbf16, #tpu.memory_space<vmem>>, %arg4: memref<5x32x1xf32, #tpu.memory_space<vmem>>, %arg5: memref<32x1xf32, #tpu.memory_space<vmem>>, %arg6: memref<1x1xf32, #tpu.memory_space<vmem>>, %arg7: memref<1x8x1024xf32, #tpu.memory_space<vmem>>) attributes {dimension_semantics = [#tpu.dimension_semantics<parallel>], iteration_bounds = array<i64: 2>, scalar_prefetch = 0 : i64, scratch_operands = 0 : i64, tpu.core_type = #tpu.core_type<tc>, window_params = [{transform_indices = @transform_0, window_bounds = array<i64: 1, 8, 1024>}, {pipeline_mode = #tpu.pipeline_mode<synchronous>, transform_indices = @transform_1, window_bounds = array<i64: 32, 1>}, {pipeline_mode = #tpu.pipeline_mode<synchronous>, transform_indices = @transform_2, window_bounds = array<i64: 4, 32, 32>}, {pipeline_mode = #tpu.pipeline_mode<synchronous>, transform_indices = @transform_3, window_bounds = array<i64: 5, 32, 1>}, {pipeline_mode = #tpu.pipeline_mode<synchronous>, transform_indices = @transform_4, window_bounds = array<i64: 32, 1>}, {pipeline_mode = #tpu.pipeline_mode<synchronous>, transform_indices = @transform_5, window_bounds = array<i64: 1, 1>}, {transform_indices = @transform_6, window_bounds = array<i64: 1, 8, 1024>}]} {
    %c0 = arith.constant 0 : index
    %c0_0 = arith.constant 0 : index
    %0 = vector.load %arg2[%c0, %c0_0] : memref<32x1xf32, #tpu.memory_space<vmem>>, vector<32x1xf32>
    %c0_1 = arith.constant 0 : index
    %c0_2 = arith.constant 0 : index
    %c0_3 = arith.constant 0 : index
    %1 = vector.load %arg4[%c0_1, %c0_2, %c0_3] : memref<5x32x1xf32, #tpu.memory_space<vmem>>, vector<1x32x1xf32>
    %2 = vector.shape_cast %1 : vector<1x32x1xf32> to vector<32x1xf32>
    %c0_4 = arith.constant 0 : index
    %c0_5 = arith.constant 0 : index
    %3 = vector.load %arg5[%c0_4, %c0_5] : memref<32x1xf32, #tpu.memory_space<vmem>>, vector<32x1xf32>
    %c0_6 = arith.constant 0 : index
    %c0_7 = arith.constant 0 : index
    %4 = vector.load %arg6[%c0_6, %c0_7] : memref<1x1xf32, #tpu.memory_space<vmem>>, vector<1x1xf32>
    %c0_8 = arith.constant 0 : index
    %c0_9 = arith.constant 0 : index
    %c0_10 = arith.constant 0 : index
    %5 = vector.load %arg3[%c0_8, %c0_9, %c0_10] : memref<4x32x32xbf16, #tpu.memory_space<vmem>>, vector<1x32x32xbf16>
    %6 = vector.shape_cast %5 : vector<1x32x32xbf16> to vector<32x32xbf16>
    %c1 = arith.constant 1 : index
    %c0_11 = arith.constant 0 : index
    %c0_12 = arith.constant 0 : index
    %7 = vector.load %arg3[%c1, %c0_11, %c0_12] : memref<4x32x32xbf16, #tpu.memory_space<vmem>>, vector<1x32x32xbf16>
    %8 = vector.shape_cast %7 : vector<1x32x32xbf16> to vector<32x32xbf16>
    %c2 = arith.constant 2 : index
    %c0_13 = arith.constant 0 : index
    %c0_14 = arith.constant 0 : index
    %9 = vector.load %arg3[%c2, %c0_13, %c0_14] : memref<4x32x32xbf16, #tpu.memory_space<vmem>>, vector<1x32x32xbf16>
    %10 = vector.shape_cast %9 : vector<1x32x32xbf16> to vector<32x32xbf16>
    %c3 = arith.constant 3 : index
    %c0_15 = arith.constant 0 : index
    %c0_16 = arith.constant 0 : index
    %11 = vector.load %arg3[%c3, %c0_15, %c0_16] : memref<4x32x32xbf16, #tpu.memory_space<vmem>>, vector<1x32x32xbf16>
    %12 = vector.shape_cast %11 : vector<1x32x32xbf16> to vector<32x32xbf16>
    %c1_17 = arith.constant 1 : index
    %c0_18 = arith.constant 0 : index
    %c0_19 = arith.constant 0 : index
    %13 = vector.load %arg4[%c1_17, %c0_18, %c0_19] : memref<5x32x1xf32, #tpu.memory_space<vmem>>, vector<1x32x1xf32>
    %14 = vector.shape_cast %13 : vector<1x32x1xf32> to vector<32x1xf32>
    %c2_20 = arith.constant 2 : index
    %c0_21 = arith.constant 0 : index
    %c0_22 = arith.constant 0 : index
    %15 = vector.load %arg4[%c2_20, %c0_21, %c0_22] : memref<5x32x1xf32, #tpu.memory_space<vmem>>, vector<1x32x1xf32>
    %16 = vector.shape_cast %15 : vector<1x32x1xf32> to vector<32x1xf32>
    %c3_23 = arith.constant 3 : index
    %c0_24 = arith.constant 0 : index
    %c0_25 = arith.constant 0 : index
    %17 = vector.load %arg4[%c3_23, %c0_24, %c0_25] : memref<5x32x1xf32, #tpu.memory_space<vmem>>, vector<1x32x1xf32>
    %18 = vector.shape_cast %17 : vector<1x32x1xf32> to vector<32x1xf32>
    %c4 = arith.constant 4 : index
    %c0_26 = arith.constant 0 : index
    %c0_27 = arith.constant 0 : index
    %19 = vector.load %arg4[%c4, %c0_26, %c0_27] : memref<5x32x1xf32, #tpu.memory_space<vmem>>, vector<1x32x1xf32>
    %20 = vector.shape_cast %19 : vector<1x32x1xf32> to vector<32x1xf32>
    %c0_28 = arith.constant 0 : index
    %c0_29 = arith.constant 0 : index
    %c0_30 = arith.constant 0 : index
    %21 = vector.load %arg1[%c0_28, %c0_29, %c0_30] : memref<1x8x1024xf32, #tpu.memory_space<vmem>>, vector<1x8x1024xf32>
    %22 = vector.shape_cast %21 : vector<1x8x1024xf32> to vector<8x1024xf32>
    %23 = vector.extract_strided_slice %22 {offsets = [0, 0], sizes = [1, 1024], strides = [1, 1]} : vector<8x1024xf32> to vector<1x1024xf32>
    %24 = vector.broadcast %0 : vector<32x1xf32> to vector<32x1024xf32>
    %25 = vector.broadcast %23 : vector<1x1024xf32> to vector<32x1024xf32>
    %26 = arith.mulf %24, %25 : vector<32x1024xf32>
    %27 = vector.broadcast %2 : vector<32x1xf32> to vector<32x1024xf32>
    %28 = arith.addf %26, %27 : vector<32x1024xf32>
    %29 = math.tanh %28 : vector<32x1024xf32>
    %30 = arith.truncf %29 : vector<32x1024xf32> to vector<32x1024xbf16>
    %cst = arith.constant dense<0.000000e+00> : vector<32x1024xf32>
    %31 = tpu.matmul %6, %30, %cst {dimension_numbers = #tpu.dot_dimension_numbers<[1], [0], [0], [1], [0, 0, 1, 1], [], []>} : vector<32x32xbf16>, vector<32x1024xbf16>, vector<32x1024xf32> -> vector<32x1024xf32>
    %32 = vector.broadcast %14 : vector<32x1xf32> to vector<32x1024xf32>
    %33 = arith.addf %31, %32 : vector<32x1024xf32>
    %34 = math.tanh %33 : vector<32x1024xf32>
    %35 = arith.truncf %34 : vector<32x1024xf32> to vector<32x1024xbf16>
    %cst_31 = arith.constant dense<0.000000e+00> : vector<32x1024xf32>
    %36 = tpu.matmul %8, %35, %cst_31 {dimension_numbers = #tpu.dot_dimension_numbers<[1], [0], [0], [1], [0, 0, 1, 1], [], []>} : vector<32x32xbf16>, vector<32x1024xbf16>, vector<32x1024xf32> -> vector<32x1024xf32>
    %37 = vector.broadcast %16 : vector<32x1xf32> to vector<32x1024xf32>
    %38 = arith.addf %36, %37 : vector<32x1024xf32>
    %39 = math.tanh %38 : vector<32x1024xf32>
    %40 = arith.truncf %39 : vector<32x1024xf32> to vector<32x1024xbf16>
    %cst_32 = arith.constant dense<0.000000e+00> : vector<32x1024xf32>
    %41 = tpu.matmul %10, %40, %cst_32 {dimension_numbers = #tpu.dot_dimension_numbers<[1], [0], [0], [1], [0, 0, 1, 1], [], []>} : vector<32x32xbf16>, vector<32x1024xbf16>, vector<32x1024xf32> -> vector<32x1024xf32>
    %42 = vector.broadcast %18 : vector<32x1xf32> to vector<32x1024xf32>
    %43 = arith.addf %41, %42 : vector<32x1024xf32>
    %44 = math.tanh %43 : vector<32x1024xf32>
    %45 = arith.truncf %44 : vector<32x1024xf32> to vector<32x1024xbf16>
    %cst_33 = arith.constant dense<0.000000e+00> : vector<32x1024xf32>
    %46 = tpu.matmul %12, %45, %cst_33 {dimension_numbers = #tpu.dot_dimension_numbers<[1], [0], [0], [1], [0, 0, 1, 1], [], []>} : vector<32x32xbf16>, vector<32x1024xbf16>, vector<32x1024xf32> -> vector<32x1024xf32>
    %47 = vector.broadcast %20 : vector<32x1xf32> to vector<32x1024xf32>
    %48 = arith.addf %46, %47 : vector<32x1024xf32>
    %49 = math.tanh %48 : vector<32x1024xf32>
    %50 = vector.broadcast %3 : vector<32x1xf32> to vector<32x1024xf32>
    %51 = arith.mulf %50, %49 : vector<32x1024xf32>
    %cst_34 = arith.constant dense<0.000000e+00> : vector<1024xf32>
    %52 = vector.multi_reduction <add>, %51, %cst_34 [0] : vector<32x1024xf32> to vector<1024xf32>
    %53 = vector.shape_cast %52 : vector<1024xf32> to vector<1x1024xf32>
    %54 = vector.broadcast %4 : vector<1x1xf32> to vector<1x1024xf32>
    %55 = arith.addf %53, %54 : vector<1x1024xf32>
    %c0_35 = arith.constant 0 : index
    %c0_36 = arith.constant 0 : index
    %c0_37 = arith.constant 0 : index
    %56 = vector.load %arg7[%c0_35, %c0_36, %c0_37] : memref<1x8x1024xf32, #tpu.memory_space<vmem>>, vector<1x1x1024xf32>
    %57 = vector.shape_cast %56 : vector<1x1x1024xf32> to vector<1x1024xf32>
    %58 = vector.shape_cast %55 : vector<1x1024xf32> to vector<1x1x1024xf32>
    tpu.vector_store %arg7[%c0_35, %c0_36, %c0_37], %58 {strides = array<i32>} : memref<1x8x1024xf32, #tpu.memory_space<vmem>>, vector<1x1x1024xf32>,
    %59 = vector.extract_strided_slice %22 {offsets = [1, 0], sizes = [1, 1024], strides = [1, 1]} : vector<8x1024xf32> to vector<1x1024xf32>
    %60 = vector.broadcast %0 : vector<32x1xf32> to vector<32x1024xf32>
    %61 = vector.broadcast %59 : vector<1x1024xf32> to vector<32x1024xf32>
    %62 = arith.mulf %60, %61 : vector<32x1024xf32>
    %63 = vector.broadcast %2 : vector<32x1xf32> to vector<32x1024xf32>
    %64 = arith.addf %62, %63 : vector<32x1024xf32>
    %65 = math.tanh %64 : vector<32x1024xf32>
    %66 = arith.truncf %65 : vector<32x1024xf32> to vector<32x1024xbf16>
    %cst_38 = arith.constant dense<0.000000e+00> : vector<32x1024xf32>
    %67 = tpu.matmul %6, %66, %cst_38 {dimension_numbers = #tpu.dot_dimension_numbers<[1], [0], [0], [1], [0, 0, 1, 1], [], []>} : vector<32x32xbf16>, vector<32x1024xbf16>, vector<32x1024xf32> -> vector<32x1024xf32>
    %68 = vector.broadcast %14 : vector<32x1xf32> to vector<32x1024xf32>
    %69 = arith.addf %67, %68 : vector<32x1024xf32>
    %70 = math.tanh %69 : vector<32x1024xf32>
    %71 = arith.truncf %70 : vector<32x1024xf32> to vector<32x1024xbf16>
    %cst_39 = arith.constant dense<0.000000e+00> : vector<32x1024xf32>
    %72 = tpu.matmul %8, %71, %cst_39 {dimension_numbers = #tpu.dot_dimension_numbers<[1], [0], [0], [1], [0, 0, 1, 1], [], []>} : vector<32x32xbf16>, vector<32x1024xbf16>, vector<32x1024xf32> -> vector<32x1024xf32>
    %73 = vector.broadcast %16 : vector<32x1xf32> to vector<32x1024xf32>
    %74 = arith.addf %72, %73 : vector<32x1024xf32>
    %75 = math.tanh %74 : vector<32x1024xf32>
    %76 = arith.truncf %75 : vector<32x1024xf32> to vector<32x1024xbf16>
    %cst_40 = arith.constant dense<0.000000e+00> : vector<32x1024xf32>
    %77 = tpu.matmul %10, %76, %cst_40 {dimension_numbers = #tpu.dot_dimension_numbers<[1], [0], [0], [1], [0, 0, 1, 1], [], []>} : vector<32x32xbf16>, vector<32x1024xbf16>, vector<32x1024xf32> -> vector<32x1024xf32>
    %78 = vector.broadcast %18 : vector<32x1xf32> to vector<32x1024xf32>
    %79 = arith.addf %77, %78 : vector<32x1024xf32>
    %80 = math.tanh %79 : vector<32x1024xf32>
    %81 = arith.truncf %80 : vector<32x1024xf32> to vector<32x1024xbf16>
    %cst_41 = arith.constant dense<0.000000e+00> : vector<32x1024xf32>
    %82 = tpu.matmul %12, %81, %cst_41 {dimension_numbers = #tpu.dot_dimension_numbers<[1], [0], [0], [1], [0, 0, 1, 1], [], []>} : vector<32x32xbf16>, vector<32x1024xbf16>, vector<32x1024xf32> -> vector<32x1024xf32>
    %83 = vector.broadcast %20 : vector<32x1xf32> to vector<32x1024xf32>
    %84 = arith.addf %82, %83 : vector<32x1024xf32>
    %85 = math.tanh %84 : vector<32x1024xf32>
    %86 = vector.broadcast %3 : vector<32x1xf32> to vector<32x1024xf32>
    %87 = arith.mulf %86, %85 : vector<32x1024xf32>
    %cst_42 = arith.constant dense<0.000000e+00> : vector<1024xf32>
    %88 = vector.multi_reduction <add>, %87, %cst_42 [0] : vector<32x1024xf32> to vector<1024xf32>
    %89 = vector.shape_cast %88 : vector<1024xf32> to vector<1x1024xf32>
    %90 = vector.broadcast %4 : vector<1x1xf32> to vector<1x1024xf32>
    %91 = arith.addf %89, %90 : vector<1x1024xf32>
    %c0_43 = arith.constant 0 : index
    %c1_44 = arith.constant 1 : index
    %c0_45 = arith.constant 0 : index
    %92 = vector.load %arg7[%c0_43, %c1_44, %c0_45] : memref<1x8x1024xf32, #tpu.memory_space<vmem>>, vector<1x1x1024xf32>
    %93 = vector.shape_cast %92 : vector<1x1x1024xf32> to vector<1x1024xf32>
    %94 = vector.shape_cast %91 : vector<1x1024xf32> to vector<1x1x1024xf32>
    tpu.vector_store %arg7[%c0_43, %c1_44, %c0_45], %94 {strides = array<i32>} : memref<1x8x1024xf32, #tpu.memory_space<vmem>>, vector<1x1x1024xf32>,
    %95 = vector.extract_strided_slice %22 {offsets = [2, 0], sizes = [1, 1024], strides = [1, 1]} : vector<8x1024xf32> to vector<1x1024xf32>
    %96 = vector.broadcast %0 : vector<32x1xf32> to vector<32x1024xf32>
    %97 = vector.broadcast %95 : vector<1x1024xf32> to vector<32x1024xf32>
    %98 = arith.mulf %96, %97 : vector<32x1024xf32>
    %99 = vector.broadcast %2 : vector<32x1xf32> to vector<32x1024xf32>
    %100 = arith.addf %98, %99 : vector<32x1024xf32>
    %101 = math.tanh %100 : vector<32x1024xf32>
    %102 = arith.truncf %101 : vector<32x1024xf32> to vector<32x1024xbf16>
    %cst_46 = arith.constant dense<0.000000e+00> : vector<32x1024xf32>
    %103 = tpu.matmul %6, %102, %cst_46 {dimension_numbers = #tpu.dot_dimension_numbers<[1], [0], [0], [1], [0, 0, 1, 1], [], []>} : vector<32x32xbf16>, vector<32x1024xbf16>, vector<32x1024xf32> -> vector<32x1024xf32>
    %104 = vector.broadcast %14 : vector<32x1xf32> to vector<32x1024xf32>
    %105 = arith.addf %103, %104 : vector<32x1024xf32>
    %106 = math.tanh %105 : vector<32x1024xf32>
    %107 = arith.truncf %106 : vector<32x1024xf32> to vector<32x1024xbf16>
    %cst_47 = arith.constant dense<0.000000e+00> : vector<32x1024xf32>
    %108 = tpu.matmul %8, %107, %cst_47 {dimension_numbers = #tpu.dot_dimension_numbers<[1], [0], [0], [1], [0, 0, 1, 1], [], []>} : vector<32x32xbf16>, vector<32x1024xbf16>, vector<32x1024xf32> -> vector<32x1024xf32>
    %109 = vector.broadcast %16 : vector<32x1xf32> to vector<32x1024xf32>
    %110 = arith.addf %108, %109 : vector<32x1024xf32>
    %111 = math.tanh %110 : vector<32x1024xf32>
    %112 = arith.truncf %111 : vector<32x1024xf32> to vector<32x1024xbf16>
    %cst_48 = arith.constant dense<0.000000e+00> : vector<32x1024xf32>
    %113 = tpu.matmul %10, %112, %cst_48 {dimension_numbers = #tpu.dot_dimension_numbers<[1], [0], [0], [1], [0, 0, 1, 1], [], []>} : vector<32x32xbf16>, vector<32x1024xbf16>, vector<32x1024xf32> -> vector<32x1024xf32>
    %114 = vector.broadcast %18 : vector<32x1xf32> to vector<32x1024xf32>
    %115 = arith.addf %113, %114 : vector<32x1024xf32>
    %116 = math.tanh %115 : vector<32x1024xf32>
    %117 = arith.truncf %116 : vector<32x1024xf32> to vector<32x1024xbf16>
    %cst_49 = arith.constant dense<0.000000e+00> : vector<32x1024xf32>
    %118 = tpu.matmul %12, %117, %cst_49 {dimension_numbers = #tpu.dot_dimension_numbers<[1], [0], [0], [1], [0, 0, 1, 1], [], []>} : vector<32x32xbf16>, vector<32x1024xbf16>, vector<32x1024xf32> -> vector<32x1024xf32>
    %119 = vector.broadcast %20 : vector<32x1xf32> to vector<32x1024xf32>
    %120 = arith.addf %118, %119 : vector<32x1024xf32>
    %121 = math.tanh %120 : vector<32x1024xf32>
    %122 = vector.broadcast %3 : vector<32x1xf32> to vector<32x1024xf32>
    %123 = arith.mulf %122, %121 : vector<32x1024xf32>
    %cst_50 = arith.constant dense<0.000000e+00> : vector<1024xf32>
    %124 = vector.multi_reduction <add>, %123, %cst_50 [0] : vector<32x1024xf32> to vector<1024xf32>
    %125 = vector.shape_cast %124 : vector<1024xf32> to vector<1x1024xf32>
    %126 = vector.broadcast %4 : vector<1x1xf32> to vector<1x1024xf32>
    %127 = arith.addf %125, %126 : vector<1x1024xf32>
    %c0_51 = arith.constant 0 : index
    %c2_52 = arith.constant 2 : index
    %c0_53 = arith.constant 0 : index
    %128 = vector.load %arg7[%c0_51, %c2_52, %c0_53] : memref<1x8x1024xf32, #tpu.memory_space<vmem>>, vector<1x1x1024xf32>
    %129 = vector.shape_cast %128 : vector<1x1x1024xf32> to vector<1x1024xf32>
    %130 = vector.shape_cast %127 : vector<1x1024xf32> to vector<1x1x1024xf32>
    tpu.vector_store %arg7[%c0_51, %c2_52, %c0_53], %130 {strides = array<i32>} : memref<1x8x1024xf32, #tpu.memory_space<vmem>>, vector<1x1x1024xf32>,
    %131 = vector.extract_strided_slice %22 {offsets = [3, 0], sizes = [1, 1024], strides = [1, 1]} : vector<8x1024xf32> to vector<1x1024xf32>
    %132 = vector.broadcast %0 : vector<32x1xf32> to vector<32x1024xf32>
    %133 = vector.broadcast %131 : vector<1x1024xf32> to vector<32x1024xf32>
    %134 = arith.mulf %132, %133 : vector<32x1024xf32>
    %135 = vector.broadcast %2 : vector<32x1xf32> to vector<32x1024xf32>
    %136 = arith.addf %134, %135 : vector<32x1024xf32>
    %137 = math.tanh %136 : vector<32x1024xf32>
    %138 = arith.truncf %137 : vector<32x1024xf32> to vector<32x1024xbf16>
    %cst_54 = arith.constant dense<0.000000e+00> : vector<32x1024xf32>
    %139 = tpu.matmul %6, %138, %cst_54 {dimension_numbers = #tpu.dot_dimension_numbers<[1], [0], [0], [1], [0, 0, 1, 1], [], []>} : vector<32x32xbf16>, vector<32x1024xbf16>, vector<32x1024xf32> -> vector<32x1024xf32>
    %140 = vector.broadcast %14 : vector<32x1xf32> to vector<32x1024xf32>
    %141 = arith.addf %139, %140 : vector<32x1024xf32>
    %142 = math.tanh %141 : vector<32x1024xf32>
    %143 = arith.truncf %142 : vector<32x1024xf32> to vector<32x1024xbf16>
    %cst_55 = arith.constant dense<0.000000e+00> : vector<32x1024xf32>
    %144 = tpu.matmul %8, %143, %cst_55 {dimension_numbers = #tpu.dot_dimension_numbers<[1], [0], [0], [1], [0, 0, 1, 1], [], []>} : vector<32x32xbf16>, vector<32x1024xbf16>, vector<32x1024xf32> -> vector<32x1024xf32>
    %145 = vector.broadcast %16 : vector<32x1xf32> to vector<32x1024xf32>
    %146 = arith.addf %144, %145 : vector<32x1024xf32>
    %147 = math.tanh %146 : vector<32x1024xf32>
    %148 = arith.truncf %147 : vector<32x1024xf32> to vector<32x1024xbf16>
    %cst_56 = arith.constant dense<0.000000e+00> : vector<32x1024xf32>
    %149 = tpu.matmul %10, %148, %cst_56 {dimension_numbers = #tpu.dot_dimension_numbers<[1], [0], [0], [1], [0, 0, 1, 1], [], []>} : vector<32x32xbf16>, vector<32x1024xbf16>, vector<32x1024xf32> -> vector<32x1024xf32>
    %150 = vector.broadcast %18 : vector<32x1xf32> to vector<32x1024xf32>
    %151 = arith.addf %149, %150 : vector<32x1024xf32>
    %152 = math.tanh %151 : vector<32x1024xf32>
    %153 = arith.truncf %152 : vector<32x1024xf32> to vector<32x1024xbf16>
    %cst_57 = arith.constant dense<0.000000e+00> : vector<32x1024xf32>
    %154 = tpu.matmul %12, %153, %cst_57 {dimension_numbers = #tpu.dot_dimension_numbers<[1], [0], [0], [1], [0, 0, 1, 1], [], []>} : vector<32x32xbf16>, vector<32x1024xbf16>, vector<32x1024xf32> -> vector<32x1024xf32>
    %155 = vector.broadcast %20 : vector<32x1xf32> to vector<32x1024xf32>
    %156 = arith.addf %154, %155 : vector<32x1024xf32>
    %157 = math.tanh %156 : vector<32x1024xf32>
    %158 = vector.broadcast %3 : vector<32x1xf32> to vector<32x1024xf32>
    %159 = arith.mulf %158, %157 : vector<32x1024xf32>
    %cst_58 = arith.constant dense<0.000000e+00> : vector<1024xf32>
    %160 = vector.multi_reduction <add>, %159, %cst_58 [0] : vector<32x1024xf32> to vector<1024xf32>
    %161 = vector.shape_cast %160 : vector<1024xf32> to vector<1x1024xf32>
    %162 = vector.broadcast %4 : vector<1x1xf32> to vector<1x1024xf32>
    %163 = arith.addf %161, %162 : vector<1x1024xf32>
    %c0_59 = arith.constant 0 : index
    %c3_60 = arith.constant 3 : index
    %c0_61 = arith.constant 0 : index
    %164 = vector.load %arg7[%c0_59, %c3_60, %c0_61] : memref<1x8x1024xf32, #tpu.memory_space<vmem>>, vector<1x1x1024xf32>
    %165 = vector.shape_cast %164 : vector<1x1x1024xf32> to vector<1x1024xf32>
    %166 = vector.shape_cast %163 : vector<1x1024xf32> to vector<1x1x1024xf32>
    tpu.vector_store %arg7[%c0_59, %c3_60, %c0_61], %166 {strides = array<i32>} : memref<1x8x1024xf32, #tpu.memory_space<vmem>>, vector<1x1x1024xf32>,
    %167 = vector.extract_strided_slice %22 {offsets = [4, 0], sizes = [1, 1024], strides = [1, 1]} : vector<8x1024xf32> to vector<1x1024xf32>
    %168 = vector.broadcast %0 : vector<32x1xf32> to vector<32x1024xf32>
    %169 = vector.broadcast %167 : vector<1x1024xf32> to vector<32x1024xf32>
    %170 = arith.mulf %168, %169 : vector<32x1024xf32>
    %171 = vector.broadcast %2 : vector<32x1xf32> to vector<32x1024xf32>
    %172 = arith.addf %170, %171 : vector<32x1024xf32>
    %173 = math.tanh %172 : vector<32x1024xf32>
    %174 = arith.truncf %173 : vector<32x1024xf32> to vector<32x1024xbf16>
    %cst_62 = arith.constant dense<0.000000e+00> : vector<32x1024xf32>
    %175 = tpu.matmul %6, %174, %cst_62 {dimension_numbers = #tpu.dot_dimension_numbers<[1], [0], [0], [1], [0, 0, 1, 1], [], []>} : vector<32x32xbf16>, vector<32x1024xbf16>, vector<32x1024xf32> -> vector<32x1024xf32>
    %176 = vector.broadcast %14 : vector<32x1xf32> to vector<32x1024xf32>
    %177 = arith.addf %175, %176 : vector<32x1024xf32>
    %178 = math.tanh %177 : vector<32x1024xf32>
    %179 = arith.truncf %178 : vector<32x1024xf32> to vector<32x1024xbf16>
    %cst_63 = arith.constant dense<0.000000e+00> : vector<32x1024xf32>
    %180 = tpu.matmul %8, %179, %cst_63 {dimension_numbers = #tpu.dot_dimension_numbers<[1], [0], [0], [1], [0, 0, 1, 1], [], []>} : vector<32x32xbf16>, vector<32x1024xbf16>, vector<32x1024xf32> -> vector<32x1024xf32>
    %181 = vector.broadcast %16 : vector<32x1xf32> to vector<32x1024xf32>
    %182 = arith.addf %180, %181 : vector<32x1024xf32>
    %183 = math.tanh %182 : vector<32x1024xf32>
    %184 = arith.truncf %183 : vector<32x1024xf32> to vector<32x1024xbf16>
    %cst_64 = arith.constant dense<0.000000e+00> : vector<32x1024xf32>
    %185 = tpu.matmul %10, %184, %cst_64 {dimension_numbers = #tpu.dot_dimension_numbers<[1], [0], [0], [1], [0, 0, 1, 1], [], []>} : vector<32x32xbf16>, vector<32x1024xbf16>, vector<32x1024xf32> -> vector<32x1024xf32>
    %186 = vector.broadcast %18 : vector<32x1xf32> to vector<32x1024xf32>
    %187 = arith.addf %185, %186 : vector<32x1024xf32>
    %188 = math.tanh %187 : vector<32x1024xf32>
    %189 = arith.truncf %188 : vector<32x1024xf32> to vector<32x1024xbf16>
    %cst_65 = arith.constant dense<0.000000e+00> : vector<32x1024xf32>
    %190 = tpu.matmul %12, %189, %cst_65 {dimension_numbers = #tpu.dot_dimension_numbers<[1], [0], [0], [1], [0, 0, 1, 1], [], []>} : vector<32x32xbf16>, vector<32x1024xbf16>, vector<32x1024xf32> -> vector<32x1024xf32>
    %191 = vector.broadcast %20 : vector<32x1xf32> to vector<32x1024xf32>
    %192 = arith.addf %190, %191 : vector<32x1024xf32>
    %193 = math.tanh %192 : vector<32x1024xf32>
    %194 = vector.broadcast %3 : vector<32x1xf32> to vector<32x1024xf32>
    %195 = arith.mulf %194, %193 : vector<32x1024xf32>
    %cst_66 = arith.constant dense<0.000000e+00> : vector<1024xf32>
    %196 = vector.multi_reduction <add>, %195, %cst_66 [0] : vector<32x1024xf32> to vector<1024xf32>
    %197 = vector.shape_cast %196 : vector<1024xf32> to vector<1x1024xf32>
    %198 = vector.broadcast %4 : vector<1x1xf32> to vector<1x1024xf32>
    %199 = arith.addf %197, %198 : vector<1x1024xf32>
    %c0_67 = arith.constant 0 : index
    %c4_68 = arith.constant 4 : index
    %c0_69 = arith.constant 0 : index
    %200 = vector.load %arg7[%c0_67, %c4_68, %c0_69] : memref<1x8x1024xf32, #tpu.memory_space<vmem>>, vector<1x1x1024xf32>
    %201 = vector.shape_cast %200 : vector<1x1x1024xf32> to vector<1x1024xf32>
    %202 = vector.shape_cast %199 : vector<1x1024xf32> to vector<1x1x1024xf32>
    tpu.vector_store %arg7[%c0_67, %c4_68, %c0_69], %202 {strides = array<i32>} : memref<1x8x1024xf32, #tpu.memory_space<vmem>>, vector<1x1x1024xf32>,
    %203 = vector.extract_strided_slice %22 {offsets = [5, 0], sizes = [1, 1024], strides = [1, 1]} : vector<8x1024xf32> to vector<1x1024xf32>
    %204 = vector.broadcast %0 : vector<32x1xf32> to vector<32x1024xf32>
    %205 = vector.broadcast %203 : vector<1x1024xf32> to vector<32x1024xf32>
    %206 = arith.mulf %204, %205 : vector<32x1024xf32>
    %207 = vector.broadcast %2 : vector<32x1xf32> to vector<32x1024xf32>
    %208 = arith.addf %206, %207 : vector<32x1024xf32>
    %209 = math.tanh %208 : vector<32x1024xf32>
    %210 = arith.truncf %209 : vector<32x1024xf32> to vector<32x1024xbf16>
    %cst_70 = arith.constant dense<0.000000e+00> : vector<32x1024xf32>
    %211 = tpu.matmul %6, %210, %cst_70 {dimension_numbers = #tpu.dot_dimension_numbers<[1], [0], [0], [1], [0, 0, 1, 1], [], []>} : vector<32x32xbf16>, vector<32x1024xbf16>, vector<32x1024xf32> -> vector<32x1024xf32>
    %212 = vector.broadcast %14 : vector<32x1xf32> to vector<32x1024xf32>
    %213 = arith.addf %211, %212 : vector<32x1024xf32>
    %214 = math.tanh %213 : vector<32x1024xf32>
    %215 = arith.truncf %214 : vector<32x1024xf32> to vector<32x1024xbf16>
    %cst_71 = arith.constant dense<0.000000e+00> : vector<32x1024xf32>
    %216 = tpu.matmul %8, %215, %cst_71 {dimension_numbers = #tpu.dot_dimension_numbers<[1], [0], [0], [1], [0, 0, 1, 1], [], []>} : vector<32x32xbf16>, vector<32x1024xbf16>, vector<32x1024xf32> -> vector<32x1024xf32>
    %217 = vector.broadcast %16 : vector<32x1xf32> to vector<32x1024xf32>
    %218 = arith.addf %216, %217 : vector<32x1024xf32>
    %219 = math.tanh %218 : vector<32x1024xf32>
    %220 = arith.truncf %219 : vector<32x1024xf32> to vector<32x1024xbf16>
    %cst_72 = arith.constant dense<0.000000e+00> : vector<32x1024xf32>
    %221 = tpu.matmul %10, %220, %cst_72 {dimension_numbers = #tpu.dot_dimension_numbers<[1], [0], [0], [1], [0, 0, 1, 1], [], []>} : vector<32x32xbf16>, vector<32x1024xbf16>, vector<32x1024xf32> -> vector<32x1024xf32>
    %222 = vector.broadcast %18 : vector<32x1xf32> to vector<32x1024xf32>
    %223 = arith.addf %221, %222 : vector<32x1024xf32>
    %224 = math.tanh %223 : vector<32x1024xf32>
    %225 = arith.truncf %224 : vector<32x1024xf32> to vector<32x1024xbf16>
    %cst_73 = arith.constant dense<0.000000e+00> : vector<32x1024xf32>
    %226 = tpu.matmul %12, %225, %cst_73 {dimension_numbers = #tpu.dot_dimension_numbers<[1], [0], [0], [1], [0, 0, 1, 1], [], []>} : vector<32x32xbf16>, vector<32x1024xbf16>, vector<32x1024xf32> -> vector<32x1024xf32>
    %227 = vector.broadcast %20 : vector<32x1xf32> to vector<32x1024xf32>
    %228 = arith.addf %226, %227 : vector<32x1024xf32>
    %229 = math.tanh %228 : vector<32x1024xf32>
    %230 = vector.broadcast %3 : vector<32x1xf32> to vector<32x1024xf32>
    %231 = arith.mulf %230, %229 : vector<32x1024xf32>
    %cst_74 = arith.constant dense<0.000000e+00> : vector<1024xf32>
    %232 = vector.multi_reduction <add>, %231, %cst_74 [0] : vector<32x1024xf32> to vector<1024xf32>
    %233 = vector.shape_cast %232 : vector<1024xf32> to vector<1x1024xf32>
    %234 = vector.broadcast %4 : vector<1x1xf32> to vector<1x1024xf32>
    %235 = arith.addf %233, %234 : vector<1x1024xf32>
    %c0_75 = arith.constant 0 : index
    %c5 = arith.constant 5 : index
    %c0_76 = arith.constant 0 : index
    %236 = vector.load %arg7[%c0_75, %c5, %c0_76] : memref<1x8x1024xf32, #tpu.memory_space<vmem>>, vector<1x1x1024xf32>
    %237 = vector.shape_cast %236 : vector<1x1x1024xf32> to vector<1x1024xf32>
    %238 = vector.shape_cast %235 : vector<1x1024xf32> to vector<1x1x1024xf32>
    tpu.vector_store %arg7[%c0_75, %c5, %c0_76], %238 {strides = array<i32>} : memref<1x8x1024xf32, #tpu.memory_space<vmem>>, vector<1x1x1024xf32>,
    %239 = vector.extract_strided_slice %22 {offsets = [6, 0], sizes = [1, 1024], strides = [1, 1]} : vector<8x1024xf32> to vector<1x1024xf32>
    %240 = vector.broadcast %0 : vector<32x1xf32> to vector<32x1024xf32>
    %241 = vector.broadcast %239 : vector<1x1024xf32> to vector<32x1024xf32>
    %242 = arith.mulf %240, %241 : vector<32x1024xf32>
    %243 = vector.broadcast %2 : vector<32x1xf32> to vector<32x1024xf32>
    %244 = arith.addf %242, %243 : vector<32x1024xf32>
    %245 = math.tanh %244 : vector<32x1024xf32>
    %246 = arith.truncf %245 : vector<32x1024xf32> to vector<32x1024xbf16>
    %cst_77 = arith.constant dense<0.000000e+00> : vector<32x1024xf32>
    %247 = tpu.matmul %6, %246, %cst_77 {dimension_numbers = #tpu.dot_dimension_numbers<[1], [0], [0], [1], [0, 0, 1, 1], [], []>} : vector<32x32xbf16>, vector<32x1024xbf16>, vector<32x1024xf32> -> vector<32x1024xf32>
    %248 = vector.broadcast %14 : vector<32x1xf32> to vector<32x1024xf32>
    %249 = arith.addf %247, %248 : vector<32x1024xf32>
    %250 = math.tanh %249 : vector<32x1024xf32>
    %251 = arith.truncf %250 : vector<32x1024xf32> to vector<32x1024xbf16>
    %cst_78 = arith.constant dense<0.000000e+00> : vector<32x1024xf32>
    %252 = tpu.matmul %8, %251, %cst_78 {dimension_numbers = #tpu.dot_dimension_numbers<[1], [0], [0], [1], [0, 0, 1, 1], [], []>} : vector<32x32xbf16>, vector<32x1024xbf16>, vector<32x1024xf32> -> vector<32x1024xf32>
    %253 = vector.broadcast %16 : vector<32x1xf32> to vector<32x1024xf32>
    %254 = arith.addf %252, %253 : vector<32x1024xf32>
    %255 = math.tanh %254 : vector<32x1024xf32>
    %256 = arith.truncf %255 : vector<32x1024xf32> to vector<32x1024xbf16>
    %cst_79 = arith.constant dense<0.000000e+00> : vector<32x1024xf32>
    %257 = tpu.matmul %10, %256, %cst_79 {dimension_numbers = #tpu.dot_dimension_numbers<[1], [0], [0], [1], [0, 0, 1, 1], [], []>} : vector<32x32xbf16>, vector<32x1024xbf16>, vector<32x1024xf32> -> vector<32x1024xf32>
    %258 = vector.broadcast %18 : vector<32x1xf32> to vector<32x1024xf32>
    %259 = arith.addf %257, %258 : vector<32x1024xf32>
    %260 = math.tanh %259 : vector<32x1024xf32>
    %261 = arith.truncf %260 : vector<32x1024xf32> to vector<32x1024xbf16>
    %cst_80 = arith.constant dense<0.000000e+00> : vector<32x1024xf32>
    %262 = tpu.matmul %12, %261, %cst_80 {dimension_numbers = #tpu.dot_dimension_numbers<[1], [0], [0], [1], [0, 0, 1, 1], [], []>} : vector<32x32xbf16>, vector<32x1024xbf16>, vector<32x1024xf32> -> vector<32x1024xf32>
    %263 = vector.broadcast %20 : vector<32x1xf32> to vector<32x1024xf32>
    %264 = arith.addf %262, %263 : vector<32x1024xf32>
    %265 = math.tanh %264 : vector<32x1024xf32>
    %266 = vector.broadcast %3 : vector<32x1xf32> to vector<32x1024xf32>
    %267 = arith.mulf %266, %265 : vector<32x1024xf32>
    %cst_81 = arith.constant dense<0.000000e+00> : vector<1024xf32>
    %268 = vector.multi_reduction <add>, %267, %cst_81 [0] : vector<32x1024xf32> to vector<1024xf32>
    %269 = vector.shape_cast %268 : vector<1024xf32> to vector<1x1024xf32>
    %270 = vector.broadcast %4 : vector<1x1xf32> to vector<1x1024xf32>
    %271 = arith.addf %269, %270 : vector<1x1024xf32>
    %c0_82 = arith.constant 0 : index
    %c6 = arith.constant 6 : index
    %c0_83 = arith.constant 0 : index
    %272 = vector.load %arg7[%c0_82, %c6, %c0_83] : memref<1x8x1024xf32, #tpu.memory_space<vmem>>, vector<1x1x1024xf32>
    %273 = vector.shape_cast %272 : vector<1x1x1024xf32> to vector<1x1024xf32>
    %274 = vector.shape_cast %271 : vector<1x1024xf32> to vector<1x1x1024xf32>
    tpu.vector_store %arg7[%c0_82, %c6, %c0_83], %274 {strides = array<i32>} : memref<1x8x1024xf32, #tpu.memory_space<vmem>>, vector<1x1x1024xf32>,
    %275 = vector.extract_strided_slice %22 {offsets = [7, 0], sizes = [1, 1024], strides = [1, 1]} : vector<8x1024xf32> to vector<1x1024xf32>
    %276 = vector.broadcast %0 : vector<32x1xf32> to vector<32x1024xf32>
    %277 = vector.broadcast %275 : vector<1x1024xf32> to vector<32x1024xf32>
    %278 = arith.mulf %276, %277 : vector<32x1024xf32>
    %279 = vector.broadcast %2 : vector<32x1xf32> to vector<32x1024xf32>
    %280 = arith.addf %278, %279 : vector<32x1024xf32>
    %281 = math.tanh %280 : vector<32x1024xf32>
    %282 = arith.truncf %281 : vector<32x1024xf32> to vector<32x1024xbf16>
    %cst_84 = arith.constant dense<0.000000e+00> : vector<32x1024xf32>
    %283 = tpu.matmul %6, %282, %cst_84 {dimension_numbers = #tpu.dot_dimension_numbers<[1], [0], [0], [1], [0, 0, 1, 1], [], []>} : vector<32x32xbf16>, vector<32x1024xbf16>, vector<32x1024xf32> -> vector<32x1024xf32>
    %284 = vector.broadcast %14 : vector<32x1xf32> to vector<32x1024xf32>
    %285 = arith.addf %283, %284 : vector<32x1024xf32>
    %286 = math.tanh %285 : vector<32x1024xf32>
    %287 = arith.truncf %286 : vector<32x1024xf32> to vector<32x1024xbf16>
    %cst_85 = arith.constant dense<0.000000e+00> : vector<32x1024xf32>
    %288 = tpu.matmul %8, %287, %cst_85 {dimension_numbers = #tpu.dot_dimension_numbers<[1], [0], [0], [1], [0, 0, 1, 1], [], []>} : vector<32x32xbf16>, vector<32x1024xbf16>, vector<32x1024xf32> -> vector<32x1024xf32>
    %289 = vector.broadcast %16 : vector<32x1xf32> to vector<32x1024xf32>
    %290 = arith.addf %288, %289 : vector<32x1024xf32>
    %291 = math.tanh %290 : vector<32x1024xf32>
    %292 = arith.truncf %291 : vector<32x1024xf32> to vector<32x1024xbf16>
    %cst_86 = arith.constant dense<0.000000e+00> : vector<32x1024xf32>
    %293 = tpu.matmul %10, %292, %cst_86 {dimension_numbers = #tpu.dot_dimension_numbers<[1], [0], [0], [1], [0, 0, 1, 1], [], []>} : vector<32x32xbf16>, vector<32x1024xbf16>, vector<32x1024xf32> -> vector<32x1024xf32>
    %294 = vector.broadcast %18 : vector<32x1xf32> to vector<32x1024xf32>
    %295 = arith.addf %293, %294 : vector<32x1024xf32>
    %296 = math.tanh %295 : vector<32x1024xf32>
    %297 = arith.truncf %296 : vector<32x1024xf32> to vector<32x1024xbf16>
    %cst_87 = arith.constant dense<0.000000e+00> : vector<32x1024xf32>
    %298 = tpu.matmul %12, %297, %cst_87 {dimension_numbers = #tpu.dot_dimension_numbers<[1], [0], [0], [1], [0, 0, 1, 1], [], []>} : vector<32x32xbf16>, vector<32x1024xbf16>, vector<32x1024xf32> -> vector<32x1024xf32>
    %299 = vector.broadcast %20 : vector<32x1xf32> to vector<32x1024xf32>
    %300 = arith.addf %298, %299 : vector<32x1024xf32>
    %301 = math.tanh %300 : vector<32x1024xf32>
    %302 = vector.broadcast %3 : vector<32x1xf32> to vector<32x1024xf32>
    %303 = arith.mulf %302, %301 : vector<32x1024xf32>
    %cst_88 = arith.constant dense<0.000000e+00> : vector<1024xf32>
    %304 = vector.multi_reduction <add>, %303, %cst_88 [0] : vector<32x1024xf32> to vector<1024xf32>
    %305 = vector.shape_cast %304 : vector<1024xf32> to vector<1x1024xf32>
    %306 = vector.broadcast %4 : vector<1x1xf32> to vector<1x1024xf32>
    %307 = arith.addf %305, %306 : vector<1x1024xf32>
    %c0_89 = arith.constant 0 : index
    %c7 = arith.constant 7 : index
    %c0_90 = arith.constant 0 : index
    %308 = vector.load %arg7[%c0_89, %c7, %c0_90] : memref<1x8x1024xf32, #tpu.memory_space<vmem>>, vector<1x1x1024xf32>
    %309 = vector.shape_cast %308 : vector<1x1x1024xf32> to vector<1x1024xf32>
    %310 = vector.shape_cast %307 : vector<1x1024xf32> to vector<1x1x1024xf32>
    tpu.vector_store %arg7[%c0_89, %c7, %c0_90], %310 {strides = array<i32>} : memref<1x8x1024xf32, #tpu.memory_space<vmem>>, vector<1x1x1024xf32>,
    return
  }
  func.func @transform_0(%arg0: i32) -> (i32, i32, i32) {
    %c0_i32 = arith.constant 0 : i32
    %c0_i32_0 = arith.constant 0 : i32
    %c0_i32_1 = arith.constant 0 : i32
    return %arg0, %c0_i32, %c0_i32_0 : i32, i32, i32
  }
  func.func @transform_1(%arg0: i32) -> (i32, i32) {
    %c0_i32 = arith.constant 0 : i32
    %c0_i32_0 = arith.constant 0 : i32
    %c0_i32_1 = arith.constant 0 : i32
    return %c0_i32, %c0_i32_0 : i32, i32
  }
  func.func @transform_2(%arg0: i32) -> (i32, i32, i32) {
    %c0_i32 = arith.constant 0 : i32
    %c0_i32_0 = arith.constant 0 : i32
    %c0_i32_1 = arith.constant 0 : i32
    %c0_i32_2 = arith.constant 0 : i32
    return %c0_i32, %c0_i32_0, %c0_i32_1 : i32, i32, i32
  }
  func.func @transform_3(%arg0: i32) -> (i32, i32, i32) {
    %c0_i32 = arith.constant 0 : i32
    %c0_i32_0 = arith.constant 0 : i32
    %c0_i32_1 = arith.constant 0 : i32
    %c0_i32_2 = arith.constant 0 : i32
    return %c0_i32, %c0_i32_0, %c0_i32_1 : i32, i32, i32
  }
  func.func @transform_4(%arg0: i32) -> (i32, i32) {
    %c0_i32 = arith.constant 0 : i32
    %c0_i32_0 = arith.constant 0 : i32
    %c0_i32_1 = arith.constant 0 : i32
    return %c0_i32, %c0_i32_0 : i32, i32
  }
  func.func @transform_5(%arg0: i32) -> (i32, i32) {
    %c0_i32 = arith.constant 0 : i32
    %c0_i32_0 = arith.constant 0 : i32
    %c0_i32_1 = arith.constant 0 : i32
    return %c0_i32, %c0_i32_0 : i32, i32
  }
  func.func @transform_6(%arg0: i32) -> (i32, i32, i32) {
    %c0_i32 = arith.constant 0 : i32
    %c0_i32_0 = arith.constant 0 : i32
    %c0_i32_1 = arith.constant 0 : i32
    return %arg0, %c0_i32, %c0_i32_0 : i32, i32, i32
  }
}

</mosaic_0001>

<llo_original>
// kernel: pinn_forward.1
$region0: #{pinn_forward.1}
  #allocation0 [shape = 'u32[]', space=smem, size = 0x4, offset = 0x4, fixed_abs, tag = 'smem constant byte address 0x4 - core index']
  #allocation1 [shape = 'u32[144,128]{1,0:T(1,128)}', space=vmem, size = 0x12000, scoped, tag = 'internal scratch']
  #allocation2 [shape = 'f32[1,1]{1,0:T(1,128)S(1)}', space=vmem, size = 0x200, scoped, tag = 'scoped memory for pinn_forward.1']
  %s0 = inlined_call_operand.vmem [shape: f32[2,8,1024], index: 0, kind: input, shape index: {}]
  %s1 = inlined_call_operand.vmem [shape: f32[32,1], index: 1, kind: input, shape index: {}]
  %s2 = inlined_call_operand.vmem [shape: bf16[4,32,32], index: 2, kind: input, shape index: {}]
  %s3 = inlined_call_operand.vmem [shape: f32[5,32,1], index: 3, kind: input, shape index: {}]
  %s4 = inlined_call_operand.vmem [shape: f32[32,1], index: 4, kind: input, shape index: {}]
  %s5 = inlined_call_operand.<no memory space> [shape: f32[1,1], index: 5, kind: input, shape index: {}]
  %s6 = inlined_call_operand.vmem [shape: f32[2,8,1024], index: 6, kind: output, shape index: {}]
  %s7 = sld [smem:[#allocation0]]
  $region57: #{pinn_forward.1} parent=0
    _
  %s9 = ssub.s32 1, %s7
  %s10 = scalar_select 0, %s9, %s7
  %v11 = vstv %s5
  %12 = vst [vmem:[#allocation2] sm:$0x1] %v11
  loop: start=0, step=1, limit=4
  $region2: #{pinn_forward.1} parent=0 // loop_pre_header
    _
  $region3: #{pinn_forward.1} parent=0 // loop_header
    %s14 = sphi 0, %s18
    %p15 = scmp.ge.s32.totalorder %s14, 4
    %s24 = sphi 0, %s26
    %s27 = sphi 0, %s24
    %s28 = sphi 0, %s27
    %s44 = sphi 0, %s28
    %s48 = sphi 0, %s48
    %s50 = sphi 0, %s48
    %s51 = sphi 0, %s50
    %s65 = sphi 0, %s51
    %s69 = sphi 0, %s69
    %s71 = sphi 0, %s69
    %s72 = sphi 0, %s71
    %s86 = sphi 0, %s72
    %s90 = sphi 0, %s90
    %s92 = sphi 0, %s90
    %s93 = sphi 0, %s92
    %s107 = sphi 0, %s93
    %s111 = sphi 0, %s111
    %s113 = sphi 0, %s111
    %s114 = sphi 0, %s113
    %s128 = sphi 0, %s114
    %s132 = sphi 0, %s132
    %s134 = sphi 0, %s132
    %s135 = sphi 0, %s134
    %s149 = sphi 0, %s135
    %s155 = sphi 0, %s157
    %s158 = sphi 0, %s155
    %s159 = sphi 0, %s158
    %s175 = sphi 0, %s159
  $region4: #{pinn_forward.1} parent=0 // loop_header_branch
    %17 = sbr.rel (%p15) target = $region8
  $region5: #{pinn_forward.1} parent=0 // loop_body
    %s19 = ssub.s32 %s14, 1
    %s20 = ssub.s32 %s14, 2
    %s21 = sadd.s32 %s14, 1
    %s22 = ssub.s32 %s14, %s21
    %p23 = scmp.eq.s32.totalorder %s22, 0
    %s25 = sadd.s32 %s24, 1
    %s26 = scalar_select %p23, %s24, %s25
    %p29 = pneg %p23
    %p30 = scmp.eq.s32.totalorder %s14, 1
    %p31 = por %p29, %p30
    %p32 = scmp.ne.s32.totalorder %s24, %s27
    %p33 = scmp.eq.s32.totalorder %s14, 0
    %p34 = por %p32, %p33
    %p35 = scmp.ne.s32.totalorder %s24, %s27
    %p36 = scmp.eq.s32.totalorder %s19, 1
    %p37 = por %p35, %p36
    %p38 = scmp.ne.s32.totalorder %s27, %s28
    %p39 = scmp.eq.s32.totalorder %s19, 0
    %p40 = por %p38, %p39
    %p41 = scmp.ne.s32.totalorder %s27, %s28
    %p42 = scmp.eq.s32.totalorder %s20, 1
    %p43 = por %p41, %p42
    %p45 = scmp.ne.s32.totalorder %s28, %s44
    %p46 = scmp.eq.s32.totalorder %s20, 0
    %p47 = por %p45, %p46
    %s49 = sadd.s32 %s48, 1
    %p52 = scmp.eq.s32.totalorder %s14, 1
    %p53 = scmp.ne.s32.totalorder %s48, %s50
    %p54 = scmp.eq.s32.totalorder %s14, 0
    %p55 = por %p53, %p54
    %p56 = scmp.ne.s32.totalorder %s48, %s50
    %p57 = scmp.eq.s32.totalorder %s19, 1
    %p58 = por %p56, %p57
    %p59 = scmp.ne.s32.totalorder %s50, %s51
    %p60 = scmp.eq.s32.totalorder %s19, 0
    %p61 = por %p59, %p60
    %p62 = scmp.ne.s32.totalorder %s50, %s51
    %p63 = scmp.eq.s32.totalorder %s20, 1
    %p64 = por %p62, %p63
    %p66 = scmp.ne.s32.totalorder %s51, %s65
    %p67 = scmp.eq.s32.totalorder %s20, 0
    %p68 = por %p66, %p67
    %s70 = sadd.s32 %s69, 1
    %p73 = scmp.eq.s32.totalorder %s14, 1
    %p74 = scmp.ne.s32.totalorder %s69, %s71
    %p75 = scmp.eq.s32.totalorder %s14, 0
    %p76 = por %p74, %p75
    %p77 = scmp.ne.s32.totalorder %s69, %s71
    %p78 = scmp.eq.s32.totalorder %s19, 1
    %p79 = por %p77, %p78
    %p80 = scmp.ne.s32.totalorder %s71, %s72
    %p81 = scmp.eq.s32.totalorder %s19, 0
    %p82 = por %p80, %p81
    %p83 = scmp.ne.s32.totalorder %s71, %s72
    %p84 = scmp.eq.s32.totalorder %s20, 1
    %p85 = por %p83, %p84
    %p87 = scmp.ne.s32.totalorder %s72, %s86
    %p88 = scmp.eq.s32.totalorder %s20, 0
    %p89 = por %p87, %p88
    %s91 = sadd.s32 %s90, 1
    %p94 = scmp.eq.s32.totalorder %s14, 1
    %p95 = scmp.ne.s32.totalorder %s90, %s92
    %p96 = scmp.eq.s32.totalorder %s14, 0
    %p97 = por %p95, %p96
    %p98 = scmp.ne.s32.totalorder %s90, %s92
    %p99 = scmp.eq.s32.totalorder %s19, 1
    %p100 = por %p98, %p99
    %p101 = scmp.ne.s32.totalorder %s92, %s93
    %p102 = scmp.eq.s32.totalorder %s19, 0
    %p103 = por %p101, %p102
    %p104 = scmp.ne.s32.totalorder %s92, %s93
    %p105 = scmp.eq.s32.totalorder %s20, 1
    %p106 = por %p104, %p105
    %p108 = scmp.ne.s32.totalorder %s93, %s107
    %p109 = scmp.eq.s32.totalorder %s20, 0
    %p110 = por %p108, %p109
    %s112 = sadd.s32 %s111, 1
    %p115 = scmp.eq.s32.totalorder %s14, 1
    %p116 = scmp.ne.s32.totalorder %s111, %s113
    %p117 = scmp.eq.s32.totalorder %s14, 0
    %p118 = por %p116, %p117
    %p119 = scmp.ne.s32.totalorder %s111, %s113
    %p120 = scmp.eq.s32.totalorder %s19, 1
    %p121 = por %p119, %p120
    %p122 = scmp.ne.s32.totalorder %s113, %s114
    %p123 = scmp.eq.s32.totalorder %s19, 0
    %p124 = por %p122, %p123
    %p125 = scmp.ne.s32.totalorder %s113, %s114
    %p126 = scmp.eq.s32.totalorder %s20, 1
    %p127 = por %p125, %p126
    %p129 = scmp.ne.s32.totalorder %s114, %s128
    %p130 = scmp.eq.s32.totalorder %s20, 0
    %p131 = por %p129, %p130
    %s133 = sadd.s32 %s132, 1
    %p136 = scmp.eq.s32.totalorder %s14, 1
    %p137 = scmp.ne.s32.totalorder %s132, %s134
    %p138 = scmp.eq.s32.totalorder %s14, 0
    %p139 = por %p137, %p138
    %p140 = scmp.ne.s32.totalorder %s132, %s134
    %p141 = scmp.eq.s32.totalorder %s19, 1
    %p142 = por %p140, %p141
    %p143 = scmp.ne.s32.totalorder %s134, %s135
    %p144 = scmp.eq.s32.totalorder %s19, 0
    %p145 = por %p143, %p144
    %p146 = scmp.ne.s32.totalorder %s134, %s135
    %p147 = scmp.eq.s32.totalorder %s20, 1
    %p148 = por %p146, %p147
    %p150 = scmp.ne.s32.totalorder %s135, %s149
    %p151 = scmp.eq.s32.totalorder %s20, 0
    %p152 = por %p150, %p151
    %s153 = ssub.s32 %s14, %s21
    %p154 = scmp.eq.s32.totalorder %s153, 0
    %s156 = sadd.s32 %s155, 1
    %s157 = scalar_select %p154, %s155, %s156
    %p160 = pneg %p154
    %p161 = scmp.eq.s32.totalorder %s14, 1
    %p162 = por %p160, %p161
    %p163 = scmp.ne.s32.totalorder %s155, %s158
    %p164 = scmp.eq.s32.totalorder %s14, 0
    %p165 = por %p163, %p164
    %p166 = scmp.ne.s32.totalorder %s155, %s158
    %p167 = scmp.eq.s32.totalorder %s19, 1
    %p168 = por %p166, %p167
    %p169 = scmp.ne.s32.totalorder %s158, %s159
    %p170 = scmp.eq.s32.totalorder %s19, 0
    %p171 = por %p169, %p170
    %p172 = scmp.ne.s32.totalorder %s158, %s159
    %p173 = scmp.eq.s32.totalorder %s20, 1
    %p174 = por %p172, %p173
    %p176 = scmp.ne.s32.totalorder %s159, %s175
    %p177 = scmp.eq.s32.totalorder %s20, 0
    %p178 = por %p176, %p177
    %p179 = scmp.le.s32.totalorder 1, %s14
    %p180 = scmp.lt.s32.totalorder %s14, 3
    %p181 = pnand %p179, %p180
    %p182 = pneg %p181
    // Predicated region
    $region9: #{pinn_forward.1} parent=5 // pred_check
      _
    $region10: #{pinn_forward.1} parent=5 // pred_check_branch
      %184 = sbr.rel (%p181) target = $region12
    $region11: #{pinn_forward.1} parent=5 // pred_region
      %s185 = ssub.s32 %s14, 1
      // Predicated region
      $region13: #{pinn_forward.1} parent=11 // pred_check
        %p186 = pneg %p61
      $region14: #{pinn_forward.1} parent=11 // pred_check_branch
        %188 = sbr.rel (%p186) target = $region16
      $region15: #{pinn_forward.1} parent=11 // pred_region
        _
      $region16: #{pinn_forward.1} parent=11 // pred_fallthru
        _
      // Predicated region
      $region17: #{pinn_forward.1} parent=11 // pred_check
        %p189 = pneg %p82
      $region18: #{pinn_forward.1} parent=11 // pred_check_branch
        %191 = sbr.rel (%p189) target = $region20
      $region19: #{pinn_forward.1} parent=11 // pred_region
        _
      $region20: #{pinn_forward.1} parent=11 // pred_fallthru
        _
      // Predicated region
      $region21: #{pinn_forward.1} parent=11 // pred_check
        %p192 = pneg %p103
      $region22: #{pinn_forward.1} parent=11 // pred_check_branch
        %194 = sbr.rel (%p192) target = $region24
      $region23: #{pinn_forward.1} parent=11 // pred_region
        _
      $region24: #{pinn_forward.1} parent=11 // pred_fallthru
        _
      // Predicated region
      $region25: #{pinn_forward.1} parent=11 // pred_check
        %p195 = pneg %p124
      $region26: #{pinn_forward.1} parent=11 // pred_check_branch
        %197 = sbr.rel (%p195) target = $region28
      $region27: #{pinn_forward.1} parent=11 // pred_region
        _
      $region28: #{pinn_forward.1} parent=11 // pred_fallthru
        _
      // Predicated region
      $region29: #{pinn_forward.1} parent=11 // pred_check
        %p198 = pneg %p145
      $region30: #{pinn_forward.1} parent=11 // pred_check_branch
        %200 = sbr.rel (%p198) target = $region32
      $region31: #{pinn_forward.1} parent=11 // pred_region
        _
      $region32: #{pinn_forward.1} parent=11 // pred_fallthru
        _
    $region12: #{pinn_forward.1} parent=5 // pred_fallthru
      _
    %p201 = scmp.lt.s32.totalorder %s14, 2
    // Predicated region
    $region33: #{pinn_forward.1} parent=5 // pred_check
      %p202 = pneg %p201
    $region34: #{pinn_forward.1} parent=5 // pred_check_branch
      %204 = sbr.rel (%p202) target = $region36
    $region35: #{pinn_forward.1} parent=5 // pred_region
      // Predicated region
      $region37: #{pinn_forward.1} parent=35 // pred_check
        %p205 = pneg %p34
      $region38: #{pinn_forward.1} parent=35 // pred_check_branch
        %207 = sbr.rel (%p205) target = $region40
      $region39: #{pinn_forward.1} parent=35 // pred_region
        %p208 = scmp.lt.s32.totalorder %s14, 1
        %s209 = scalar_select %p208, %s14, 1
        %s210 = smul.addr %s209, 8
        %s211 = smul.addr %s210, 8
        %s212 = scalar_lea.vmem %s0, %s211
      $region40: #{pinn_forward.1} parent=35 // pred_fallthru
        _
    $region36: #{pinn_forward.1} parent=5 // pred_fallthru
      _
    %p213 = scmp.le.s32.totalorder 1, %s14
    %p214 = scmp.lt.s32.totalorder %s14, 3
    %p215 = pnand %p213, %p214
    %p216 = pneg %p215
    // Predicated region
    $region41: #{pinn_forward.1} parent=5 // pred_check
      _
    $region42: #{pinn_forward.1} parent=5 // pred_check_branch
      %218 = sbr.rel (%p215) target = $region44
    $region43: #{pinn_forward.1} parent=5 // pred_region
      %s219 = ssub.s32 %s14, 1
      %p220 = scmp.lt.s32.totalorder %s19, 1
      %s221 = scalar_select %p220, %s19, 1
      %s222 = smul.addr %s221, 8
      %s223 = smul.addr %s222, 8
      %s224 = scalar_lea.vmem %s0, %s223
      %p225 = pneg %p40
      %p226 = pneg %p37
      %p227 = pneg %p61
      %p228 = pneg %p58
      %p229 = pneg %p82
      %p230 = pneg %p79
      %p231 = pneg %p103
      %p232 = pneg %p100
      %p233 = pneg %p124
      %p234 = pneg %p121
      %p235 = pneg %p145
      %p236 = pneg %p142
      %p237 = pneg %p171
      %p238 = pneg %p168
      %p239 = scmp.lt.s32.totalorder %s19, 1
      %s240 = scalar_select %p239, %s19, 1
      %s241 = smul.addr %s240, 8
      %s242 = smul.addr %s241, 8
      %s243 = scalar_lea.vmem %s6, %s242
      %p244 = scmp.lt.s32.totalorder %s19, 1
      %s245 = scalar_select %p244, %s19, 1
      %s246 = smul.addr %s245, 8
      %s247 = smul.addr %s246, 8
      %s248 = scalar_lea.vmem %s0, %s247
      %p249 = scmp.lt.s32.totalorder %s19, 1
      %s250 = scalar_select %p249, %s19, 1
      %s251 = smul.addr %s250, 8
      %s252 = smul.addr %s251, 8
      %s253 = scalar_lea.vmem %s6, %s252
      %v255 = vld [vmem:[%s1] sm:$0xff]
      %v256 = vld [vmem:[%s1 + $0x8] sm:$0xff]
      %v257 = vld [vmem:[%s1 + $0x10] sm:$0xff]
      %v258 = vld [vmem:[%s1 + $0x18] sm:$0xff]
      %v259 = vld [vmem:[%s3] sm:$0xff]
      %v260 = vld [vmem:[%s3 + $0x8] sm:$0xff]
      %v261 = vld [vmem:[%s3 + $0x10] sm:$0xff]
      %v262 = vld [vmem:[%s3 + $0x18] sm:$0xff]
      %v263 = vld [vmem:[%s4] sm:$0xff]
      %v264 = vld [vmem:[%s4 + $0x8] sm:$0xff]
      %v265 = vld [vmem:[%s4 + $0x10] sm:$0xff]
      %v266 = vld [vmem:[%s4 + $0x18] sm:$0xff]
      %v267 = vld [vmem:[#allocation2] sm:$0x1]
      %v268 = vld [vmem:[%s2] sm:$0xf]
      %v269 = vld [vmem:[%s2 + $0x4] sm:$0xf]
      %v270 = vld [vmem:[%s2 + $0x8] sm:$0xf]
      %v271 = vld [vmem:[%s2 + $0xc] sm:$0xf]
      %s272 = scalar_lea.vmem %s2, 16
      %v273 = vld [vmem:[%s272] sm:$0xf]
      %v274 = vld [vmem:[%s272 + $0x4] sm:$0xf]
      %v275 = vld [vmem:[%s272 + $0x8] sm:$0xf]
      %v276 = vld [vmem:[%s272 + $0xc] sm:$0xf]
      %s277 = scalar_lea.vmem %s2, 32
      %v278 = vld [vmem:[%s277] sm:$0xf]
      %v279 = vld [vmem:[%s277 + $0x4] sm:$0xf]
      %v280 = vld [vmem:[%s277 + $0x8] sm:$0xf]
      %v281 = vld [vmem:[%s277 + $0xc] sm:$0xf]
      %s282 = scalar_lea.vmem %s2, 48
      %v283 = vld [vmem:[%s282] sm:$0xf]
      %v284 = vld [vmem:[%s282 + $0x4] sm:$0xf]
      %v285 = vld [vmem:[%s282 + $0x8] sm:$0xf]
      %v286 = vld [vmem:[%s282 + $0xc] sm:$0xf]
      %s287 = scalar_lea.vmem %s3, 32
      %v288 = vld [vmem:[%s287] sm:$0xff]
      %v289 = vld [vmem:[%s287 + $0x8] sm:$0xff]
      %v290 = vld [vmem:[%s287 + $0x10] sm:$0xff]
      %v291 = vld [vmem:[%s287 + $0x18] sm:$0xff]
      %s292 = scalar_lea.vmem %s3, 64
      %v293 = vld [vmem:[%s292] sm:$0xff]
      %v294 = vld [vmem:[%s292 + $0x8] sm:$0xff]
      %v295 = vld [vmem:[%s292 + $0x10] sm:$0xff]
      %v296 = vld [vmem:[%s292 + $0x18] sm:$0xff]
      %s297 = scalar_lea.vmem %s3, 96
      %v298 = vld [vmem:[%s297] sm:$0xff]
      %v299 = vld [vmem:[%s297 + $0x8] sm:$0xff]
      %v300 = vld [vmem:[%s297 + $0x10] sm:$0xff]
      %v301 = vld [vmem:[%s297 + $0x18] sm:$0xff]
      %s302 = scalar_lea.vmem %s3, 128
      %v303 = vld [vmem:[%s302] sm:$0xff]
      %v304 = vld [vmem:[%s302 + $0x8] sm:$0xff]
      %v305 = vld [vmem:[%s302 + $0x10] sm:$0xff]
      %v306 = vld [vmem:[%s302 + $0x18] sm:$0xff]
      %v307 = vld [vmem:[%s248] sm:$0xff]
      %v308 = vld [vmem:[%s248 + $0x8] sm:$0xff]
      %v309 = vld [vmem:[%s248 + $0x10] sm:$0xff]
      %v310 = vld [vmem:[%s248 + $0x18] sm:$0xff]
      %v311 = vld [vmem:[%s248 + $0x20] sm:$0xff]
      %v312 = vld [vmem:[%s248 + $0x28] sm:$0xff]
      %v313 = vld [vmem:[%s248 + $0x30] sm:$0xff]
      %v314 = vld [vmem:[%s248 + $0x38] sm:$0xff]
      %316 = vset.pattern.permute.xlu0 0
      %317 = vperm.xlu0 %316, %v255
      %v318 = vpop.permute.xlu0 %317
      %321 = vset.pattern.permute.xlu0 0
      %322 = vperm.xlu0 %321, %v256
      %v323 = vpop.permute.xlu0 %322
      %326 = vset.pattern.permute.xlu0 0
      %327 = vperm.xlu0 %326, %v257
      %v328 = vpop.permute.xlu0 %327
      %331 = vset.pattern.permute.xlu0 0
      %332 = vperm.xlu0 %331, %v258
      %v333 = vpop.permute.xlu0 %332
      %v335 = vlaneseq
      %v336 = vshrl.u32 %v335, 7
      %v337 = vsub.s32 0, %v336
      %v338 = vrot.slane %v307, %v337
      %v339 = vlaneseq
      %v340 = vshrl.u32 %v339, 7
      %v341 = vsub.s32 0, %v340
      %v342 = vrot.slane %v308, %v341
      %v343 = vlaneseq
      %v344 = vshrl.u32 %v343, 7
      %v345 = vsub.s32 0, %v344
      %v346 = vrot.slane %v309, %v345
      %v347 = vlaneseq
      %v348 = vshrl.u32 %v347, 7
      %v349 = vsub.s32 0, %v348
      %v350 = vrot.slane %v310, %v349
      %v351 = vlaneseq
      %v352 = vshrl.u32 %v351, 7
      %v353 = vsub.s32 0, %v352
      %v354 = vrot.slane %v311, %v353
      %v355 = vlaneseq
      %v356 = vshrl.u32 %v355, 7
      %v357 = vsub.s32 0, %v356
      %v358 = vrot.slane %v312, %v357
      %v359 = vlaneseq
      %v360 = vshrl.u32 %v359, 7
      %v361 = vsub.s32 0, %v360
      %v362 = vrot.slane %v313, %v361
      %v363 = vlaneseq
      %v364 = vshrl.u32 %v363, 7
      %v365 = vsub.s32 0, %v364
      %v366 = vrot.slane %v314, %v365
      %v367 = vmul.f32 %v318, %v338
      %v368 = vmul.f32 %v318, %v342
      %v369 = vmul.f32 %v318, %v346
      %v370 = vmul.f32 %v318, %v350
      %v371 = vmul.f32 %v318, %v354
      %v372 = vmul.f32 %v318, %v358
      %v373 = vmul.f32 %v318, %v362
      %v374 = vmul.f32 %v318, %v366
      %v375 = vmul.f32 %v323, %v338
      %v376 = vmul.f32 %v323, %v342
      %v377 = vmul.f32 %v323, %v346
      %v378 = vmul.f32 %v323, %v350
      %v379 = vmul.f32 %v323, %v354
      %v380 = vmul.f32 %v323, %v358
      %v381 = vmul.f32 %v323, %v362
      %v382 = vmul.f32 %v323, %v366
      %v383 = vmul.f32 %v328, %v338
      %v384 = vmul.f32 %v328, %v342
      %v385 = vmul.f32 %v328, %v346
      %v386 = vmul.f32 %v328, %v350
      %v387 = vmul.f32 %v328, %v354
      %v388 = vmul.f32 %v328, %v358
      %v389 = vmul.f32 %v328, %v362
      %v390 = vmul.f32 %v328, %v366
      %v391 = vmul.f32 %v333, %v338
      %v392 = vmul.f32 %v333, %v342
      %v393 = vmul.f32 %v333, %v346
      %v394 = vmul.f32 %v333, %v350
      %v395 = vmul.f32 %v333, %v354
      %v396 = vmul.f32 %v333, %v358
      %v397 = vmul.f32 %v333, %v362
      %v398 = vmul.f32 %v333, %v366
      %400 = vset.pattern.permute.xlu0 0
      %401 = vperm.xlu0 %400, %v259
      %v402 = vpop.permute.xlu0 %401
      %405 = vset.pattern.permute.xlu0 0
      %406 = vperm.xlu0 %405, %v260
      %v407 = vpop.permute.xlu0 %406
      %410 = vset.pattern.permute.xlu0 0
      %411 = vperm.xlu0 %410, %v261
      %v412 = vpop.permute.xlu0 %411
      %415 = vset.pattern.permute.xlu0 0
      %416 = vperm.xlu0 %415, %v262
      %v417 = vpop.permute.xlu0 %416
      %v419 = vadd.f32 %v367, %v402
      %v420 = vadd.f32 %v368, %v402
      %v421 = vadd.f32 %v369, %v402
      %v422 = vadd.f32 %v370, %v402
      %v423 = vadd.f32 %v371, %v402
      %v424 = vadd.f32 %v372, %v402
      %v425 = vadd.f32 %v373, %v402
      %v426 = vadd.f32 %v374, %v402
      %v427 = vadd.f32 %v375, %v407
      %v428 = vadd.f32 %v376, %v407
      %v429 = vadd.f32 %v377, %v407
      %v430 = vadd.f32 %v378, %v407
      %v431 = vadd.f32 %v379, %v407
      %v432 = vadd.f32 %v380, %v407
      %v433 = vadd.f32 %v381, %v407
      %v434 = vadd.f32 %v382, %v407
      %v435 = vadd.f32 %v383, %v412
      %v436 = vadd.f32 %v384, %v412
      %v437 = vadd.f32 %v385, %v412
      %v438 = vadd.f32 %v386, %v412
      %v439 = vadd.f32 %v387, %v412
      %v440 = vadd.f32 %v388, %v412
      %v441 = vadd.f32 %v389, %v412
      %v442 = vadd.f32 %v390, %v412
      %v443 = vadd.f32 %v391, %v417
      %v444 = vadd.f32 %v392, %v417
      %v445 = vadd.f32 %v393, %v417
      %v446 = vadd.f32 %v394, %v417
      %v447 = vadd.f32 %v395, %v417
      %v448 = vadd.f32 %v396, %v417
      %v449 = vadd.f32 %v397, %v417
      %v450 = vadd.f32 %v398, %v417
      %v451 = vtanh.pop %v419
      %v452 = vtanh.pop %v420
      %v453 = vtanh.pop %v421
      %v454 = vtanh.pop %v422
      %v455 = vtanh.pop %v423
      %v456 = vtanh.pop %v424
      %v457 = vtanh.pop %v425
      %v458 = vtanh.pop %v426
      %v459 = vtanh.pop %v427
      %v460 = vtanh.pop %v428
      %v461 = vtanh.pop %v429
      %v462 = vtanh.pop %v430
      %v463 = vtanh.pop %v431
      %v464 = vtanh.pop %v432
      %v465 = vtanh.pop %v433
      %v466 = vtanh.pop %v434
      %v467 = vtanh.pop %v435
      %v468 = vtanh.pop %v436
      %v469 = vtanh.pop %v437
      %v470 = vtanh.pop %v438
      %v471 = vtanh.pop %v439
      %v472 = vtanh.pop %v440
      %v473 = vtanh.pop %v441
      %v474 = vtanh.pop %v442
      %v475 = vtanh.pop %v443
      %v476 = vtanh.pop %v444
      %v477 = vtanh.pop %v445
      %v478 = vtanh.pop %v446
      %v479 = vtanh.pop %v447
      %v480 = vtanh.pop %v448
      %v481 = vtanh.pop %v449
      %v482 = vtanh.pop %v450
      %v483 = vpack.c.bf16 %v459, %v451
      %v484 = vpack.c.bf16 %v460, %v452
      %v485 = vpack.c.bf16 %v461, %v453
      %v486 = vpack.c.bf16 %v462, %v454
      %v487 = vpack.c.bf16 %v463, %v455
      %v488 = vpack.c.bf16 %v464, %v456
      %v489 = vpack.c.bf16 %v465, %v457
      %v490 = vpack.c.bf16 %v466, %v458
      %v491 = vpack.c.bf16 %v475, %v467
      %v492 = vpack.c.bf16 %v476, %v468
      %v493 = vpack.c.bf16 %v477, %v469
      %v494 = vpack.c.bf16 %v478, %v470
      %v495 = vpack.c.bf16 %v479, %v471
      %v496 = vpack.c.bf16 %v480, %v472
      %v497 = vpack.c.bf16 %v481, %v473
      %v498 = vpack.c.bf16 %v482, %v474
      %500 = vset.pattern.permute.xlu0 0
      %501 = vperm.xlu0 %500, %v288
      %v502 = vpop.permute.xlu0 %501
      %505 = vset.pattern.permute.xlu0 0
      %506 = vperm.xlu0 %505, %v289
      %v507 = vpop.permute.xlu0 %506
      %510 = vset.pattern.permute.xlu0 0
      %511 = vperm.xlu0 %510, %v290
      %v512 = vpop.permute.xlu0 %511
      %515 = vset.pattern.permute.xlu0 0
      %516 = vperm.xlu0 %515, %v291
      %v517 = vpop.permute.xlu0 %516
      %v523 = vunpack.c.l.b16 %v268
      %v524 = vunpack.c.l.b16 %v269
      %v525 = vunpack.c.l.b16 %v270
      %v526 = vunpack.c.l.b16 %v271
      %v527 = vpack.c.b16 %v524, %v523
      %v528 = vpack.c.b16 %v526, %v525
      %vm529 = vcmask 261120
      %v531 = vsel %vm529, %v527, 0
      %v534 = vsel %vm529, %v528, 0
      %536 = vmatprep.subr.bf16.mxu0 %v484
      %537 = vmatpush1.bf16.msra.mxu0 %v483
      %538 = vmatprep.subr.bf16.mxu0 %v492
      %539 = vmatpush1.bf16.msra.mxu0 %v491
      %540 = vmatprep.subr.bf16.mxu0 0
      %541 = vmatpush1.bf16.msra.mxu0 0
      %542 = vmatprep.subr.bf16.mxu0 0
      %543 = vmatpush1.bf16.msra.mxu0 0
      %544 = vmatprep.subr.bf16.mxu0 0
      %545 = vmatpush1.bf16.msra.mxu0 0
      %546 = vmatprep.subr.bf16.mxu0 0
      %547 = vmatpush1.bf16.msra.mxu0 0
      %548 = vmatprep.subr.bf16.mxu0 0
      %549 = vmatpush1.bf16.msra.mxu0 0
      %550 = vmatprep.subr.bf16.mxu0 0
      %551 = vmatpush1.bf16.msra.mxu0 0
      %552 = vmatprep.subr.bf16.mxu0 0
      %553 = vmatpush1.bf16.msra.mxu0 0
      %554 = vmatprep.subr.bf16.mxu0 0
      %555 = vmatpush1.bf16.msra.mxu0 0
      %556 = vmatprep.subr.bf16.mxu0 0
      %557 = vmatpush1.bf16.msra.mxu0 0
      %558 = vmatprep.subr.bf16.mxu0 0
      %559 = vmatpush1.bf16.msra.mxu0 0
      %560 = vmatprep.subr.bf16.mxu0 0
      %561 = vmatpush1.bf16.msra.mxu0 0
      %562 = vmatprep.subr.bf16.mxu0 0
      %563 = vmatpush1.bf16.msra.mxu0 0
      %564 = vmatprep.subr.bf16.mxu0 0
      %565 = vmatpush1.bf16.msra.mxu0 0
      %566 = vmatprep.subr.bf16.mxu0 0
      %567 = vmatpush1.bf16.msra.mxu0 0
      %568 = vmatprep.mubr.bf16.mxu0 0
      %569 = vmatmul.mubr.bf16.gmra.mrb[0].mxu0 %v531
      %v570 = vpop.f32.mrb[0].mxu0
      %v571 = vadd.f32 %v502, %v570
      %v572 = vpop.f32.mrb[0].mxu0
      %v573 = vadd.f32 %v502, %v572
      %v574 = vpop.f32.mrb[0].mxu0
      %v575 = vadd.f32 %v507, %v574
      %v576 = vpop.f32.mrb[0].mxu0
      %v577 = vadd.f32 %v507, %v576
      %578 = vmatprep.mubr.bf16.mxu0 0
      %579 = vmatmul.mubr.bf16.gmra.mrb[0].mxu0 %v534
      %v580 = vpop.f32.mrb[0].mxu0
      %v581 = vadd.f32 %v512, %v580
      %v582 = vpop.f32.mrb[0].mxu0
      %v583 = vadd.f32 %v512, %v582
      %v584 = vpop.f32.mrb[0].mxu0
      %v585 = vadd.f32 %v517, %v584
      %v586 = vpop.f32.mrb[0].mxu0
      %v587 = vadd.f32 %v517, %v586
      %588 = vdwg.mxu0
      %589 = vmatprep.subr.bf16.mxu0 %v486
      %590 = vmatpush1.bf16.msra.mxu0 %v485
      %591 = vmatprep.subr.bf16.mxu0 %v494
      %592 = vmatpush1.bf16.msra.mxu0 %v493
      %593 = vmatprep.subr.bf16.mxu0 0
      %594 = vmatpush1.bf16.msra.mxu0 0
      %595 = vmatprep.subr.bf16.mxu0 0
      %596 = vmatpush1.bf16.msra.mxu0 0
      %597 = vmatprep.subr.bf16.mxu0 0
      %598 = vmatpush1.bf16.msra.mxu0 0
      %599 = vmatprep.subr.bf16.mxu0 0
      %600 = vmatpush1.bf16.msra.mxu0 0
      %601 = vmatprep.subr.bf16.mxu0 0
      %602 = vmatpush1.bf16.msra.mxu0 0
      %603 = vmatprep.subr.bf16.mxu0 0
      %604 = vmatpush1.bf16.msra.mxu0 0
      %605 = vmatprep.subr.bf16.mxu0 0
      %606 = vmatpush1.bf16.msra.mxu0 0
      %607 = vmatprep.subr.bf16.mxu0 0
      %608 = vmatpush1.bf16.msra.mxu0 0
      %609 = vmatprep.subr.bf16.mxu0 0
      %610 = vmatpush1.bf16.msra.mxu0 0
      %611 = vmatprep.subr.bf16.mxu0 0
      %612 = vmatpush1.bf16.msra.mxu0 0
      %613 = vmatprep.subr.bf16.mxu0 0
      %614 = vmatpush1.bf16.msra.mxu0 0
      %615 = vmatprep.subr.bf16.mxu0 0
      %616 = vmatpush1.bf16.msra.mxu0 0
      %617 = vmatprep.subr.bf16.mxu0 0
      %618 = vmatpush1.bf16.msra.mxu0 0
      %619 = vmatprep.subr.bf16.mxu0 0
      %620 = vmatpush1.bf16.msra.mxu0 0
      %621 = vmatprep.mubr.bf16.mxu0 0
      %622 = vmatmul.mubr.bf16.gmra.mrb[0].mxu0 %v531
      %v623 = vpop.f32.mrb[0].mxu0
      %v624 = vadd.f32 %v502, %v623
      %v625 = vpop.f32.mrb[0].mxu0
      %v626 = vadd.f32 %v502, %v625
      %v627 = vpop.f32.mrb[0].mxu0
      %v628 = vadd.f32 %v507, %v627
      %v629 = vpop.f32.mrb[0].mxu0
      %v630 = vadd.f32 %v507, %v629
      %631 = vmatprep.mubr.bf16.mxu0 0
      %632 = vmatmul.mubr.bf16.gmra.mrb[0].mxu0 %v534
      %v633 = vpop.f32.mrb[0].mxu0
      %v634 = vadd.f32 %v512, %v633
      %v635 = vpop.f32.mrb[0].mxu0
      %v636 = vadd.f32 %v512, %v635
      %v637 = vpop.f32.mrb[0].mxu0
      %v638 = vadd.f32 %v517, %v637
      %v639 = vpop.f32.mrb[0].mxu0
      %v640 = vadd.f32 %v517, %v639
      %641 = vdwg.mxu0
      %642 = vmatprep.subr.bf16.mxu0 %v488
      %643 = vmatpush1.bf16.msra.mxu0 %v487
      %644 = vmatprep.subr.bf16.mxu0 %v496
      %645 = vmatpush1.bf16.msra.mxu0 %v495
      %646 = vmatprep.subr.bf16.mxu0 0
      %647 = vmatpush1.bf16.msra.mxu0 0
      %648 = vmatprep.subr.bf16.mxu0 0
      %649 = vmatpush1.bf16.msra.mxu0 0
      %650 = vmatprep.subr.bf16.mxu0 0
      %651 = vmatpush1.bf16.msra.mxu0 0
      %652 = vmatprep.subr.bf16.mxu0 0
      %653 = vmatpush1.bf16.msra.mxu0 0
      %654 = vmatprep.subr.bf16.mxu0 0
      %655 = vmatpush1.bf16.msra.mxu0 0
      %656 = vmatprep.subr.bf16.mxu0 0
      %657 = vmatpush1.bf16.msra.mxu0 0
      %658 = vmatprep.subr.bf16.mxu0 0
      %659 = vmatpush1.bf16.msra.mxu0 0
      %660 = vmatprep.subr.bf16.mxu0 0
      %661 = vmatpush1.bf16.msra.mxu0 0
      %662 = vmatprep.subr.bf16.mxu0 0
      %663 = vmatpush1.bf16.msra.mxu0 0
      %664 = vmatprep.subr.bf16.mxu0 0
      %665 = vmatpush1.bf16.msra.mxu0 0
      %666 = vmatprep.subr.bf16.mxu0 0
      %667 = vmatpush1.bf16.msra.mxu0 0
      %668 = vmatprep.subr.bf16.mxu0 0
      %669 = vmatpush1.bf16.msra.mxu0 0
      %670 = vmatprep.subr.bf16.mxu0 0
      %671 = vmatpush1.bf16.msra.mxu0 0
      %672 = vmatprep.subr.bf16.mxu0 0
      %673 = vmatpush1.bf16.msra.mxu0 0
      %674 = vmatprep.mubr.bf16.mxu0 0
      %675 = vmatmul.mubr.bf16.gmra.mrb[0].mxu0 %v531
      %v676 = vpop.f32.mrb[0].mxu0
      %v677 = vadd.f32 %v502, %v676
      %v678 = vpop.f32.mrb[0].mxu0
      %v679 = vadd.f32 %v502, %v678
      %v680 = vpop.f32.mrb[0].mxu0
      %v681 = vadd.f32 %v507, %v680
      %v682 = vpop.f32.mrb[0].mxu0
      %v683 = vadd.f32 %v507, %v682
      %684 = vmatprep.mubr.bf16.mxu0 0
      %685 = vmatmul.mubr.bf16.gmra.mrb[0].mxu0 %v534
      %v686 = vpop.f32.mrb[0].mxu0
      %v687 = vadd.f32 %v512, %v686
      %v688 = vpop.f32.mrb[0].mxu0
      %v689 = vadd.f32 %v512, %v688
      %v690 = vpop.f32.mrb[0].mxu0
      %v691 = vadd.f32 %v517, %v690
      %v692 = vpop.f32.mrb[0].mxu0
      %v693 = vadd.f32 %v517, %v692
      %694 = vdwg.mxu0
      %695 = vmatprep.subr.bf16.mxu0 %v490
      %696 = vmatpush1.bf16.msra.mxu0 %v489
      %697 = vmatprep.subr.bf16.mxu0 %v498
      %698 = vmatpush1.bf16.msra.mxu0 %v497
      %699 = vmatprep.subr.bf16.mxu0 0
      %700 = vmatpush1.bf16.msra.mxu0 0
      %701 = vmatprep.subr.bf16.mxu0 0
      %702 = vmatpush1.bf16.msra.mxu0 0
      %703 = vmatprep.subr.bf16.mxu0 0
      %704 = vmatpush1.bf16.msra.mxu0 0
      %705 = vmatprep.subr.bf16.mxu0 0
      %706 = vmatpush1.bf16.msra.mxu0 0
      %707 = vmatprep.subr.bf16.mxu0 0
      %708 = vmatpush1.bf16.msra.mxu0 0
      %709 = vmatprep.subr.bf16.mxu0 0
      %710 = vmatpush1.bf16.msra.mxu0 0
      %711 = vmatprep.subr.bf16.mxu0 0
      %712 = vmatpush1.bf16.msra.mxu0 0
      %713 = vmatprep.subr.bf16.mxu0 0
      %714 = vmatpush1.bf16.msra.mxu0 0
      %715 = vmatprep.subr.bf16.mxu0 0
      %716 = vmatpush1.bf16.msra.mxu0 0
      %717 = vmatprep.subr.bf16.mxu0 0
      %718 = vmatpush1.bf16.msra.mxu0 0
      %719 = vmatprep.subr.bf16.mxu0 0
      %720 = vmatpush1.bf16.msra.mxu0 0
      %721 = vmatprep.subr.bf16.mxu0 0
      %722 = vmatpush1.bf16.msra.mxu0 0
      %723 = vmatprep.subr.bf16.mxu0 0
      %724 = vmatpush1.bf16.msra.mxu0 0
      %725 = vmatprep.subr.bf16.mxu0 0
      %726 = vmatpush1.bf16.msra.mxu0 0
      %727 = vmatprep.mubr.bf16.mxu0 0
      %728 = vmatmul.mubr.bf16.gmra.mrb[0].mxu0 %v531
      %v729 = vpop.f32.mrb[0].mxu0
      %v730 = vadd.f32 %v502, %v729
      %v731 = vpop.f32.mrb[0].mxu0
      %v732 = vadd.f32 %v502, %v731
      %v733 = vpop.f32.mrb[0].mxu0
      %v734 = vadd.f32 %v507, %v733
      %v735 = vpop.f32.mrb[0].mxu0
      %v736 = vadd.f32 %v507, %v735
      %737 = vmatprep.mubr.bf16.mxu0 0
      %738 = vmatmul.mubr.bf16.gmra.mrb[0].mxu0 %v534
      %v739 = vpop.f32.mrb[0].mxu0
      %v740 = vadd.f32 %v512, %v739
      %v741 = vpop.f32.mrb[0].mxu0
      %v742 = vadd.f32 %v512, %v741
      %v743 = vpop.f32.mrb[0].mxu0
      %v744 = vadd.f32 %v517, %v743
      %v745 = vpop.f32.mrb[0].mxu0
      %v746 = vadd.f32 %v517, %v745
      %747 = vdwg.mxu0
      %v748 = vtanh.pop %v571
      %v749 = vtanh.pop %v573
      %v750 = vtanh.pop %v624
      %v751 = vtanh.pop %v626
      %v752 = vtanh.pop %v677
      %v753 = vtanh.pop %v679
      %v754 = vtanh.pop %v730
      %v755 = vtanh.pop %v732
      %v756 = vtanh.pop %v575
      %v757 = vtanh.pop %v577
      %v758 = vtanh.pop %v628
      %v759 = vtanh.pop %v630
      %v760 = vtanh.pop %v681
      %v761 = vtanh.pop %v683
      %v762 = vtanh.pop %v734
      %v763 = vtanh.pop %v736
      %v764 = vtanh.pop %v581
      %v765 = vtanh.pop %v583
      %v766 = vtanh.pop %v634
      %v767 = vtanh.pop %v636
      %v768 = vtanh.pop %v687
      %v769 = vtanh.pop %v689
      %v770 = vtanh.pop %v740
      %v771 = vtanh.pop %v742
      %v772 = vtanh.pop %v585
      %v773 = vtanh.pop %v587
      %v774 = vtanh.pop %v638
      %v775 = vtanh.pop %v640
      %v776 = vtanh.pop %v691
      %v777 = vtanh.pop %v693
      %v778 = vtanh.pop %v744
      %v779 = vtanh.pop %v746
      %v780 = vpack.c.bf16 %v756, %v748
      %v781 = vpack.c.bf16 %v757, %v749
      %v782 = vpack.c.bf16 %v758, %v750
      %v783 = vpack.c.bf16 %v759, %v751
      %v784 = vpack.c.bf16 %v760, %v752
      %v785 = vpack.c.bf16 %v761, %v753
      %v786 = vpack.c.bf16 %v762, %v754
      %v787 = vpack.c.bf16 %v763, %v755
      %v788 = vpack.c.bf16 %v772, %v764
      %v789 = vpack.c.bf16 %v773, %v765
      %v790 = vpack.c.bf16 %v774, %v766
      %v791 = vpack.c.bf16 %v775, %v767
      %v792 = vpack.c.bf16 %v776, %v768
      %v793 = vpack.c.bf16 %v777, %v769
      %v794 = vpack.c.bf16 %v778, %v770
      %v795 = vpack.c.bf16 %v779, %v771
      %797 = vset.pattern.permute.xlu0 0
      %798 = vperm.xlu0 %797, %v293
      %v799 = vpop.permute.xlu0 %798
      %802 = vset.pattern.permute.xlu0 0
      %803 = vperm.xlu0 %802, %v294
      %v804 = vpop.permute.xlu0 %803
      %807 = vset.pattern.permute.xlu0 0
      %808 = vperm.xlu0 %807, %v295
      %v809 = vpop.permute.xlu0 %808
      %812 = vset.pattern.permute.xlu0 0
      %813 = vperm.xlu0 %812, %v296
      %v814 = vpop.permute.xlu0 %813
      %v820 = vunpack.c.l.b16 %v273
      %v821 = vunpack.c.l.b16 %v274
      %v822 = vunpack.c.l.b16 %v275
      %v823 = vunpack.c.l.b16 %v276
      %v824 = vpack.c.b16 %v821, %v820
      %v825 = vpack.c.b16 %v823, %v822
      %v827 = vsel %vm529, %v824, 0
      %v830 = vsel %vm529, %v825, 0
      %832 = vmatprep.subr.bf16.mxu0 %v781
      %833 = vmatpush1.bf16.msra.mxu0 %v780
      %834 = vmatprep.subr.bf16.mxu0 %v789
      %835 = vmatpush1.bf16.msra.mxu0 %v788
      %836 = vmatprep.subr.bf16.mxu0 0
      %837 = vmatpush1.bf16.msra.mxu0 0
      %838 = vmatprep.subr.bf16.mxu0 0
      %839 = vmatpush1.bf16.msra.mxu0 0
      %840 = vmatprep.subr.bf16.mxu0 0
      %841 = vmatpush1.bf16.msra.mxu0 0
      %842 = vmatprep.subr.bf16.mxu0 0
      %843 = vmatpush1.bf16.msra.mxu0 0
      %844 = vmatprep.subr.bf16.mxu0 0
      %845 = vmatpush1.bf16.msra.mxu0 0
      %846 = vmatprep.subr.bf16.mxu0 0
      %847 = vmatpush1.bf16.msra.mxu0 0
      %848 = vmatprep.subr.bf16.mxu0 0
      %849 = vmatpush1.bf16.msra.mxu0 0
      %850 = vmatprep.subr.bf16.mxu0 0
      %851 = vmatpush1.bf16.msra.mxu0 0
      %852 = vmatprep.subr.bf16.mxu0 0
      %853 = vmatpush1.bf16.msra.mxu0 0
      %854 = vmatprep.subr.bf16.mxu0 0
      %855 = vmatpush1.bf16.msra.mxu0 0
      %856 = vmatprep.subr.bf16.mxu0 0
      %857 = vmatpush1.bf16.msra.mxu0 0
      %858 = vmatprep.subr.bf16.mxu0 0
      %859 = vmatpush1.bf16.msra.mxu0 0
      %860 = vmatprep.subr.bf16.mxu0 0
      %861 = vmatpush1.bf16.msra.mxu0 0
      %862 = vmatprep.subr.bf16.mxu0 0
      %863 = vmatpush1.bf16.msra.mxu0 0
      %864 = vmatprep.mubr.bf16.mxu0 0
      %865 = vmatmul.mubr.bf16.gmra.mrb[0].mxu0 %v827
      %v866 = vpop.f32.mrb[0].mxu0
      %v867 = vadd.f32 %v799, %v866
      %v868 = vpop.f32.mrb[0].mxu0
      %v869 = vadd.f32 %v799, %v868
      %v870 = vpop.f32.mrb[0].mxu0
      %v871 = vadd.f32 %v804, %v870
      %v872 = vpop.f32.mrb[0].mxu0
      %v873 = vadd.f32 %v804, %v872
      %874 = vmatprep.mubr.bf16.mxu0 0
      %875 = vmatmul.mubr.bf16.gmra.mrb[0].mxu0 %v830
      %v876 = vpop.f32.mrb[0].mxu0
      %v877 = vadd.f32 %v809, %v876
      %v878 = vpop.f32.mrb[0].mxu0
      %v879 = vadd.f32 %v809, %v878
      %v880 = vpop.f32.mrb[0].mxu0
      %v881 = vadd.f32 %v814, %v880
      %v882 = vpop.f32.mrb[0].mxu0
      %v883 = vadd.f32 %v814, %v882
      %884 = vdwg.mxu0
      %885 = vmatprep.subr.bf16.mxu0 %v783
      %886 = vmatpush1.bf16.msra.mxu0 %v782
      %887 = vmatprep.subr.bf16.mxu0 %v791
      %888 = vmatpush1.bf16.msra.mxu0 %v790
      %889 = vmatprep.subr.bf16.mxu0 0
      %890 = vmatpush1.bf16.msra.mxu0 0
      %891 = vmatprep.subr.bf16.mxu0 0
      %892 = vmatpush1.bf16.msra.mxu0 0
      %893 = vmatprep.subr.bf16.mxu0 0
      %894 = vmatpush1.bf16.msra.mxu0 0
      %895 = vmatprep.subr.bf16.mxu0 0
      %896 = vmatpush1.bf16.msra.mxu0 0
      %897 = vmatprep.subr.bf16.mxu0 0
      %898 = vmatpush1.bf16.msra.mxu0 0
      %899 = vmatprep.subr.bf16.mxu0 0
      %900 = vmatpush1.bf16.msra.mxu0 0
      %901 = vmatprep.subr.bf16.mxu0 0
      %902 = vmatpush1.bf16.msra.mxu0 0
      %903 = vmatprep.subr.bf16.mxu0 0
      %904 = vmatpush1.bf16.msra.mxu0 0
      %905 = vmatprep.subr.bf16.mxu0 0
      %906 = vmatpush1.bf16.msra.mxu0 0
      %907 = vmatprep.subr.bf16.mxu0 0
      %908 = vmatpush1.bf16.msra.mxu0 0
      %909 = vmatprep.subr.bf16.mxu0 0
      %910 = vmatpush1.bf16.msra.mxu0 0
      %911 = vmatprep.subr.bf16.mxu0 0
      %912 = vmatpush1.bf16.msra.mxu0 0
      %913 = vmatprep.subr.bf16.mxu0 0
      %914 = vmatpush1.bf16.msra.mxu0 0
      %915 = vmatprep.subr.bf16.mxu0 0
      %916 = vmatpush1.bf16.msra.mxu0 0
      %917 = vmatprep.mubr.bf16.mxu0 0
      %918 = vmatmul.mubr.bf16.gmra.mrb[0].mxu0 %v827
      %v919 = vpop.f32.mrb[0].mxu0
      %v920 = vadd.f32 %v799, %v919
      %v921 = vpop.f32.mrb[0].mxu0
      %v922 = vadd.f32 %v799, %v921
      %v923 = vpop.f32.mrb[0].mxu0
      %v924 = vadd.f32 %v804, %v923
      %v925 = vpop.f32.mrb[0].mxu0
      %v926 = vadd.f32 %v804, %v925
      %927 = vmatprep.mubr.bf16.mxu0 0
      %928 = vmatmul.mubr.bf16.gmra.mrb[0].mxu0 %v830
      %v929 = vpop.f32.mrb[0].mxu0
      %v930 = vadd.f32 %v809, %v929
      %v931 = vpop.f32.mrb[0].mxu0
      %v932 = vadd.f32 %v809, %v931
      %v933 = vpop.f32.mrb[0].mxu0
      %v934 = vadd.f32 %v814, %v933
      %v935 = vpop.f32.mrb[0].mxu0
      %v936 = vadd.f32 %v814, %v935
      %937 = vdwg.mxu0
      %938 = vmatprep.subr.bf16.mxu0 %v785
      %939 = vmatpush1.bf16.msra.mxu0 %v784
      %940 = vmatprep.subr.bf16.mxu0 %v793
      %941 = vmatpush1.bf16.msra.mxu0 %v792
      %942 = vmatprep.subr.bf16.mxu0 0
      %943 = vmatpush1.bf16.msra.mxu0 0
      %944 = vmatprep.subr.bf16.mxu0 0
      %945 = vmatpush1.bf16.msra.mxu0 0
      %946 = vmatprep.subr.bf16.mxu0 0
      %947 = vmatpush1.bf16.msra.mxu0 0
      %948 = vmatprep.subr.bf16.mxu0 0
      %949 = vmatpush1.bf16.msra.mxu0 0
      %950 = vmatprep.subr.bf16.mxu0 0
      %951 = vmatpush1.bf16.msra.mxu0 0
      %952 = vmatprep.subr.bf16.mxu0 0
      %953 = vmatpush1.bf16.msra.mxu0 0
      %954 = vmatprep.subr.bf16.mxu0 0
      %955 = vmatpush1.bf16.msra.mxu0 0
      %956 = vmatprep.subr.bf16.mxu0 0
      %957 = vmatpush1.bf16.msra.mxu0 0
      %958 = vmatprep.subr.bf16.mxu0 0
      %959 = vmatpush1.bf16.msra.mxu0 0
      %960 = vmatprep.subr.bf16.mxu0 0
      %961 = vmatpush1.bf16.msra.mxu0 0
      %962 = vmatprep.subr.bf16.mxu0 0
      %963 = vmatpush1.bf16.msra.mxu0 0
      %964 = vmatprep.subr.bf16.mxu0 0
      %965 = vmatpush1.bf16.msra.mxu0 0
      %966 = vmatprep.subr.bf16.mxu0 0
      %967 = vmatpush1.bf16.msra.mxu0 0
      %968 = vmatprep.subr.bf16.mxu0 0
      %969 = vmatpush1.bf16.msra.mxu0 0
      %970 = vmatprep.mubr.bf16.mxu0 0
      %971 = vmatmul.mubr.bf16.gmra.mrb[0].mxu0 %v827
      %v972 = vpop.f32.mrb[0].mxu0
      %v973 = vadd.f32 %v799, %v972
      %v974 = vpop.f32.mrb[0].mxu0
      %v975 = vadd.f32 %v799, %v974
      %v976 = vpop.f32.mrb[0].mxu0
      %v977 = vadd.f32 %v804, %v976
      %v978 = vpop.f32.mrb[0].mxu0
      %v979 = vadd.f32 %v804, %v978
      %980 = vmatprep.mubr.bf16.mxu0 0
      %981 = vmatmul.mubr.bf16.gmra.mrb[0].mxu0 %v830
      %v982 = vpop.f32.mrb[0].mxu0
      %v983 = vadd.f32 %v809, %v982
      %v984 = vpop.f32.mrb[0].mxu0
      %v985 = vadd.f32 %v809, %v984
      %v986 = vpop.f32.mrb[0].mxu0
      %v987 = vadd.f32 %v814, %v986
      %v988 = vpop.f32.mrb[0].mxu0
      %v989 = vadd.f32 %v814, %v988
      %990 = vdwg.mxu0
      %991 = vmatprep.subr.bf16.mxu0 %v787
      %992 = vmatpush1.bf16.msra.mxu0 %v786
      %993 = vmatprep.subr.bf16.mxu0 %v795
      %994 = vmatpush1.bf16.msra.mxu0 %v794
      %995 = vmatprep.subr.bf16.mxu0 0
      %996 = vmatpush1.bf16.msra.mxu0 0
      %997 = vmatprep.subr.bf16.mxu0 0
      %998 = vmatpush1.bf16.msra.mxu0 0
      %999 = vmatprep.subr.bf16.mxu0 0
      %1000 = vmatpush1.bf16.msra.mxu0 0
      %1001 = vmatprep.subr.bf16.mxu0 0
      %1002 = vmatpush1.bf16.msra.mxu0 0
      %1003 = vmatprep.subr.bf16.mxu0 0
      %1004 = vmatpush1.bf16.msra.mxu0 0
      %1005 = vmatprep.subr.bf16.mxu0 0
      %1006 = vmatpush1.bf16.msra.mxu0 0
      %1007 = vmatprep.subr.bf16.mxu0 0
      %1008 = vmatpush1.bf16.msra.mxu0 0
      %1009 = vmatprep.subr.bf16.mxu0 0
      %1010 = vmatpush1.bf16.msra.mxu0 0
      %1011 = vmatprep.subr.bf16.mxu0 0
      %1012 = vmatpush1.bf16.msra.mxu0 0
      %1013 = vmatprep.subr.bf16.mxu0 0
      %1014 = vmatpush1.bf16.msra.mxu0 0
      %1015 = vmatprep.subr.bf16.mxu0 0
      %1016 = vmatpush1.bf16.msra.mxu0 0
      %1017 = vmatprep.subr.bf16.mxu0 0
      %1018 = vmatpush1.bf16.msra.mxu0 0
      %1019 = vmatprep.subr.bf16.mxu0 0
      %1020 = vmatpush1.bf16.msra.mxu0 0
      %1021 = vmatprep.subr.bf16.mxu0 0
      %1022 = vmatpush1.bf16.msra.mxu0 0
      %1023 = vmatprep.mubr.bf16.mxu0 0
      %1024 = vmatmul.mubr.bf16.gmra.mrb[0].mxu0 %v827
      %v1025 = vpop.f32.mrb[0].mxu0
      %v1026 = vadd.f32 %v799, %v1025
      %v1027 = vpop.f32.mrb[0].mxu0
      %v1028 = vadd.f32 %v799, %v1027
      %v1029 = vpop.f32.mrb[0].mxu0
      %v1030 = vadd.f32 %v804, %v1029
      %v1031 = vpop.f32.mrb[0].mxu0
      %v1032 = vadd.f32 %v804, %v1031
      %1033 = vmatprep.mubr.bf16.mxu0 0
      %1034 = vmatmul.mubr.bf16.gmra.mrb[0].mxu0 %v830
      %v1035 = vpop.f32.mrb[0].mxu0
      %v1036 = vadd.f32 %v809, %v1035
      %v1037 = vpop.f32.mrb[0].mxu0
      %v1038 = vadd.f32 %v809, %v1037
      %v1039 = vpop.f32.mrb[0].mxu0
      %v1040 = vadd.f32 %v814, %v1039
      %v1041 = vpop.f32.mrb[0].mxu0
      %v1042 = vadd.f32 %v814, %v1041
      %1043 = vdwg.mxu0
      %v1044 = vtanh.pop %v867
      %v1045 = vtanh.pop %v869
      %v1046 = vtanh.pop %v920
      %v1047 = vtanh.pop %v922
      %v1048 = vtanh.pop %v973
      %v1049 = vtanh.pop %v975
      %v1050 = vtanh.pop %v1026
      %v1051 = vtanh.pop %v1028
      %v1052 = vtanh.pop %v871
      %v1053 = vtanh.pop %v873
      %v1054 = vtanh.pop %v924
      %v1055 = vtanh.pop %v926
      %v1056 = vtanh.pop %v977
      %v1057 = vtanh.pop %v979
      %v1058 = vtanh.pop %v1030
      %v1059 = vtanh.pop %v1032
      %v1060 = vtanh.pop %v877
      %v1061 = vtanh.pop %v879
      %v1062 = vtanh.pop %v930
      %v1063 = vtanh.pop %v932
      %v1064 = vtanh.pop %v983
      %v1065 = vtanh.pop %v985
      %v1066 = vtanh.pop %v1036
      %v1067 = vtanh.pop %v1038
      %v1068 = vtanh.pop %v881
      %v1069 = vtanh.pop %v883
      %v1070 = vtanh.pop %v934
      %v1071 = vtanh.pop %v936
      %v1072 = vtanh.pop %v987
      %v1073 = vtanh.pop %v989
      %v1074 = vtanh.pop %v1040
      %v1075 = vtanh.pop %v1042
      %v1076 = vpack.c.bf16 %v1052, %v1044
      %v1077 = vpack.c.bf16 %v1053, %v1045
      %v1078 = vpack.c.bf16 %v1054, %v1046
      %v1079 = vpack.c.bf16 %v1055, %v1047
      %v1080 = vpack.c.bf16 %v1056, %v1048
      %v1081 = vpack.c.bf16 %v1057, %v1049
      %v1082 = vpack.c.bf16 %v1058, %v1050
      %v1083 = vpack.c.bf16 %v1059, %v1051
      %v1084 = vpack.c.bf16 %v1068, %v1060
      %v1085 = vpack.c.bf16 %v1069, %v1061
      %v1086 = vpack.c.bf16 %v1070, %v1062
      %v1087 = vpack.c.bf16 %v1071, %v1063
      %v1088 = vpack.c.bf16 %v1072, %v1064
      %v1089 = vpack.c.bf16 %v1073, %v1065
      %v1090 = vpack.c.bf16 %v1074, %v1066
      %v1091 = vpack.c.bf16 %v1075, %v1067
      %1093 = vset.pattern.permute.xlu0 0
      %1094 = vperm.xlu0 %1093, %v298
      %v1095 = vpop.permute.xlu0 %1094
      %1098 = vset.pattern.permute.xlu0 0
      %1099 = vperm.xlu0 %1098, %v299
      %v1100 = vpop.permute.xlu0 %1099
      %1103 = vset.pattern.permute.xlu0 0
      %1104 = vperm.xlu0 %1103, %v300
      %v1105 = vpop.permute.xlu0 %1104
      %1108 = vset.pattern.permute.xlu0 0
      %1109 = vperm.xlu0 %1108, %v301
      %v1110 = vpop.permute.xlu0 %1109
      %v1116 = vunpack.c.l.b16 %v278
      %v1117 = vunpack.c.l.b16 %v279
      %v1118 = vunpack.c.l.b16 %v280
      %v1119 = vunpack.c.l.b16 %v281
      %v1120 = vpack.c.b16 %v1117, %v1116
      %v1121 = vpack.c.b16 %v1119, %v1118
      %v1123 = vsel %vm529, %v1120, 0
      %v1126 = vsel %vm529, %v1121, 0
      %1128 = vmatprep.subr.bf16.mxu0 %v1077
      %1129 = vmatpush1.bf16.msra.mxu0 %v1076
      %1130 = vmatprep.subr.bf16.mxu0 %v1085
      %1131 = vmatpush1.bf16.msra.mxu0 %v1084
      %1132 = vmatprep.subr.bf16.mxu0 0
      %1133 = vmatpush1.bf16.msra.mxu0 0
      %1134 = vmatprep.subr.bf16.mxu0 0
      %1135 = vmatpush1.bf16.msra.mxu0 0
      %1136 = vmatprep.subr.bf16.mxu0 0
      %1137 = vmatpush1.bf16.msra.mxu0 0
      %1138 = vmatprep.subr.bf16.mxu0 0
      %1139 = vmatpush1.bf16.msra.mxu0 0
      %1140 = vmatprep.subr.bf16.mxu0 0
      %1141 = vmatpush1.bf16.msra.mxu0 0
      %1142 = vmatprep.subr.bf16.mxu0 0
      %1143 = vmatpush1.bf16.msra.mxu0 0
      %1144 = vmatprep.subr.bf16.mxu0 0
      %1145 = vmatpush1.bf16.msra.mxu0 0
      %1146 = vmatprep.subr.bf16.mxu0 0
      %1147 = vmatpush1.bf16.msra.mxu0 0
      %1148 = vmatprep.subr.bf16.mxu0 0
      %1149 = vmatpush1.bf16.msra.mxu0 0
      %1150 = vmatprep.subr.bf16.mxu0 0
      %1151 = vmatpush1.bf16.msra.mxu0 0
      %1152 = vmatprep.subr.bf16.mxu0 0
      %1153 = vmatpush1.bf16.msra.mxu0 0
      %1154 = vmatprep.subr.bf16.mxu0 0
      %1155 = vmatpush1.bf16.msra.mxu0 0
      %1156 = vmatprep.subr.bf16.mxu0 0
      %1157 = vmatpush1.bf16.msra.mxu0 0
      %1158 = vmatprep.subr.bf16.mxu0 0
      %1159 = vmatpush1.bf16.msra.mxu0 0
      %1160 = vmatprep.mubr.bf16.mxu0 0
      %1161 = vmatmul.mubr.bf16.gmra.mrb[0].mxu0 %v1123
      %v1162 = vpop.f32.mrb[0].mxu0
      %v1163 = vadd.f32 %v1095, %v1162
      %v1164 = vpop.f32.mrb[0].mxu0
      %v1165 = vadd.f32 %v1095, %v1164
      %v1166 = vpop.f32.mrb[0].mxu0
      %v1167 = vadd.f32 %v1100, %v1166
      %v1168 = vpop.f32.mrb[0].mxu0
      %v1169 = vadd.f32 %v1100, %v1168
      %1170 = vmatprep.mubr.bf16.mxu0 0
      %1171 = vmatmul.mubr.bf16.gmra.mrb[0].mxu0 %v1126
      %v1172 = vpop.f32.mrb[0].mxu0
      %v1173 = vadd.f32 %v1105, %v1172
      %v1174 = vpop.f32.mrb[0].mxu0
      %v1175 = vadd.f32 %v1105, %v1174
      %v1176 = vpop.f32.mrb[0].mxu0
      %v1177 = vadd.f32 %v1110, %v1176
      %v1178 = vpop.f32.mrb[0].mxu0
      %v1179 = vadd.f32 %v1110, %v1178
      %1180 = vdwg.mxu0
      %1181 = vmatprep.subr.bf16.mxu0 %v1079
      %1182 = vmatpush1.bf16.msra.mxu0 %v1078
      %1183 = vmatprep.subr.bf16.mxu0 %v1087
      %1184 = vmatpush1.bf16.msra.mxu0 %v1086
      %1185 = vmatprep.subr.bf16.mxu0 0
      %1186 = vmatpush1.bf16.msra.mxu0 0
      %1187 = vmatprep.subr.bf16.mxu0 0
      %1188 = vmatpush1.bf16.msra.mxu0 0
      %1189 = vmatprep.subr.bf16.mxu0 0
      %1190 = vmatpush1.bf16.msra.mxu0 0
      %1191 = vmatprep.subr.bf16.mxu0 0
      %1192 = vmatpush1.bf16.msra.mxu0 0
      %1193 = vmatprep.subr.bf16.mxu0 0
      %1194 = vmatpush1.bf16.msra.mxu0 0
      %1195 = vmatprep.subr.bf16.mxu0 0
      %1196 = vmatpush1.bf16.msra.mxu0 0
      %1197 = vmatprep.subr.bf16.mxu0 0
      %1198 = vmatpush1.bf16.msra.mxu0 0
      %1199 = vmatprep.subr.bf16.mxu0 0
      %1200 = vmatpush1.bf16.msra.mxu0 0
      %1201 = vmatprep.subr.bf16.mxu0 0
      %1202 = vmatpush1.bf16.msra.mxu0 0
      %1203 = vmatprep.subr.bf16.mxu0 0
      %1204 = vmatpush1.bf16.msra.mxu0 0
      %1205 = vmatprep.subr.bf16.mxu0 0
      %1206 = vmatpush1.bf16.msra.mxu0 0
      %1207 = vmatprep.subr.bf16.mxu0 0
      %1208 = vmatpush1.bf16.msra.mxu0 0
      %1209 = vmatprep.subr.bf16.mxu0 0
      %1210 = vmatpush1.bf16.msra.mxu0 0
      %1211 = vmatprep.subr.bf16.mxu0 0
      %1212 = vmatpush1.bf16.msra.mxu0 0
      %1213 = vmatprep.mubr.bf16.mxu0 0
      %1214 = vmatmul.mubr.bf16.gmra.mrb[0].mxu0 %v1123
      %v1215 = vpop.f32.mrb[0].mxu0
      %v1216 = vadd.f32 %v1095, %v1215
      %v1217 = vpop.f32.mrb[0].mxu0
      %v1218 = vadd.f32 %v1095, %v1217
      %v1219 = vpop.f32.mrb[0].mxu0
      %v1220 = vadd.f32 %v1100, %v1219
      %v1221 = vpop.f32.mrb[0].mxu0
      %v1222 = vadd.f32 %v1100, %v1221
      %1223 = vmatprep.mubr.bf16.mxu0 0
      %1224 = vmatmul.mubr.bf16.gmra.mrb[0].mxu0 %v1126
      %v1225 = vpop.f32.mrb[0].mxu0
      %v1226 = vadd.f32 %v1105, %v1225
      %v1227 = vpop.f32.mrb[0].mxu0
      %v1228 = vadd.f32 %v1105, %v1227
      %v1229 = vpop.f32.mrb[0].mxu0
      %v1230 = vadd.f32 %v1110, %v1229
      %v1231 = vpop.f32.mrb[0].mxu0
      %v1232 = vadd.f32 %v1110, %v1231
      %1233 = vdwg.mxu0
      %1234 = vmatprep.subr.bf16.mxu0 %v1081
      %1235 = vmatpush1.bf16.msra.mxu0 %v1080
      %1236 = vmatprep.subr.bf16.mxu0 %v1089
      %1237 = vmatpush1.bf16.msra.mxu0 %v1088
      %1238 = vmatprep.subr.bf16.mxu0 0
      %1239 = vmatpush1.bf16.msra.mxu0 0
      %1240 = vmatprep.subr.bf16.mxu0 0
      %1241 = vmatpush1.bf16.msra.mxu0 0
      %1242 = vmatprep.subr.bf16.mxu0 0
      %1243 = vmatpush1.bf16.msra.mxu0 0
      %1244 = vmatprep.subr.bf16.mxu0 0
      %1245 = vmatpush1.bf16.msra.mxu0 0
      %1246 = vmatprep.subr.bf16.mxu0 0
      %1247 = vmatpush1.bf16.msra.mxu0 0
      %1248 = vmatprep.subr.bf16.mxu0 0
      %1249 = vmatpush1.bf16.msra.mxu0 0
      %1250 = vmatprep.subr.bf16.mxu0 0
      %1251 = vmatpush1.bf16.msra.mxu0 0
      %1252 = vmatprep.subr.bf16.mxu0 0
      %1253 = vmatpush1.bf16.msra.mxu0 0
      %1254 = vmatprep.subr.bf16.mxu0 0
      %1255 = vmatpush1.bf16.msra.mxu0 0
      %1256 = vmatprep.subr.bf16.mxu0 0
      %1257 = vmatpush1.bf16.msra.mxu0 0
      %1258 = vmatprep.subr.bf16.mxu0 0
      %1259 = vmatpush1.bf16.msra.mxu0 0
      %1260 = vmatprep.subr.bf16.mxu0 0
      %1261 = vmatpush1.bf16.msra.mxu0 0
      %1262 = vmatprep.subr.bf16.mxu0 0
      %1263 = vmatpush1.bf16.msra.mxu0 0
      %1264 = vmatprep.subr.bf16.mxu0 0
      %1265 = vmatpush1.bf16.msra.mxu0 0
      %1266 = vmatprep.mubr.bf16.mxu0 0
      %1267 = vmatmul.mubr.bf16.gmra.mrb[0].mxu0 %v1123
      %v1268 = vpop.f32.mrb[0].mxu0
      %v1269 = vadd.f32 %v1095, %v1268
      %v1270 = vpop.f32.mrb[0].mxu0
      %v1271 = vadd.f32 %v1095, %v1270
      %v1272 = vpop.f32.mrb[0].mxu0
      %v1273 = vadd.f32 %v1100, %v1272
      %v1274 = vpop.f32.mrb[0].mxu0
      %v1275 = vadd.f32 %v1100, %v1274
      %1276 = vmatprep.mubr.bf16.mxu0 0
      %1277 = vmatmul.mubr.bf16.gmra.mrb[0].mxu0 %v1126
      %v1278 = vpop.f32.mrb[0].mxu0
      %v1279 = vadd.f32 %v1105, %v1278
      %v1280 = vpop.f32.mrb[0].mxu0
      %v1281 = vadd.f32 %v1105, %v1280
      %v1282 = vpop.f32.mrb[0].mxu0
      %v1283 = vadd.f32 %v1110, %v1282
      %v1284 = vpop.f32.mrb[0].mxu0
      %v1285 = vadd.f32 %v1110, %v1284
      %1286 = vdwg.mxu0
      %1287 = vmatprep.subr.bf16.mxu0 %v1083
      %1288 = vmatpush1.bf16.msra.mxu0 %v1082
      %1289 = vmatprep.subr.bf16.mxu0 %v1091
      %1290 = vmatpush1.bf16.msra.mxu0 %v1090
      %1291 = vmatprep.subr.bf16.mxu0 0
      %1292 = vmatpush1.bf16.msra.mxu0 0
      %1293 = vmatprep.subr.bf16.mxu0 0
      %1294 = vmatpush1.bf16.msra.mxu0 0
      %1295 = vmatprep.subr.bf16.mxu0 0
      %1296 = vmatpush1.bf16.msra.mxu0 0
      %1297 = vmatprep.subr.bf16.mxu0 0
      %1298 = vmatpush1.bf16.msra.mxu0 0
      %1299 = vmatprep.subr.bf16.mxu0 0
      %1300 = vmatpush1.bf16.msra.mxu0 0
      %1301 = vmatprep.subr.bf16.mxu0 0
      %1302 = vmatpush1.bf16.msra.mxu0 0
      %1303 = vmatprep.subr.bf16.mxu0 0
      %1304 = vmatpush1.bf16.msra.mxu0 0
      %1305 = vmatprep.subr.bf16.mxu0 0
      %1306 = vmatpush1.bf16.msra.mxu0 0
      %1307 = vmatprep.subr.bf16.mxu0 0
      %1308 = vmatpush1.bf16.msra.mxu0 0
      %1309 = vmatprep.subr.bf16.mxu0 0
      %1310 = vmatpush1.bf16.msra.mxu0 0
      %1311 = vmatprep.subr.bf16.mxu0 0
      %1312 = vmatpush1.bf16.msra.mxu0 0
      %1313 = vmatprep.subr.bf16.mxu0 0
      %1314 = vmatpush1.bf16.msra.mxu0 0
      %1315 = vmatprep.subr.bf16.mxu0 0
      %1316 = vmatpush1.bf16.msra.mxu0 0
      %1317 = vmatprep.subr.bf16.mxu0 0
      %1318 = vmatpush1.bf16.msra.mxu0 0
      %1319 = vmatprep.mubr.bf16.mxu0 0
      %1320 = vmatmul.mubr.bf16.gmra.mrb[0].mxu0 %v1123
      %v1321 = vpop.f32.mrb[0].mxu0
      %v1322 = vadd.f32 %v1095, %v1321
      %v1323 = vpop.f32.mrb[0].mxu0
      %v1324 = vadd.f32 %v1095, %v1323
      %v1325 = vpop.f32.mrb[0].mxu0
      %v1326 = vadd.f32 %v1100, %v1325
      %v1327 = vpop.f32.mrb[0].mxu0
      %v1328 = vadd.f32 %v1100, %v1327
      %1329 = vmatprep.mubr.bf16.mxu0 0
      %1330 = vmatmul.mubr.bf16.gmra.mrb[0].mxu0 %v1126
      %v1331 = vpop.f32.mrb[0].mxu0
      %v1332 = vadd.f32 %v1105, %v1331
      %v1333 = vpop.f32.mrb[0].mxu0
      %v1334 = vadd.f32 %v1105, %v1333
      %v1335 = vpop.f32.mrb[0].mxu0
      %v1336 = vadd.f32 %v1110, %v1335
      %v1337 = vpop.f32.mrb[0].mxu0
      %v1338 = vadd.f32 %v1110, %v1337
      %1339 = vdwg.mxu0
      %v1340 = vtanh.pop %v1163
      %v1341 = vtanh.pop %v1165
      %v1342 = vtanh.pop %v1216
      %v1343 = vtanh.pop %v1218
      %v1344 = vtanh.pop %v1269
      %v1345 = vtanh.pop %v1271
      %v1346 = vtanh.pop %v1322
      %v1347 = vtanh.pop %v1324
      %v1348 = vtanh.pop %v1167
      %v1349 = vtanh.pop %v1169
      %v1350 = vtanh.pop %v1220
      %v1351 = vtanh.pop %v1222
      %v1352 = vtanh.pop %v1273
      %v1353 = vtanh.pop %v1275
      %v1354 = vtanh.pop %v1326
      %v1355 = vtanh.pop %v1328
      %v1356 = vtanh.pop %v1173
      %v1357 = vtanh.pop %v1175
      %v1358 = vtanh.pop %v1226
      %v1359 = vtanh.pop %v1228
      %v1360 = vtanh.pop %v1279
      %v1361 = vtanh.pop %v1281
      %v1362 = vtanh.pop %v1332
      %v1363 = vtanh.pop %v1334
      %v1364 = vtanh.pop %v1177
      %v1365 = vtanh.pop %v1179
      %v1366 = vtanh.pop %v1230
      %v1367 = vtanh.pop %v1232
      %v1368 = vtanh.pop %v1283
      %v1369 = vtanh.pop %v1285
      %v1370 = vtanh.pop %v1336
      %v1371 = vtanh.pop %v1338
      %v1372 = vpack.c.bf16 %v1348, %v1340
      %v1373 = vpack.c.bf16 %v1349, %v1341
      %v1374 = vpack.c.bf16 %v1350, %v1342
      %v1375 = vpack.c.bf16 %v1351, %v1343
      %v1376 = vpack.c.bf16 %v1352, %v1344
      %v1377 = vpack.c.bf16 %v1353, %v1345
      %v1378 = vpack.c.bf16 %v1354, %v1346
      %v1379 = vpack.c.bf16 %v1355, %v1347
      %v1380 = vpack.c.bf16 %v1364, %v1356
      %v1381 = vpack.c.bf16 %v1365, %v1357
      %v1382 = vpack.c.bf16 %v1366, %v1358
      %v1383 = vpack.c.bf16 %v1367, %v1359
      %v1384 = vpack.c.bf16 %v1368, %v1360
      %v1385 = vpack.c.bf16 %v1369, %v1361
      %v1386 = vpack.c.bf16 %v1370, %v1362
      %v1387 = vpack.c.bf16 %v1371, %v1363
      %1389 = vset.pattern.permute.xlu0 0
      %1390 = vperm.xlu0 %1389, %v303
      %v1391 = vpop.permute.xlu0 %1390
      %1394 = vset.pattern.permute.xlu0 0
      %1395 = vperm.xlu0 %1394, %v304
      %v1396 = vpop.permute.xlu0 %1395
      %1399 = vset.pattern.permute.xlu0 0
      %1400 = vperm.xlu0 %1399, %v305
      %v1401 = vpop.permute.xlu0 %1400
      %1404 = vset.pattern.permute.xlu0 0
      %1405 = vperm.xlu0 %1404, %v306
      %v1406 = vpop.permute.xlu0 %1405
      %v1412 = vunpack.c.l.b16 %v283
      %v1413 = vunpack.c.l.b16 %v284
      %v1414 = vunpack.c.l.b16 %v285
      %v1415 = vunpack.c.l.b16 %v286
      %v1416 = vpack.c.b16 %v1413, %v1412
      %v1417 = vpack.c.b16 %v1415, %v1414
      %v1419 = vsel %vm529, %v1416, 0
      %v1422 = vsel %vm529, %v1417, 0
      %1424 = vmatprep.subr.bf16.mxu0 %v1373
      %1425 = vmatpush1.bf16.msra.mxu0 %v1372
      %1426 = vmatprep.subr.bf16.mxu0 %v1381
      %1427 = vmatpush1.bf16.msra.mxu0 %v1380
      %1428 = vmatprep.subr.bf16.mxu0 0
      %1429 = vmatpush1.bf16.msra.mxu0 0
      %1430 = vmatprep.subr.bf16.mxu0 0
      %1431 = vmatpush1.bf16.msra.mxu0 0
      %1432 = vmatprep.subr.bf16.mxu0 0
      %1433 = vmatpush1.bf16.msra.mxu0 0
      %1434 = vmatprep.subr.bf16.mxu0 0
      %1435 = vmatpush1.bf16.msra.mxu0 0
      %1436 = vmatprep.subr.bf16.mxu0 0
      %1437 = vmatpush1.bf16.msra.mxu0 0
      %1438 = vmatprep.subr.bf16.mxu0 0
      %1439 = vmatpush1.bf16.msra.mxu0 0
      %1440 = vmatprep.subr.bf16.mxu0 0
      %1441 = vmatpush1.bf16.msra.mxu0 0
      %1442 = vmatprep.subr.bf16.mxu0 0
      %1443 = vmatpush1.bf16.msra.mxu0 0
      %1444 = vmatprep.subr.bf16.mxu0 0
      %1445 = vmatpush1.bf16.msra.mxu0 0
      %1446 = vmatprep.subr.bf16.mxu0 0
      %1447 = vmatpush1.bf16.msra.mxu0 0
      %1448 = vmatprep.subr.bf16.mxu0 0
      %1449 = vmatpush1.bf16.msra.mxu0 0
      %1450 = vmatprep.subr.bf16.mxu0 0
      %1451 = vmatpush1.bf16.msra.mxu0 0
      %1452 = vmatprep.subr.bf16.mxu0 0
      %1453 = vmatpush1.bf16.msra.mxu0 0
      %1454 = vmatprep.subr.bf16.mxu0 0
      %1455 = vmatpush1.bf16.msra.mxu0 0
      %1456 = vmatprep.mubr.bf16.mxu0 0
      %1457 = vmatmul.mubr.bf16.gmra.mrb[0].mxu0 %v1419
      %v1458 = vpop.f32.mrb[0].mxu0
      %v1459 = vadd.f32 %v1391, %v1458
      %v1460 = vpop.f32.mrb[0].mxu0
      %v1461 = vadd.f32 %v1391, %v1460
      %v1462 = vpop.f32.mrb[0].mxu0
      %v1463 = vadd.f32 %v1396, %v1462
      %v1464 = vpop.f32.mrb[0].mxu0
      %v1465 = vadd.f32 %v1396, %v1464
      %1466 = vmatprep.mubr.bf16.mxu0 0
      %1467 = vmatmul.mubr.bf16.gmra.mrb[0].mxu0 %v1422
      %v1468 = vpop.f32.mrb[0].mxu0
      %v1469 = vadd.f32 %v1401, %v1468
      %v1470 = vpop.f32.mrb[0].mxu0
      %v1471 = vadd.f32 %v1401, %v1470
      %v1472 = vpop.f32.mrb[0].mxu0
      %v1473 = vadd.f32 %v1406, %v1472
      %v1474 = vpop.f32.mrb[0].mxu0
      %v1475 = vadd.f32 %v1406, %v1474
      %1476 = vdwg.mxu0
      %1477 = vmatprep.subr.bf16.mxu0 %v1375
      %1478 = vmatpush1.bf16.msra.mxu0 %v1374
      %1479 = vmatprep.subr.bf16.mxu0 %v1383
      %1480 = vmatpush1.bf16.msra.mxu0 %v1382
      %1481 = vmatprep.subr.bf16.mxu0 0
      %1482 = vmatpush1.bf16.msra.mxu0 0
      %1483 = vmatprep.subr.bf16.mxu0 0
      %1484 = vmatpush1.bf16.msra.mxu0 0
      %1485 = vmatprep.subr.bf16.mxu0 0
      %1486 = vmatpush1.bf16.msra.mxu0 0
      %1487 = vmatprep.subr.bf16.mxu0 0
      %1488 = vmatpush1.bf16.msra.mxu0 0
      %1489 = vmatprep.subr.bf16.mxu0 0
      %1490 = vmatpush1.bf16.msra.mxu0 0
      %1491 = vmatprep.subr.bf16.mxu0 0
      %1492 = vmatpush1.bf16.msra.mxu0 0
      %1493 = vmatprep.subr.bf16.mxu0 0
      %1494 = vmatpush1.bf16.msra.mxu0 0
      %1495 = vmatprep.subr.bf16.mxu0 0
      %1496 = vmatpush1.bf16.msra.mxu0 0
      %1497 = vmatprep.subr.bf16.mxu0 0
      %1498 = vmatpush1.bf16.msra.mxu0 0
      %1499 = vmatprep.subr.bf16.mxu0 0
      %1500 = vmatpush1.bf16.msra.mxu0 0
      %1501 = vmatprep.subr.bf16.mxu0 0
      %1502 = vmatpush1.bf16.msra.mxu0 0
      %1503 = vmatprep.subr.bf16.mxu0 0
      %1504 = vmatpush1.bf16.msra.mxu0 0
      %1505 = vmatprep.subr.bf16.mxu0 0
      %1506 = vmatpush1.bf16.msra.mxu0 0
      %1507 = vmatprep.subr.bf16.mxu0 0
      %1508 = vmatpush1.bf16.msra.mxu0 0
      %1509 = vmatprep.mubr.bf16.mxu0 0
      %1510 = vmatmul.mubr.bf16.gmra.mrb[0].mxu0 %v1419
      %v1511 = vpop.f32.mrb[0].mxu0
      %v1512 = vadd.f32 %v1391, %v1511
      %v1513 = vpop.f32.mrb[0].mxu0
      %v1514 = vadd.f32 %v1391, %v1513
      %v1515 = vpop.f32.mrb[0].mxu0
      %v1516 = vadd.f32 %v1396, %v1515
      %v1517 = vpop.f32.mrb[0].mxu0
      %v1518 = vadd.f32 %v1396, %v1517
      %1519 = vmatprep.mubr.bf16.mxu0 0
      %1520 = vmatmul.mubr.bf16.gmra.mrb[0].mxu0 %v1422
      %v1521 = vpop.f32.mrb[0].mxu0
      %v1522 = vadd.f32 %v1401, %v1521
      %v1523 = vpop.f32.mrb[0].mxu0
      %v1524 = vadd.f32 %v1401, %v1523
      %v1525 = vpop.f32.mrb[0].mxu0
      %v1526 = vadd.f32 %v1406, %v1525
      %v1527 = vpop.f32.mrb[0].mxu0
      %v1528 = vadd.f32 %v1406, %v1527
      %1529 = vdwg.mxu0
      %1530 = vmatprep.subr.bf16.mxu0 %v1377
      %1531 = vmatpush1.bf16.msra.mxu0 %v1376
      %1532 = vmatprep.subr.bf16.mxu0 %v1385
      %1533 = vmatpush1.bf16.msra.mxu0 %v1384
      %1534 = vmatprep.subr.bf16.mxu0 0
      %1535 = vmatpush1.bf16.msra.mxu0 0
      %1536 = vmatprep.subr.bf16.mxu0 0
      %1537 = vmatpush1.bf16.msra.mxu0 0
      %1538 = vmatprep.subr.bf16.mxu0 0
      %1539 = vmatpush1.bf16.msra.mxu0 0
      %1540 = vmatprep.subr.bf16.mxu0 0
      %1541 = vmatpush1.bf16.msra.mxu0 0
      %1542 = vmatprep.subr.bf16.mxu0 0
      %1543 = vmatpush1.bf16.msra.mxu0 0
      %1544 = vmatprep.subr.bf16.mxu0 0
      %1545 = vmatpush1.bf16.msra.mxu0 0
      %1546 = vmatprep.subr.bf16.mxu0 0
      %1547 = vmatpush1.bf16.msra.mxu0 0
      %1548 = vmatprep.subr.bf16.mxu0 0
      %1549 = vmatpush1.bf16.msra.mxu0 0
      %1550 = vmatprep.subr.bf16.mxu0 0
      %1551 = vmatpush1.bf16.msra.mxu0 0
      %1552 = vmatprep.subr.bf16.mxu0 0
      %1553 = vmatpush1.bf16.msra.mxu0 0
      %1554 = vmatprep.subr.bf16.mxu0 0
      %1555 = vmatpush1.bf16.msra.mxu0 0
      %1556 = vmatprep.subr.bf16.mxu0 0
      %1557 = vmatpush1.bf16.msra.mxu0 0
      %1558 = vmatprep.subr.bf16.mxu0 0
      %1559 = vmatpush1.bf16.msra.mxu0 0
      %1560 = vmatprep.subr.bf16.mxu0 0
      %1561 = vmatpush1.bf16.msra.mxu0 0
      %1562 = vmatprep.mubr.bf16.mxu0 0
      %1563 = vmatmul.mubr.bf16.gmra.mrb[0].mxu0 %v1419
      %v1564 = vpop.f32.mrb[0].mxu0
      %v1565 = vadd.f32 %v1391, %v1564
      %v1566 = vpop.f32.mrb[0].mxu0
      %v1567 = vadd.f32 %v1391, %v1566
      %v1568 = vpop.f32.mrb[0].mxu0
      %v1569 = vadd.f32 %v1396, %v1568
      %v1570 = vpop.f32.mrb[0].mxu0
      %v1571 = vadd.f32 %v1396, %v1570
      %1572 = vmatprep.mubr.bf16.mxu0 0
      %1573 = vmatmul.mubr.bf16.gmra.mrb[0].mxu0 %v1422
      %v1574 = vpop.f32.mrb[0].mxu0
      %v1575 = vadd.f32 %v1401, %v1574
      %v1576 = vpop.f32.mrb[0].mxu0
      %v1577 = vadd.f32 %v1401, %v1576
      %v1578 = vpop.f32.mrb[0].mxu0
      %v1579 = vadd.f32 %v1406, %v1578
      %v1580 = vpop.f32.mrb[0].mxu0
      %v1581 = vadd.f32 %v1406, %v1580
      %1582 = vdwg.mxu0
      %1583 = vmatprep.subr.bf16.mxu0 %v1379
      %1584 = vmatpush1.bf16.msra.mxu0 %v1378
      %1585 = vmatprep.subr.bf16.mxu0 %v1387
      %1586 = vmatpush1.bf16.msra.mxu0 %v1386
      %1587 = vmatprep.subr.bf16.mxu0 0
      %1588 = vmatpush1.bf16.msra.mxu0 0
      %1589 = vmatprep.subr.bf16.mxu0 0
      %1590 = vmatpush1.bf16.msra.mxu0 0
      %1591 = vmatprep.subr.bf16.mxu0 0
      %1592 = vmatpush1.bf16.msra.mxu0 0
      %1593 = vmatprep.subr.bf16.mxu0 0
      %1594 = vmatpush1.bf16.msra.mxu0 0
      %1595 = vmatprep.subr.bf16.mxu0 0
      %1596 = vmatpush1.bf16.msra.mxu0 0
      %1597 = vmatprep.subr.bf16.mxu0 0
      %1598 = vmatpush1.bf16.msra.mxu0 0
      %1599 = vmatprep.subr.bf16.mxu0 0
      %1600 = vmatpush1.bf16.msra.mxu0 0
      %1601 = vmatprep.subr.bf16.mxu0 0
      %1602 = vmatpush1.bf16.msra.mxu0 0
      %1603 = vmatprep.subr.bf16.mxu0 0
      %1604 = vmatpush1.bf16.msra.mxu0 0
      %1605 = vmatprep.subr.bf16.mxu0 0
      %1606 = vmatpush1.bf16.msra.mxu0 0
      %1607 = vmatprep.subr.bf16.mxu0 0
      %1608 = vmatpush1.bf16.msra.mxu0 0
      %1609 = vmatprep.subr.bf16.mxu0 0
      %1610 = vmatpush1.bf16.msra.mxu0 0
      %1611 = vmatprep.subr.bf16.mxu0 0
      %1612 = vmatpush1.bf16.msra.mxu0 0
      %1613 = vmatprep.subr.bf16.mxu0 0
      %1614 = vmatpush1.bf16.msra.mxu0 0
      %1615 = vmatprep.mubr.bf16.mxu0 0
      %1616 = vmatmul.mubr.bf16.gmra.mrb[0].mxu0 %v1419
      %v1617 = vpop.f32.mrb[0].mxu0
      %v1618 = vadd.f32 %v1391, %v1617
      %v1619 = vpop.f32.mrb[0].mxu0
      %v1620 = vadd.f32 %v1391, %v1619
      %v1621 = vpop.f32.mrb[0].mxu0
      %v1622 = vadd.f32 %v1396, %v1621
      %v1623 = vpop.f32.mrb[0].mxu0
      %v1624 = vadd.f32 %v1396, %v1623
      %1625 = vmatprep.mubr.bf16.mxu0 0
      %1626 = vmatmul.mubr.bf16.gmra.mrb[0].mxu0 %v1422
      %v1627 = vpop.f32.mrb[0].mxu0
      %v1628 = vadd.f32 %v1401, %v1627
      %v1629 = vpop.f32.mrb[0].mxu0
      %v1630 = vadd.f32 %v1401, %v1629
      %v1631 = vpop.f32.mrb[0].mxu0
      %v1632 = vadd.f32 %v1406, %v1631
      %v1633 = vpop.f32.mrb[0].mxu0
      %v1634 = vadd.f32 %v1406, %v1633
      %1635 = vdwg.mxu0
      %v1636 = vtanh.pop %v1459
      %v1637 = vtanh.pop %v1461
      %v1638 = vtanh.pop %v1512
      %v1639 = vtanh.pop %v1514
      %v1640 = vtanh.pop %v1565
      %v1641 = vtanh.pop %v1567
      %v1642 = vtanh.pop %v1618
      %v1643 = vtanh.pop %v1620
      %v1644 = vtanh.pop %v1463
      %v1645 = vtanh.pop %v1465
      %v1646 = vtanh.pop %v1516
      %v1647 = vtanh.pop %v1518
      %v1648 = vtanh.pop %v1569
      %v1649 = vtanh.pop %v1571
      %v1650 = vtanh.pop %v1622
      %v1651 = vtanh.pop %v1624
      %v1652 = vtanh.pop %v1469
      %v1653 = vtanh.pop %v1471
      %v1654 = vtanh.pop %v1522
      %v1655 = vtanh.pop %v1524
      %v1656 = vtanh.pop %v1575
      %v1657 = vtanh.pop %v1577
      %v1658 = vtanh.pop %v1628
      %v1659 = vtanh.pop %v1630
      %v1660 = vtanh.pop %v1473
      %v1661 = vtanh.pop %v1475
      %v1662 = vtanh.pop %v1526
      %v1663 = vtanh.pop %v1528
      %v1664 = vtanh.pop %v1579
      %v1665 = vtanh.pop %v1581
      %v1666 = vtanh.pop %v1632
      %v1667 = vtanh.pop %v1634
      %1669 = vset.pattern.permute.xlu0 0
      %1670 = vperm.xlu0 %1669, %v263
      %v1671 = vpop.permute.xlu0 %1670
      %1674 = vset.pattern.permute.xlu0 0
      %1675 = vperm.xlu0 %1674, %v264
      %v1676 = vpop.permute.xlu0 %1675
      %1679 = vset.pattern.permute.xlu0 0
      %1680 = vperm.xlu0 %1679, %v265
      %v1681 = vpop.permute.xlu0 %1680
      %1684 = vset.pattern.permute.xlu0 0
      %1685 = vperm.xlu0 %1684, %v266
      %v1686 = vpop.permute.xlu0 %1685
      %v1688 = vmul.f32 %v1671, %v1636
      %v1689 = vmul.f32 %v1671, %v1637
      %v1690 = vmul.f32 %v1671, %v1638
      %v1691 = vmul.f32 %v1671, %v1639
      %v1692 = vmul.f32 %v1671, %v1640
      %v1693 = vmul.f32 %v1671, %v1641
      %v1694 = vmul.f32 %v1671, %v1642
      %v1695 = vmul.f32 %v1671, %v1643
      %v1696 = vmul.f32 %v1676, %v1644
      %v1697 = vmul.f32 %v1676, %v1645
      %v1698 = vmul.f32 %v1676, %v1646
      %v1699 = vmul.f32 %v1676, %v1647
      %v1700 = vmul.f32 %v1676, %v1648
      %v1701 = vmul.f32 %v1676, %v1649
      %v1702 = vmul.f32 %v1676, %v1650
      %v1703 = vmul.f32 %v1676, %v1651
      %v1704 = vmul.f32 %v1681, %v1652
      %v1705 = vmul.f32 %v1681, %v1653
      %v1706 = vmul.f32 %v1681, %v1654
      %v1707 = vmul.f32 %v1681, %v1655
      %v1708 = vmul.f32 %v1681, %v1656
      %v1709 = vmul.f32 %v1681, %v1657
      %v1710 = vmul.f32 %v1681, %v1658
      %v1711 = vmul.f32 %v1681, %v1659
      %v1712 = vmul.f32 %v1686, %v1660
      %v1713 = vmul.f32 %v1686, %v1661
      %v1714 = vmul.f32 %v1686, %v1662
      %v1715 = vmul.f32 %v1686, %v1663
      %v1716 = vmul.f32 %v1686, %v1664
      %v1717 = vmul.f32 %v1686, %v1665
      %v1718 = vmul.f32 %v1686, %v1666
      %v1719 = vmul.f32 %v1686, %v1667
      %v1720 = vadd.f32 %v1688, %v1696
      %v1721 = vadd.f32 %v1720, %v1704
      %v1722 = vadd.f32 %v1721, %v1712
      %v1723 = vrot.slane %v1722, 4
      %v1724 = vadd.f32 %v1722, %v1723
      %v1725 = vrot.slane %v1724, 2
      %v1726 = vadd.f32 %v1724, %v1725
      %v1727 = vrot.slane %v1726, 1
      %v1728 = vadd.f32 %v1726, %v1727
      %v1729 = vadd.f32 %v1689, %v1697
      %v1730 = vadd.f32 %v1729, %v1705
      %v1731 = vadd.f32 %v1730, %v1713
      %v1732 = vrot.slane %v1731, 4
      %v1733 = vadd.f32 %v1731, %v1732
      %v1734 = vrot.slane %v1733, 2
      %v1735 = vadd.f32 %v1733, %v1734
      %v1736 = vrot.slane %v1735, 1
      %v1737 = vadd.f32 %v1735, %v1736
      %v1738 = vadd.f32 %v1690, %v1698
      %v1739 = vadd.f32 %v1738, %v1706
      %v1740 = vadd.f32 %v1739, %v1714
      %v1741 = vrot.slane %v1740, 4
      %v1742 = vadd.f32 %v1740, %v1741
      %v1743 = vrot.slane %v1742, 2
      %v1744 = vadd.f32 %v1742, %v1743
      %v1745 = vrot.slane %v1744, 1
      %v1746 = vadd.f32 %v1744, %v1745
      %v1747 = vadd.f32 %v1691, %v1699
      %v1748 = vadd.f32 %v1747, %v1707
      %v1749 = vadd.f32 %v1748, %v1715
      %v1750 = vrot.slane %v1749, 4
      %v1751 = vadd.f32 %v1749, %v1750
      %v1752 = vrot.slane %v1751, 2
      %v1753 = vadd.f32 %v1751, %v1752
      %v1754 = vrot.slane %v1753, 1
      %v1755 = vadd.f32 %v1753, %v1754
      %v1756 = vadd.f32 %v1692, %v1700
      %v1757 = vadd.f32 %v1756, %v1708
      %v1758 = vadd.f32 %v1757, %v1716
      %v1759 = vrot.slane %v1758, 4
      %v1760 = vadd.f32 %v1758, %v1759
      %v1761 = vrot.slane %v1760, 2
      %v1762 = vadd.f32 %v1760, %v1761
      %v1763 = vrot.slane %v1762, 1
      %v1764 = vadd.f32 %v1762, %v1763
      %v1765 = vadd.f32 %v1693, %v1701
      %v1766 = vadd.f32 %v1765, %v1709
      %v1767 = vadd.f32 %v1766, %v1717
      %v1768 = vrot.slane %v1767, 4
      %v1769 = vadd.f32 %v1767, %v1768
      %v1770 = vrot.slane %v1769, 2
      %v1771 = vadd.f32 %v1769, %v1770
      %v1772 = vrot.slane %v1771, 1
      %v1773 = vadd.f32 %v1771, %v1772
      %v1774 = vadd.f32 %v1694, %v1702
      %v1775 = vadd.f32 %v1774, %v1710
      %v1776 = vadd.f32 %v1775, %v1718
      %v1777 = vrot.slane %v1776, 4
      %v1778 = vadd.f32 %v1776, %v1777
      %v1779 = vrot.slane %v1778, 2
      %v1780 = vadd.f32 %v1778, %v1779
      %v1781 = vrot.slane %v1780, 1
      %v1782 = vadd.f32 %v1780, %v1781
      %v1783 = vadd.f32 %v1695, %v1703
      %v1784 = vadd.f32 %v1783, %v1711
      %v1785 = vadd.f32 %v1784, %v1719
      %v1786 = vrot.slane %v1785, 4
      %v1787 = vadd.f32 %v1785, %v1786
      %v1788 = vrot.slane %v1787, 2
      %v1789 = vadd.f32 %v1787, %v1788
      %v1790 = vrot.slane %v1789, 1
      %v1791 = vadd.f32 %v1789, %v1790
      %1793 = vset.pattern.permute.xlu0 0
      %1794 = vperm.xlu0 %1793, %v267
      %v1795 = vpop.permute.xlu0 %1794
      %v1797 = vlaneseq
      %v1798 = vshrl.u32 %v1797, 7
      %v1799 = vsub.s32 0, %v1798
      %v1800 = vrot.slane %v1795, %v1799
      %v1801 = vadd.f32 %v1728, %v1800
      %v1802 = vadd.f32 %v1737, %v1800
      %v1803 = vadd.f32 %v1746, %v1800
      %v1804 = vadd.f32 %v1755, %v1800
      %v1805 = vadd.f32 %v1764, %v1800
      %v1806 = vadd.f32 %v1773, %v1800
      %v1807 = vadd.f32 %v1782, %v1800
      %v1808 = vadd.f32 %v1791, %v1800
      %v1817 = vcombine.low %v1801, %v1802
      %v1818 = vcombine.low %v1803, %v1804
      %v1819 = vcombine.low %v1805, %v1806
      %v1820 = vcombine.low %v1807, %v1808
      %v1822 = vunpack.c.l.s4 1966171168
      %v1823 = vunpack.c.0.s8 %v1822
      %v1824 = vlaneseq
      %v1825 = vshrl.u32 %v1824, 7
      %v1826 = vsub.s32 %v1823, %v1825
      %v1827 = vrot.slane %v1817, %v1826
      %v1829 = vunpack.c.l.s4 1966171168
      %v1830 = vunpack.c.0.s8 %v1829
      %v1831 = vlaneseq
      %v1832 = vshrl.u32 %v1831, 7
      %v1833 = vsub.s32 %v1830, %v1832
      %v1834 = vrot.slane %v1818, %v1833
      %v1836 = vunpack.c.l.s4 1966171168
      %v1837 = vunpack.c.0.s8 %v1836
      %v1838 = vlaneseq
      %v1839 = vshrl.u32 %v1838, 7
      %v1840 = vsub.s32 %v1837, %v1839
      %v1841 = vrot.slane %v1819, %v1840
      %v1843 = vunpack.c.l.s4 1966171168
      %v1844 = vunpack.c.0.s8 %v1843
      %v1845 = vlaneseq
      %v1846 = vshrl.u32 %v1845, 7
      %v1847 = vsub.s32 %v1844, %v1846
      %v1848 = vrot.slane %v1820, %v1847
      %v1849 = vcombine.low %v1827, %v1834
      %v1850 = vcombine.low %v1841, %v1848
      %v1852 = vunpack.c.l.s4 1966171168
      %v1853 = vunpack.c.0.s8 %v1852
      %v1854 = vlaneseq
      %v1855 = vshrl.u32 %v1854, 7
      %v1856 = vsub.s32 %v1853, %v1855
      %v1857 = vrot.slane %v1849, %v1856
      %v1859 = vunpack.c.l.s4 1966171168
      %v1860 = vunpack.c.0.s8 %v1859
      %v1861 = vlaneseq
      %v1862 = vshrl.u32 %v1861, 7
      %v1863 = vsub.s32 %v1860, %v1862
      %v1864 = vrot.slane %v1850, %v1863
      %v1865 = vcombine.low %v1857, %v1864
      %1867 = vst [vmem:[%s253] ss:$8 sm:$0xf] %v1865
      %1868 = vst [vmem:[%s253] ss:$8 sm:$0xf0] %v1865
      %v1869 = vlaneseq
      %v1870 = vshrl.u32 %v1869, 7
      %v1871 = vsub.s32 1, %v1870
      %v1872 = vrot.slane %v307, %v1871
      %v1873 = vlaneseq
      %v1874 = vshrl.u32 %v1873, 7
      %v1875 = vsub.s32 1, %v1874
      %v1876 = vrot.slane %v308, %v1875
      %v1877 = vlaneseq
      %v1878 = vshrl.u32 %v1877, 7
      %v1879 = vsub.s32 1, %v1878
      %v1880 = vrot.slane %v309, %v1879
      %v1881 = vlaneseq
      %v1882 = vshrl.u32 %v1881, 7
      %v1883 = vsub.s32 1, %v1882
      %v1884 = vrot.slane %v310, %v1883
      %v1885 = vlaneseq
      %v1886 = vshrl.u32 %v1885, 7
      %v1887 = vsub.s32 1, %v1886
      %v1888 = vrot.slane %v311, %v1887
      %v1889 = vlaneseq
      %v1890 = vshrl.u32 %v1889, 7
      %v1891 = vsub.s32 1, %v1890
      %v1892 = vrot.slane %v312, %v1891
      %v1893 = vlaneseq
      %v1894 = vshrl.u32 %v1893, 7
      %v1895 = vsub.s32 1, %v1894
      %v1896 = vrot.slane %v313, %v1895
      %v1897 = vlaneseq
      %v1898 = vshrl.u32 %v1897, 7
      %v1899 = vsub.s32 1, %v1898
      %v1900 = vrot.slane %v314, %v1899
      %v1901 = vmul.f32 %v318, %v1872
      %v1902 = vmul.f32 %v318, %v1876
      %v1903 = vmul.f32 %v318, %v1880
      %v1904 = vmul.f32 %v318, %v1884
      %v1905 = vmul.f32 %v318, %v1888
      %v1906 = vmul.f32 %v318, %v1892
      %v1907 = vmul.f32 %v318, %v1896
      %v1908 = vmul.f32 %v318, %v1900
      %v1909 = vmul.f32 %v323, %v1872
      %v1910 = vmul.f32 %v323, %v1876
      %v1911 = vmul.f32 %v323, %v1880
      %v1912 = vmul.f32 %v323, %v1884
      %v1913 = vmul.f32 %v323, %v1888
      %v1914 = vmul.f32 %v323, %v1892
      %v1915 = vmul.f32 %v323, %v1896
      %v1916 = vmul.f32 %v323, %v1900
      %v1917 = vmul.f32 %v328, %v1872
      %v1918 = vmul.f32 %v328, %v1876
      %v1919 = vmul.f32 %v328, %v1880
      %v1920 = vmul.f32 %v328, %v1884
      %v1921 = vmul.f32 %v328, %v1888
      %v1922 = vmul.f32 %v328, %v1892
      %v1923 = vmul.f32 %v328, %v1896
      %v1924 = vmul.f32 %v328, %v1900
      %v1925 = vmul.f32 %v333, %v1872
      %v1926 = vmul.f32 %v333, %v1876
      %v1927 = vmul.f32 %v333, %v1880
      %v1928 = vmul.f32 %v333, %v1884
      %v1929 = vmul.f32 %v333, %v1888
      %v1930 = vmul.f32 %v333, %v1892
      %v1931 = vmul.f32 %v333, %v1896
      %v1932 = vmul.f32 %v333, %v1900
      %v1933 = vadd.f32 %v1901, %v402
      %v1934 = vadd.f32 %v1902, %v402
      %v1935 = vadd.f32 %v1903, %v402
      %v1936 = vadd.f32 %v1904, %v402
      %v1937 = vadd.f32 %v1905, %v402
      %v1938 = vadd.f32 %v1906, %v402
      %v1939 = vadd.f32 %v1907, %v402
      %v1940 = vadd.f32 %v1908, %v402
      %v1941 = vadd.f32 %v1909, %v407
      %v1942 = vadd.f32 %v1910, %v407
      %v1943 = vadd.f32 %v1911, %v407
      %v1944 = vadd.f32 %v1912, %v407
      %v1945 = vadd.f32 %v1913, %v407
      %v1946 = vadd.f32 %v1914, %v407
      %v1947 = vadd.f32 %v1915, %v407
      %v1948 = vadd.f32 %v1916, %v407
      %v1949 = vadd.f32 %v1917, %v412
      %v1950 = vadd.f32 %v1918, %v412
      %v1951 = vadd.f32 %v1919, %v412
      %v1952 = vadd.f32 %v1920, %v412
      %v1953 = vadd.f32 %v1921, %v412
      %v1954 = vadd.f32 %v1922, %v412
      %v1955 = vadd.f32 %v1923, %v412
      %v1956 = vadd.f32 %v1924, %v412
      %v1957 = vadd.f32 %v1925, %v417
      %v1958 = vadd.f32 %v1926, %v417
      %v1959 = vadd.f32 %v1927, %v417
      %v1960 = vadd.f32 %v1928, %v417
      %v1961 = vadd.f32 %v1929, %v417
      %v1962 = vadd.f32 %v1930, %v417
      %v1963 = vadd.f32 %v1931, %v417
      %v1964 = vadd.f32 %v1932, %v417
      %v1965 = vtanh.pop %v1933
      %v1966 = vtanh.pop %v1934
      %v1967 = vtanh.pop %v1935
      %v1968 = vtanh.pop %v1936
      %v1969 = vtanh.pop %v1937
      %v1970 = vtanh.pop %v1938
      %v1971 = vtanh.pop %v1939
      %v1972 = vtanh.pop %v1940
      %v1973 = vtanh.pop %v1941
      %v1974 = vtanh.pop %v1942
      %v1975 = vtanh.pop %v1943
      %v1976 = vtanh.pop %v1944
      %v1977 = vtanh.pop %v1945
      %v1978 = vtanh.pop %v1946
      %v1979 = vtanh.pop %v1947
      %v1980 = vtanh.pop %v1948
      %v1981 = vtanh.pop %v1949
      %v1982 = vtanh.pop %v1950
      %v1983 = vtanh.pop %v1951
      %v1984 = vtanh.pop %v1952
      %v1985 = vtanh.pop %v1953
      %v1986 = vtanh.pop %v1954
      %v1987 = vtanh.pop %v1955
      %v1988 = vtanh.pop %v1956
      %v1989 = vtanh.pop %v1957
      %v1990 = vtanh.pop %v1958
      %v1991 = vtanh.pop %v1959
      %v1992 = vtanh.pop %v1960
      %v1993 = vtanh.pop %v1961
      %v1994 = vtanh.pop %v1962
      %v1995 = vtanh.pop %v1963
      %v1996 = vtanh.pop %v1964
      %v1997 = vpack.c.bf16 %v1973, %v1965
      %v1998 = vpack.c.bf16 %v1974, %v1966
      %v1999 = vpack.c.bf16 %v1975, %v1967
      %v2000 = vpack.c.bf16 %v1976, %v1968
      %v2001 = vpack.c.bf16 %v1977, %v1969
      %v2002 = vpack.c.bf16 %v1978, %v1970
      %v2003 = vpack.c.bf16 %v1979, %v1971
      %v2004 = vpack.c.bf16 %v1980, %v1972
      %v2005 = vpack.c.bf16 %v1989, %v1981
      %v2006 = vpack.c.bf16 %v1990, %v1982
      %v2007 = vpack.c.bf16 %v1991, %v1983
      %v2008 = vpack.c.bf16 %v1992, %v1984
      %v2009 = vpack.c.bf16 %v1993, %v1985
      %v2010 = vpack.c.bf16 %v1994, %v1986
      %v2011 = vpack.c.bf16 %v1995, %v1987
      %v2012 = vpack.c.bf16 %v1996, %v1988
      %2013 = vmatprep.subr.bf16.mxu0 %v1998
      %2014 = vmatpush1.bf16.msra.mxu0 %v1997
      %2015 = vmatprep.subr.bf16.mxu0 %v2006
      %2016 = vmatpush1.bf16.msra.mxu0 %v2005
      %2017 = vmatprep.subr.bf16.mxu0 0
      %2018 = vmatpush1.bf16.msra.mxu0 0
      %2019 = vmatprep.subr.bf16.mxu0 0
      %2020 = vmatpush1.bf16.msra.mxu0 0
      %2021 = vmatprep.subr.bf16.mxu0 0
      %2022 = vmatpush1.bf16.msra.mxu0 0
      %2023 = vmatprep.subr.bf16.mxu0 0
      %2024 = vmatpush1.bf16.msra.mxu0 0
      %2025 = vmatprep.subr.bf16.mxu0 0
      %2026 = vmatpush1.bf16.msra.mxu0 0
      %2027 = vmatprep.subr.bf16.mxu0 0
      %2028 = vmatpush1.bf16.msra.mxu0 0
      %2029 = vmatprep.subr.bf16.mxu0 0
      %2030 = vmatpush1.bf16.msra.mxu0 0
      %2031 = vmatprep.subr.bf16.mxu0 0
      %2032 = vmatpush1.bf16.msra.mxu0 0
      %2033 = vmatprep.subr.bf16.mxu0 0
      %2034 = vmatpush1.bf16.msra.mxu0 0
      %2035 = vmatprep.subr.bf16.mxu0 0
      %2036 = vmatpush1.bf16.msra.mxu0 0
      %2037 = vmatprep.subr.bf16.mxu0 0
      %2038 = vmatpush1.bf16.msra.mxu0 0
      %2039 = vmatprep.subr.bf16.mxu0 0
      %2040 = vmatpush1.bf16.msra.mxu0 0
      %2041 = vmatprep.subr.bf16.mxu0 0
      %2042 = vmatpush1.bf16.msra.mxu0 0
      %2043 = vmatprep.subr.bf16.mxu0 0
      %2044 = vmatpush1.bf16.msra.mxu0 0
      %2045 = vmatprep.mubr.bf16.mxu0 0
      %2046 = vmatmul.mubr.bf16.gmra.mrb[0].mxu0 %v531
      %v2047 = vpop.f32.mrb[0].mxu0
      %v2048 = vadd.f32 %v502, %v2047
      %v2049 = vpop.f32.mrb[0].mxu0
      %v2050 = vadd.f32 %v502, %v2049
      %v2051 = vpop.f32.mrb[0].mxu0
      %v2052 = vadd.f32 %v507, %v2051
      %v2053 = vpop.f32.mrb[0].mxu0
      %v2054 = vadd.f32 %v507, %v2053
      %2055 = vmatprep.mubr.bf16.mxu0 0
      %2056 = vmatmul.mubr.bf16.gmra.mrb[0].mxu0 %v534
      %v2057 = vpop.f32.mrb[0].mxu0
      %v2058 = vadd.f32 %v512, %v2057
      %v2059 = vpop.f32.mrb[0].mxu0
      %v2060 = vadd.f32 %v512, %v2059
      %v2061 = vpop.f32.mrb[0].mxu0
      %v2062 = vadd.f32 %v517, %v2061
      %v2063 = vpop.f32.mrb[0].mxu0
      %v2064 = vadd.f32 %v517, %v2063
      %2065 = vdwg.mxu0
      %2066 = vmatprep.subr.bf16.mxu0 %v2000
      %2067 = vmatpush1.bf16.msra.mxu0 %v1999
      %2068 = vmatprep.subr.bf16.mxu0 %v2008
      %2069 = vmatpush1.bf16.msra.mxu0 %v2007
      %2070 = vmatprep.subr.bf16.mxu0 0
      %2071 = vmatpush1.bf16.msra.mxu0 0
      %2072 = vmatprep.subr.bf16.mxu0 0
      %2073 = vmatpush1.bf16.msra.mxu0 0
      %2074 = vmatprep.subr.bf16.mxu0 0
      %2075 = vmatpush1.bf16.msra.mxu0 0
      %2076 = vmatprep.subr.bf16.mxu0 0
      %2077 = vmatpush1.bf16.msra.mxu0 0
      %2078 = vmatprep.subr.bf16.mxu0 0
      %2079 = vmatpush1.bf16.msra.mxu0 0
      %2080 = vmatprep.subr.bf16.mxu0 0
      %2081 = vmatpush1.bf16.msra.mxu0 0
      %2082 = vmatprep.subr.bf16.mxu0 0
      %2083 = vmatpush1.bf16.msra.mxu0 0
      %2084 = vmatprep.subr.bf16.mxu0 0
      %2085 = vmatpush1.bf16.msra.mxu0 0
      %2086 = vmatprep.subr.bf16.mxu0 0
      %2087 = vmatpush1.bf16.msra.mxu0 0
      %2088 = vmatprep.subr.bf16.mxu0 0
      %2089 = vmatpush1.bf16.msra.mxu0 0
      %2090 = vmatprep.subr.bf16.mxu0 0
      %2091 = vmatpush1.bf16.msra.mxu0 0
      %2092 = vmatprep.subr.bf16.mxu0 0
      %2093 = vmatpush1.bf16.msra.mxu0 0
      %2094 = vmatprep.subr.bf16.mxu0 0
      %2095 = vmatpush1.bf16.msra.mxu0 0
      %2096 = vmatprep.subr.bf16.mxu0 0
      %2097 = vmatpush1.bf16.msra.mxu0 0
      %2098 = vmatprep.mubr.bf16.mxu0 0
      %2099 = vmatmul.mubr.bf16.gmra.mrb[0].mxu0 %v531
      %v2100 = vpop.f32.mrb[0].mxu0
      %v2101 = vadd.f32 %v502, %v2100
      %v2102 = vpop.f32.mrb[0].mxu0
      %v2103 = vadd.f32 %v502, %v2102
      %v2104 = vpop.f32.mrb[0].mxu0
      %v2105 = vadd.f32 %v507, %v2104
      %v2106 = vpop.f32.mrb[0].mxu0
      %v2107 = vadd.f32 %v507, %v2106
      %2108 = vmatprep.mubr.bf16.mxu0 0
      %2109 = vmatmul.mubr.bf16.gmra.mrb[0].mxu0 %v534
      %v2110 = vpop.f32.mrb[0].mxu0
      %v2111 = vadd.f32 %v512, %v2110
      %v2112 = vpop.f32.mrb[0].mxu0
      %v2113 = vadd.f32 %v512, %v2112
      %v2114 = vpop.f32.mrb[0].mxu0
      %v2115 = vadd.f32 %v517, %v2114
      %v2116 = vpop.f32.mrb[0].mxu0
      %v2117 = vadd.f32 %v517, %v2116
      %2118 = vdwg.mxu0
      %2119 = vmatprep.subr.bf16.mxu0 %v2002
      %2120 = vmatpush1.bf16.msra.mxu0 %v2001
      %2121 = vmatprep.subr.bf16.mxu0 %v2010
      %2122 = vmatpush1.bf16.msra.mxu0 %v2009
      %2123 = vmatprep.subr.bf16.mxu0 0
      %2124 = vmatpush1.bf16.msra.mxu0 0
      %2125 = vmatprep.subr.bf16.mxu0 0
      %2126 = vmatpush1.bf16.msra.mxu0 0
      %2127 = vmatprep.subr.bf16.mxu0 0
      %2128 = vmatpush1.bf16.msra.mxu0 0
      %2129 = vmatprep.subr.bf16.mxu0 0
      %2130 = vmatpush1.bf16.msra.mxu0 0
      %2131 = vmatprep.subr.bf16.mxu0 0
      %2132 = vmatpush1.bf16.msra.mxu0 0
      %2133 = vmatprep.subr.bf16.mxu0 0
      %2134 = vmatpush1.bf16.msra.mxu0 0
      %2135 = vmatprep.subr.bf16.mxu0 0
      %2136 = vmatpush1.bf16.msra.mxu0 0
      %2137 = vmatprep.subr.bf16.mxu0 0
      %2138 = vmatpush1.bf16.msra.mxu0 0
      %2139 = vmatprep.subr.bf16.mxu0 0
      %2140 = vmatpush1.bf16.msra.mxu0 0
      %2141 = vmatprep.subr.bf16.mxu0 0
      %2142 = vmatpush1.bf16.msra.mxu0 0
      %2143 = vmatprep.subr.bf16.mxu0 0
      %2144 = vmatpush1.bf16.msra.mxu0 0
      %2145 = vmatprep.subr.bf16.mxu0 0
      %2146 = vmatpush1.bf16.msra.mxu0 0
      %2147 = vmatprep.subr.bf16.mxu0 0
      %2148 = vmatpush1.bf16.msra.mxu0 0
      %2149 = vmatprep.subr.bf16.mxu0 0
      %2150 = vmatpush1.bf16.msra.mxu0 0
      %2151 = vmatprep.mubr.bf16.mxu0 0
      %2152 = vmatmul.mubr.bf16.gmra.mrb[0].mxu0 %v531
      %v2153 = vpop.f32.mrb[0].mxu0
      %v2154 = vadd.f32 %v502, %v2153
      %v2155 = vpop.f32.mrb[0].mxu0
      %v2156 = vadd.f32 %v502, %v2155
      %v2157 = vpop.f32.mrb[0].mxu0
      %v2158 = vadd.f32 %v507, %v2157
      %v2159 = vpop.f32.mrb[0].mxu0
      %v2160 = vadd.f32 %v507, %v2159
      %2161 = vmatprep.mubr.bf16.mxu0 0
      %2162 = vmatmul.mubr.bf16.gmra.mrb[0].mxu0 %v534
      %v2163 = vpop.f32.mrb[0].mxu0
      %v2164 = vadd.f32 %v512, %v2163
      %v2165 = vpop.f32.mrb[0].mxu0
      %v2166 = vadd.f32 %v512, %v2165
      %v2167 = vpop.f32.mrb[0].mxu0
      %v2168 = vadd.f32 %v517, %v2167
      %v2169 = vpop.f32.mrb[0].mxu0
      %v2170 = vadd.f32 %v517, %v2169
      %2171 = vdwg.mxu0
      %2172 = vmatprep.subr.bf16.mxu0 %v2004
      %2173 = vmatpush1.bf16.msra.mxu0 %v2003
      %2174 = vmatprep.subr.bf16.mxu0 %v2012
      %2175 = vmatpush1.bf16.msra.mxu0 %v2011
      %2176 = vmatprep.subr.bf16.mxu0 0
      %2177 = vmatpush1.bf16.msra.mxu0 0
      %2178 = vmatprep.subr.bf16.mxu0 0
      %2179 = vmatpush1.bf16.msra.mxu0 0
      %2180 = vmatprep.subr.bf16.mxu0 0
      %2181 = vmatpush1.bf16.msra.mxu0 0
      %2182 = vmatprep.subr.bf16.mxu0 0
      %2183 = vmatpush1.bf16.msra.mxu0 0
      %2184 = vmatprep.subr.bf16.mxu0 0
      %2185 = vmatpush1.bf16.msra.mxu0 0
      %2186 = vmatprep.subr.bf16.mxu0 0
      %2187 = vmatpush1.bf16.msra.mxu0 0
      %2188 = vmatprep.subr.bf16.mxu0 0
      %2189 = vmatpush1.bf16.msra.mxu0 0
      %2190 = vmatprep.subr.bf16.mxu0 0
      %2191 = vmatpush1.bf16.msra.mxu0 0
      %2192 = vmatprep.subr.bf16.mxu0 0
      %2193 = vmatpush1.bf16.msra.mxu0 0
      %2194 = vmatprep.subr.bf16.mxu0 0
      %2195 = vmatpush1.bf16.msra.mxu0 0
      %2196 = vmatprep.subr.bf16.mxu0 0
      %2197 = vmatpush1.bf16.msra.mxu0 0
      %2198 = vmatprep.subr.bf16.mxu0 0
      %2199 = vmatpush1.bf16.msra.mxu0 0
      %2200 = vmatprep.subr.bf16.mxu0 0
      %2201 = vmatpush1.bf16.msra.mxu0 0
      %2202 = vmatprep.subr.bf16.mxu0 0
      %2203 = vmatpush1.bf16.msra.mxu0 0
      %2204 = vmatprep.mubr.bf16.mxu0 0
      %2205 = vmatmul.mubr.bf16.gmra.mrb[0].mxu0 %v531
      %v2206 = vpop.f32.mrb[0].mxu0
      %v2207 = vadd.f32 %v502, %v2206
      %v2208 = vpop.f32.mrb[0].mxu0
      %v2209 = vadd.f32 %v502, %v2208
      %v2210 = vpop.f32.mrb[0].mxu0
      %v2211 = vadd.f32 %v507, %v2210
      %v2212 = vpop.f32.mrb[0].mxu0
      %v2213 = vadd.f32 %v507, %v2212
      %2214 = vmatprep.mubr.bf16.mxu0 0
      %2215 = vmatmul.mubr.bf16.gmra.mrb[0].mxu0 %v534
      %v2216 = vpop.f32.mrb[0].mxu0
      %v2217 = vadd.f32 %v512, %v2216
      %v2218 = vpop.f32.mrb[0].mxu0
      %v2219 = vadd.f32 %v512, %v2218
      %v2220 = vpop.f32.mrb[0].mxu0
      %v2221 = vadd.f32 %v517, %v2220
      %v2222 = vpop.f32.mrb[0].mxu0
      %v2223 = vadd.f32 %v517, %v2222
      %2224 = vdwg.mxu0
      %v2225 = vtanh.pop %v2048
      %v2226 = vtanh.pop %v2050
      %v2227 = vtanh.pop %v2101
      %v2228 = vtanh.pop %v2103
      %v2229 = vtanh.pop %v2154
      %v2230 = vtanh.pop %v2156
      %v2231 = vtanh.pop %v2207
      %v2232 = vtanh.pop %v2209
      %v2233 = vtanh.pop %v2052
      %v2234 = vtanh.pop %v2054
      %v2235 = vtanh.pop %v2105
      %v2236 = vtanh.pop %v2107
      %v2237 = vtanh.pop %v2158
      %v2238 = vtanh.pop %v2160
      %v2239 = vtanh.pop %v2211
      %v2240 = vtanh.pop %v2213
      %v2241 = vtanh.pop %v2058
      %v2242 = vtanh.pop %v2060
      %v2243 = vtanh.pop %v2111
      %v2244 = vtanh.pop %v2113
      %v2245 = vtanh.pop %v2164
      %v2246 = vtanh.pop %v2166
      %v2247 = vtanh.pop %v2217
      %v2248 = vtanh.pop %v2219
      %v2249 = vtanh.pop %v2062
      %v2250 = vtanh.pop %v2064
      %v2251 = vtanh.pop %v2115
      %v2252 = vtanh.pop %v2117
      %v2253 = vtanh.pop %v2168
      %v2254 = vtanh.pop %v2170
      %v2255 = vtanh.pop %v2221
      %v2256 = vtanh.pop %v2223
      %v2257 = vpack.c.bf16 %v2233, %v2225
      %v2258 = vpack.c.bf16 %v2234, %v2226
      %v2259 = vpack.c.bf16 %v2235, %v2227
      %v2260 = vpack.c.bf16 %v2236, %v2228
      %v2261 = vpack.c.bf16 %v2237, %v2229
      %v2262 = vpack.c.bf16 %v2238, %v2230
      %v2263 = vpack.c.bf16 %v2239, %v2231
      %v2264 = vpack.c.bf16 %v2240, %v2232
      %v2265 = vpack.c.bf16 %v2249, %v2241
      %v2266 = vpack.c.bf16 %v2250, %v2242
      %v2267 = vpack.c.bf16 %v2251, %v2243
      %v2268 = vpack.c.bf16 %v2252, %v2244
      %v2269 = vpack.c.bf16 %v2253, %v2245
      %v2270 = vpack.c.bf16 %v2254, %v2246
      %v2271 = vpack.c.bf16 %v2255, %v2247
      %v2272 = vpack.c.bf16 %v2256, %v2248
      %2273 = vmatprep.subr.bf16.mxu0 %v2258
      %2274 = vmatpush1.bf16.msra.mxu0 %v2257
      %2275 = vmatprep.subr.bf16.mxu0 %v2266
      %2276 = vmatpush1.bf16.msra.mxu0 %v2265
      %2277 = vmatprep.subr.bf16.mxu0 0
      %2278 = vmatpush1.bf16.msra.mxu0 0
      %2279 = vmatprep.subr.bf16.mxu0 0
      %2280 = vmatpush1.bf16.msra.mxu0 0
      %2281 = vmatprep.subr.bf16.mxu0 0
      %2282 = vmatpush1.bf16.msra.mxu0 0
      %2283 = vmatprep.subr.bf16.mxu0 0
      %2284 = vmatpush1.bf16.msra.mxu0 0
      %2285 = vmatprep.subr.bf16.mxu0 0
      %2286 = vmatpush1.bf16.msra.mxu0 0
      %2287 = vmatprep.subr.bf16.mxu0 0
      %2288 = vmatpush1.bf16.msra.mxu0 0
      %2289 = vmatprep.subr.bf16.mxu0 0
      %2290 = vmatpush1.bf16.msra.mxu0 0
      %2291 = vmatprep.subr.bf16.mxu0 0
      %2292 = vmatpush1.bf16.msra.mxu0 0
      %2293 = vmatprep.subr.bf16.mxu0 0
      %2294 = vmatpush1.bf16.msra.mxu0 0
      %2295 = vmatprep.subr.bf16.mxu0 0
      %2296 = vmatpush1.bf16.msra.mxu0 0
      %2297 = vmatprep.subr.bf16.mxu0 0
      %2298 = vmatpush1.bf16.msra.mxu0 0
      %2299 = vmatprep.subr.bf16.mxu0 0
      %2300 = vmatpush1.bf16.msra.mxu0 0
      %2301 = vmatprep.subr.bf16.mxu0 0
      %2302 = vmatpush1.bf16.msra.mxu0 0
      %2303 = vmatprep.subr.bf16.mxu0 0
      %2304 = vmatpush1.bf16.msra.mxu0 0
      %2305 = vmatprep.mubr.bf16.mxu0 0
      %2306 = vmatmul.mubr.bf16.gmra.mrb[0].mxu0 %v827
      %v2307 = vpop.f32.mrb[0].mxu0
      %v2308 = vadd.f32 %v799, %v2307
      %v2309 = vpop.f32.mrb[0].mxu0
      %v2310 = vadd.f32 %v799, %v2309
      %v2311 = vpop.f32.mrb[0].mxu0
      %v2312 = vadd.f32 %v804, %v2311
      %v2313 = vpop.f32.mrb[0].mxu0
      %v2314 = vadd.f32 %v804, %v2313
      %2315 = vmatprep.mubr.bf16.mxu0 0
      %2316 = vmatmul.mubr.bf16.gmra.mrb[0].mxu0 %v830
      %v2317 = vpop.f32.mrb[0].mxu0
      %v2318 = vadd.f32 %v809, %v2317
      %v2319 = vpop.f32.mrb[0].mxu0
      %v2320 = vadd.f32 %v809, %v2319
      %v2321 = vpop.f32.mrb[0].mxu0
      %v2322 = vadd.f32 %v814, %v2321
      %v2323 = vpop.f32.mrb[0].mxu0
      %v2324 = vadd.f32 %v814, %v2323
      %2325 = vdwg.mxu0
      %2326 = vmatprep.subr.bf16.mxu0 %v2260
      %2327 = vmatpush1.bf16.msra.mxu0 %v2259
      %2328 = vmatprep.subr.bf16.mxu0 %v2268
      %2329 = vmatpush1.bf16.msra.mxu0 %v2267
      %2330 = vmatprep.subr.bf16.mxu0 0
      %2331 = vmatpush1.bf16.msra.mxu0 0
      %2332 = vmatprep.subr.bf16.mxu0 0
      %2333 = vmatpush1.bf16.msra.mxu0 0
      %2334 = vmatprep.subr.bf16.mxu0 0
      %2335 = vmatpush1.bf16.msra.mxu0 0
      %2336 = vmatprep.subr.bf16.mxu0 0
      %2337 = vmatpush1.bf16.msra.mxu0 0
      %2338 = vmatprep.subr.bf16.mxu0 0
      %2339 = vmatpush1.bf16.msra.mxu0 0
      %2340 = vmatprep.subr.bf16.mxu0 0
      %2341 = vmatpush1.bf16.msra.mxu0 0
      %2342 = vmatprep.subr.bf16.mxu0 0
      %2343 = vmatpush1.bf16.msra.mxu0 0
      %2344 = vmatprep.subr.bf16.mxu0 0
      %2345 = vmatpush1.bf16.msra.mxu0 0
      %2346 = vmatprep.subr.bf16.mxu0 0
      %2347 = vmatpush1.bf16.msra.mxu0 0
      %2348 = vmatprep.subr.bf16.mxu0 0
      %2349 = vmatpush1.bf16.msra.mxu0 0
      %2350 = vmatprep.subr.bf16.mxu0 0
      %2351 = vmatpush1.bf16.msra.mxu0 0
      %2352 = vmatprep.subr.bf16.mxu0 0
      %2353 = vmatpush1.bf16.msra.mxu0 0
      %2354 = vmatprep.subr.bf16.mxu0 0
      %2355 = vmatpush1.bf16.msra.mxu0 0
      %2356 = vmatprep.subr.bf16.mxu0 0
      %2357 = vmatpush1.bf16.msra.mxu0 0
      %2358 = vmatprep.mubr.bf16.mxu0 0
      %2359 = vmatmul.mubr.bf16.gmra.mrb[0].mxu0 %v827
      %v2360 = vpop.f32.mrb[0].mxu0
      %v2361 = vadd.f32 %v799, %v2360
      %v2362 = vpop.f32.mrb[0].mxu0
      %v2363 = vadd.f32 %v799, %v2362
      %v2364 = vpop.f32.mrb[0].mxu0
      %v2365 = vadd.f32 %v804, %v2364
      %v2366 = vpop.f32.mrb[0].mxu0
      %v2367 = vadd.f32 %v804, %v2366
      %2368 = vmatprep.mubr.bf16.mxu0 0
      %2369 = vmatmul.mubr.bf16.gmra.mrb[0].mxu0 %v830
      %v2370 = vpop.f32.mrb[0].mxu0
      %v2371 = vadd.f32 %v809, %v2370
      %v2372 = vpop.f32.mrb[0].mxu0
      %v2373 = vadd.f32 %v809, %v2372
      %v2374 = vpop.f32.mrb[0].mxu0
      %v2375 = vadd.f32 %v814, %v2374
      %v2376 = vpop.f32.mrb[0].mxu0
      %v2377 = vadd.f32 %v814, %v2376
      %2378 = vdwg.mxu0
      %2379 = vmatprep.subr.bf16.mxu0 %v2262
      %2380 = vmatpush1.bf16.msra.mxu0 %v2261
      %2381 = vmatprep.subr.bf16.mxu0 %v2270
      %2382 = vmatpush1.bf16.msra.mxu0 %v2269
      %2383 = vmatprep.subr.bf16.mxu0 0
      %2384 = vmatpush1.bf16.msra.mxu0 0
      %2385 = vmatprep.subr.bf16.mxu0 0
      %2386 = vmatpush1.bf16.msra.mxu0 0
      %2387 = vmatprep.subr.bf16.mxu0 0
      %2388 = vmatpush1.bf16.msra.mxu0 0
      %2389 = vmatprep.subr.bf16.mxu0 0
      %2390 = vmatpush1.bf16.msra.mxu0 0
      %2391 = vmatprep.subr.bf16.mxu0 0
      %2392 = vmatpush1.bf16.msra.mxu0 0
      %2393 = vmatprep.subr.bf16.mxu0 0
      %2394 = vmatpush1.bf16.msra.mxu0 0
      %2395 = vmatprep.subr.bf16.mxu0 0
      %2396 = vmatpush1.bf16.msra.mxu0 0
      %2397 = vmatprep.subr.bf16.mxu0 0
      %2398 = vmatpush1.bf16.msra.mxu0 0
      %2399 = vmatprep.subr.bf16.mxu0 0
      %2400 = vmatpush1.bf16.msra.mxu0 0
      %2401 = vmatprep.subr.bf16.mxu0 0
      %2402 = vmatpush1.bf16.msra.mxu0 0
      %2403 = vmatprep.subr.bf16.mxu0 0
      %2404 = vmatpush1.bf16.msra.mxu0 0
      %2405 = vmatprep.subr.bf16.mxu0 0
      %2406 = vmatpush1.bf16.msra.mxu0 0
      %2407 = vmatprep.subr.bf16.mxu0 0
      %2408 = vmatpush1.bf16.msra.mxu0 0
      %2409 = vmatprep.subr.bf16.mxu0 0
      %2410 = vmatpush1.bf16.msra.mxu0 0
      %2411 = vmatprep.mubr.bf16.mxu0 0
      %2412 = vmatmul.mubr.bf16.gmra.mrb[0].mxu0 %v827
      %v2413 = vpop.f32.mrb[0].mxu0
      %v2414 = vadd.f32 %v799, %v2413
      %v2415 = vpop.f32.mrb[0].mxu0
      %v2416 = vadd.f32 %v799, %v2415
      %v2417 = vpop.f32.mrb[0].mxu0
      %v2418 = vadd.f32 %v804, %v2417
      %v2419 = vpop.f32.mrb[0].mxu0
      %v2420 = vadd.f32 %v804, %v2419
      %2421 = vmatprep.mubr.bf16.mxu0 0
      %2422 = vmatmul.mubr.bf16.gmra.mrb[0].mxu0 %v830
      %v2423 = vpop.f32.mrb[0].mxu0
      %v2424 = vadd.f32 %v809, %v2423
      %v2425 = vpop.f32.mrb[0].mxu0
      %v2426 = vadd.f32 %v809, %v2425
      %v2427 = vpop.f32.mrb[0].mxu0
      %v2428 = vadd.f32 %v814, %v2427
      %v2429 = vpop.f32.mrb[0].mxu0
      %v2430 = vadd.f32 %v814, %v2429
      %2431 = vdwg.mxu0
      %2432 = vmatprep.subr.bf16.mxu0 %v2264
      %2433 = vmatpush1.bf16.msra.mxu0 %v2263
      %2434 = vmatprep.subr.bf16.mxu0 %v2272
      %2435 = vmatpush1.bf16.msra.mxu0 %v2271
      %2436 = vmatprep.subr.bf16.mxu0 0
      %2437 = vmatpush1.bf16.msra.mxu0 0
      %2438 = vmatprep.subr.bf16.mxu0 0
      %2439 = vmatpush1.bf16.msra.mxu0 0
      %2440 = vmatprep.subr.bf16.mxu0 0
      %2441 = vmatpush1.bf16.msra.mxu0 0
      %2442 = vmatprep.subr.bf16.mxu0 0
      %2443 = vmatpush1.bf16.msra.mxu0 0
      %2444 = vmatprep.subr.bf16.mxu0 0
      %2445 = vmatpush1.bf16.msra.mxu0 0
      %2446 = vmatprep.subr.bf16.mxu0 0
      %2447 = vmatpush1.bf16.msra.mxu0 0
      %2448 = vmatprep.subr.bf16.mxu0 0
      %2449 = vmatpush1.bf16.msra.mxu0 0
      %2450 = vmatprep.subr.bf16.mxu0 0
      %2451 = vmatpush1.bf16.msra.mxu0 0
      %2452 = vmatprep.subr.bf16.mxu0 0
      %2453 = vmatpush1.bf16.msra.mxu0 0
      %2454 = vmatprep.subr.bf16.mxu0 0
      %2455 = vmatpush1.bf16.msra.mxu0 0
      %2456 = vmatprep.subr.bf16.mxu0 0
      %2457 = vmatpush1.bf16.msra.mxu0 0
      %2458 = vmatprep.subr.bf16.mxu0 0
      %2459 = vmatpush1.bf16.msra.mxu0 0
      %2460 = vmatprep.subr.bf16.mxu0 0
      %2461 = vmatpush1.bf16.msra.mxu0 0
      %2462 = vmatprep.subr.bf16.mxu0 0
      %2463 = vmatpush1.bf16.msra.mxu0 0
      %2464 = vmatprep.mubr.bf16.mxu0 0
      %2465 = vmatmul.mubr.bf16.gmra.mrb[0].mxu0 %v827
      %v2466 = vpop.f32.mrb[0].mxu0
      %v2467 = vadd.f32 %v799, %v2466
      %v2468 = vpop.f32.mrb[0].mxu0
      %v2469 = vadd.f32 %v799, %v2468
      %v2470 = vpop.f32.mrb[0].mxu0
      %v2471 = vadd.f32 %v804, %v2470
      %v2472 = vpop.f32.mrb[0].mxu0
      %v2473 = vadd.f32 %v804, %v2472
      %2474 = vmatprep.mubr.bf16.mxu0 0
      %2475 = vmatmul.mubr.bf16.gmra.mrb[0].mxu0 %v830
      %v2476 = vpop.f32.mrb[0].mxu0
      %v2477 = vadd.f32 %v809, %v2476
      %v2478 = vpop.f32.mrb[0].mxu0
      %v2479 = vadd.f32 %v809, %v2478
      %v2480 = vpop.f32.mrb[0].mxu0
      %v2481 = vadd.f32 %v814, %v2480
      %v2482 = vpop.f32.mrb[0].mxu0
      %v2483 = vadd.f32 %v814, %v2482
      %2484 = vdwg.mxu0
      %v2485 = vtanh.pop %v2308
      %v2486 = vtanh.pop %v2310
      %v2487 = vtanh.pop %v2361
      %v2488 = vtanh.pop %v2363
      %v2489 = vtanh.pop %v2414
      %v2490 = vtanh.pop %v2416
      %v2491 = vtanh.pop %v2467
      %v2492 = vtanh.pop %v2469
      %v2493 = vtanh.pop %v2312
      %v2494 = vtanh.pop %v2314
      %v2495 = vtanh.pop %v2365
      %v2496 = vtanh.pop %v2367
      %v2497 = vtanh.pop %v2418
      %v2498 = vtanh.pop %v2420
      %v2499 = vtanh.pop %v2471
      %v2500 = vtanh.pop %v2473
      %v2501 = vtanh.pop %v2318
      %v2502 = vtanh.pop %v2320
      %v2503 = vtanh.pop %v2371
      %v2504 = vtanh.pop %v2373
      %v2505 = vtanh.pop %v2424
      %v2506 = vtanh.pop %v2426
      %v2507 = vtanh.pop %v2477
      %v2508 = vtanh.pop %v2479
      %v2509 = vtanh.pop %v2322
      %v2510 = vtanh.pop %v2324
      %v2511 = vtanh.pop %v2375
      %v2512 = vtanh.pop %v2377
      %v2513 = vtanh.pop %v2428
      %v2514 = vtanh.pop %v2430
      %v2515 = vtanh.pop %v2481
      %v2516 = vtanh.pop %v2483
      %v2517 = vpack.c.bf16 %v2493, %v2485
      %v2518 = vpack.c.bf16 %v2494, %v2486
      %v2519 = vpack.c.bf16 %v2495, %v2487
      %v2520 = vpack.c.bf16 %v2496, %v2488
      %v2521 = vpack.c.bf16 %v2497, %v2489
      %v2522 = vpack.c.bf16 %v2498, %v2490
      %v2523 = vpack.c.bf16 %v2499, %v2491
      %v2524 = vpack.c.bf16 %v2500, %v2492
      %v2525 = vpack.c.bf16 %v2509, %v2501
      %v2526 = vpack.c.bf16 %v2510, %v2502
      %v2527 = vpack.c.bf16 %v2511, %v2503
      %v2528 = vpack.c.bf16 %v2512, %v2504
      %v2529 = vpack.c.bf16 %v2513, %v2505
      %v2530 = vpack.c.bf16 %v2514, %v2506
      %v2531 = vpack.c.bf16 %v2515, %v2507
      %v2532 = vpack.c.bf16 %v2516, %v2508
      %2533 = vmatprep.subr.bf16.mxu0 %v2518
      %2534 = vmatpush1.bf16.msra.mxu0 %v2517
      %2535 = vmatprep.subr.bf16.mxu0 %v2526
      %2536 = vmatpush1.bf16.msra.mxu0 %v2525
      %2537 = vmatprep.subr.bf16.mxu0 0
      %2538 = vmatpush1.bf16.msra.mxu0 0
      %2539 = vmatprep.subr.bf16.mxu0 0
      %2540 = vmatpush1.bf16.msra.mxu0 0
      %2541 = vmatprep.subr.bf16.mxu0 0
      %2542 = vmatpush1.bf16.msra.mxu0 0
      %2543 = vmatprep.subr.bf16.mxu0 0
      %2544 = vmatpush1.bf16.msra.mxu0 0
      %2545 = vmatprep.subr.bf16.mxu0 0
      %2546 = vmatpush1.bf16.msra.mxu0 0
      %2547 = vmatprep.subr.bf16.mxu0 0
      %2548 = vmatpush1.bf16.msra.mxu0 0
      %2549 = vmatprep.subr.bf16.mxu0 0
      %2550 = vmatpush1.bf16.msra.mxu0 0
      %2551 = vmatprep.subr.bf16.mxu0 0
      %2552 = vmatpush1.bf16.msra.mxu0 0
      %2553 = vmatprep.subr.bf16.mxu0 0
      %2554 = vmatpush1.bf16.msra.mxu0 0
      %2555 = vmatprep.subr.bf16.mxu0 0
      %2556 = vmatpush1.bf16.msra.mxu0 0
      %2557 = vmatprep.subr.bf16.mxu0 0
      %2558 = vmatpush1.bf16.msra.mxu0 0
      %2559 = vmatprep.subr.bf16.mxu0 0
      %2560 = vmatpush1.bf16.msra.mxu0 0
      %2561 = vmatprep.subr.bf16.mxu0 0
      %2562 = vmatpush1.bf16.msra.mxu0 0
      %2563 = vmatprep.subr.bf16.mxu0 0
      %2564 = vmatpush1.bf16.msra.mxu0 0
      %2565 = vmatprep.mubr.bf16.mxu0 0
      %2566 = vmatmul.mubr.bf16.gmra.mrb[0].mxu0 %v1123
      %v2567 = vpop.f32.mrb[0].mxu0
      %v2568 = vadd.f32 %v1095, %v2567
      %v2569 = vpop.f32.mrb[0].mxu0
      %v2570 = vadd.f32 %v1095, %v2569
      %v2571 = vpop.f32.mrb[0].mxu0
      %v2572 = vadd.f32 %v1100, %v2571
      %v2573 = vpop.f32.mrb[0].mxu0
      %v2574 = vadd.f32 %v1100, %v2573
      %2575 = vmatprep.mubr.bf16.mxu0 0
      %2576 = vmatmul.mubr.bf16.gmra.mrb[0].mxu0 %v1126
      %v2577 = vpop.f32.mrb[0].mxu0
      %v2578 = vadd.f32 %v1105, %v2577
      %v2579 = vpop.f32.mrb[0].mxu0
      %v2580 = vadd.f32 %v1105, %v2579
      %v2581 = vpop.f32.mrb[0].mxu0
      %v2582 = vadd.f32 %v1110, %v2581
      %v2583 = vpop.f32.mrb[0].mxu0
      %v2584 = vadd.f32 %v1110, %v2583
      %2585 = vdwg.mxu0
      %2586 = vmatprep.subr.bf16.mxu0 %v2520
      %2587 = vmatpush1.bf16.msra.mxu0 %v2519
      %2588 = vmatprep.subr.bf16.mxu0 %v2528
      %2589 = vmatpush1.bf16.msra.mxu0 %v2527
      %2590 = vmatprep.subr.bf16.mxu0 0
      %2591 = vmatpush1.bf16.msra.mxu0 0
      %2592 = vmatprep.subr.bf16.mxu0 0
      %2593 = vmatpush1.bf16.msra.mxu0 0
      %2594 = vmatprep.subr.bf16.mxu0 0
      %2595 = vmatpush1.bf16.msra.mxu0 0
      %2596 = vmatprep.subr.bf16.mxu0 0
      %2597 = vmatpush1.bf16.msra.mxu0 0
      %2598 = vmatprep.subr.bf16.mxu0 0
      %2599 = vmatpush1.bf16.msra.mxu0 0
      %2600 = vmatprep.subr.bf16.mxu0 0
      %2601 = vmatpush1.bf16.msra.mxu0 0
      %2602 = vmatprep.subr.bf16.mxu0 0
      %2603 = vmatpush1.bf16.msra.mxu0 0
      %2604 = vmatprep.subr.bf16.mxu0 0
      %2605 = vmatpush1.bf16.msra.mxu0 0
      %2606 = vmatprep.subr.bf16.mxu0 0
      %2607 = vmatpush1.bf16.msra.mxu0 0
      %2608 = vmatprep.subr.bf16.mxu0 0
      %2609 = vmatpush1.bf16.msra.mxu0 0
      %2610 = vmatprep.subr.bf16.mxu0 0
      %2611 = vmatpush1.bf16.msra.mxu0 0
      %2612 = vmatprep.subr.bf16.mxu0 0
      %2613 = vmatpush1.bf16.msra.mxu0 0
      %2614 = vmatprep.subr.bf16.mxu0 0
      %2615 = vmatpush1.bf16.msra.mxu0 0
      %2616 = vmatprep.subr.bf16.mxu0 0
      %2617 = vmatpush1.bf16.msra.mxu0 0
      %2618 = vmatprep.mubr.bf16.mxu0 0
      %2619 = vmatmul.mubr.bf16.gmra.mrb[0].mxu0 %v1123
      %v2620 = vpop.f32.mrb[0].mxu0
      %v2621 = vadd.f32 %v1095, %v2620
      %v2622 = vpop.f32.mrb[0].mxu0
      %v2623 = vadd.f32 %v1095, %v2622
      %v2624 = vpop.f32.mrb[0].mxu0
      %v2625 = vadd.f32 %v1100, %v2624
      %v2626 = vpop.f32.mrb[0].mxu0
      %v2627 = vadd.f32 %v1100, %v2626
      %2628 = vmatprep.mubr.bf16.mxu0 0
      %2629 = vmatmul.mubr.bf16.gmra.mrb[0].mxu0 %v1126
      %v2630 = vpop.f32.mrb[0].mxu0
      %v2631 = vadd.f32 %v1105, %v2630
      %v2632 = vpop.f32.mrb[0].mxu0
      %v2633 = vadd.f32 %v1105, %v2632
      %v2634 = vpop.f32.mrb[0].mxu0
      %v2635 = vadd.f32 %v1110, %v2634
      %v2636 = vpop.f32.mrb[0].mxu0
      %v2637 = vadd.f32 %v1110, %v2636
      %2638 = vdwg.mxu0
      %2639 = vmatprep.subr.bf16.mxu0 %v2522
      %2640 = vmatpush1.bf16.msra.mxu0 %v2521
      %2641 = vmatprep.subr.bf16.mxu0 %v2530
      %2642 = vmatpush1.bf16.msra.mxu0 %v2529
      %2643 = vmatprep.subr.bf16.mxu0 0
      %2644 = vmatpush1.bf16.msra.mxu0 0
      %2645 = vmatprep.subr.bf16.mxu0 0
      %2646 = vmatpush1.bf16.msra.mxu0 0
      %2647 = vmatprep.subr.bf16.mxu0 0
      %2648 = vmatpush1.bf16.msra.mxu0 0
      %2649 = vmatprep.subr.bf16.mxu0 0
      %2650 = vmatpush1.bf16.msra.mxu0 0
      %2651 = vmatprep.subr.bf16.mxu0 0
      %2652 = vmatpush1.bf16.msra.mxu0 0
      %2653 = vmatprep.subr.bf16.mxu0 0
      %2654 = vmatpush1.bf16.msra.mxu0 0
      %2655 = vmatprep.subr.bf16.mxu0 0
      %2656 = vmatpush1.bf16.msra.mxu0 0
      %2657 = vmatprep.subr.bf16.mxu0 0
      %2658 = vmatpush1.bf16.msra.mxu0 0
      %2659 = vmatprep.subr.bf16.mxu0 0
      %2660 = vmatpush1.bf16.msra.mxu0 0
      %2661 = vmatprep.subr.bf16.mxu0 0
      %2662 = vmatpush1.bf16.msra.mxu0 0
      %2663 = vmatprep.subr.bf16.mxu0 0
      %2664 = vmatpush1.bf16.msra.mxu0 0
      %2665 = vmatprep.subr.bf16.mxu0 0
      %2666 = vmatpush1.bf16.msra.mxu0 0
      %2667 = vmatprep.subr.bf16.mxu0 0
      %2668 = vmatpush1.bf16.msra.mxu0 0
      %2669 = vmatprep.subr.bf16.mxu0 0
      %2670 = vmatpush1.bf16.msra.mxu0 0
      %2671 = vmatprep.mubr.bf16.mxu0 0
      %2672 = vmatmul.mubr.bf16.gmra.mrb[0].mxu0 %v1123
      %v2673 = vpop.f32.mrb[0].mxu0
      %v2674 = vadd.f32 %v1095, %v2673
      %v2675 = vpop.f32.mrb[0].mxu0
      %v2676 = vadd.f32 %v1095, %v2675
      %v2677 = vpop.f32.mrb[0].mxu0
      %v2678 = vadd.f32 %v1100, %v2677
      %v2679 = vpop.f32.mrb[0].mxu0
      %v2680 = vadd.f32 %v1100, %v2679
      %2681 = vmatprep.mubr.bf16.mxu0 0
      %2682 = vmatmul.mubr.bf16.gmra.mrb[0].mxu0 %v1126
      %v2683 = vpop.f32.mrb[0].mxu0
      %v2684 = vadd.f32 %v1105, %v2683
      %v2685 = vpop.f32.mrb[0].mxu0
      %v2686 = vadd.f32 %v1105, %v2685
      %v2687 = vpop.f32.mrb[0].mxu0
      %v2688 = vadd.f32 %v1110, %v2687
      %v2689 = vpop.f32.mrb[0].mxu0
      %v2690 = vadd.f32 %v1110, %v2689
      %2691 = vdwg.mxu0
      %2692 = vmatprep.subr.bf16.mxu0 %v2524
      %2693 = vmatpush1.bf16.msra.mxu0 %v2523
      %2694 = vmatprep.subr.bf16.mxu0 %v2532
      %2695 = vmatpush1.bf16.msra.mxu0 %v2531
      %2696 = vmatprep.subr.bf16.mxu0 0
      %2697 = vmatpush1.bf16.msra.mxu0 0
      %2698 = vmatprep.subr.bf16.mxu0 0
      %2699 = vmatpush1.bf16.msra.mxu0 0
      %2700 = vmatprep.subr.bf16.mxu0 0
      %2701 = vmatpush1.bf16.msra.mxu0 0
      %2702 = vmatprep.subr.bf16.mxu0 0
      %2703 = vmatpush1.bf16.msra.mxu0 0
      %2704 = vmatprep.subr.bf16.mxu0 0
      %2705 = vmatpush1.bf16.msra.mxu0 0
      %2706 = vmatprep.subr.bf16.mxu0 0
      %2707 = vmatpush1.bf16.msra.mxu0 0
      %2708 = vmatprep.subr.bf16.mxu0 0
      %2709 = vmatpush1.bf16.msra.mxu0 0
      %2710 = vmatprep.subr.bf16.mxu0 0
      %2711 = vmatpush1.bf16.msra.mxu0 0
      %2712 = vmatprep.subr.bf16.mxu0 0
      %2713 = vmatpush1.bf16.msra.mxu0 0
      %2714 = vmatprep.subr.bf16.mxu0 0
      %2715 = vmatpush1.bf16.msra.mxu0 0
      %2716 = vmatprep.subr.bf16.mxu0 0
      %2717 = vmatpush1.bf16.msra.mxu0 0
      %2718 = vmatprep.subr.bf16.mxu0 0
      %2719 = vmatpush1.bf16.msra.mxu0 0
      %2720 = vmatprep.subr.bf16.mxu0 0
      %2721 = vmatpush1.bf16.msra.mxu0 0
      %2722 = vmatprep.subr.bf16.mxu0 0
      %2723 = vmatpush1.bf16.msra.mxu0 0
      %2724 = vmatprep.mubr.bf16.mxu0 0
      %2725 = vmatmul.mubr.bf16.gmra.mrb[0].mxu0 %v1123
      %v2726 = vpop.f32.mrb[0].mxu0
      %v2727 = vadd.f32 %v1095, %v2726
      %v2728 = vpop.f32.mrb[0].mxu0
      %v2729 = vadd.f32 %v1095, %v2728
      %v2730 = vpop.f32.mrb[0].mxu0
      %v2731 = vadd.f32 %v1100, %v2730
      %v2732 = vpop.f32.mrb[0].mxu0
      %v2733 = vadd.f32 %v1100, %v2732
      %2734 = vmatprep.mubr.bf16.mxu0 0
      %2735 = vmatmul.mubr.bf16.gmra.mrb[0].mxu0 %v1126
      %v2736 = vpop.f32.mrb[0].mxu0
      %v2737 = vadd.f32 %v1105, %v2736
      %v2738 = vpop.f32.mrb[0].mxu0
      %v2739 = vadd.f32 %v1105, %v2738
      %v2740 = vpop.f32.mrb[0].mxu0
      %v2741 = vadd.f32 %v1110, %v2740
      %v2742 = vpop.f32.mrb[0].mxu0
      %v2743 = vadd.f32 %v1110, %v2742
      %2744 = vdwg.mxu0
      %v2745 = vtanh.pop %v2568
      %v2746 = vtanh.pop %v2570
      %v2747 = vtanh.pop %v2621
      %v2748 = vtanh.pop %v2623
      %v2749 = vtanh.pop %v2674
      %v2750 = vtanh.pop %v2676
      %v2751 = vtanh.pop %v2727
      %v2752 = vtanh.pop %v2729
      %v2753 = vtanh.pop %v2572
      %v2754 = vtanh.pop %v2574
      %v2755 = vtanh.pop %v2625
      %v2756 = vtanh.pop %v2627
      %v2757 = vtanh.pop %v2678
      %v2758 = vtanh.pop %v2680
      %v2759 = vtanh.pop %v2731
      %v2760 = vtanh.pop %v2733
      %v2761 = vtanh.pop %v2578
      %v2762 = vtanh.pop %v2580
      %v2763 = vtanh.pop %v2631
      %v2764 = vtanh.pop %v2633
      %v2765 = vtanh.pop %v2684
      %v2766 = vtanh.pop %v2686
      %v2767 = vtanh.pop %v2737
      %v2768 = vtanh.pop %v2739
      %v2769 = vtanh.pop %v2582
      %v2770 = vtanh.pop %v2584
      %v2771 = vtanh.pop %v2635
      %v2772 = vtanh.pop %v2637
      %v2773 = vtanh.pop %v2688
      %v2774 = vtanh.pop %v2690
      %v2775 = vtanh.pop %v2741
      %v2776 = vtanh.pop %v2743
      %v2777 = vpack.c.bf16 %v2753, %v2745
      %v2778 = vpack.c.bf16 %v2754, %v2746
      %v2779 = vpack.c.bf16 %v2755, %v2747
      %v2780 = vpack.c.bf16 %v2756, %v2748
      %v2781 = vpack.c.bf16 %v2757, %v2749
      %v2782 = vpack.c.bf16 %v2758, %v2750
      %v2783 = vpack.c.bf16 %v2759, %v2751
      %v2784 = vpack.c.bf16 %v2760, %v2752
      %v2785 = vpack.c.bf16 %v2769, %v2761
      %v2786 = vpack.c.bf16 %v2770, %v2762
      %v2787 = vpack.c.bf16 %v2771, %v2763
      %v2788 = vpack.c.bf16 %v2772, %v2764
      %v2789 = vpack.c.bf16 %v2773, %v2765
      %v2790 = vpack.c.bf16 %v2774, %v2766
      %v2791 = vpack.c.bf16 %v2775, %v2767
      %v2792 = vpack.c.bf16 %v2776, %v2768
      %2793 = vmatprep.subr.bf16.mxu0 %v2778
      %2794 = vmatpush1.bf16.msra.mxu0 %v2777
      %2795 = vmatprep.subr.bf16.mxu0 %v2786
      %2796 = vmatpush1.bf16.msra.mxu0 %v2785
      %2797 = vmatprep.subr.bf16.mxu0 0
      %2798 = vmatpush1.bf16.msra.mxu0 0
      %2799 = vmatprep.subr.bf16.mxu0 0
      %2800 = vmatpush1.bf16.msra.mxu0 0
      %2801 = vmatprep.subr.bf16.mxu0 0
      %2802 = vmatpush1.bf16.msra.mxu0 0
      %2803 = vmatprep.subr.bf16.mxu0 0
      %2804 = vmatpush1.bf16.msra.mxu0 0
      %2805 = vmatprep.subr.bf16.mxu0 0
      %2806 = vmatpush1.bf16.msra.mxu0 0
      %2807 = vmatprep.subr.bf16.mxu0 0
      %2808 = vmatpush1.bf16.msra.mxu0 0
      %2809 = vmatprep.subr.bf16.mxu0 0
      %2810 = vmatpush1.bf16.msra.mxu0 0
      %2811 = vmatprep.subr.bf16.mxu0 0
      %2812 = vmatpush1.bf16.msra.mxu0 0
      %2813 = vmatprep.subr.bf16.mxu0 0
      %2814 = vmatpush1.bf16.msra.mxu0 0
      %2815 = vmatprep.subr.bf16.mxu0 0
      %2816 = vmatpush1.bf16.msra.mxu0 0
      %2817 = vmatprep.subr.bf16.mxu0 0
      %2818 = vmatpush1.bf16.msra.mxu0 0
      %2819 = vmatprep.subr.bf16.mxu0 0
      %2820 = vmatpush1.bf16.msra.mxu0 0
      %2821 = vmatprep.subr.bf16.mxu0 0
      %2822 = vmatpush1.bf16.msra.mxu0 0
      %2823 = vmatprep.subr.bf16.mxu0 0
      %2824 = vmatpush1.bf16.msra.mxu0 0
      %2825 = vmatprep.mubr.bf16.mxu0 0
      %2826 = vmatmul.mubr.bf16.gmra.mrb[0].mxu0 %v1419
      %v2827 = vpop.f32.mrb[0].mxu0
      %v2828 = vadd.f32 %v1391, %v2827
      %v2829 = vpop.f32.mrb[0].mxu0
      %v2830 = vadd.f32 %v1391, %v2829
      %v2831 = vpop.f32.mrb[0].mxu0
      %v2832 = vadd.f32 %v1396, %v2831
      %v2833 = vpop.f32.mrb[0].mxu0
      %v2834 = vadd.f32 %v1396, %v2833
      %2835 = vmatprep.mubr.bf16.mxu0 0
      %2836 = vmatmul.mubr.bf16.gmra.mrb[0].mxu0 %v1422
      %v2837 = vpop.f32.mrb[0].mxu0
      %v2838 = vadd.f32 %v1401, %v2837
      %v2839 = vpop.f32.mrb[0].mxu0
      %v2840 = vadd.f32 %v1401, %v2839
      %v2841 = vpop.f32.mrb[0].mxu0
      %v2842 = vadd.f32 %v1406, %v2841
      %v2843 = vpop.f32.mrb[0].mxu0
      %v2844 = vadd.f32 %v1406, %v2843
      %2845 = vdwg.mxu0
      %2846 = vmatprep.subr.bf16.mxu0 %v2780
      %2847 = vmatpush1.bf16.msra.mxu0 %v2779
      %2848 = vmatprep.subr.bf16.mxu0 %v2788
      %2849 = vmatpush1.bf16.msra.mxu0 %v2787
      %2850 = vmatprep.subr.bf16.mxu0 0
      %2851 = vmatpush1.bf16.msra.mxu0 0
      %2852 = vmatprep.subr.bf16.mxu0 0
      %2853 = vmatpush1.bf16.msra.mxu0 0
      %2854 = vmatprep.subr.bf16.mxu0 0
      %2855 = vmatpush1.bf16.msra.mxu0 0
      %2856 = vmatprep.subr.bf16.mxu0 0
      %2857 = vmatpush1.bf16.msra.mxu0 0
      %2858 = vmatprep.subr.bf16.mxu0 0
      %2859 = vmatpush1.bf16.msra.mxu0 0
      %2860 = vmatprep.subr.bf16.mxu0 0
      %2861 = vmatpush1.bf16.msra.mxu0 0
      %2862 = vmatprep.subr.bf16.mxu0 0
      %2863 = vmatpush1.bf16.msra.mxu0 0
      %2864 = vmatprep.subr.bf16.mxu0 0
      %2865 = vmatpush1.bf16.msra.mxu0 0
      %2866 = vmatprep.subr.bf16.mxu0 0
      %2867 = vmatpush1.bf16.msra.mxu0 0
      %2868 = vmatprep.subr.bf16.mxu0 0
      %2869 = vmatpush1.bf16.msra.mxu0 0
      %2870 = vmatprep.subr.bf16.mxu0 0
      %2871 = vmatpush1.bf16.msra.mxu0 0
      %2872 = vmatprep.subr.bf16.mxu0 0
      %2873 = vmatpush1.bf16.msra.mxu0 0
      %2874 = vmatprep.subr.bf16.mxu0 0
      %2875 = vmatpush1.bf16.msra.mxu0 0
      %2876 = vmatprep.subr.bf16.mxu0 0
      %2877 = vmatpush1.bf16.msra.mxu0 0
      %2878 = vmatprep.mubr.bf16.mxu0 0
      %2879 = vmatmul.mubr.bf16.gmra.mrb[0].mxu0 %v1419
      %v2880 = vpop.f32.mrb[0].mxu0
      %v2881 = vadd.f32 %v1391, %v2880
      %v2882 = vpop.f32.mrb[0].mxu0
      %v2883 = vadd.f32 %v1391, %v2882
      %v2884 = vpop.f32.mrb[0].mxu0
      %v2885 = vadd.f32 %v1396, %v2884
      %v2886 = vpop.f32.mrb[0].mxu0
      %v2887 = vadd.f32 %v1396, %v2886
      %2888 = vmatprep.mubr.bf16.mxu0 0
      %2889 = vmatmul.mubr.bf16.gmra.mrb[0].mxu0 %v1422
      %v2890 = vpop.f32.mrb[0].mxu0
      %v2891 = vadd.f32 %v1401, %v2890
      %v2892 = vpop.f32.mrb[0].mxu0
      %v2893 = vadd.f32 %v1401, %v2892
      %v2894 = vpop.f32.mrb[0].mxu0
      %v2895 = vadd.f32 %v1406, %v2894
      %v2896 = vpop.f32.mrb[0].mxu0
      %v2897 = vadd.f32 %v1406, %v2896
      %2898 = vdwg.mxu0
      %2899 = vmatprep.subr.bf16.mxu0 %v2782
      %2900 = vmatpush1.bf16.msra.mxu0 %v2781
      %2901 = vmatprep.subr.bf16.mxu0 %v2790
      %2902 = vmatpush1.bf16.msra.mxu0 %v2789
      %2903 = vmatprep.subr.bf16.mxu0 0
      %2904 = vmatpush1.bf16.msra.mxu0 0
      %2905 = vmatprep.subr.bf16.mxu0 0
      %2906 = vmatpush1.bf16.msra.mxu0 0
      %2907 = vmatprep.subr.bf16.mxu0 0
      %2908 = vmatpush1.bf16.msra.mxu0 0
      %2909 = vmatprep.subr.bf16.mxu0 0
      %2910 = vmatpush1.bf16.msra.mxu0 0
      %2911 = vmatprep.subr.bf16.mxu0 0
      %2912 = vmatpush1.bf16.msra.mxu0 0
      %2913 = vmatprep.subr.bf16.mxu0 0
      %2914 = vmatpush1.bf16.msra.mxu0 0
      %2915 = vmatprep.subr.bf16.mxu0 0
      %2916 = vmatpush1.bf16.msra.mxu0 0
      %2917 = vmatprep.subr.bf16.mxu0 0
      %2918 = vmatpush1.bf16.msra.mxu0 0
      %2919 = vmatprep.subr.bf16.mxu0 0
      %2920 = vmatpush1.bf16.msra.mxu0 0
      %2921 = vmatprep.subr.bf16.mxu0 0
      %2922 = vmatpush1.bf16.msra.mxu0 0
      %2923 = vmatprep.subr.bf16.mxu0 0
      %2924 = vmatpush1.bf16.msra.mxu0 0
      %2925 = vmatprep.subr.bf16.mxu0 0
      %2926 = vmatpush1.bf16.msra.mxu0 0
      %2927 = vmatprep.subr.bf16.mxu0 0
      %2928 = vmatpush1.bf16.msra.mxu0 0
      %2929 = vmatprep.subr.bf16.mxu0 0
      %2930 = vmatpush1.bf16.msra.mxu0 0
      %2931 = vmatprep.mubr.bf16.mxu0 0
      %2932 = vmatmul.mubr.bf16.gmra.mrb[0].mxu0 %v1419
      %v2933 = vpop.f32.mrb[0].mxu0
      %v2934 = vadd.f32 %v1391, %v2933
      %v2935 = vpop.f32.mrb[0].mxu0
      %v2936 = vadd.f32 %v1391, %v2935
      %v2937 = vpop.f32.mrb[0].mxu0
      %v2938 = vadd.f32 %v1396, %v2937
      %v2939 = vpop.f32.mrb[0].mxu0
      %v2940 = vadd.f32 %v1396, %v2939
      %2941 = vmatprep.mubr.bf16.mxu0 0
      %2942 = vmatmul.mubr.bf16.gmra.mrb[0].mxu0 %v1422
      %v2943 = vpop.f32.mrb[0].mxu0
      %v2944 = vadd.f32 %v1401, %v2943
      %v2945 = vpop.f32.mrb[0].mxu0
      %v2946 = vadd.f32 %v1401, %v2945
      %v2947 = vpop.f32.mrb[0].mxu0
      %v2948 = vadd.f32 %v1406, %v2947
      %v2949 = vpop.f32.mrb[0].mxu0
      %v2950 = vadd.f32 %v1406, %v2949
      %2951 = vdwg.mxu0
      %2952 = vmatprep.subr.bf16.mxu0 %v2784
      %2953 = vmatpush1.bf16.msra.mxu0 %v2783
      %2954 = vmatprep.subr.bf16.mxu0 %v2792
      %2955 = vmatpush1.bf16.msra.mxu0 %v2791
      %2956 = vmatprep.subr.bf16.mxu0 0
      %2957 = vmatpush1.bf16.msra.mxu0 0
      %2958 = vmatprep.subr.bf16.mxu0 0
      %2959 = vmatpush1.bf16.msra.mxu0 0
      %2960 = vmatprep.subr.bf16.mxu0 0
      %2961 = vmatpush1.bf16.msra.mxu0 0
      %2962 = vmatprep.subr.bf16.mxu0 0
      %2963 = vmatpush1.bf16.msra.mxu0 0
      %2964 = vmatprep.subr.bf16.mxu0 0
      %2965 = vmatpush1.bf16.msra.mxu0 0
      %2966 = vmatprep.subr.bf16.mxu0 0
      %2967 = vmatpush1.bf16.msra.mxu0 0
      %2968 = vmatprep.subr.bf16.mxu0 0
      %2969 = vmatpush1.bf16.msra.mxu0 0
      %2970 = vmatprep.subr.bf16.mxu0 0
      %2971 = vmatpush1.bf16.msra.mxu0 0
      %2972 = vmatprep.subr.bf16.mxu0 0
      %2973 = vmatpush1.bf16.msra.mxu0 0
      %2974 = vmatprep.subr.bf16.mxu0 0
      %2975 = vmatpush1.bf16.msra.mxu0 0
      %2976 = vmatprep.subr.bf16.mxu0 0
      %2977 = vmatpush1.bf16.msra.mxu0 0
      %2978 = vmatprep.subr.bf16.mxu0 0
      %2979 = vmatpush1.bf16.msra.mxu0 0
      %2980 = vmatprep.subr.bf16.mxu0 0
      %2981 = vmatpush1.bf16.msra.mxu0 0
      %2982 = vmatprep.subr.bf16.mxu0 0
      %2983 = vmatpush1.bf16.msra.mxu0 0
      %2984 = vmatprep.mubr.bf16.mxu0 0
      %2985 = vmatmul.mubr.bf16.gmra.mrb[0].mxu0 %v1419
      %v2986 = vpop.f32.mrb[0].mxu0
      %v2987 = vadd.f32 %v1391, %v2986
      %v2988 = vpop.f32.mrb[0].mxu0
      %v2989 = vadd.f32 %v1391, %v2988
      %v2990 = vpop.f32.mrb[0].mxu0
      %v2991 = vadd.f32 %v1396, %v2990
      %v2992 = vpop.f32.mrb[0].mxu0
      %v2993 = vadd.f32 %v1396, %v2992
      %2994 = vmatprep.mubr.bf16.mxu0 0
      %2995 = vmatmul.mubr.bf16.gmra.mrb[0].mxu0 %v1422
      %v2996 = vpop.f32.mrb[0].mxu0
      %v2997 = vadd.f32 %v1401, %v2996
      %v2998 = vpop.f32.mrb[0].mxu0
      %v2999 = vadd.f32 %v1401, %v2998
      %v3000 = vpop.f32.mrb[0].mxu0
      %v3001 = vadd.f32 %v1406, %v3000
      %v3002 = vpop.f32.mrb[0].mxu0
      %v3003 = vadd.f32 %v1406, %v3002
      %3004 = vdwg.mxu0
      %v3005 = vtanh.pop %v2828
      %v3006 = vtanh.pop %v2830
      %v3007 = vtanh.pop %v2881
      %v3008 = vtanh.pop %v2883
      %v3009 = vtanh.pop %v2934
      %v3010 = vtanh.pop %v2936
      %v3011 = vtanh.pop %v2987
      %v3012 = vtanh.pop %v2989
      %v3013 = vtanh.pop %v2832
      %v3014 = vtanh.pop %v2834
      %v3015 = vtanh.pop %v2885
      %v3016 = vtanh.pop %v2887
      %v3017 = vtanh.pop %v2938
      %v3018 = vtanh.pop %v2940
      %v3019 = vtanh.pop %v2991
      %v3020 = vtanh.pop %v2993
      %v3021 = vtanh.pop %v2838
      %v3022 = vtanh.pop %v2840
      %v3023 = vtanh.pop %v2891
      %v3024 = vtanh.pop %v2893
      %v3025 = vtanh.pop %v2944
      %v3026 = vtanh.pop %v2946
      %v3027 = vtanh.pop %v2997
      %v3028 = vtanh.pop %v2999
      %v3029 = vtanh.pop %v2842
      %v3030 = vtanh.pop %v2844
      %v3031 = vtanh.pop %v2895
      %v3032 = vtanh.pop %v2897
      %v3033 = vtanh.pop %v2948
      %v3034 = vtanh.pop %v2950
      %v3035 = vtanh.pop %v3001
      %v3036 = vtanh.pop %v3003
      %v3037 = vmul.f32 %v1671, %v3005
      %v3038 = vmul.f32 %v1671, %v3006
      %v3039 = vmul.f32 %v1671, %v3007
      %v3040 = vmul.f32 %v1671, %v3008
      %v3041 = vmul.f32 %v1671, %v3009
      %v3042 = vmul.f32 %v1671, %v3010
      %v3043 = vmul.f32 %v1671, %v3011
      %v3044 = vmul.f32 %v1671, %v3012
      %v3045 = vmul.f32 %v1676, %v3013
      %v3046 = vmul.f32 %v1676, %v3014
      %v3047 = vmul.f32 %v1676, %v3015
      %v3048 = vmul.f32 %v1676, %v3016
      %v3049 = vmul.f32 %v1676, %v3017
      %v3050 = vmul.f32 %v1676, %v3018
      %v3051 = vmul.f32 %v1676, %v3019
      %v3052 = vmul.f32 %v1676, %v3020
      %v3053 = vmul.f32 %v1681, %v3021
      %v3054 = vmul.f32 %v1681, %v3022
      %v3055 = vmul.f32 %v1681, %v3023
      %v3056 = vmul.f32 %v1681, %v3024
      %v3057 = vmul.f32 %v1681, %v3025
      %v3058 = vmul.f32 %v1681, %v3026
      %v3059 = vmul.f32 %v1681, %v3027
      %v3060 = vmul.f32 %v1681, %v3028
      %v3061 = vmul.f32 %v1686, %v3029
      %v3062 = vmul.f32 %v1686, %v3030
      %v3063 = vmul.f32 %v1686, %v3031
      %v3064 = vmul.f32 %v1686, %v3032
      %v3065 = vmul.f32 %v1686, %v3033
      %v3066 = vmul.f32 %v1686, %v3034
      %v3067 = vmul.f32 %v1686, %v3035
      %v3068 = vmul.f32 %v1686, %v3036
      %v3069 = vadd.f32 %v3037, %v3045
      %v3070 = vadd.f32 %v3069, %v3053
      %v3071 = vadd.f32 %v3070, %v3061
      %v3072 = vrot.slane %v3071, 4
      %v3073 = vadd.f32 %v3071, %v3072
      %v3074 = vrot.slane %v3073, 2
      %v3075 = vadd.f32 %v3073, %v3074
      %v3076 = vrot.slane %v3075, 1
      %v3077 = vadd.f32 %v3075, %v3076
      %v3078 = vadd.f32 %v3038, %v3046
      %v3079 = vadd.f32 %v3078, %v3054
      %v3080 = vadd.f32 %v3079, %v3062
      %v3081 = vrot.slane %v3080, 4
      %v3082 = vadd.f32 %v3080, %v3081
      %v3083 = vrot.slane %v3082, 2
      %v3084 = vadd.f32 %v3082, %v3083
      %v3085 = vrot.slane %v3084, 1
      %v3086 = vadd.f32 %v3084, %v3085
      %v3087 = vadd.f32 %v3039, %v3047
      %v3088 = vadd.f32 %v3087, %v3055
      %v3089 = vadd.f32 %v3088, %v3063
      %v3090 = vrot.slane %v3089, 4
      %v3091 = vadd.f32 %v3089, %v3090
      %v3092 = vrot.slane %v3091, 2
      %v3093 = vadd.f32 %v3091, %v3092
      %v3094 = vrot.slane %v3093, 1
      %v3095 = vadd.f32 %v3093, %v3094
      %v3096 = vadd.f32 %v3040, %v3048
      %v3097 = vadd.f32 %v3096, %v3056
      %v3098 = vadd.f32 %v3097, %v3064
      %v3099 = vrot.slane %v3098, 4
      %v3100 = vadd.f32 %v3098, %v3099
      %v3101 = vrot.slane %v3100, 2
      %v3102 = vadd.f32 %v3100, %v3101
      %v3103 = vrot.slane %v3102, 1
      %v3104 = vadd.f32 %v3102, %v3103
      %v3105 = vadd.f32 %v3041, %v3049
      %v3106 = vadd.f32 %v3105, %v3057
      %v3107 = vadd.f32 %v3106, %v3065
      %v3108 = vrot.slane %v3107, 4
      %v3109 = vadd.f32 %v3107, %v3108
      %v3110 = vrot.slane %v3109, 2
      %v3111 = vadd.f32 %v3109, %v3110
      %v3112 = vrot.slane %v3111, 1
      %v3113 = vadd.f32 %v3111, %v3112
      %v3114 = vadd.f32 %v3042, %v3050
      %v3115 = vadd.f32 %v3114, %v3058
      %v3116 = vadd.f32 %v3115, %v3066
      %v3117 = vrot.slane %v3116, 4
      %v3118 = vadd.f32 %v3116, %v3117
      %v3119 = vrot.slane %v3118, 2
      %v3120 = vadd.f32 %v3118, %v3119
      %v3121 = vrot.slane %v3120, 1
      %v3122 = vadd.f32 %v3120, %v3121
      %v3123 = vadd.f32 %v3043, %v3051
      %v3124 = vadd.f32 %v3123, %v3059
      %v3125 = vadd.f32 %v3124, %v3067
      %v3126 = vrot.slane %v3125, 4
      %v3127 = vadd.f32 %v3125, %v3126
      %v3128 = vrot.slane %v3127, 2
      %v3129 = vadd.f32 %v3127, %v3128
      %v3130 = vrot.slane %v3129, 1
      %v3131 = vadd.f32 %v3129, %v3130
      %v3132 = vadd.f32 %v3044, %v3052
      %v3133 = vadd.f32 %v3132, %v3060
      %v3134 = vadd.f32 %v3133, %v3068
      %v3135 = vrot.slane %v3134, 4
      %v3136 = vadd.f32 %v3134, %v3135
      %v3137 = vrot.slane %v3136, 2
      %v3138 = vadd.f32 %v3136, %v3137
      %v3139 = vrot.slane %v3138, 1
      %v3140 = vadd.f32 %v3138, %v3139
      %v3141 = vadd.f32 %v3077, %v1800
      %v3142 = vadd.f32 %v3086, %v1800
      %v3143 = vadd.f32 %v3095, %v1800
      %v3144 = vadd.f32 %v3104, %v1800
      %v3145 = vadd.f32 %v3113, %v1800
      %v3146 = vadd.f32 %v3122, %v1800
      %v3147 = vadd.f32 %v3131, %v1800
      %v3148 = vadd.f32 %v3140, %v1800
      %v3157 = vcombine.low %v3141, %v3142
      %v3158 = vcombine.low %v3143, %v3144
      %v3159 = vcombine.low %v3145, %v3146
      %v3160 = vcombine.low %v3147, %v3148
      %v3162 = vunpack.c.l.s4 1966171168
      %v3163 = vunpack.c.0.s8 %v3162
      %v3164 = vlaneseq
      %v3165 = vshrl.u32 %v3164, 7
      %v3166 = vsub.s32 %v3163, %v3165
      %v3167 = vrot.slane %v3157, %v3166
      %v3169 = vunpack.c.l.s4 1966171168
      %v3170 = vunpack.c.0.s8 %v3169
      %v3171 = vlaneseq
      %v3172 = vshrl.u32 %v3171, 7
      %v3173 = vsub.s32 %v3170, %v3172
      %v3174 = vrot.slane %v3158, %v3173
      %v3176 = vunpack.c.l.s4 1966171168
      %v3177 = vunpack.c.0.s8 %v3176
      %v3178 = vlaneseq
      %v3179 = vshrl.u32 %v3178, 7
      %v3180 = vsub.s32 %v3177, %v3179
      %v3181 = vrot.slane %v3159, %v3180
      %v3183 = vunpack.c.l.s4 1966171168
      %v3184 = vunpack.c.0.s8 %v3183
      %v3185 = vlaneseq
      %v3186 = vshrl.u32 %v3185, 7
      %v3187 = vsub.s32 %v3184, %v3186
      %v3188 = vrot.slane %v3160, %v3187
      %v3189 = vcombine.low %v3167, %v3174
      %v3190 = vcombine.low %v3181, %v3188
      %v3192 = vunpack.c.l.s4 1966171168
      %v3193 = vunpack.c.0.s8 %v3192
      %v3194 = vlaneseq
      %v3195 = vshrl.u32 %v3194, 7
      %v3196 = vsub.s32 %v3193, %v3195
      %v3197 = vrot.slane %v3189, %v3196
      %v3199 = vunpack.c.l.s4 1966171168
      %v3200 = vunpack.c.0.s8 %v3199
      %v3201 = vlaneseq
      %v3202 = vshrl.u32 %v3201, 7
      %v3203 = vsub.s32 %v3200, %v3202
      %v3204 = vrot.slane %v3190, %v3203
      %v3205 = vcombine.low %v3197, %v3204
      %s3207 = scalar_lea.vmem %s253, 1
      %3208 = vst [vmem:[%s3207] ss:$8 sm:$0xf] %v3205
      %3209 = vst [vmem:[%s3207] ss:$8 sm:$0xf0] %v3205
      %v3210 = vlaneseq
      %v3211 = vshrl.u32 %v3210, 7
      %v3212 = vsub.s32 2, %v3211
      %v3213 = vrot.slane %v307, %v3212
      %v3214 = vlaneseq
      %v3215 = vshrl.u32 %v3214, 7
      %v3216 = vsub.s32 2, %v3215
      %v3217 = vrot.slane %v308, %v3216
      %v3218 = vlaneseq
      %v3219 = vshrl.u32 %v3218, 7
      %v3220 = vsub.s32 2, %v3219
      %v3221 = vrot.slane %v309, %v3220
      %v3222 = vlaneseq
      %v3223 = vshrl.u32 %v3222, 7
      %v3224 = vsub.s32 2, %v3223
      %v3225 = vrot.slane %v310, %v3224
      %v3226 = vlaneseq
      %v3227 = vshrl.u32 %v3226, 7
      %v3228 = vsub.s32 2, %v3227
      %v3229 = vrot.slane %v311, %v3228
      %v3230 = vlaneseq
      %v3231 = vshrl.u32 %v3230, 7
      %v3232 = vsub.s32 2, %v3231
      %v3233 = vrot.slane %v312, %v3232
      %v3234 = vlaneseq
      %v3235 = vshrl.u32 %v3234, 7
      %v3236 = vsub.s32 2, %v3235
      %v3237 = vrot.slane %v313, %v3236
      %v3238 = vlaneseq
      %v3239 = vshrl.u32 %v3238, 7
      %v3240 = vsub.s32 2, %v3239
      %v3241 = vrot.slane %v314, %v3240
      %v3242 = vmul.f32 %v318, %v3213
      %v3243 = vmul.f32 %v318, %v3217
      %v3244 = vmul.f32 %v318, %v3221
      %v3245 = vmul.f32 %v318, %v3225
      %v3246 = vmul.f32 %v318, %v3229
      %v3247 = vmul.f32 %v318, %v3233
      %v3248 = vmul.f32 %v318, %v3237
      %v3249 = vmul.f32 %v318, %v3241
      %v3250 = vmul.f32 %v323, %v3213
      %v3251 = vmul.f32 %v323, %v3217
      %v3252 = vmul.f32 %v323, %v3221
      %v3253 = vmul.f32 %v323, %v3225
      %v3254 = vmul.f32 %v323, %v3229
      %v3255 = vmul.f32 %v323, %v3233
      %v3256 = vmul.f32 %v323, %v3237
      %v3257 = vmul.f32 %v323, %v3241
      %v3258 = vmul.f32 %v328, %v3213
      %v3259 = vmul.f32 %v328, %v3217
      %v3260 = vmul.f32 %v328, %v3221
      %v3261 = vmul.f32 %v328, %v3225
      %v3262 = vmul.f32 %v328, %v3229
      %v3263 = vmul.f32 %v328, %v3233
      %v3264 = vmul.f32 %v328, %v3237
      %v3265 = vmul.f32 %v328, %v3241
      %v3266 = vmul.f32 %v333, %v3213
      %v3267 = vmul.f32 %v333, %v3217
      %v3268 = vmul.f32 %v333, %v3221
      %v3269 = vmul.f32 %v333, %v3225
      %v3270 = vmul.f32 %v333, %v3229
      %v3271 = vmul.f32 %v333, %v3233
      %v3272 = vmul.f32 %v333, %v3237
      %v3273 = vmul.f32 %v333, %v3241
      %v3274 = vadd.f32 %v3242, %v402
      %v3275 = vadd.f32 %v3243, %v402
      %v3276 = vadd.f32 %v3244, %v402
      %v3277 = vadd.f32 %v3245, %v402
      %v3278 = vadd.f32 %v3246, %v402
      %v3279 = vadd.f32 %v3247, %v402
      %v3280 = vadd.f32 %v3248, %v402
      %v3281 = vadd.f32 %v3249, %v402
      %v3282 = vadd.f32 %v3250, %v407
      %v3283 = vadd.f32 %v3251, %v407
      %v3284 = vadd.f32 %v3252, %v407
      %v3285 = vadd.f32 %v3253, %v407
      %v3286 = vadd.f32 %v3254, %v407
      %v3287 = vadd.f32 %v3255, %v407
      %v3288 = vadd.f32 %v3256, %v407
      %v3289 = vadd.f32 %v3257, %v407
      %v3290 = vadd.f32 %v3258, %v412
      %v3291 = vadd.f32 %v3259, %v412
      %v3292 = vadd.f32 %v3260, %v412
      %v3293 = vadd.f32 %v3261, %v412
      %v3294 = vadd.f32 %v3262, %v412
      %v3295 = vadd.f32 %v3263, %v412
      %v3296 = vadd.f32 %v3264, %v412
      %v3297 = vadd.f32 %v3265, %v412
      %v3298 = vadd.f32 %v3266, %v417
      %v3299 = vadd.f32 %v3267, %v417
      %v3300 = vadd.f32 %v3268, %v417
      %v3301 = vadd.f32 %v3269, %v417
      %v3302 = vadd.f32 %v3270, %v417
      %v3303 = vadd.f32 %v3271, %v417
      %v3304 = vadd.f32 %v3272, %v417
      %v3305 = vadd.f32 %v3273, %v417
      %v3306 = vtanh.pop %v3274
      %v3307 = vtanh.pop %v3275
      %v3308 = vtanh.pop %v3276
      %v3309 = vtanh.pop %v3277
      %v3310 = vtanh.pop %v3278
      %v3311 = vtanh.pop %v3279
      %v3312 = vtanh.pop %v3280
      %v3313 = vtanh.pop %v3281
      %v3314 = vtanh.pop %v3282
      %v3315 = vtanh.pop %v3283
      %v3316 = vtanh.pop %v3284
      %v3317 = vtanh.pop %v3285
      %v3318 = vtanh.pop %v3286
      %v3319 = vtanh.pop %v3287
      %v3320 = vtanh.pop %v3288
      %v3321 = vtanh.pop %v3289
      %v3322 = vtanh.pop %v3290
      %v3323 = vtanh.pop %v3291
      %v3324 = vtanh.pop %v3292
      %v3325 = vtanh.pop %v3293
      %v3326 = vtanh.pop %v3294
      %v3327 = vtanh.pop %v3295
      %v3328 = vtanh.pop %v3296
      %v3329 = vtanh.pop %v3297
      %v3330 = vtanh.pop %v3298
      %v3331 = vtanh.pop %v3299
      %v3332 = vtanh.pop %v3300
      %v3333 = vtanh.pop %v3301
      %v3334 = vtanh.pop %v3302
      %v3335 = vtanh.pop %v3303
      %v3336 = vtanh.pop %v3304
      %v3337 = vtanh.pop %v3305
      %v3338 = vpack.c.bf16 %v3314, %v3306
      %v3339 = vpack.c.bf16 %v3315, %v3307
      %v3340 = vpack.c.bf16 %v3316, %v3308
      %v3341 = vpack.c.bf16 %v3317, %v3309
      %v3342 = vpack.c.bf16 %v3318, %v3310
      %v3343 = vpack.c.bf16 %v3319, %v3311
      %v3344 = vpack.c.bf16 %v3320, %v3312
      %v3345 = vpack.c.bf16 %v3321, %v3313
      %v3346 = vpack.c.bf16 %v3330, %v3322
      %v3347 = vpack.c.bf16 %v3331, %v3323
      %v3348 = vpack.c.bf16 %v3332, %v3324
      %v3349 = vpack.c.bf16 %v3333, %v3325
      %v3350 = vpack.c.bf16 %v3334, %v3326
      %v3351 = vpack.c.bf16 %v3335, %v3327
      %v3352 = vpack.c.bf16 %v3336, %v3328
      %v3353 = vpack.c.bf16 %v3337, %v3329
      %3354 = vmatprep.subr.bf16.mxu0 %v3339
      %3355 = vmatpush1.bf16.msra.mxu0 %v3338
      %3356 = vmatprep.subr.bf16.mxu0 %v3347
      %3357 = vmatpush1.bf16.msra.mxu0 %v3346
      %3358 = vmatprep.subr.bf16.mxu0 0
      %3359 = vmatpush1.bf16.msra.mxu0 0
      %3360 = vmatprep.subr.bf16.mxu0 0
      %3361 = vmatpush1.bf16.msra.mxu0 0
      %3362 = vmatprep.subr.bf16.mxu0 0
      %3363 = vmatpush1.bf16.msra.mxu0 0
      %3364 = vmatprep.subr.bf16.mxu0 0
      %3365 = vmatpush1.bf16.msra.mxu0 0
      %3366 = vmatprep.subr.bf16.mxu0 0
      %3367 = vmatpush1.bf16.msra.mxu0 0
      %3368 = vmatprep.subr.bf16.mxu0 0
      %3369 = vmatpush1.bf16.msra.mxu0 0
      %3370 = vmatprep.subr.bf16.mxu0 0
      %3371 = vmatpush1.bf16.msra.mxu0 0
      %3372 = vmatprep.subr.bf16.mxu0 0
      %3373 = vmatpush1.bf16.msra.mxu0 0
      %3374 = vmatprep.subr.bf16.mxu0 0
      %3375 = vmatpush1.bf16.msra.mxu0 0
      %3376 = vmatprep.subr.bf16.mxu0 0
      %3377 = vmatpush1.bf16.msra.mxu0 0
      %3378 = vmatprep.subr.bf16.mxu0 0
      %3379 = vmatpush1.bf16.msra.mxu0 0
      %3380 = vmatprep.subr.bf16.mxu0 0
      %3381 = vmatpush1.bf16.msra.mxu0 0
      %3382 = vmatprep.subr.bf16.mxu0 0
      %3383 = vmatpush1.bf16.msra.mxu0 0
      %3384 = vmatprep.subr.bf16.mxu0 0
      %3385 = vmatpush1.bf16.msra.mxu0 0
      %3386 = vmatprep.mubr.bf16.mxu0 0
      %3387 = vmatmul.mubr.bf16.gmra.mrb[0].mxu0 %v531
      %v3388 = vpop.f32.mrb[0].mxu0
      %v3389 = vadd.f32 %v502, %v3388
      %v3390 = vpop.f32.mrb[0].mxu0
      %v3391 = vadd.f32 %v502, %v3390
      %v3392 = vpop.f32.mrb[0].mxu0
      %v3393 = vadd.f32 %v507, %v3392
      %v3394 = vpop.f32.mrb[0].mxu0
      %v3395 = vadd.f32 %v507, %v3394
      %3396 = vmatprep.mubr.bf16.mxu0 0
      %3397 = vmatmul.mubr.bf16.gmra.mrb[0].mxu0 %v534
      %v3398 = vpop.f32.mrb[0].mxu0
      %v3399 = vadd.f32 %v512, %v3398
      %v3400 = vpop.f32.mrb[0].mxu0
      %v3401 = vadd.f32 %v512, %v3400
      %v3402 = vpop.f32.mrb[0].mxu0
      %v3403 = vadd.f32 %v517, %v3402
      %v3404 = vpop.f32.mrb[0].mxu0
      %v3405 = vadd.f32 %v517, %v3404
      %3406 = vdwg.mxu0
      %3407 = vmatprep.subr.bf16.mxu0 %v3341
      %3408 = vmatpush1.bf16.msra.mxu0 %v3340
      %3409 = vmatprep.subr.bf16.mxu0 %v3349
      %3410 = vmatpush1.bf16.msra.mxu0 %v3348
      %3411 = vmatprep.subr.bf16.mxu0 0
      %3412 = vmatpush1.bf16.msra.mxu0 0
      %3413 = vmatprep.subr.bf16.mxu0 0
      %3414 = vmatpush1.bf16.msra.mxu0 0
      %3415 = vmatprep.subr.bf16.mxu0 0
      %3416 = vmatpush1.bf16.msra.mxu0 0
      %3417 = vmatprep.subr.bf16.mxu0 0
      %3418 = vmatpush1.bf16.msra.mxu0 0
      %3419 = vmatprep.subr.bf16.mxu0 0
      %3420 = vmatpush1.bf16.msra.mxu0 0
      %3421 = vmatprep.subr.bf16.mxu0 0
      %3422 = vmatpush1.bf16.msra.mxu0 0
      %3423 = vmatprep.subr.bf16.mxu0 0
      %3424 = vmatpush1.bf16.msra.mxu0 0
      %3425 = vmatprep.subr.bf16.mxu0 0
      %3426 = vmatpush1.bf16.msra.mxu0 0
      %3427 = vmatprep.subr.bf16.mxu0 0
      %3428 = vmatpush1.bf16.msra.mxu0 0
      %3429 = vmatprep.subr.bf16.mxu0 0
      %3430 = vmatpush1.bf16.msra.mxu0 0
      %3431 = vmatprep.subr.bf16.mxu0 0
      %3432 = vmatpush1.bf16.msra.mxu0 0
      %3433 = vmatprep.subr.bf16.mxu0 0
      %3434 = vmatpush1.bf16.msra.mxu0 0
      %3435 = vmatprep.subr.bf16.mxu0 0
      %3436 = vmatpush1.bf16.msra.mxu0 0
      %3437 = vmatprep.subr.bf16.mxu0 0
      %3438 = vmatpush1.bf16.msra.mxu0 0
      %3439 = vmatprep.mubr.bf16.mxu0 0
      %3440 = vmatmul.mubr.bf16.gmra.mrb[0].mxu0 %v531
      %v3441 = vpop.f32.mrb[0].mxu0
      %v3442 = vadd.f32 %v502, %v3441
      %v3443 = vpop.f32.mrb[0].mxu0
      %v3444 = vadd.f32 %v502, %v3443
      %v3445 = vpop.f32.mrb[0].mxu0
      %v3446 = vadd.f32 %v507, %v3445
      %v3447 = vpop.f32.mrb[0].mxu0
      %v3448 = vadd.f32 %v507, %v3447
      %3449 = vmatprep.mubr.bf16.mxu0 0
      %3450 = vmatmul.mubr.bf16.gmra.mrb[0].mxu0 %v534
      %v3451 = vpop.f32.mrb[0].mxu0
      %v3452 = vadd.f32 %v512, %v3451
      %v3453 = vpop.f32.mrb[0].mxu0
      %v3454 = vadd.f32 %v512, %v3453
      %v3455 = vpop.f32.mrb[0].mxu0
      %v3456 = vadd.f32 %v517, %v3455
      %v3457 = vpop.f32.mrb[0].mxu0
      %v3458 = vadd.f32 %v517, %v3457
      %3459 = vdwg.mxu0
      %3460 = vmatprep.subr.bf16.mxu0 %v3343
      %3461 = vmatpush1.bf16.msra.mxu0 %v3342
      %3462 = vmatprep.subr.bf16.mxu0 %v3351
      %3463 = vmatpush1.bf16.msra.mxu0 %v3350
      %3464 = vmatprep.subr.bf16.mxu0 0
      %3465 = vmatpush1.bf16.msra.mxu0 0
      %3466 = vmatprep.subr.bf16.mxu0 0
      %3467 = vmatpush1.bf16.msra.mxu0 0
      %3468 = vmatprep.subr.bf16.mxu0 0
      %3469 = vmatpush1.bf16.msra.mxu0 0
      %3470 = vmatprep.subr.bf16.mxu0 0
      %3471 = vmatpush1.bf16.msra.mxu0 0
      %3472 = vmatprep.subr.bf16.mxu0 0
      %3473 = vmatpush1.bf16.msra.mxu0 0
      %3474 = vmatprep.subr.bf16.mxu0 0
      %3475 = vmatpush1.bf16.msra.mxu0 0
      %3476 = vmatprep.subr.bf16.mxu0 0
      %3477 = vmatpush1.bf16.msra.mxu0 0
      %3478 = vmatprep.subr.bf16.mxu0 0
      %3479 = vmatpush1.bf16.msra.mxu0 0
      %3480 = vmatprep.subr.bf16.mxu0 0
      %3481 = vmatpush1.bf16.msra.mxu0 0
      %3482 = vmatprep.subr.bf16.mxu0 0
      %3483 = vmatpush1.bf16.msra.mxu0 0
      %3484 = vmatprep.subr.bf16.mxu0 0
      %3485 = vmatpush1.bf16.msra.mxu0 0
      %3486 = vmatprep.subr.bf16.mxu0 0
      %3487 = vmatpush1.bf16.msra.mxu0 0
      %3488 = vmatprep.subr.bf16.mxu0 0
      %3489 = vmatpush1.bf16.msra.mxu0 0
      %3490 = vmatprep.subr.bf16.mxu0 0
      %3491 = vmatpush1.bf16.msra.mxu0 0
      %3492 = vmatprep.mubr.bf16.mxu0 0
      %3493 = vmatmul.mubr.bf16.gmra.mrb[0].mxu0 %v531
      %v3494 = vpop.f32.mrb[0].mxu0
      %v3495 = vadd.f32 %v502, %v3494
      %v3496 = vpop.f32.mrb[0].mxu0
      %v3497 = vadd.f32 %v502, %v3496
      %v3498 = vpop.f32.mrb[0].mxu0
      %v3499 = vadd.f32 %v507, %v3498
      %v3500 = vpop.f32.mrb[0].mxu0
      %v3501 = vadd.f32 %v507, %v3500
      %3502 = vmatprep.mubr.bf16.mxu0 0
      %3503 = vmatmul.mubr.bf16.gmra.mrb[0].mxu0 %v534
      %v3504 = vpop.f32.mrb[0].mxu0
      %v3505 = vadd.f32 %v512, %v3504
      %v3506 = vpop.f32.mrb[0].mxu0
      %v3507 = vadd.f32 %v512, %v3506
      %v3508 = vpop.f32.mrb[0].mxu0
      %v3509 = vadd.f32 %v517, %v3508
      %v3510 = vpop.f32.mrb[0].mxu0
      %v3511 = vadd.f32 %v517, %v3510
      %3512 = vdwg.mxu0
      %3513 = vmatprep.subr.bf16.mxu0 %v3345
      %3514 = vmatpush1.bf16.msra.mxu0 %v3344
      %3515 = vmatprep.subr.bf16.mxu0 %v3353
      %3516 = vmatpush1.bf16.msra.mxu0 %v3352
      %3517 = vmatprep.subr.bf16.mxu0 0
      %3518 = vmatpush1.bf16.msra.mxu0 0
      %3519 = vmatprep.subr.bf16.mxu0 0
      %3520 = vmatpush1.bf16.msra.mxu0 0
      %3521 = vmatprep.subr.bf16.mxu0 0
      %3522 = vmatpush1.bf16.msra.mxu0 0
      %3523 = vmatprep.subr.bf16.mxu0 0
      %3524 = vmatpush1.bf16.msra.mxu0 0
      %3525 = vmatprep.subr.bf16.mxu0 0
      %3526 = vmatpush1.bf16.msra.mxu0 0
      %3527 = vmatprep.subr.bf16.mxu0 0
      %3528 = vmatpush1.bf16.msra.mxu0 0
      %3529 = vmatprep.subr.bf16.mxu0 0
      %3530 = vmatpush1.bf16.msra.mxu0 0
      %3531 = vmatprep.subr.bf16.mxu0 0
      %3532 = vmatpush1.bf16.msra.mxu0 0
      %3533 = vmatprep.subr.bf16.mxu0 0
      %3534 = vmatpush1.bf16.msra.mxu0 0
      %3535 = vmatprep.subr.bf16.mxu0 0
      %3536 = vmatpush1.bf16.msra.mxu0 0
      %3537 = vmatprep.subr.bf16.mxu0 0
      %3538 = vmatpush1.bf16.msra.mxu0 0
      %3539 = vmatprep.subr.bf16.mxu0 0
      %3540 = vmatpush1.bf16.msra.mxu0 0
      %3541 = vmatprep.subr.bf16.mxu0 0
      %3542 = vmatpush1.bf16.msra.mxu0 0
      %3543 = vmatprep.subr.bf16.mxu0 0
      %3544 = vmatpush1.bf16.msra.mxu0 0
      %3545 = vmatprep.mubr.bf16.mxu0 0
      %3546 = vmatmul.mubr.bf16.gmra.mrb[0].mxu0 %v531
      %v3547 = vpop.f32.mrb[0].mxu0
      %v3548 = vadd.f32 %v502, %v3547
      %v3549 = vpop.f32.mrb[0].mxu0
      %v3550 = vadd.f32 %v502, %v3549
      %v3551 = vpop.f32.mrb[0].mxu0
      %v3552 = vadd.f32 %v507, %v3551
      %v3553 = vpop.f32.mrb[0].mxu0
      %v3554 = vadd.f32 %v507, %v3553
      %3555 = vmatprep.mubr.bf16.mxu0 0
      %3556 = vmatmul.mubr.bf16.gmra.mrb[0].mxu0 %v534
      %v3557 = vpop.f32.mrb[0].mxu0
      %v3558 = vadd.f32 %v512, %v3557
      %v3559 = vpop.f32.mrb[0].mxu0
      %v3560 = vadd.f32 %v512, %v3559
      %v3561 = vpop.f32.mrb[0].mxu0
      %v3562 = vadd.f32 %v517, %v3561
      %v3563 = vpop.f32.mrb[0].mxu0
      %v3564 = vadd.f32 %v517, %v3563
      %3565 = vdwg.mxu0
      %v3566 = vtanh.pop %v3389
      %v3567 = vtanh.pop %v3391
      %v3568 = vtanh.pop %v3442
      %v3569 = vtanh.pop %v3444
      %v3570 = vtanh.pop %v3495
      %v3571 = vtanh.pop %v3497
      %v3572 = vtanh.pop %v3548
      %v3573 = vtanh.pop %v3550
      %v3574 = vtanh.pop %v3393
      %v3575 = vtanh.pop %v3395
      %v3576 = vtanh.pop %v3446
      %v3577 = vtanh.pop %v3448
      %v3578 = vtanh.pop %v3499
      %v3579 = vtanh.pop %v3501
      %v3580 = vtanh.pop %v3552
      %v3581 = vtanh.pop %v3554
      %v3582 = vtanh.pop %v3399
      %v3583 = vtanh.pop %v3401
      %v3584 = vtanh.pop %v3452
      %v3585 = vtanh.pop %v3454
      %v3586 = vtanh.pop %v3505
      %v3587 = vtanh.pop %v3507
      %v3588 = vtanh.pop %v3558
      %v3589 = vtanh.pop %v3560
      %v3590 = vtanh.pop %v3403
      %v3591 = vtanh.pop %v3405
      %v3592 = vtanh.pop %v3456
      %v3593 = vtanh.pop %v3458
      %v3594 = vtanh.pop %v3509
      %v3595 = vtanh.pop %v3511
      %v3596 = vtanh.pop %v3562
      %v3597 = vtanh.pop %v3564
      %v3598 = vpack.c.bf16 %v3574, %v3566
      %v3599 = vpack.c.bf16 %v3575, %v3567
      %v3600 = vpack.c.bf16 %v3576, %v3568
      %v3601 = vpack.c.bf16 %v3577, %v3569
      %v3602 = vpack.c.bf16 %v3578, %v3570
      %v3603 = vpack.c.bf16 %v3579, %v3571
      %v3604 = vpack.c.bf16 %v3580, %v3572
      %v3605 = vpack.c.bf16 %v3581, %v3573
      %v3606 = vpack.c.bf16 %v3590, %v3582
      %v3607 = vpack.c.bf16 %v3591, %v3583
      %v3608 = vpack.c.bf16 %v3592, %v3584
      %v3609 = vpack.c.bf16 %v3593, %v3585
      %v3610 = vpack.c.bf16 %v3594, %v3586
      %v3611 = vpack.c.bf16 %v3595, %v3587
      %v3612 = vpack.c.bf16 %v3596, %v3588
      %v3613 = vpack.c.bf16 %v3597, %v3589
      %3614 = vmatprep.subr.bf16.mxu0 %v3599
      %3615 = vmatpush1.bf16.msra.mxu0 %v3598
      %3616 = vmatprep.subr.bf16.mxu0 %v3607
      %3617 = vmatpush1.bf16.msra.mxu0 %v3606
      %3618 = vmatprep.subr.bf16.mxu0 0
      %3619 = vmatpush1.bf16.msra.mxu0 0
      %3620 = vmatprep.subr.bf16.mxu0 0
      %3621 = vmatpush1.bf16.msra.mxu0 0
      %3622 = vmatprep.subr.bf16.mxu0 0
      %3623 = vmatpush1.bf16.msra.mxu0 0
      %3624 = vmatprep.subr.bf16.mxu0 0
      %3625 = vmatpush1.bf16.msra.mxu0 0
      %3626 = vmatprep.subr.bf16.mxu0 0
      %3627 = vmatpush1.bf16.msra.mxu0 0
      %3628 = vmatprep.subr.bf16.mxu0 0
      %3629 = vmatpush1.bf16.msra.mxu0 0
      %3630 = vmatprep.subr.bf16.mxu0 0
      %3631 = vmatpush1.bf16.msra.mxu0 0
      %3632 = vmatprep.subr.bf16.mxu0 0
      %3633 = vmatpush1.bf16.msra.mxu0 0
      %3634 = vmatprep.subr.bf16.mxu0 0
      %3635 = vmatpush1.bf16.msra.mxu0 0
      %3636 = vmatprep.subr.bf16.mxu0 0
      %3637 = vmatpush1.bf16.msra.mxu0 0
      %3638 = vmatprep.subr.bf16.mxu0 0
      %3639 = vmatpush1.bf16.msra.mxu0 0
      %3640 = vmatprep.subr.bf16.mxu0 0
      %3641 = vmatpush1.bf16.msra.mxu0 0
      %3642 = vmatprep.subr.bf16.mxu0 0
      %3643 = vmatpush1.bf16.msra.mxu0 0
      %3644 = vmatprep.subr.bf16.mxu0 0
      %3645 = vmatpush1.bf16.msra.mxu0 0
      %3646 = vmatprep.mubr.bf16.mxu0 0
      %3647 = vmatmul.mubr.bf16.gmra.mrb[0].mxu0 %v827
      %v3648 = vpop.f32.mrb[0].mxu0
      %v3649 = vadd.f32 %v799, %v3648
      %v3650 = vpop.f32.mrb[0].mxu0
      %v3651 = vadd.f32 %v799, %v3650
      %v3652 = vpop.f32.mrb[0].mxu0
      %v3653 = vadd.f32 %v804, %v3652
      %v3654 = vpop.f32.mrb[0].mxu0
      %v3655 = vadd.f32 %v804, %v3654
      %3656 = vmatprep.mubr.bf16.mxu0 0
      %3657 = vmatmul.mubr.bf16.gmra.mrb[0].mxu0 %v830
      %v3658 = vpop.f32.mrb[0].mxu0
      %v3659 = vadd.f32 %v809, %v3658
      %v3660 = vpop.f32.mrb[0].mxu0
      %v3661 = vadd.f32 %v809, %v3660
      %v3662 = vpop.f32.mrb[0].mxu0
      %v3663 = vadd.f32 %v814, %v3662
      %v3664 = vpop.f32.mrb[0].mxu0
      %v3665 = vadd.f32 %v814, %v3664
      %3666 = vdwg.mxu0
      %3667 = vmatprep.subr.bf16.mxu0 %v3601
      %3668 = vmatpush1.bf16.msra.mxu0 %v3600
      %3669 = vmatprep.subr.bf16.mxu0 %v3609
      %3670 = vmatpush1.bf16.msra.mxu0 %v3608
      %3671 = vmatprep.subr.bf16.mxu0 0
      %3672 = vmatpush1.bf16.msra.mxu0 0
      %3673 = vmatprep.subr.bf16.mxu0 0
      %3674 = vmatpush1.bf16.msra.mxu0 0
      %3675 = vmatprep.subr.bf16.mxu0 0
      %3676 = vmatpush1.bf16.msra.mxu0 0
      %3677 = vmatprep.subr.bf16.mxu0 0
      %3678 = vmatpush1.bf16.msra.mxu0 0
      %3679 = vmatprep.subr.bf16.mxu0 0
      %3680 = vmatpush1.bf16.msra.mxu0 0
      %3681 = vmatprep.subr.bf16.mxu0 0
      %3682 = vmatpush1.bf16.msra.mxu0 0
      %3683 = vmatprep.subr.bf16.mxu0 0
      %3684 = vmatpush1.bf16.msra.mxu0 0
      %3685 = vmatprep.subr.bf16.mxu0 0
      %3686 = vmatpush1.bf16.msra.mxu0 0
      %3687 = vmatprep.subr.bf16.mxu0 0
      %3688 = vmatpush1.bf16.msra.mxu0 0
      %3689 = vmatprep.subr.bf16.mxu0 0
      %3690 = vmatpush1.bf16.msra.mxu0 0
      %3691 = vmatprep.subr.bf16.mxu0 0
      %3692 = vmatpush1.bf16.msra.mxu0 0
      %3693 = vmatprep.subr.bf16.mxu0 0
      %3694 = vmatpush1.bf16.msra.mxu0 0
      %3695 = vmatprep.subr.bf16.mxu0 0
      %3696 = vmatpush1.bf16.msra.mxu0 0
      %3697 = vmatprep.subr.bf16.mxu0 0
      %3698 = vmatpush1.bf16.msra.mxu0 0
      %3699 = vmatprep.mubr.bf16.mxu0 0
      %3700 = vmatmul.mubr.bf16.gmra.mrb[0].mxu0 %v827
      %v3701 = vpop.f32.mrb[0].mxu0
      %v3702 = vadd.f32 %v799, %v3701
      %v3703 = vpop.f32.mrb[0].mxu0
      %v3704 = vadd.f32 %v799, %v3703
      %v3705 = vpop.f32.mrb[0].mxu0
      %v3706 = vadd.f32 %v804, %v3705
      %v3707 = vpop.f32.mrb[0].mxu0
      %v3708 = vadd.f32 %v804, %v3707
      %3709 = vmatprep.mubr.bf16.mxu0 0
      %3710 = vmatmul.mubr.bf16.gmra.mrb[0].mxu0 %v830
      %v3711 = vpop.f32.mrb[0].mxu0
      %v3712 = vadd.f32 %v809, %v3711
      %v3713 = vpop.f32.mrb[0].mxu0
      %v3714 = vadd.f32 %v809, %v3713
      %v3715 = vpop.f32.mrb[0].mxu0
      %v3716 = vadd.f32 %v814, %v3715
      %v3717 = vpop.f32.mrb[0].mxu0
      %v3718 = vadd.f32 %v814, %v3717
      %3719 = vdwg.mxu0
      %3720 = vmatprep.subr.bf16.mxu0 %v3603
      %3721 = vmatpush1.bf16.msra.mxu0 %v3602
      %3722 = vmatprep.subr.bf16.mxu0 %v3611
      %3723 = vmatpush1.bf16.msra.mxu0 %v3610
      %3724 = vmatprep.subr.bf16.mxu0 0
      %3725 = vmatpush1.bf16.msra.mxu0 0
      %3726 = vmatprep.subr.bf16.mxu0 0
      %3727 = vmatpush1.bf16.msra.mxu0 0
      %3728 = vmatprep.subr.bf16.mxu0 0
      %3729 = vmatpush1.bf16.msra.mxu0 0
      %3730 = vmatprep.subr.bf16.mxu0 0
      %3731 = vmatpush1.bf16.msra.mxu0 0
      %3732 = vmatprep.subr.bf16.mxu0 0
      %3733 = vmatpush1.bf16.msra.mxu0 0
      %3734 = vmatprep.subr.bf16.mxu0 0
      %3735 = vmatpush1.bf16.msra.mxu0 0
      %3736 = vmatprep.subr.bf16.mxu0 0
      %3737 = vmatpush1.bf16.msra.mxu0 0
      %3738 = vmatprep.subr.bf16.mxu0 0
      %3739 = vmatpush1.bf16.msra.mxu0 0
      %3740 = vmatprep.subr.bf16.mxu0 0
      %3741 = vmatpush1.bf16.msra.mxu0 0
      %3742 = vmatprep.subr.bf16.mxu0 0
      %3743 = vmatpush1.bf16.msra.mxu0 0
      %3744 = vmatprep.subr.bf16.mxu0 0
      %3745 = vmatpush1.bf16.msra.mxu0 0
      %3746 = vmatprep.subr.bf16.mxu0 0
      %3747 = vmatpush1.bf16.msra.mxu0 0
      %3748 = vmatprep.subr.bf16.mxu0 0
      %3749 = vmatpush1.bf16.msra.mxu0 0
      %3750 = vmatprep.subr.bf16.mxu0 0
      %3751 = vmatpush1.bf16.msra.mxu0 0
      %3752 = vmatprep.mubr.bf16.mxu0 0
      %3753 = vmatmul.mubr.bf16.gmra.mrb[0].mxu0 %v827
      %v3754 = vpop.f32.mrb[0].mxu0
      %v3755 = vadd.f32 %v799, %v3754
      %v3756 = vpop.f32.mrb[0].mxu0
      %v3757 = vadd.f32 %v799, %v3756
      %v3758 = vpop.f32.mrb[0].mxu0
      %v3759 = vadd.f32 %v804, %v3758
      %v3760 = vpop.f32.mrb[0].mxu0
      %v3761 = vadd.f32 %v804, %v3760
      %3762 = vmatprep.mubr.bf16.mxu0 0
      %3763 = vmatmul.mubr.bf16.gmra.mrb[0].mxu0 %v830
      %v3764 = vpop.f32.mrb[0].mxu0
      %v3765 = vadd.f32 %v809, %v3764
      %v3766 = vpop.f32.mrb[0].mxu0
      %v3767 = vadd.f32 %v809, %v3766
      %v3768 = vpop.f32.mrb[0].mxu0
      %v3769 = vadd.f32 %v814, %v3768
      %v3770 = vpop.f32.mrb[0].mxu0
      %v3771 = vadd.f32 %v814, %v3770
      %3772 = vdwg.mxu0
      %3773 = vmatprep.subr.bf16.mxu0 %v3605
      %3774 = vmatpush1.bf16.msra.mxu0 %v3604
      %3775 = vmatprep.subr.bf16.mxu0 %v3613
      %3776 = vmatpush1.bf16.msra.mxu0 %v3612
      %3777 = vmatprep.subr.bf16.mxu0 0
      %3778 = vmatpush1.bf16.msra.mxu0 0
      %3779 = vmatprep.subr.bf16.mxu0 0
      %3780 = vmatpush1.bf16.msra.mxu0 0
      %3781 = vmatprep.subr.bf16.mxu0 0
      %3782 = vmatpush1.bf16.msra.mxu0 0
      %3783 = vmatprep.subr.bf16.mxu0 0
      %3784 = vmatpush1.bf16.msra.mxu0 0
      %3785 = vmatprep.subr.bf16.mxu0 0
      %3786 = vmatpush1.bf16.msra.mxu0 0
      %3787 = vmatprep.subr.bf16.mxu0 0
      %3788 = vmatpush1.bf16.msra.mxu0 0
      %3789 = vmatprep.subr.bf16.mxu0 0
      %3790 = vmatpush1.bf16.msra.mxu0 0
      %3791 = vmatprep.subr.bf16.mxu0 0
      %3792 = vmatpush1.bf16.msra.mxu0 0
      %3793 = vmatprep.subr.bf16.mxu0 0
      %3794 = vmatpush1.bf16.msra.mxu0 0
      %3795 = vmatprep.subr.bf16.mxu0 0
      %3796 = vmatpush1.bf16.msra.mxu0 0
      %3797 = vmatprep.subr.bf16.mxu0 0
      %3798 = vmatpush1.bf16.msra.mxu0 0
      %3799 = vmatprep.subr.bf16.mxu0 0
      %3800 = vmatpush1.bf16.msra.mxu0 0
      %3801 = vmatprep.subr.bf16.mxu0 0
      %3802 = vmatpush1.bf16.msra.mxu0 0
      %3803 = vmatprep.subr.bf16.mxu0 0
      %3804 = vmatpush1.bf16.msra.mxu0 0
      %3805 = vmatprep.mubr.bf16.mxu0 0
      %3806 = vmatmul.mubr.bf16.gmra.mrb[0].mxu0 %v827
      %v3807 = vpop.f32.mrb[0].mxu0
      %v3808 = vadd.f32 %v799, %v3807
      %v3809 = vpop.f32.mrb[0].mxu0
      %v3810 = vadd.f32 %v799, %v3809
      %v3811 = vpop.f32.mrb[0].mxu0
      %v3812 = vadd.f32 %v804, %v3811
      %v3813 = vpop.f32.mrb[0].mxu0
      %v3814 = vadd.f32 %v804, %v3813
      %3815 = vmatprep.mubr.bf16.mxu0 0
      %3816 = vmatmul.mubr.bf16.gmra.mrb[0].mxu0 %v830
      %v3817 = vpop.f32.mrb[0].mxu0
      %v3818 = vadd.f32 %v809, %v3817
      %v3819 = vpop.f32.mrb[0].mxu0
      %v3820 = vadd.f32 %v809, %v3819
      %v3821 = vpop.f32.mrb[0].mxu0
      %v3822 = vadd.f32 %v814, %v3821
      %v3823 = vpop.f32.mrb[0].mxu0
      %v3824 = vadd.f32 %v814, %v3823
      %3825 = vdwg.mxu0
      %v3826 = vtanh.pop %v3649
      %v3827 = vtanh.pop %v3651
      %v3828 = vtanh.pop %v3702
      %v3829 = vtanh.pop %v3704
      %v3830 = vtanh.pop %v3755
      %v3831 = vtanh.pop %v3757
      %v3832 = vtanh.pop %v3808
      %v3833 = vtanh.pop %v3810
      %v3834 = vtanh.pop %v3653
      %v3835 = vtanh.pop %v3655
      %v3836 = vtanh.pop %v3706
      %v3837 = vtanh.pop %v3708
      %v3838 = vtanh.pop %v3759
      %v3839 = vtanh.pop %v3761
      %v3840 = vtanh.pop %v3812
      %v3841 = vtanh.pop %v3814
      %v3842 = vtanh.pop %v3659
      %v3843 = vtanh.pop %v3661
      %v3844 = vtanh.pop %v3712
      %v3845 = vtanh.pop %v3714
      %v3846 = vtanh.pop %v3765
      %v3847 = vtanh.pop %v3767
      %v3848 = vtanh.pop %v3818
      %v3849 = vtanh.pop %v3820
      %v3850 = vtanh.pop %v3663
      %v3851 = vtanh.pop %v3665
      %v3852 = vtanh.pop %v3716
      %v3853 = vtanh.pop %v3718
      %v3854 = vtanh.pop %v3769
      %v3855 = vtanh.pop %v3771
      %v3856 = vtanh.pop %v3822
      %v3857 = vtanh.pop %v3824
      %v3858 = vpack.c.bf16 %v3834, %v3826
      %v3859 = vpack.c.bf16 %v3835, %v3827
      %v3860 = vpack.c.bf16 %v3836, %v3828
      %v3861 = vpack.c.bf16 %v3837, %v3829
      %v3862 = vpack.c.bf16 %v3838, %v3830
      %v3863 = vpack.c.bf16 %v3839, %v3831
      %v3864 = vpack.c.bf16 %v3840, %v3832
      %v3865 = vpack.c.bf16 %v3841, %v3833
      %v3866 = vpack.c.bf16 %v3850, %v3842
      %v3867 = vpack.c.bf16 %v3851, %v3843
      %v3868 = vpack.c.bf16 %v3852, %v3844
      %v3869 = vpack.c.bf16 %v3853, %v3845
      %v3870 = vpack.c.bf16 %v3854, %v3846
      %v3871 = vpack.c.bf16 %v3855, %v3847
      %v3872 = vpack.c.bf16 %v3856, %v3848
      %v3873 = vpack.c.bf16 %v3857, %v3849
      %3874 = vmatprep.subr.bf16.mxu0 %v3859
      %3875 = vmatpush1.bf16.msra.mxu0 %v3858
      %3876 = vmatprep.subr.bf16.mxu0 %v3867
      %3877 = vmatpush1.bf16.msra.mxu0 %v3866
      %3878 = vmatprep.subr.bf16.mxu0 0
      %3879 = vmatpush1.bf16.msra.mxu0 0
      %3880 = vmatprep.subr.bf16.mxu0 0
      %3881 = vmatpush1.bf16.msra.mxu0 0
      %3882 = vmatprep.subr.bf16.mxu0 0
      %3883 = vmatpush1.bf16.msra.mxu0 0
      %3884 = vmatprep.subr.bf16.mxu0 0
      %3885 = vmatpush1.bf16.msra.mxu0 0
      %3886 = vmatprep.subr.bf16.mxu0 0
      %3887 = vmatpush1.bf16.msra.mxu0 0
      %3888 = vmatprep.subr.bf16.mxu0 0
      %3889 = vmatpush1.bf16.msra.mxu0 0
      %3890 = vmatprep.subr.bf16.mxu0 0
      %3891 = vmatpush1.bf16.msra.mxu0 0
      %3892 = vmatprep.subr.bf16.mxu0 0
      %3893 = vmatpush1.bf16.msra.mxu0 0
      %3894 = vmatprep.subr.bf16.mxu0 0
      %3895 = vmatpush1.bf16.msra.mxu0 0
      %3896 = vmatprep.subr.bf16.mxu0 0
      %3897 = vmatpush1.bf16.msra.mxu0 0
      %3898 = vmatprep.subr.bf16.mxu0 0
      %3899 = vmatpush1.bf16.msra.mxu0 0
      %3900 = vmatprep.subr.bf16.mxu0 0
      %3901 = vmatpush1.bf16.msra.mxu0 0
      %3902 = vmatprep.subr.bf16.mxu0 0
      %3903 = vmatpush1.bf16.msra.mxu0 0
      %3904 = vmatprep.subr.bf16.mxu0 0
      %3905 = vmatpush1.bf16.msra.mxu0 0
      %3906 = vmatprep.mubr.bf16.mxu0 0
      %3907 = vmatmul.mubr.bf16.gmra.mrb[0].mxu0 %v1123
      %v3908 = vpop.f32.mrb[0].mxu0
      %v3909 = vadd.f32 %v1095, %v3908
      %v3910 = vpop.f32.mrb[0].mxu0
      %v3911 = vadd.f32 %v1095, %v3910
      %v3912 = vpop.f32.mrb[0].mxu0
      %v3913 = vadd.f32 %v1100, %v3912
      %v3914 = vpop.f32.mrb[0].mxu0
      %v3915 = vadd.f32 %v1100, %v3914
      %3916 = vmatprep.mubr.bf16.mxu0 0
      %3917 = vmatmul.mubr.bf16.gmra.mrb[0].mxu0 %v1126
      %v3918 = vpop.f32.mrb[0].mxu0
      %v3919 = vadd.f32 %v1105, %v3918
      %v3920 = vpop.f32.mrb[0].mxu0
      %v3921 = vadd.f32 %v1105, %v3920
      %v3922 = vpop.f32.mrb[0].mxu0
      %v3923 = vadd.f32 %v1110, %v3922
      %v3924 = vpop.f32.mrb[0].mxu0
      %v3925 = vadd.f32 %v1110, %v3924
      %3926 = vdwg.mxu0
      %3927 = vmatprep.subr.bf16.mxu0 %v3861
      %3928 = vmatpush1.bf16.msra.mxu0 %v3860
      %3929 = vmatprep.subr.bf16.mxu0 %v3869
      %3930 = vmatpush1.bf16.msra.mxu0 %v3868
      %3931 = vmatprep.subr.bf16.mxu0 0
      %3932 = vmatpush1.bf16.msra.mxu0 0
      %3933 = vmatprep.subr.bf16.mxu0 0
      %3934 = vmatpush1.bf16.msra.mxu0 0
      %3935 = vmatprep.subr.bf16.mxu0 0
      %3936 = vmatpush1.bf16.msra.mxu0 0
      %3937 = vmatprep.subr.bf16.mxu0 0
      %3938 = vmatpush1.bf16.msra.mxu0 0
      %3939 = vmatprep.subr.bf16.mxu0 0
      %3940 = vmatpush1.bf16.msra.mxu0 0
      %3941 = vmatprep.subr.bf16.mxu0 0
      %3942 = vmatpush1.bf16.msra.mxu0 0
      %3943 = vmatprep.subr.bf16.mxu0 0
      %3944 = vmatpush1.bf16.msra.mxu0 0
      %3945 = vmatprep.subr.bf16.mxu0 0
      %3946 = vmatpush1.bf16.msra.mxu0 0
      %3947 = vmatprep.subr.bf16.mxu0 0
      %3948 = vmatpush1.bf16.msra.mxu0 0
      %3949 = vmatprep.subr.bf16.mxu0 0
      %3950 = vmatpush1.bf16.msra.mxu0 0
      %3951 = vmatprep.subr.bf16.mxu0 0
      %3952 = vmatpush1.bf16.msra.mxu0 0
      %3953 = vmatprep.subr.bf16.mxu0 0
      %3954 = vmatpush1.bf16.msra.mxu0 0
      %3955 = vmatprep.subr.bf16.mxu0 0
      %3956 = vmatpush1.bf16.msra.mxu0 0
      %3957 = vmatprep.subr.bf16.mxu0 0
      %3958 = vmatpush1.bf16.msra.mxu0 0
      %3959 = vmatprep.mubr.bf16.mxu0 0
      %3960 = vmatmul.mubr.bf16.gmra.mrb[0].mxu0 %v1123
      %v3961 = vpop.f32.mrb[0].mxu0
      %v3962 = vadd.f32 %v1095, %v3961
      %v3963 = vpop.f32.mrb[0].mxu0
      %v3964 = vadd.f32 %v1095, %v3963
      %v3965 = vpop.f32.mrb[0].mxu0
      %v3966 = vadd.f32 %v1100, %v3965
      %v3967 = vpop.f32.mrb[0].mxu0
      %v3968 = vadd.f32 %v1100, %v3967
      %3969 = vmatprep.mubr.bf16.mxu0 0
      %3970 = vmatmul.mubr.bf16.gmra.mrb[0].mxu0 %v1126
      %v3971 = vpop.f32.mrb[0].mxu0
      %v3972 = vadd.f32 %v1105, %v3971
      %v3973 = vpop.f32.mrb[0].mxu0
      %v3974 = vadd.f32 %v1105, %v3973
      %v3975 = vpop.f32.mrb[0].mxu0
      %v3976 = vadd.f32 %v1110, %v3975
      %v3977 = vpop.f32.mrb[0].mxu0
      %v3978 = vadd.f32 %v1110, %v3977
      %3979 = vdwg.mxu0
      %3980 = vmatprep.subr.bf16.mxu0 %v3863
      %3981 = vmatpush1.bf16.msra.mxu0 %v3862
      %3982 = vmatprep.subr.bf16.mxu0 %v3871
      %3983 = vmatpush1.bf16.msra.mxu0 %v3870
      %3984 = vmatprep.subr.bf16.mxu0 0
      %3985 = vmatpush1.bf16.msra.mxu0 0
      %3986 = vmatprep.subr.bf16.mxu0 0
      %3987 = vmatpush1.bf16.msra.mxu0 0
      %3988 = vmatprep.subr.bf16.mxu0 0
      %3989 = vmatpush1.bf16.msra.mxu0 0
      %3990 = vmatprep.subr.bf16.mxu0 0
      %3991 = vmatpush1.bf16.msra.mxu0 0
      %3992 = vmatprep.subr.bf16.mxu0 0
      %3993 = vmatpush1.bf16.msra.mxu0 0
      %3994 = vmatprep.subr.bf16.mxu0 0
      %3995 = vmatpush1.bf16.msra.mxu0 0
      %3996 = vmatprep.subr.bf16.mxu0 0
      %3997 = vmatpush1.bf16.msra.mxu0 0
      %3998 = vmatprep.subr.bf16.mxu0 0
      %3999 = vmatpush1.bf16.msra.mxu0 0
      %4000 = vmatprep.subr.bf16.mxu0 0
      %4001 = vmatpush1.bf16.msra.mxu0 0
      %4002 = vmatprep.subr.bf16.mxu0 0
      %4003 = vmatpush1.bf16.msra.mxu0 0
      %4004 = vmatprep.subr.bf16.mxu0 0
      %4005 = vmatpush1.bf16.msra.mxu0 0
      %4006 = vmatprep.subr.bf16.mxu0 0
      %4007 = vmatpush1.bf16.msra.mxu0 0
      %4008 = vmatprep.subr.bf16.mxu0 0
      %4009 = vmatpush1.bf16.msra.mxu0 0
      %4010 = vmatprep.subr.bf16.mxu0 0
      %4011 = vmatpush1.bf16.msra.mxu0 0
      %4012 = vmatprep.mubr.bf16.mxu0 0
      %4013 = vmatmul.mubr.bf16.gmra.mrb[0].mxu0 %v1123
      %v4014 = vpop.f32.mrb[0].mxu0
      %v4015 = vadd.f32 %v1095, %v4014
      %v4016 = vpop.f32.mrb[0].mxu0
      %v4017 = vadd.f32 %v1095, %v4016
      %v4018 = vpop.f32.mrb[0].mxu0
      %v4019 = vadd.f32 %v1100, %v4018
      %v4020 = vpop.f32.mrb[0].mxu0
      %v4021 = vadd.f32 %v1100, %v4020
      %4022 = vmatprep.mubr.bf16.mxu0 0
      %4023 = vmatmul.mubr.bf16.gmra.mrb[0].mxu0 %v1126
      %v4024 = vpop.f32.mrb[0].mxu0
      %v4025 = vadd.f32 %v1105, %v4024
      %v4026 = vpop.f32.mrb[0].mxu0
      %v4027 = vadd.f32 %v1105, %v4026
      %v4028 = vpop.f32.mrb[0].mxu0
      %v4029 = vadd.f32 %v1110, %v4028
      %v4030 = vpop.f32.mrb[0].mxu0
      %v4031 = vadd.f32 %v1110, %v4030
      %4032 = vdwg.mxu0
      %4033 = vmatprep.subr.bf16.mxu0 %v3865
      %4034 = vmatpush1.bf16.msra.mxu0 %v3864
      %4035 = vmatprep.subr.bf16.mxu0 %v3873
      %4036 = vmatpush1.bf16.msra.mxu0 %v3872
      %4037 = vmatprep.subr.bf16.mxu0 0
      %4038 = vmatpush1.bf16.msra.mxu0 0
      %4039 = vmatprep.subr.bf16.mxu0 0
      %4040 = vmatpush1.bf16.msra.mxu0 0
      %4041 = vmatprep.subr.bf16.mxu0 0
      %4042 = vmatpush1.bf16.msra.mxu0 0
      %4043 = vmatprep.subr.bf16.mxu0 0
      %4044 = vmatpush1.bf16.msra.mxu0 0
      %4045 = vmatprep.subr.bf16.mxu0 0
      %4046 = vmatpush1.bf16.msra.mxu0 0
      %4047 = vmatprep.subr.bf16.mxu0 0
      %4048 = vmatpush1.bf16.msra.mxu0 0
      %4049 = vmatprep.subr.bf16.mxu0 0
      %4050 = vmatpush1.bf16.msra.mxu0 0
      %4051 = vmatprep.subr.bf16.mxu0 0
      %4052 = vmatpush1.bf16.msra.mxu0 0
      %4053 = vmatprep.subr.bf16.mxu0 0
      %4054 = vmatpush1.bf16.msra.mxu0 0
      %4055 = vmatprep.subr.bf16.mxu0 0
      %4056 = vmatpush1.bf16.msra.mxu0 0
      %4057 = vmatprep.subr.bf16.mxu0 0
      %4058 = vmatpush1.bf16.msra.mxu0 0
      %4059 = vmatprep.subr.bf16.mxu0 0
      %4060 = vmatpush1.bf16.msra.mxu0 0
      %4061 = vmatprep.subr.bf16.mxu0 0
      %4062 = vmatpush1.bf16.msra.mxu0 0
      %4063 = vmatprep.subr.bf16.mxu0 0
      %4064 = vmatpush1.bf16.msra.mxu0 0
      %4065 = vmatprep.mubr.bf16.mxu0 0
      %4066 = vmatmul.mubr.bf16.gmra.mrb[0].mxu0 %v1123
      %v4067 = vpop.f32.mrb[0].mxu0
      %v4068 = vadd.f32 %v1095, %v4067
      %v4069 = vpop.f32.mrb[0].mxu0
      %v4070 = vadd.f32 %v1095, %v4069
      %v4071 = vpop.f32.mrb[0].mxu0
      %v4072 = vadd.f32 %v1100, %v4071
      %v4073 = vpop.f32.mrb[0].mxu0
      %v4074 = vadd.f32 %v1100, %v4073
      %4075 = vmatprep.mubr.bf16.mxu0 0
      %4076 = vmatmul.mubr.bf16.gmra.mrb[0].mxu0 %v1126
      %v4077 = vpop.f32.mrb[0].mxu0
      %v4078 = vadd.f32 %v1105, %v4077
      %v4079 = vpop.f32.mrb[0].mxu0
      %v4080 = vadd.f32 %v1105, %v4079
      %v4081 = vpop.f32.mrb[0].mxu0
      %v4082 = vadd.f32 %v1110, %v4081
      %v4083 = vpop.f32.mrb[0].mxu0
      %v4084 = vadd.f32 %v1110, %v4083
      %4085 = vdwg.mxu0
      %v4086 = vtanh.pop %v3909
      %v4087 = vtanh.pop %v3911
      %v4088 = vtanh.pop %v3962
      %v4089 = vtanh.pop %v3964
      %v4090 = vtanh.pop %v4015
      %v4091 = vtanh.pop %v4017
      %v4092 = vtanh.pop %v4068
      %v4093 = vtanh.pop %v4070
      %v4094 = vtanh.pop %v3913
      %v4095 = vtanh.pop %v3915
      %v4096 = vtanh.pop %v3966
      %v4097 = vtanh.pop %v3968
      %v4098 = vtanh.pop %v4019
      %v4099 = vtanh.pop %v4021
      %v4100 = vtanh.pop %v4072
      %v4101 = vtanh.pop %v4074
      %v4102 = vtanh.pop %v3919
      %v4103 = vtanh.pop %v3921
      %v4104 = vtanh.pop %v3972
      %v4105 = vtanh.pop %v3974
      %v4106 = vtanh.pop %v4025
      %v4107 = vtanh.pop %v4027
      %v4108 = vtanh.pop %v4078
      %v4109 = vtanh.pop %v4080
      %v4110 = vtanh.pop %v3923
      %v4111 = vtanh.pop %v3925
      %v4112 = vtanh.pop %v3976
      %v4113 = vtanh.pop %v3978
      %v4114 = vtanh.pop %v4029
      %v4115 = vtanh.pop %v4031
      %v4116 = vtanh.pop %v4082
      %v4117 = vtanh.pop %v4084
      %v4118 = vpack.c.bf16 %v4094, %v4086
      %v4119 = vpack.c.bf16 %v4095, %v4087
      %v4120 = vpack.c.bf16 %v4096, %v4088
      %v4121 = vpack.c.bf16 %v4097, %v4089
      %v4122 = vpack.c.bf16 %v4098, %v4090
      %v4123 = vpack.c.bf16 %v4099, %v4091
      %v4124 = vpack.c.bf16 %v4100, %v4092
      %v4125 = vpack.c.bf16 %v4101, %v4093
      %v4126 = vpack.c.bf16 %v4110, %v4102
      %v4127 = vpack.c.bf16 %v4111, %v4103
      %v4128 = vpack.c.bf16 %v4112, %v4104
      %v4129 = vpack.c.bf16 %v4113, %v4105
      %v4130 = vpack.c.bf16 %v4114, %v4106
      %v4131 = vpack.c.bf16 %v4115, %v4107
      %v4132 = vpack.c.bf16 %v4116, %v4108
      %v4133 = vpack.c.bf16 %v4117, %v4109
      %4134 = vmatprep.subr.bf16.mxu0 %v4119
      %4135 = vmatpush1.bf16.msra.mxu0 %v4118
      %4136 = vmatprep.subr.bf16.mxu0 %v4127
      %4137 = vmatpush1.bf16.msra.mxu0 %v4126
      %4138 = vmatprep.subr.bf16.mxu0 0
      %4139 = vmatpush1.bf16.msra.mxu0 0
      %4140 = vmatprep.subr.bf16.mxu0 0
      %4141 = vmatpush1.bf16.msra.mxu0 0
      %4142 = vmatprep.subr.bf16.mxu0 0
      %4143 = vmatpush1.bf16.msra.mxu0 0
      %4144 = vmatprep.subr.bf16.mxu0 0
      %4145 = vmatpush1.bf16.msra.mxu0 0
      %4146 = vmatprep.subr.bf16.mxu0 0
      %4147 = vmatpush1.bf16.msra.mxu0 0
      %4148 = vmatprep.subr.bf16.mxu0 0
      %4149 = vmatpush1.bf16.msra.mxu0 0
      %4150 = vmatprep.subr.bf16.mxu0 0
      %4151 = vmatpush1.bf16.msra.mxu0 0
      %4152 = vmatprep.subr.bf16.mxu0 0
      %4153 = vmatpush1.bf16.msra.mxu0 0
      %4154 = vmatprep.subr.bf16.mxu0 0
      %4155 = vmatpush1.bf16.msra.mxu0 0
      %4156 = vmatprep.subr.bf16.mxu0 0
      %4157 = vmatpush1.bf16.msra.mxu0 0
      %4158 = vmatprep.subr.bf16.mxu0 0
      %4159 = vmatpush1.bf16.msra.mxu0 0
      %4160 = vmatprep.subr.bf16.mxu0 0
      %4161 = vmatpush1.bf16.msra.mxu0 0
      %4162 = vmatprep.subr.bf16.mxu0 0
      %4163 = vmatpush1.bf16.msra.mxu0 0
      %4164 = vmatprep.subr.bf16.mxu0 0
      %4165 = vmatpush1.bf16.msra.mxu0 0
      %4166 = vmatprep.mubr.bf16.mxu0 0
      %4167 = vmatmul.mubr.bf16.gmra.mrb[0].mxu0 %v1419
      %v4168 = vpop.f32.mrb[0].mxu0
      %v4169 = vadd.f32 %v1391, %v4168
      %v4170 = vpop.f32.mrb[0].mxu0
      %v4171 = vadd.f32 %v1391, %v4170
      %v4172 = vpop.f32.mrb[0].mxu0
      %v4173 = vadd.f32 %v1396, %v4172
      %v4174 = vpop.f32.mrb[0].mxu0
      %v4175 = vadd.f32 %v1396, %v4174
      %4176 = vmatprep.mubr.bf16.mxu0 0
      %4177 = vmatmul.mubr.bf16.gmra.mrb[0].mxu0 %v1422
      %v4178 = vpop.f32.mrb[0].mxu0
      %v4179 = vadd.f32 %v1401, %v4178
      %v4180 = vpop.f32.mrb[0].mxu0
      %v4181 = vadd.f32 %v1401, %v4180
      %v4182 = vpop.f32.mrb[0].mxu0
      %v4183 = vadd.f32 %v1406, %v4182
      %v4184 = vpop.f32.mrb[0].mxu0
      %v4185 = vadd.f32 %v1406, %v4184
      %4186 = vdwg.mxu0
      %4187 = vmatprep.subr.bf16.mxu0 %v4121
      %4188 = vmatpush1.bf16.msra.mxu0 %v4120
      %4189 = vmatprep.subr.bf16.mxu0 %v4129
      %4190 = vmatpush1.bf16.msra.mxu0 %v4128
      %4191 = vmatprep.subr.bf16.mxu0 0
      %4192 = vmatpush1.bf16.msra.mxu0 0
      %4193 = vmatprep.subr.bf16.mxu0 0
      %4194 = vmatpush1.bf16.msra.mxu0 0
      %4195 = vmatprep.subr.bf16.mxu0 0
      %4196 = vmatpush1.bf16.msra.mxu0 0
      %4197 = vmatprep.subr.bf16.mxu0 0
      %4198 = vmatpush1.bf16.msra.mxu0 0
      %4199 = vmatprep.subr.bf16.mxu0 0
      %4200 = vmatpush1.bf16.msra.mxu0 0
      %4201 = vmatprep.subr.bf16.mxu0 0
      %4202 = vmatpush1.bf16.msra.mxu0 0
      %4203 = vmatprep.subr.bf16.mxu0 0
      %4204 = vmatpush1.bf16.msra.mxu0 0
      %4205 = vmatprep.subr.bf16.mxu0 0
      %4206 = vmatpush1.bf16.msra.mxu0 0
      %4207 = vmatprep.subr.bf16.mxu0 0
      %4208 = vmatpush1.bf16.msra.mxu0 0
      %4209 = vmatprep.subr.bf16.mxu0 0
      %4210 = vmatpush1.bf16.msra.mxu0 0
      %4211 = vmatprep.subr.bf16.mxu0 0
      %4212 = vmatpush1.bf16.msra.mxu0 0
      %4213 = vmatprep.subr.bf16.mxu0 0
      %4214 = vmatpush1.bf16.msra.mxu0 0
      %4215 = vmatprep.subr.bf16.mxu0 0
      %4216 = vmatpush1.bf16.msra.mxu0 0
      %4217 = vmatprep.subr.bf16.mxu0 0
      %4218 = vmatpush1.bf16.msra.mxu0 0
      %4219 = vmatprep.mubr.bf16.mxu0 0
      %4220 = vmatmul.mubr.bf16.gmra.mrb[0].mxu0 %v1419
      %v4221 = vpop.f32.mrb[0].mxu0
      %v4222 = vadd.f32 %v1391, %v4221
      %v4223 = vpop.f32.mrb[0].mxu0
      %v4224 = vadd.f32 %v1391, %v4223
      %v4225 = vpop.f32.mrb[0].mxu0
      %v4226 = vadd.f32 %v1396, %v4225
      %v4227 = vpop.f32.mrb[0].mxu0
      %v4228 = vadd.f32 %v1396, %v4227
      %4229 = vmatprep.mubr.bf16.mxu0 0
      %4230 = vmatmul.mubr.bf16.gmra.mrb[0].mxu0 %v1422
      %v4231 = vpop.f32.mrb[0].mxu0
      %v4232 = vadd.f32 %v1401, %v4231
      %v4233 = vpop.f32.mrb[0].mxu0
      %v4234 = vadd.f32 %v1401, %v4233
      %v4235 = vpop.f32.mrb[0].mxu0
      %v4236 = vadd.f32 %v1406, %v4235
      %v4237 = vpop.f32.mrb[0].mxu0
      %v4238 = vadd.f32 %v1406, %v4237
      %4239 = vdwg.mxu0
      %4240 = vmatprep.subr.bf16.mxu0 %v4123
      %4241 = vmatpush1.bf16.msra.mxu0 %v4122
      %4242 = vmatprep.subr.bf16.mxu0 %v4131
      %4243 = vmatpush1.bf16.msra.mxu0 %v4130
      %4244 = vmatprep.subr.bf16.mxu0 0
      %4245 = vmatpush1.bf16.msra.mxu0 0
      %4246 = vmatprep.subr.bf16.mxu0 0
      %4247 = vmatpush1.bf16.msra.mxu0 0
      %4248 = vmatprep.subr.bf16.mxu0 0
      %4249 = vmatpush1.bf16.msra.mxu0 0
      %4250 = vmatprep.subr.bf16.mxu0 0
      %4251 = vmatpush1.bf16.msra.mxu0 0
      %4252 = vmatprep.subr.bf16.mxu0 0
      %4253 = vmatpush1.bf16.msra.mxu0 0
      %4254 = vmatprep.subr.bf16.mxu0 0
      %4255 = vmatpush1.bf16.msra.mxu0 0
      %4256 = vmatprep.subr.bf16.mxu0 0
      %4257 = vmatpush1.bf16.msra.mxu0 0
      %4258 = vmatprep.subr.bf16.mxu0 0
      %4259 = vmatpush1.bf16.msra.mxu0 0
      %4260 = vmatprep.subr.bf16.mxu0 0
      %4261 = vmatpush1.bf16.msra.mxu0 0
      %4262 = vmatprep.subr.bf16.mxu0 0
      %4263 = vmatpush1.bf16.msra.mxu0 0
      %4264 = vmatprep.subr.bf16.mxu0 0
      %4265 = vmatpush1.bf16.msra.mxu0 0
      %4266 = vmatprep.subr.bf16.mxu0 0
      %4267 = vmatpush1.bf16.msra.mxu0 0
      %4268 = vmatprep.subr.bf16.mxu0 0
      %4269 = vmatpush1.bf16.msra.mxu0 0
      %4270 = vmatprep.subr.bf16.mxu0 0
      %4271 = vmatpush1.bf16.msra.mxu0 0
      %4272 = vmatprep.mubr.bf16.mxu0 0
      %4273 = vmatmul.mubr.bf16.gmra.mrb[0].mxu0 %v1419
      %v4274 = vpop.f32.mrb[0].mxu0
      %v4275 = vadd.f32 %v1391, %v4274
      %v4276 = vpop.f32.mrb[0].mxu0
      %v4277 = vadd.f32 %v1391, %v4276
      %v4278 = vpop.f32.mrb[0].mxu0
      %v4279 = vadd.f32 %v1396, %v4278
      %v4280 = vpop.f32.mrb[0].mxu0
      %v4281 = vadd.f32 %v1396, %v4280
      %4282 = vmatprep.mubr.bf16.mxu0 0
      %4283 = vmatmul.mubr.bf16.gmra.mrb[0].mxu0 %v1422
      %v4284 = vpop.f32.mrb[0].mxu0
      %v4285 = vadd.f32 %v1401, %v4284
      %v4286 = vpop.f32.mrb[0].mxu0
      %v4287 = vadd.f32 %v1401, %v4286
      %v4288 = vpop.f32.mrb[0].mxu0
      %v4289 = vadd.f32 %v1406, %v4288
      %v4290 = vpop.f32.mrb[0].mxu0
      %v4291 = vadd.f32 %v1406, %v4290
      %4292 = vdwg.mxu0
      %4293 = vmatprep.subr.bf16.mxu0 %v4125
      %4294 = vmatpush1.bf16.msra.mxu0 %v4124
      %4295 = vmatprep.subr.bf16.mxu0 %v4133
      %4296 = vmatpush1.bf16.msra.mxu0 %v4132
      %4297 = vmatprep.subr.bf16.mxu0 0
      %4298 = vmatpush1.bf16.msra.mxu0 0
      %4299 = vmatprep.subr.bf16.mxu0 0
      %4300 = vmatpush1.bf16.msra.mxu0 0
      %4301 = vmatprep.subr.bf16.mxu0 0
      %4302 = vmatpush1.bf16.msra.mxu0 0
      %4303 = vmatprep.subr.bf16.mxu0 0
      %4304 = vmatpush1.bf16.msra.mxu0 0
      %4305 = vmatprep.subr.bf16.mxu0 0
      %4306 = vmatpush1.bf16.msra.mxu0 0
      %4307 = vmatprep.subr.bf16.mxu0 0
      %4308 = vmatpush1.bf16.msra.mxu0 0
      %4309 = vmatprep.subr.bf16.mxu0 0
      %4310 = vmatpush1.bf16.msra.mxu0 0
      %4311 = vmatprep.subr.bf16.mxu0 0
      %4312 = vmatpush1.bf16.msra.mxu0 0
      %4313 = vmatprep.subr.bf16.mxu0 0
      %4314 = vmatpush1.bf16.msra.mxu0 0
      %4315 = vmatprep.subr.bf16.mxu0 0
      %4316 = vmatpush1.bf16.msra.mxu0 0
      %4317 = vmatprep.subr.bf16.mxu0 0
      %4318 = vmatpush1.bf16.msra.mxu0 0
      %4319 = vmatprep.subr.bf16.mxu0 0
      %4320 = vmatpush1.bf16.msra.mxu0 0
      %4321 = vmatprep.subr.bf16.mxu0 0
      %4322 = vmatpush1.bf16.msra.mxu0 0
      %4323 = vmatprep.subr.bf16.mxu0 0
      %4324 = vmatpush1.bf16.msra.mxu0 0
      %4325 = vmatprep.mubr.bf16.mxu0 0
      %4326 = vmatmul.mubr.bf16.gmra.mrb[0].mxu0 %v1419
      %v4327 = vpop.f32.mrb[0].mxu0
      %v4328 = vadd.f32 %v1391, %v4327
      %v4329 = vpop.f32.mrb[0].mxu0
      %v4330 = vadd.f32 %v1391, %v4329
      %v4331 = vpop.f32.mrb[0].mxu0
      %v4332 = vadd.f32 %v1396, %v4331
      %v4333 = vpop.f32.mrb[0].mxu0
      %v4334 = vadd.f32 %v1396, %v4333
      %4335 = vmatprep.mubr.bf16.mxu0 0
      %4336 = vmatmul.mubr.bf16.gmra.mrb[0].mxu0 %v1422
      %v4337 = vpop.f32.mrb[0].mxu0
      %v4338 = vadd.f32 %v1401, %v4337
      %v4339 = vpop.f32.mrb[0].mxu0
      %v4340 = vadd.f32 %v1401, %v4339
      %v4341 = vpop.f32.mrb[0].mxu0
      %v4342 = vadd.f32 %v1406, %v4341
      %v4343 = vpop.f32.mrb[0].mxu0
      %v4344 = vadd.f32 %v1406, %v4343
      %4345 = vdwg.mxu0
      %v4346 = vtanh.pop %v4169
      %v4347 = vtanh.pop %v4171
      %v4348 = vtanh.pop %v4222
      %v4349 = vtanh.pop %v4224
      %v4350 = vtanh.pop %v4275
      %v4351 = vtanh.pop %v4277
      %v4352 = vtanh.pop %v4328
      %v4353 = vtanh.pop %v4330
      %v4354 = vtanh.pop %v4173
      %v4355 = vtanh.pop %v4175
      %v4356 = vtanh.pop %v4226
      %v4357 = vtanh.pop %v4228
      %v4358 = vtanh.pop %v4279
      %v4359 = vtanh.pop %v4281
      %v4360 = vtanh.pop %v4332
      %v4361 = vtanh.pop %v4334
      %v4362 = vtanh.pop %v4179
      %v4363 = vtanh.pop %v4181
      %v4364 = vtanh.pop %v4232
      %v4365 = vtanh.pop %v4234
      %v4366 = vtanh.pop %v4285
      %v4367 = vtanh.pop %v4287
      %v4368 = vtanh.pop %v4338
      %v4369 = vtanh.pop %v4340
      %v4370 = vtanh.pop %v4183
      %v4371 = vtanh.pop %v4185
      %v4372 = vtanh.pop %v4236
      %v4373 = vtanh.pop %v4238
      %v4374 = vtanh.pop %v4289
      %v4375 = vtanh.pop %v4291
      %v4376 = vtanh.pop %v4342
      %v4377 = vtanh.pop %v4344
      %v4378 = vmul.f32 %v1671, %v4346
      %v4379 = vmul.f32 %v1671, %v4347
      %v4380 = vmul.f32 %v1671, %v4348
      %v4381 = vmul.f32 %v1671, %v4349
      %v4382 = vmul.f32 %v1671, %v4350
      %v4383 = vmul.f32 %v1671, %v4351
      %v4384 = vmul.f32 %v1671, %v4352
      %v4385 = vmul.f32 %v1671, %v4353
      %v4386 = vmul.f32 %v1676, %v4354
      %v4387 = vmul.f32 %v1676, %v4355
      %v4388 = vmul.f32 %v1676, %v4356
      %v4389 = vmul.f32 %v1676, %v4357
      %v4390 = vmul.f32 %v1676, %v4358
      %v4391 = vmul.f32 %v1676, %v4359
      %v4392 = vmul.f32 %v1676, %v4360
      %v4393 = vmul.f32 %v1676, %v4361
      %v4394 = vmul.f32 %v1681, %v4362
      %v4395 = vmul.f32 %v1681, %v4363
      %v4396 = vmul.f32 %v1681, %v4364
      %v4397 = vmul.f32 %v1681, %v4365
      %v4398 = vmul.f32 %v1681, %v4366
      %v4399 = vmul.f32 %v1681, %v4367
      %v4400 = vmul.f32 %v1681, %v4368
      %v4401 = vmul.f32 %v1681, %v4369
      %v4402 = vmul.f32 %v1686, %v4370
      %v4403 = vmul.f32 %v1686, %v4371
      %v4404 = vmul.f32 %v1686, %v4372
      %v4405 = vmul.f32 %v1686, %v4373
      %v4406 = vmul.f32 %v1686, %v4374
      %v4407 = vmul.f32 %v1686, %v4375
      %v4408 = vmul.f32 %v1686, %v4376
      %v4409 = vmul.f32 %v1686, %v4377
      %v4410 = vadd.f32 %v4378, %v4386
      %v4411 = vadd.f32 %v4410, %v4394
      %v4412 = vadd.f32 %v4411, %v4402
      %v4413 = vrot.slane %v4412, 4
      %v4414 = vadd.f32 %v4412, %v4413
      %v4415 = vrot.slane %v4414, 2
      %v4416 = vadd.f32 %v4414, %v4415
      %v4417 = vrot.slane %v4416, 1
      %v4418 = vadd.f32 %v4416, %v4417
      %v4419 = vadd.f32 %v4379, %v4387
      %v4420 = vadd.f32 %v4419, %v4395
      %v4421 = vadd.f32 %v4420, %v4403
      %v4422 = vrot.slane %v4421, 4
      %v4423 = vadd.f32 %v4421, %v4422
      %v4424 = vrot.slane %v4423, 2
      %v4425 = vadd.f32 %v4423, %v4424
      %v4426 = vrot.slane %v4425, 1
      %v4427 = vadd.f32 %v4425, %v4426
      %v4428 = vadd.f32 %v4380, %v4388
      %v4429 = vadd.f32 %v4428, %v4396
      %v4430 = vadd.f32 %v4429, %v4404
      %v4431 = vrot.slane %v4430, 4
      %v4432 = vadd.f32 %v4430, %v4431
      %v4433 = vrot.slane %v4432, 2
      %v4434 = vadd.f32 %v4432, %v4433
      %v4435 = vrot.slane %v4434, 1
      %v4436 = vadd.f32 %v4434, %v4435
      %v4437 = vadd.f32 %v4381, %v4389
      %v4438 = vadd.f32 %v4437, %v4397
      %v4439 = vadd.f32 %v4438, %v4405
      %v4440 = vrot.slane %v4439, 4
      %v4441 = vadd.f32 %v4439, %v4440
      %v4442 = vrot.slane %v4441, 2
      %v4443 = vadd.f32 %v4441, %v4442
      %v4444 = vrot.slane %v4443, 1
      %v4445 = vadd.f32 %v4443, %v4444
      %v4446 = vadd.f32 %v4382, %v4390
      %v4447 = vadd.f32 %v4446, %v4398
      %v4448 = vadd.f32 %v4447, %v4406
      %v4449 = vrot.slane %v4448, 4
      %v4450 = vadd.f32 %v4448, %v4449
      %v4451 = vrot.slane %v4450, 2
      %v4452 = vadd.f32 %v4450, %v4451
      %v4453 = vrot.slane %v4452, 1
      %v4454 = vadd.f32 %v4452, %v4453
      %v4455 = vadd.f32 %v4383, %v4391
      %v4456 = vadd.f32 %v4455, %v4399
      %v4457 = vadd.f32 %v4456, %v4407
      %v4458 = vrot.slane %v4457, 4
      %v4459 = vadd.f32 %v4457, %v4458
      %v4460 = vrot.slane %v4459, 2
      %v4461 = vadd.f32 %v4459, %v4460
      %v4462 = vrot.slane %v4461, 1
      %v4463 = vadd.f32 %v4461, %v4462
      %v4464 = vadd.f32 %v4384, %v4392
      %v4465 = vadd.f32 %v4464, %v4400
      %v4466 = vadd.f32 %v4465, %v4408
      %v4467 = vrot.slane %v4466, 4
      %v4468 = vadd.f32 %v4466, %v4467
      %v4469 = vrot.slane %v4468, 2
      %v4470 = vadd.f32 %v4468, %v4469
      %v4471 = vrot.slane %v4470, 1
      %v4472 = vadd.f32 %v4470, %v4471
      %v4473 = vadd.f32 %v4385, %v4393
      %v4474 = vadd.f32 %v4473, %v4401
      %v4475 = vadd.f32 %v4474, %v4409
      %v4476 = vrot.slane %v4475, 4
      %v4477 = vadd.f32 %v4475, %v4476
      %v4478 = vrot.slane %v4477, 2
      %v4479 = vadd.f32 %v4477, %v4478
      %v4480 = vrot.slane %v4479, 1
      %v4481 = vadd.f32 %v4479, %v4480
      %v4482 = vadd.f32 %v4418, %v1800
      %v4483 = vadd.f32 %v4427, %v1800
      %v4484 = vadd.f32 %v4436, %v1800
      %v4485 = vadd.f32 %v4445, %v1800
      %v4486 = vadd.f32 %v4454, %v1800
      %v4487 = vadd.f32 %v4463, %v1800
      %v4488 = vadd.f32 %v4472, %v1800
      %v4489 = vadd.f32 %v4481, %v1800
      %v4498 = vcombine.low %v4482, %v4483
      %v4499 = vcombine.low %v4484, %v4485
      %v4500 = vcombine.low %v4486, %v4487
      %v4501 = vcombine.low %v4488, %v4489
      %v4503 = vunpack.c.l.s4 1966171168
      %v4504 = vunpack.c.0.s8 %v4503
      %v4505 = vlaneseq
      %v4506 = vshrl.u32 %v4505, 7
      %v4507 = vsub.s32 %v4504, %v4506
      %v4508 = vrot.slane %v4498, %v4507
      %v4510 = vunpack.c.l.s4 1966171168
      %v4511 = vunpack.c.0.s8 %v4510
      %v4512 = vlaneseq
      %v4513 = vshrl.u32 %v4512, 7
      %v4514 = vsub.s32 %v4511, %v4513
      %v4515 = vrot.slane %v4499, %v4514
      %v4517 = vunpack.c.l.s4 1966171168
      %v4518 = vunpack.c.0.s8 %v4517
      %v4519 = vlaneseq
      %v4520 = vshrl.u32 %v4519, 7
      %v4521 = vsub.s32 %v4518, %v4520
      %v4522 = vrot.slane %v4500, %v4521
      %v4524 = vunpack.c.l.s4 1966171168
      %v4525 = vunpack.c.0.s8 %v4524
      %v4526 = vlaneseq
      %v4527 = vshrl.u32 %v4526, 7
      %v4528 = vsub.s32 %v4525, %v4527
      %v4529 = vrot.slane %v4501, %v4528
      %v4530 = vcombine.low %v4508, %v4515
      %v4531 = vcombine.low %v4522, %v4529
      %v4533 = vunpack.c.l.s4 1966171168
      %v4534 = vunpack.c.0.s8 %v4533
      %v4535 = vlaneseq
      %v4536 = vshrl.u32 %v4535, 7
      %v4537 = vsub.s32 %v4534, %v4536
      %v4538 = vrot.slane %v4530, %v4537
      %v4540 = vunpack.c.l.s4 1966171168
      %v4541 = vunpack.c.0.s8 %v4540
      %v4542 = vlaneseq
      %v4543 = vshrl.u32 %v4542, 7
      %v4544 = vsub.s32 %v4541, %v4543
      %v4545 = vrot.slane %v4531, %v4544
      %v4546 = vcombine.low %v4538, %v4545
      %s4548 = scalar_lea.vmem %s253, 2
      %4549 = vst [vmem:[%s4548] ss:$8 sm:$0xf] %v4546
      %4550 = vst [vmem:[%s4548] ss:$8 sm:$0xf0] %v4546
      %v4551 = vlaneseq
      %v4552 = vshrl.u32 %v4551, 7
      %v4553 = vsub.s32 3, %v4552
      %v4554 = vrot.slane %v307, %v4553
      %v4555 = vlaneseq
      %v4556 = vshrl.u32 %v4555, 7
      %v4557 = vsub.s32 3, %v4556
      %v4558 = vrot.slane %v308, %v4557
      %v4559 = vlaneseq
      %v4560 = vshrl.u32 %v4559, 7
      %v4561 = vsub.s32 3, %v4560
      %v4562 = vrot.slane %v309, %v4561
      %v4563 = vlaneseq
      %v4564 = vshrl.u32 %v4563, 7
      %v4565 = vsub.s32 3, %v4564
      %v4566 = vrot.slane %v310, %v4565
      %v4567 = vlaneseq
      %v4568 = vshrl.u32 %v4567, 7
      %v4569 = vsub.s32 3, %v4568
      %v4570 = vrot.slane %v311, %v4569
      %v4571 = vlaneseq
      %v4572 = vshrl.u32 %v4571, 7
      %v4573 = vsub.s32 3, %v4572
      %v4574 = vrot.slane %v312, %v4573
      %v4575 = vlaneseq
      %v4576 = vshrl.u32 %v4575, 7
      %v4577 = vsub.s32 3, %v4576
      %v4578 = vrot.slane %v313, %v4577
      %v4579 = vlaneseq
      %v4580 = vshrl.u32 %v4579, 7
      %v4581 = vsub.s32 3, %v4580
      %v4582 = vrot.slane %v314, %v4581
      %v4583 = vmul.f32 %v318, %v4554
      %v4584 = vmul.f32 %v318, %v4558
      %v4585 = vmul.f32 %v318, %v4562
      %v4586 = vmul.f32 %v318, %v4566
      %v4587 = vmul.f32 %v318, %v4570
      %v4588 = vmul.f32 %v318, %v4574
      %v4589 = vmul.f32 %v318, %v4578
      %v4590 = vmul.f32 %v318, %v4582
      %v4591 = vmul.f32 %v323, %v4554
      %v4592 = vmul.f32 %v323, %v4558
      %v4593 = vmul.f32 %v323, %v4562
      %v4594 = vmul.f32 %v323, %v4566
      %v4595 = vmul.f32 %v323, %v4570
      %v4596 = vmul.f32 %v323, %v4574
      %v4597 = vmul.f32 %v323, %v4578
      %v4598 = vmul.f32 %v323, %v4582
      %v4599 = vmul.f32 %v328, %v4554
      %v4600 = vmul.f32 %v328, %v4558
      %v4601 = vmul.f32 %v328, %v4562
      %v4602 = vmul.f32 %v328, %v4566
      %v4603 = vmul.f32 %v328, %v4570
      %v4604 = vmul.f32 %v328, %v4574
      %v4605 = vmul.f32 %v328, %v4578
      %v4606 = vmul.f32 %v328, %v4582
      %v4607 = vmul.f32 %v333, %v4554
      %v4608 = vmul.f32 %v333, %v4558
      %v4609 = vmul.f32 %v333, %v4562
      %v4610 = vmul.f32 %v333, %v4566
      %v4611 = vmul.f32 %v333, %v4570
      %v4612 = vmul.f32 %v333, %v4574
      %v4613 = vmul.f32 %v333, %v4578
      %v4614 = vmul.f32 %v333, %v4582
      %v4615 = vadd.f32 %v4583, %v402
      %v4616 = vadd.f32 %v4584, %v402
      %v4617 = vadd.f32 %v4585, %v402
      %v4618 = vadd.f32 %v4586, %v402
      %v4619 = vadd.f32 %v4587, %v402
      %v4620 = vadd.f32 %v4588, %v402
      %v4621 = vadd.f32 %v4589, %v402
      %v4622 = vadd.f32 %v4590, %v402
      %v4623 = vadd.f32 %v4591, %v407
      %v4624 = vadd.f32 %v4592, %v407
      %v4625 = vadd.f32 %v4593, %v407
      %v4626 = vadd.f32 %v4594, %v407
      %v4627 = vadd.f32 %v4595, %v407
      %v4628 = vadd.f32 %v4596, %v407
      %v4629 = vadd.f32 %v4597, %v407
      %v4630 = vadd.f32 %v4598, %v407
      %v4631 = vadd.f32 %v4599, %v412
      %v4632 = vadd.f32 %v4600, %v412
      %v4633 = vadd.f32 %v4601, %v412
      %v4634 = vadd.f32 %v4602, %v412
      %v4635 = vadd.f32 %v4603, %v412
      %v4636 = vadd.f32 %v4604, %v412
      %v4637 = vadd.f32 %v4605, %v412
      %v4638 = vadd.f32 %v4606, %v412
      %v4639 = vadd.f32 %v4607, %v417
      %v4640 = vadd.f32 %v4608, %v417
      %v4641 = vadd.f32 %v4609, %v417
      %v4642 = vadd.f32 %v4610, %v417
      %v4643 = vadd.f32 %v4611, %v417
      %v4644 = vadd.f32 %v4612, %v417
      %v4645 = vadd.f32 %v4613, %v417
      %v4646 = vadd.f32 %v4614, %v417
      %v4647 = vtanh.pop %v4615
      %v4648 = vtanh.pop %v4616
      %v4649 = vtanh.pop %v4617
      %v4650 = vtanh.pop %v4618
      %v4651 = vtanh.pop %v4619
      %v4652 = vtanh.pop %v4620
      %v4653 = vtanh.pop %v4621
      %v4654 = vtanh.pop %v4622
      %v4655 = vtanh.pop %v4623
      %v4656 = vtanh.pop %v4624
      %v4657 = vtanh.pop %v4625
      %v4658 = vtanh.pop %v4626
      %v4659 = vtanh.pop %v4627
      %v4660 = vtanh.pop %v4628
      %v4661 = vtanh.pop %v4629
      %v4662 = vtanh.pop %v4630
      %v4663 = vtanh.pop %v4631
      %v4664 = vtanh.pop %v4632
      %v4665 = vtanh.pop %v4633
      %v4666 = vtanh.pop %v4634
      %v4667 = vtanh.pop %v4635
      %v4668 = vtanh.pop %v4636
      %v4669 = vtanh.pop %v4637
      %v4670 = vtanh.pop %v4638
      %v4671 = vtanh.pop %v4639
      %v4672 = vtanh.pop %v4640
      %v4673 = vtanh.pop %v4641
      %v4674 = vtanh.pop %v4642
      %v4675 = vtanh.pop %v4643
      %v4676 = vtanh.pop %v4644
      %v4677 = vtanh.pop %v4645
      %v4678 = vtanh.pop %v4646
      %v4679 = vpack.c.bf16 %v4655, %v4647
      %v4680 = vpack.c.bf16 %v4656, %v4648
      %v4681 = vpack.c.bf16 %v4657, %v4649
      %v4682 = vpack.c.bf16 %v4658, %v4650
      %v4683 = vpack.c.bf16 %v4659, %v4651
      %v4684 = vpack.c.bf16 %v4660, %v4652
      %v4685 = vpack.c.bf16 %v4661, %v4653
      %v4686 = vpack.c.bf16 %v4662, %v4654
      %v4687 = vpack.c.bf16 %v4671, %v4663
      %v4688 = vpack.c.bf16 %v4672, %v4664
      %v4689 = vpack.c.bf16 %v4673, %v4665
      %v4690 = vpack.c.bf16 %v4674, %v4666
      %v4691 = vpack.c.bf16 %v4675, %v4667
      %v4692 = vpack.c.bf16 %v4676, %v4668
      %v4693 = vpack.c.bf16 %v4677, %v4669
      %v4694 = vpack.c.bf16 %v4678, %v4670
      %4695 = vmatprep.subr.bf16.mxu0 %v4680
      %4696 = vmatpush1.bf16.msra.mxu0 %v4679
      %4697 = vmatprep.subr.bf16.mxu0 %v4688
      %4698 = vmatpush1.bf16.msra.mxu0 %v4687
      %4699 = vmatprep.subr.bf16.mxu0 0
      %4700 = vmatpush1.bf16.msra.mxu0 0
      %4701 = vmatprep.subr.bf16.mxu0 0
      %4702 = vmatpush1.bf16.msra.mxu0 0
      %4703 = vmatprep.subr.bf16.mxu0 0
      %4704 = vmatpush1.bf16.msra.mxu0 0
      %4705 = vmatprep.subr.bf16.mxu0 0
      %4706 = vmatpush1.bf16.msra.mxu0 0
      %4707 = vmatprep.subr.bf16.mxu0 0
      %4708 = vmatpush1.bf16.msra.mxu0 0
      %4709 = vmatprep.subr.bf16.mxu0 0
      %4710 = vmatpush1.bf16.msra.mxu0 0
      %4711 = vmatprep.subr.bf16.mxu0 0
      %4712 = vmatpush1.bf16.msra.mxu0 0
      %4713 = vmatprep.subr.bf16.mxu0 0
      %4714 = vmatpush1.bf16.msra.mxu0 0
      %4715 = vmatprep.subr.bf16.mxu0 0
      %4716 = vmatpush1.bf16.msra.mxu0 0
      %4717 = vmatprep.subr.bf16.mxu0 0
      %4718 = vmatpush1.bf16.msra.mxu0 0
      %4719 = vmatprep.subr.bf16.mxu0 0
      %4720 = vmatpush1.bf16.msra.mxu0 0
      %4721 = vmatprep.subr.bf16.mxu0 0
      %4722 = vmatpush1.bf16.msra.mxu0 0
      %4723 = vmatprep.subr.bf16.mxu0 0
      %4724 = vmatpush1.bf16.msra.mxu0 0
      %4725 = vmatprep.subr.bf16.mxu0 0
      %4726 = vmatpush1.bf16.msra.mxu0 0
      %4727 = vmatprep.mubr.bf16.mxu0 0
      %4728 = vmatmul.mubr.bf16.gmra.mrb[0].mxu0 %v531
      %v4729 = vpop.f32.mrb[0].mxu0
      %v4730 = vadd.f32 %v502, %v4729
      %v4731 = vpop.f32.mrb[0].mxu0
      %v4732 = vadd.f32 %v502, %v4731
      %v4733 = vpop.f32.mrb[0].mxu0
      %v4734 = vadd.f32 %v507, %v4733
      %v4735 = vpop.f32.mrb[0].mxu0
      %v4736 = vadd.f32 %v507, %v4735
      %4737 = vmatprep.mubr.bf16.mxu0 0
      %4738 = vmatmul.mubr.bf16.gmra.mrb[0].mxu0 %v534
      %v4739 = vpop.f32.mrb[0].mxu0
      %v4740 = vadd.f32 %v512, %v4739
      %v4741 = vpop.f32.mrb[0].mxu0
      %v4742 = vadd.f32 %v512, %v4741
      %v4743 = vpop.f32.mrb[0].mxu0
      %v4744 = vadd.f32 %v517, %v4743
      %v4745 = vpop.f32.mrb[0].mxu0
      %v4746 = vadd.f32 %v517, %v4745
      %4747 = vdwg.mxu0
      %4748 = vmatprep.subr.bf16.mxu0 %v4682
      %4749 = vmatpush1.bf16.msra.mxu0 %v4681
      %4750 = vmatprep.subr.bf16.mxu0 %v4690
      %4751 = vmatpush1.bf16.msra.mxu0 %v4689
      %4752 = vmatprep.subr.bf16.mxu0 0
      %4753 = vmatpush1.bf16.msra.mxu0 0
      %4754 = vmatprep.subr.bf16.mxu0 0
      %4755 = vmatpush1.bf16.msra.mxu0 0
      %4756 = vmatprep.subr.bf16.mxu0 0
      %4757 = vmatpush1.bf16.msra.mxu0 0
      %4758 = vmatprep.subr.bf16.mxu0 0
      %4759 = vmatpush1.bf16.msra.mxu0 0
      %4760 = vmatprep.subr.bf16.mxu0 0
      %4761 = vmatpush1.bf16.msra.mxu0 0
      %4762 = vmatprep.subr.bf16.mxu0 0
      %4763 = vmatpush1.bf16.msra.mxu0 0
      %4764 = vmatprep.subr.bf16.mxu0 0
      %4765 = vmatpush1.bf16.msra.mxu0 0
      %4766 = vmatprep.subr.bf16.mxu0 0
      %4767 = vmatpush1.bf16.msra.mxu0 0
      %4768 = vmatprep.subr.bf16.mxu0 0
      %4769 = vmatpush1.bf16.msra.mxu0 0
      %4770 = vmatprep.subr.bf16.mxu0 0
      %4771 = vmatpush1.bf16.msra.mxu0 0
      %4772 = vmatprep.subr.bf16.mxu0 0
      %4773 = vmatpush1.bf16.msra.mxu0 0
      %4774 = vmatprep.subr.bf16.mxu0 0
      %4775 = vmatpush1.bf16.msra.mxu0 0
      %4776 = vmatprep.subr.bf16.mxu0 0
      %4777 = vmatpush1.bf16.msra.mxu0 0
      %4778 = vmatprep.subr.bf16.mxu0 0
      %4779 = vmatpush1.bf16.msra.mxu0 0
      %4780 = vmatprep.mubr.bf16.mxu0 0
      %4781 = vmatmul.mubr.bf16.gmra.mrb[0].mxu0 %v531
      %v4782 = vpop.f32.mrb[0].mxu0
      %v4783 = vadd.f32 %v502, %v4782
      %v4784 = vpop.f32.mrb[0].mxu0
      %v4785 = vadd.f32 %v502, %v4784
      %v4786 = vpop.f32.mrb[0].mxu0
      %v4787 = vadd.f32 %v507, %v4786
      %v4788 = vpop.f32.mrb[0].mxu0
      %v4789 = vadd.f32 %v507, %v4788
      %4790 = vmatprep.mubr.bf16.mxu0 0
      %4791 = vmatmul.mubr.bf16.gmra.mrb[0].mxu0 %v534
      %v4792 = vpop.f32.mrb[0].mxu0
      %v4793 = vadd.f32 %v512, %v4792
      %v4794 = vpop.f32.mrb[0].mxu0
      %v4795 = vadd.f32 %v512, %v4794
      %v4796 = vpop.f32.mrb[0].mxu0
      %v4797 = vadd.f32 %v517, %v4796
      %v4798 = vpop.f32.mrb[0].mxu0
      %v4799 = vadd.f32 %v517, %v4798
      %4800 = vdwg.mxu0
      %4801 = vmatprep.subr.bf16.mxu0 %v4684
      %4802 = vmatpush1.bf16.msra.mxu0 %v4683
      %4803 = vmatprep.subr.bf16.mxu0 %v4692
      %4804 = vmatpush1.bf16.msra.mxu0 %v4691
      %4805 = vmatprep.subr.bf16.mxu0 0
      %4806 = vmatpush1.bf16.msra.mxu0 0
      %4807 = vmatprep.subr.bf16.mxu0 0
      %4808 = vmatpush1.bf16.msra.mxu0 0
      %4809 = vmatprep.subr.bf16.mxu0 0
      %4810 = vmatpush1.bf16.msra.mxu0 0
      %4811 = vmatprep.subr.bf16.mxu0 0
      %4812 = vmatpush1.bf16.msra.mxu0 0
      %4813 = vmatprep.subr.bf16.mxu0 0
      %4814 = vmatpush1.bf16.msra.mxu0 0
      %4815 = vmatprep.subr.bf16.mxu0 0
      %4816 = vmatpush1.bf16.msra.mxu0 0
      %4817 = vmatprep.subr.bf16.mxu0 0
      %4818 = vmatpush1.bf16.msra.mxu0 0
      %4819 = vmatprep.subr.bf16.mxu0 0
      %4820 = vmatpush1.bf16.msra.mxu0 0
      %4821 = vmatprep.subr.bf16.mxu0 0
      %4822 = vmatpush1.bf16.msra.mxu0 0
      %4823 = vmatprep.subr.bf16.mxu0 0
      %4824 = vmatpush1.bf16.msra.mxu0 0
      %4825 = vmatprep.subr.bf16.mxu0 0
      %4826 = vmatpush1.bf16.msra.mxu0 0
      %4827 = vmatprep.subr.bf16.mxu0 0
      %4828 = vmatpush1.bf16.msra.mxu0 0
      %4829 = vmatprep.subr.bf16.mxu0 0
      %4830 = vmatpush1.bf16.msra.mxu0 0
      %4831 = vmatprep.subr.bf16.mxu0 0
      %4832 = vmatpush1.bf16.msra.mxu0 0
      %4833 = vmatprep.mubr.bf16.mxu0 0
      %4834 = vmatmul.mubr.bf16.gmra.mrb[0].mxu0 %v531
      %v4835 = vpop.f32.mrb[0].mxu0
      %v4836 = vadd.f32 %v502, %v4835
      %v4837 = vpop.f32.mrb[0].mxu0
      %v4838 = vadd.f32 %v502, %v4837
      %v4839 = vpop.f32.mrb[0].mxu0
      %v4840 = vadd.f32 %v507, %v4839
      %v4841 = vpop.f32.mrb[0].mxu0
      %v4842 = vadd.f32 %v507, %v4841
      %4843 = vmatprep.mubr.bf16.mxu0 0
      %4844 = vmatmul.mubr.bf16.gmra.mrb[0].mxu0 %v534
      %v4845 = vpop.f32.mrb[0].mxu0
      %v4846 = vadd.f32 %v512, %v4845
      %v4847 = vpop.f32.mrb[0].mxu0
      %v4848 = vadd.f32 %v512, %v4847
      %v4849 = vpop.f32.mrb[0].mxu0
      %v4850 = vadd.f32 %v517, %v4849
      %v4851 = vpop.f32.mrb[0].mxu0
      %v4852 = vadd.f32 %v517, %v4851
      %4853 = vdwg.mxu0
      %4854 = vmatprep.subr.bf16.mxu0 %v4686
      %4855 = vmatpush1.bf16.msra.mxu0 %v4685
      %4856 = vmatprep.subr.bf16.mxu0 %v4694
      %4857 = vmatpush1.bf16.msra.mxu0 %v4693
      %4858 = vmatprep.subr.bf16.mxu0 0
      %4859 = vmatpush1.bf16.msra.mxu0 0
      %4860 = vmatprep.subr.bf16.mxu0 0
      %4861 = vmatpush1.bf16.msra.mxu0 0
      %4862 = vmatprep.subr.bf16.mxu0 0
      %4863 = vmatpush1.bf16.msra.mxu0 0
      %4864 = vmatprep.subr.bf16.mxu0 0
      %4865 = vmatpush1.bf16.msra.mxu0 0
      %4866 = vmatprep.subr.bf16.mxu0 0
      %4867 = vmatpush1.bf16.msra.mxu0 0
      %4868 = vmatprep.subr.bf16.mxu0 0
      %4869 = vmatpush1.bf16.msra.mxu0 0
      %4870 = vmatprep.subr.bf16.mxu0 0
      %4871 = vmatpush1.bf16.msra.mxu0 0
      %4872 = vmatprep.subr.bf16.mxu0 0
      %4873 = vmatpush1.bf16.msra.mxu0 0
      %4874 = vmatprep.subr.bf16.mxu0 0
      %4875 = vmatpush1.bf16.msra.mxu0 0
      %4876 = vmatprep.subr.bf16.mxu0 0
      %4877 = vmatpush1.bf16.msra.mxu0 0
      %4878 = vmatprep.subr.bf16.mxu0 0
      %4879 = vmatpush1.bf16.msra.mxu0 0
      %4880 = vmatprep.subr.bf16.mxu0 0
      %4881 = vmatpush1.bf16.msra.mxu0 0
      %4882 = vmatprep.subr.bf16.mxu0 0
      %4883 = vmatpush1.bf16.msra.mxu0 0
      %4884 = vmatprep.subr.bf16.mxu0 0
      %4885 = vmatpush1.bf16.msra.mxu0 0
      %4886 = vmatprep.mubr.bf16.mxu0 0
      %4887 = vmatmul.mubr.bf16.gmra.mrb[0].mxu0 %v531
      %v4888 = vpop.f32.mrb[0].mxu0
      %v4889 = vadd.f32 %v502, %v4888
      %v4890 = vpop.f32.mrb[0].mxu0
      %v4891 = vadd.f32 %v502, %v4890
      %v4892 = vpop.f32.mrb[0].mxu0
      %v4893 = vadd.f32 %v507, %v4892
      %v4894 = vpop.f32.mrb[0].mxu0
      %v4895 = vadd.f32 %v507, %v4894
      %4896 = vmatprep.mubr.bf16.mxu0 0
      %4897 = vmatmul.mubr.bf16.gmra.mrb[0].mxu0 %v534
      %v4898 = vpop.f32.mrb[0].mxu0
      %v4899 = vadd.f32 %v512, %v4898
      %v4900 = vpop.f32.mrb[0].mxu0
      %v4901 = vadd.f32 %v512, %v4900
      %v4902 = vpop.f32.mrb[0].mxu0
      %v4903 = vadd.f32 %v517, %v4902
      %v4904 = vpop.f32.mrb[0].mxu0
      %v4905 = vadd.f32 %v517, %v4904
      %4906 = vdwg.mxu0
      %v4907 = vtanh.pop %v4730
      %v4908 = vtanh.pop %v4732
      %v4909 = vtanh.pop %v4783
      %v4910 = vtanh.pop %v4785
      %v4911 = vtanh.pop %v4836
      %v4912 = vtanh.pop %v4838
      %v4913 = vtanh.pop %v4889
      %v4914 = vtanh.pop %v4891
      %v4915 = vtanh.pop %v4734
      %v4916 = vtanh.pop %v4736
      %v4917 = vtanh.pop %v4787
      %v4918 = vtanh.pop %v4789
      %v4919 = vtanh.pop %v4840
      %v4920 = vtanh.pop %v4842
      %v4921 = vtanh.pop %v4893
      %v4922 = vtanh.pop %v4895
      %v4923 = vtanh.pop %v4740
      %v4924 = vtanh.pop %v4742
      %v4925 = vtanh.pop %v4793
      %v4926 = vtanh.pop %v4795
      %v4927 = vtanh.pop %v4846
      %v4928 = vtanh.pop %v4848
      %v4929 = vtanh.pop %v4899
      %v4930 = vtanh.pop %v4901
      %v4931 = vtanh.pop %v4744
      %v4932 = vtanh.pop %v4746
      %v4933 = vtanh.pop %v4797
      %v4934 = vtanh.pop %v4799
      %v4935 = vtanh.pop %v4850
      %v4936 = vtanh.pop %v4852
      %v4937 = vtanh.pop %v4903
      %v4938 = vtanh.pop %v4905
      %v4939 = vpack.c.bf16 %v4915, %v4907
      %v4940 = vpack.c.bf16 %v4916, %v4908
      %v4941 = vpack.c.bf16 %v4917, %v4909
      %v4942 = vpack.c.bf16 %v4918, %v4910
      %v4943 = vpack.c.bf16 %v4919, %v4911
      %v4944 = vpack.c.bf16 %v4920, %v4912
      %v4945 = vpack.c.bf16 %v4921, %v4913
      %v4946 = vpack.c.bf16 %v4922, %v4914
      %v4947 = vpack.c.bf16 %v4931, %v4923
      %v4948 = vpack.c.bf16 %v4932, %v4924
      %v4949 = vpack.c.bf16 %v4933, %v4925
      %v4950 = vpack.c.bf16 %v4934, %v4926
      %v4951 = vpack.c.bf16 %v4935, %v4927
      %v4952 = vpack.c.bf16 %v4936, %v4928
      %v4953 = vpack.c.bf16 %v4937, %v4929
      %v4954 = vpack.c.bf16 %v4938, %v4930
      %4955 = vmatprep.subr.bf16.mxu0 %v4940
      %4956 = vmatpush1.bf16.msra.mxu0 %v4939
      %4957 = vmatprep.subr.bf16.mxu0 %v4948
      %4958 = vmatpush1.bf16.msra.mxu0 %v4947
      %4959 = vmatprep.subr.bf16.mxu0 0
      %4960 = vmatpush1.bf16.msra.mxu0 0
      %4961 = vmatprep.subr.bf16.mxu0 0
      %4962 = vmatpush1.bf16.msra.mxu0 0
      %4963 = vmatprep.subr.bf16.mxu0 0
      %4964 = vmatpush1.bf16.msra.mxu0 0
      %4965 = vmatprep.subr.bf16.mxu0 0
      %4966 = vmatpush1.bf16.msra.mxu0 0
      %4967 = vmatprep.subr.bf16.mxu0 0
      %4968 = vmatpush1.bf16.msra.mxu0 0
      %4969 = vmatprep.subr.bf16.mxu0 0
      %4970 = vmatpush1.bf16.msra.mxu0 0
      %4971 = vmatprep.subr.bf16.mxu0 0
      %4972 = vmatpush1.bf16.msra.mxu0 0
      %4973 = vmatprep.subr.bf16.mxu0 0
      %4974 = vmatpush1.bf16.msra.mxu0 0
      %4975 = vmatprep.subr.bf16.mxu0 0
      %4976 = vmatpush1.bf16.msra.mxu0 0
      %4977 = vmatprep.subr.bf16.mxu0 0
      %4978 = vmatpush1.bf16.msra.mxu0 0
      %4979 = vmatprep.subr.bf16.mxu0 0
      %4980 = vmatpush1.bf16.msra.mxu0 0
      %4981 = vmatprep.subr.bf16.mxu0 0
      %4982 = vmatpush1.bf16.msra.mxu0 0
      %4983 = vmatprep.subr.bf16.mxu0 0
      %4984 = vmatpush1.bf16.msra.mxu0 0
      %4985 = vmatprep.subr.bf16.mxu0 0
      %4986 = vmatpush1.bf16.msra.mxu0 0
      %4987 = vmatprep.mubr.bf16.mxu0 0
      %4988 = vmatmul.mubr.bf16.gmra.mrb[0].mxu0 %v827
      %v4989 = vpop.f32.mrb[0].mxu0
      %v4990 = vadd.f32 %v799, %v4989
      %v4991 = vpop.f32.mrb[0].mxu0
      %v4992 = vadd.f32 %v799, %v4991
      %v4993 = vpop.f32.mrb[0].mxu0
      %v4994 = vadd.f32 %v804, %v4993
      %v4995 = vpop.f32.mrb[0].mxu0
      %v4996 = vadd.f32 %v804, %v4995
      %4997 = vmatprep.mubr.bf16.mxu0 0
      %4998 = vmatmul.mubr.bf16.gmra.mrb[0].mxu0 %v830
      %v4999 = vpop.f32.mrb[0].mxu0
      %v5000 = vadd.f32 %v809, %v4999
      %v5001 = vpop.f32.mrb[0].mxu0
      %v5002 = vadd.f32 %v809, %v5001
      %v5003 = vpop.f32.mrb[0].mxu0
      %v5004 = vadd.f32 %v814, %v5003
      %v5005 = vpop.f32.mrb[0].mxu0
      %v5006 = vadd.f32 %v814, %v5005
      %5007 = vdwg.mxu0
      %5008 = vmatprep.subr.bf16.mxu0 %v4942
      %5009 = vmatpush1.bf16.msra.mxu0 %v4941
      %5010 = vmatprep.subr.bf16.mxu0 %v4950
      %5011 = vmatpush1.bf16.msra.mxu0 %v4949
      %5012 = vmatprep.subr.bf16.mxu0 0
      %5013 = vmatpush1.bf16.msra.mxu0 0
      %5014 = vmatprep.subr.bf16.mxu0 0
      %5015 = vmatpush1.bf16.msra.mxu0 0
      %5016 = vmatprep.subr.bf16.mxu0 0
      %5017 = vmatpush1.bf16.msra.mxu0 0
      %5018 = vmatprep.subr.bf16.mxu0 0
      %5019 = vmatpush1.bf16.msra.mxu0 0
      %5020 = vmatprep.subr.bf16.mxu0 0
      %5021 = vmatpush1.bf16.msra.mxu0 0
      %5022 = vmatprep.subr.bf16.mxu0 0
      %5023 = vmatpush1.bf16.msra.mxu0 0
      %5024 = vmatprep.subr.bf16.mxu0 0
      %5025 = vmatpush1.bf16.msra.mxu0 0
      %5026 = vmatprep.subr.bf16.mxu0 0
      %5027 = vmatpush1.bf16.msra.mxu0 0
      %5028 = vmatprep.subr.bf16.mxu0 0
      %5029 = vmatpush1.bf16.msra.mxu0 0
      %5030 = vmatprep.subr.bf16.mxu0 0
      %5031 = vmatpush1.bf16.msra.mxu0 0
      %5032 = vmatprep.subr.bf16.mxu0 0
      %5033 = vmatpush1.bf16.msra.mxu0 0
      %5034 = vmatprep.subr.bf16.mxu0 0
      %5035 = vmatpush1.bf16.msra.mxu0 0
      %5036 = vmatprep.subr.bf16.mxu0 0
      %5037 = vmatpush1.bf16.msra.mxu0 0
      %5038 = vmatprep.subr.bf16.mxu0 0
      %5039 = vmatpush1.bf16.msra.mxu0 0
      %5040 = vmatprep.mubr.bf16.mxu0 0
      %5041 = vmatmul.mubr.bf16.gmra.mrb[0].mxu0 %v827
      %v5042 = vpop.f32.mrb[0].mxu0
      %v5043 = vadd.f32 %v799, %v5042
      %v5044 = vpop.f32.mrb[0].mxu0
      %v5045 = vadd.f32 %v799, %v5044
      %v5046 = vpop.f32.mrb[0].mxu0
      %v5047 = vadd.f32 %v804, %v5046
      %v5048 = vpop.f32.mrb[0].mxu0
      %v5049 = vadd.f32 %v804, %v5048
      %5050 = vmatprep.mubr.bf16.mxu0 0
      %5051 = vmatmul.mubr.bf16.gmra.mrb[0].mxu0 %v830
      %v5052 = vpop.f32.mrb[0].mxu0
      %v5053 = vadd.f32 %v809, %v5052
      %v5054 = vpop.f32.mrb[0].mxu0
      %v5055 = vadd.f32 %v809, %v5054
      %v5056 = vpop.f32.mrb[0].mxu0
      %v5057 = vadd.f32 %v814, %v5056
      %v5058 = vpop.f32.mrb[0].mxu0
      %v5059 = vadd.f32 %v814, %v5058
      %5060 = vdwg.mxu0
      %5061 = vmatprep.subr.bf16.mxu0 %v4944
      %5062 = vmatpush1.bf16.msra.mxu0 %v4943
      %5063 = vmatprep.subr.bf16.mxu0 %v4952
      %5064 = vmatpush1.bf16.msra.mxu0 %v4951
      %5065 = vmatprep.subr.bf16.mxu0 0
      %5066 = vmatpush1.bf16.msra.mxu0 0
      %5067 = vmatprep.subr.bf16.mxu0 0
      %5068 = vmatpush1.bf16.msra.mxu0 0
      %5069 = vmatprep.subr.bf16.mxu0 0
      %5070 = vmatpush1.bf16.msra.mxu0 0
      %5071 = vmatprep.subr.bf16.mxu0 0
      %5072 = vmatpush1.bf16.msra.mxu0 0
      %5073 = vmatprep.subr.bf16.mxu0 0
      %5074 = vmatpush1.bf16.msra.mxu0 0
      %5075 = vmatprep.subr.bf16.mxu0 0
      %5076 = vmatpush1.bf16.msra.mxu0 0
      %5077 = vmatprep.subr.bf16.mxu0 0
      %5078 = vmatpush1.bf16.msra.mxu0 0
      %5079 = vmatprep.subr.bf16.mxu0 0
      %5080 = vmatpush1.bf16.msra.mxu0 0
      %5081 = vmatprep.subr.bf16.mxu0 0
      %5082 = vmatpush1.bf16.msra.mxu0 0
      %5083 = vmatprep.subr.bf16.mxu0 0
      %5084 = vmatpush1.bf16.msra.mxu0 0
      %5085 = vmatprep.subr.bf16.mxu0 0
      %5086 = vmatpush1.bf16.msra.mxu0 0
      %5087 = vmatprep.subr.bf16.mxu0 0
      %5088 = vmatpush1.bf16.msra.mxu0 0
      %5089 = vmatprep.subr.bf16.mxu0 0
      %5090 = vmatpush1.bf16.msra.mxu0 0
      %5091 = vmatprep.subr.bf16.mxu0 0
      %5092 = vmatpush1.bf16.msra.mxu0 0
      %5093 = vmatprep.mubr.bf16.mxu0 0
      %5094 = vmatmul.mubr.bf16.gmra.mrb[0].mxu0 %v827
      %v5095 = vpop.f32.mrb[0].mxu0
      %v5096 = vadd.f32 %v799, %v5095
      %v5097 = vpop.f32.mrb[0].mxu0
      %v5098 = vadd.f32 %v799, %v5097
      %v5099 = vpop.f32.mrb[0].mxu0
      %v5100 = vadd.f32 %v804, %v5099
      %v5101 = vpop.f32.mrb[0].mxu0
      %v5102 = vadd.f32 %v804, %v5101
      %5103 = vmatprep.mubr.bf16.mxu0 0
      %5104 = vmatmul.mubr.bf16.gmra.mrb[0].mxu0 %v830
      %v5105 = vpop.f32.mrb[0].mxu0
      %v5106 = vadd.f32 %v809, %v5105
      %v5107 = vpop.f32.mrb[0].mxu0
      %v5108 = vadd.f32 %v809, %v5107
      %v5109 = vpop.f32.mrb[0].mxu0
      %v5110 = vadd.f32 %v814, %v5109
      %v5111 = vpop.f32.mrb[0].mxu0
      %v5112 = vadd.f32 %v814, %v5111
      %5113 = vdwg.mxu0
      %5114 = vmatprep.subr.bf16.mxu0 %v4946
      %5115 = vmatpush1.bf16.msra.mxu0 %v4945
      %5116 = vmatprep.subr.bf16.mxu0 %v4954
      %5117 = vmatpush1.bf16.msra.mxu0 %v4953
      %5118 = vmatprep.subr.bf16.mxu0 0
      %5119 = vmatpush1.bf16.msra.mxu0 0
      %5120 = vmatprep.subr.bf16.mxu0 0
      %5121 = vmatpush1.bf16.msra.mxu0 0
      %5122 = vmatprep.subr.bf16.mxu0 0
      %5123 = vmatpush1.bf16.msra.mxu0 0
      %5124 = vmatprep.subr.bf16.mxu0 0
      %5125 = vmatpush1.bf16.msra.mxu0 0
      %5126 = vmatprep.subr.bf16.mxu0 0
      %5127 = vmatpush1.bf16.msra.mxu0 0
      %5128 = vmatprep.subr.bf16.mxu0 0
      %5129 = vmatpush1.bf16.msra.mxu0 0
      %5130 = vmatprep.subr.bf16.mxu0 0
      %5131 = vmatpush1.bf16.msra.mxu0 0
      %5132 = vmatprep.subr.bf16.mxu0 0
      %5133 = vmatpush1.bf16.msra.mxu0 0
      %5134 = vmatprep.subr.bf16.mxu0 0
      %5135 = vmatpush1.bf16.msra.mxu0 0
      %5136 = vmatprep.subr.bf16.mxu0 0
      %5137 = vmatpush1.bf16.msra.mxu0 0
      %5138 = vmatprep.subr.bf16.mxu0 0
      %5139 = vmatpush1.bf16.msra.mxu0 0
      %5140 = vmatprep.subr.bf16.mxu0 0
      %5141 = vmatpush1.bf16.msra.mxu0 0
      %5142 = vmatprep.subr.bf16.mxu0 0
      %5143 = vmatpush1.bf16.msra.mxu0 0
      %5144 = vmatprep.subr.bf16.mxu0 0
      %5145 = vmatpush1.bf16.msra.mxu0 0
      %5146 = vmatprep.mubr.bf16.mxu0 0
      %5147 = vmatmul.mubr.bf16.gmra.mrb[0].mxu0 %v827
      %v5148 = vpop.f32.mrb[0].mxu0
      %v5149 = vadd.f32 %v799, %v5148
      %v5150 = vpop.f32.mrb[0].mxu0
      %v5151 = vadd.f32 %v799, %v5150
      %v5152 = vpop.f32.mrb[0].mxu0
      %v5153 = vadd.f32 %v804, %v5152
      %v5154 = vpop.f32.mrb[0].mxu0
      %v5155 = vadd.f32 %v804, %v5154
      %5156 = vmatprep.mubr.bf16.mxu0 0
      %5157 = vmatmul.mubr.bf16.gmra.mrb[0].mxu0 %v830
      %v5158 = vpop.f32.mrb[0].mxu0
      %v5159 = vadd.f32 %v809, %v5158
      %v5160 = vpop.f32.mrb[0].mxu0
      %v5161 = vadd.f32 %v809, %v5160
      %v5162 = vpop.f32.mrb[0].mxu0
      %v5163 = vadd.f32 %v814, %v5162
      %v5164 = vpop.f32.mrb[0].mxu0
      %v5165 = vadd.f32 %v814, %v5164
      %5166 = vdwg.mxu0
      %v5167 = vtanh.pop %v4990
      %v5168 = vtanh.pop %v4992
      %v5169 = vtanh.pop %v5043
      %v5170 = vtanh.pop %v5045
      %v5171 = vtanh.pop %v5096
      %v5172 = vtanh.pop %v5098
      %v5173 = vtanh.pop %v5149
      %v5174 = vtanh.pop %v5151
      %v5175 = vtanh.pop %v4994
      %v5176 = vtanh.pop %v4996
      %v5177 = vtanh.pop %v5047
      %v5178 = vtanh.pop %v5049
      %v5179 = vtanh.pop %v5100
      %v5180 = vtanh.pop %v5102
      %v5181 = vtanh.pop %v5153
      %v5182 = vtanh.pop %v5155
      %v5183 = vtanh.pop %v5000
      %v5184 = vtanh.pop %v5002
      %v5185 = vtanh.pop %v5053
      %v5186 = vtanh.pop %v5055
      %v5187 = vtanh.pop %v5106
      %v5188 = vtanh.pop %v5108
      %v5189 = vtanh.pop %v5159
      %v5190 = vtanh.pop %v5161
      %v5191 = vtanh.pop %v5004
      %v5192 = vtanh.pop %v5006
      %v5193 = vtanh.pop %v5057
      %v5194 = vtanh.pop %v5059
      %v5195 = vtanh.pop %v5110
      %v5196 = vtanh.pop %v5112
      %v5197 = vtanh.pop %v5163
      %v5198 = vtanh.pop %v5165
      %v5199 = vpack.c.bf16 %v5175, %v5167
      %v5200 = vpack.c.bf16 %v5176, %v5168
      %v5201 = vpack.c.bf16 %v5177, %v5169
      %v5202 = vpack.c.bf16 %v5178, %v5170
      %v5203 = vpack.c.bf16 %v5179, %v5171
      %v5204 = vpack.c.bf16 %v5180, %v5172
      %v5205 = vpack.c.bf16 %v5181, %v5173
      %v5206 = vpack.c.bf16 %v5182, %v5174
      %v5207 = vpack.c.bf16 %v5191, %v5183
      %v5208 = vpack.c.bf16 %v5192, %v5184
      %v5209 = vpack.c.bf16 %v5193, %v5185
      %v5210 = vpack.c.bf16 %v5194, %v5186
      %v5211 = vpack.c.bf16 %v5195, %v5187
      %v5212 = vpack.c.bf16 %v5196, %v5188
      %v5213 = vpack.c.bf16 %v5197, %v5189
      %v5214 = vpack.c.bf16 %v5198, %v5190
      %5215 = vmatprep.subr.bf16.mxu0 %v5200
      %5216 = vmatpush1.bf16.msra.mxu0 %v5199
      %5217 = vmatprep.subr.bf16.mxu0 %v5208
      %5218 = vmatpush1.bf16.msra.mxu0 %v5207
      %5219 = vmatprep.subr.bf16.mxu0 0
      %5220 = vmatpush1.bf16.msra.mxu0 0
      %5221 = vmatprep.subr.bf16.mxu0 0
      %5222 = vmatpush1.bf16.msra.mxu0 0
      %5223 = vmatprep.subr.bf16.mxu0 0
      %5224 = vmatpush1.bf16.msra.mxu0 0
      %5225 = vmatprep.subr.bf16.mxu0 0
      %5226 = vmatpush1.bf16.msra.mxu0 0
      %5227 = vmatprep.subr.bf16.mxu0 0
      %5228 = vmatpush1.bf16.msra.mxu0 0
      %5229 = vmatprep.subr.bf16.mxu0 0
      %5230 = vmatpush1.bf16.msra.mxu0 0
      %5231 = vmatprep.subr.bf16.mxu0 0
      %5232 = vmatpush1.bf16.msra.mxu0 0
      %5233 = vmatprep.subr.bf16.mxu0 0
      %5234 = vmatpush1.bf16.msra.mxu0 0
      %5235 = vmatprep.subr.bf16.mxu0 0
      %5236 = vmatpush1.bf16.msra.mxu0 0
      %5237 = vmatprep.subr.bf16.mxu0 0
      %5238 = vmatpush1.bf16.msra.mxu0 0
      %5239 = vmatprep.subr.bf16.mxu0 0
      %5240 = vmatpush1.bf16.msra.mxu0 0
      %5241 = vmatprep.subr.bf16.mxu0 0
      %5242 = vmatpush1.bf16.msra.mxu0 0
      %5243 = vmatprep.subr.bf16.mxu0 0
      %5244 = vmatpush1.bf16.msra.mxu0 0
      %5245 = vmatprep.subr.bf16.mxu0 0
      %5246 = vmatpush1.bf16.msra.mxu0 0
      %5247 = vmatprep.mubr.bf16.mxu0 0
      %5248 = vmatmul.mubr.bf16.gmra.mrb[0].mxu0 %v1123
      %v5249 = vpop.f32.mrb[0].mxu0
      %v5250 = vadd.f32 %v1095, %v5249
      %v5251 = vpop.f32.mrb[0].mxu0
      %v5252 = vadd.f32 %v1095, %v5251
      %v5253 = vpop.f32.mrb[0].mxu0
      %v5254 = vadd.f32 %v1100, %v5253
      %v5255 = vpop.f32.mrb[0].mxu0
      %v5256 = vadd.f32 %v1100, %v5255
      %5257 = vmatprep.mubr.bf16.mxu0 0
      %5258 = vmatmul.mubr.bf16.gmra.mrb[0].mxu0 %v1126
      %v5259 = vpop.f32.mrb[0].mxu0
      %v5260 = vadd.f32 %v1105, %v5259
      %v5261 = vpop.f32.mrb[0].mxu0
      %v5262 = vadd.f32 %v1105, %v5261
      %v5263 = vpop.f32.mrb[0].mxu0
      %v5264 = vadd.f32 %v1110, %v5263
      %v5265 = vpop.f32.mrb[0].mxu0
      %v5266 = vadd.f32 %v1110, %v5265
      %5267 = vdwg.mxu0
      %5268 = vmatprep.subr.bf16.mxu0 %v5202
      %5269 = vmatpush1.bf16.msra.mxu0 %v5201
      %5270 = vmatprep.subr.bf16.mxu0 %v5210
      %5271 = vmatpush1.bf16.msra.mxu0 %v5209
      %5272 = vmatprep.subr.bf16.mxu0 0
      %5273 = vmatpush1.bf16.msra.mxu0 0
      %5274 = vmatprep.subr.bf16.mxu0 0
      %5275 = vmatpush1.bf16.msra.mxu0 0
      %5276 = vmatprep.subr.bf16.mxu0 0
      %5277 = vmatpush1.bf16.msra.mxu0 0
      %5278 = vmatprep.subr.bf16.mxu0 0
      %5279 = vmatpush1.bf16.msra.mxu0 0
      %5280 = vmatprep.subr.bf16.mxu0 0
      %5281 = vmatpush1.bf16.msra.mxu0 0
      %5282 = vmatprep.subr.bf16.mxu0 0
      %5283 = vmatpush1.bf16.msra.mxu0 0
      %5284 = vmatprep.subr.bf16.mxu0 0
      %5285 = vmatpush1.bf16.msra.mxu0 0
      %5286 = vmatprep.subr.bf16.mxu0 0
      %5287 = vmatpush1.bf16.msra.mxu0 0
      %5288 = vmatprep.subr.bf16.mxu0 0
      %5289 = vmatpush1.bf16.msra.mxu0 0
      %5290 = vmatprep.subr.bf16.mxu0 0
      %5291 = vmatpush1.bf16.msra.mxu0 0
      %5292 = vmatprep.subr.bf16.mxu0 0
      %5293 = vmatpush1.bf16.msra.mxu0 0
      %5294 = vmatprep.subr.bf16.mxu0 0
      %5295 = vmatpush1.bf16.msra.mxu0 0
      %5296 = vmatprep.subr.bf16.mxu0 0
      %5297 = vmatpush1.bf16.msra.mxu0 0
      %5298 = vmatprep.subr.bf16.mxu0 0
      %5299 = vmatpush1.bf16.msra.mxu0 0
      %5300 = vmatprep.mubr.bf16.mxu0 0
      %5301 = vmatmul.mubr.bf16.gmra.mrb[0].mxu0 %v1123
      %v5302 = vpop.f32.mrb[0].mxu0
      %v5303 = vadd.f32 %v1095, %v5302
      %v5304 = vpop.f32.mrb[0].mxu0
      %v5305 = vadd.f32 %v1095, %v5304
      %v5306 = vpop.f32.mrb[0].mxu0
      %v5307 = vadd.f32 %v1100, %v5306
      %v5308 = vpop.f32.mrb[0].mxu0
      %v5309 = vadd.f32 %v1100, %v5308
      %5310 = vmatprep.mubr.bf16.mxu0 0
      %5311 = vmatmul.mubr.bf16.gmra.mrb[0].mxu0 %v1126
      %v5312 = vpop.f32.mrb[0].mxu0
      %v5313 = vadd.f32 %v1105, %v5312
      %v5314 = vpop.f32.mrb[0].mxu0
      %v5315 = vadd.f32 %v1105, %v5314
      %v5316 = vpop.f32.mrb[0].mxu0
      %v5317 = vadd.f32 %v1110, %v5316
      %v5318 = vpop.f32.mrb[0].mxu0
      %v5319 = vadd.f32 %v1110, %v5318
      %5320 = vdwg.mxu0
      %5321 = vmatprep.subr.bf16.mxu0 %v5204
      %5322 = vmatpush1.bf16.msra.mxu0 %v5203
      %5323 = vmatprep.subr.bf16.mxu0 %v5212
      %5324 = vmatpush1.bf16.msra.mxu0 %v5211
      %5325 = vmatprep.subr.bf16.mxu0 0
      %5326 = vmatpush1.bf16.msra.mxu0 0
      %5327 = vmatprep.subr.bf16.mxu0 0
      %5328 = vmatpush1.bf16.msra.mxu0 0
      %5329 = vmatprep.subr.bf16.mxu0 0
      %5330 = vmatpush1.bf16.msra.mxu0 0
      %5331 = vmatprep.subr.bf16.mxu0 0
      %5332 = vmatpush1.bf16.msra.mxu0 0
      %5333 = vmatprep.subr.bf16.mxu0 0
      %5334 = vmatpush1.bf16.msra.mxu0 0
      %5335 = vmatprep.subr.bf16.mxu0 0
      %5336 = vmatpush1.bf16.msra.mxu0 0
      %5337 = vmatprep.subr.bf16.mxu0 0
      %5338 = vmatpush1.bf16.msra.mxu0 0
      %5339 = vmatprep.subr.bf16.mxu0 0
      %5340 = vmatpush1.bf16.msra.mxu0 0
      %5341 = vmatprep.subr.bf16.mxu0 0
      %5342 = vmatpush1.bf16.msra.mxu0 0
      %5343 = vmatprep.subr.bf16.mxu0 0
      %5344 = vmatpush1.bf16.msra.mxu0 0
      %5345 = vmatprep.subr.bf16.mxu0 0
      %5346 = vmatpush1.bf16.msra.mxu0 0
      %5347 = vmatprep.subr.bf16.mxu0 0
      %5348 = vmatpush1.bf16.msra.mxu0 0
      %5349 = vmatprep.subr.bf16.mxu0 0
      %5350 = vmatpush1.bf16.msra.mxu0 0
      %5351 = vmatprep.subr.bf16.mxu0 0
      %5352 = vmatpush1.bf16.msra.mxu0 0
      %5353 = vmatprep.mubr.bf16.mxu0 0
      %5354 = vmatmul.mubr.bf16.gmra.mrb[0].mxu0 %v1123
      %v5355 = vpop.f32.mrb[0].mxu0
      %v5356 = vadd.f32 %v1095, %v5355
      %v5357 = vpop.f32.mrb[0].mxu0
      %v5358 = vadd.f32 %v1095, %v5357
      %v5359 = vpop.f32.mrb[0].mxu0
      %v5360 = vadd.f32 %v1100, %v5359
      %v5361 = vpop.f32.mrb[0].mxu0
      %v5362 = vadd.f32 %v1100, %v5361
      %5363 = vmatprep.mubr.bf16.mxu0 0
      %5364 = vmatmul.mubr.bf16.gmra.mrb[0].mxu0 %v1126
      %v5365 = vpop.f32.mrb[0].mxu0
      %v5366 = vadd.f32 %v1105, %v5365
      %v5367 = vpop.f32.mrb[0].mxu0
      %v5368 = vadd.f32 %v1105, %v5367
      %v5369 = vpop.f32.mrb[0].mxu0
      %v5370 = vadd.f32 %v1110, %v5369
      %v5371 = vpop.f32.mrb[0].mxu0
      %v5372 = vadd.f32 %v1110, %v5371
      %5373 = vdwg.mxu0
      %5374 = vmatprep.subr.bf16.mxu0 %v5206
      %5375 = vmatpush1.bf16.msra.mxu0 %v5205
      %5376 = vmatprep.subr.bf16.mxu0 %v5214
      %5377 = vmatpush1.bf16.msra.mxu0 %v5213
      %5378 = vmatprep.subr.bf16.mxu0 0
      %5379 = vmatpush1.bf16.msra.mxu0 0
      %5380 = vmatprep.subr.bf16.mxu0 0
      %5381 = vmatpush1.bf16.msra.mxu0 0
      %5382 = vmatprep.subr.bf16.mxu0 0
      %5383 = vmatpush1.bf16.msra.mxu0 0
      %5384 = vmatprep.subr.bf16.mxu0 0
      %5385 = vmatpush1.bf16.msra.mxu0 0
      %5386 = vmatprep.subr.bf16.mxu0 0
      %5387 = vmatpush1.bf16.msra.mxu0 0
      %5388 = vmatprep.subr.bf16.mxu0 0
      %5389 = vmatpush1.bf16.msra.mxu0 0
      %5390 = vmatprep.subr.bf16.mxu0 0
      %5391 = vmatpush1.bf16.msra.mxu0 0
      %5392 = vmatprep.subr.bf16.mxu0 0
      %5393 = vmatpush1.bf16.msra.mxu0 0
      %5394 = vmatprep.subr.bf16.mxu0 0
      %5395 = vmatpush1.bf16.msra.mxu0 0
      %5396 = vmatprep.subr.bf16.mxu0 0
      %5397 = vmatpush1.bf16.msra.mxu0 0
      %5398 = vmatprep.subr.bf16.mxu0 0
      %5399 = vmatpush1.bf16.msra.mxu0 0
      %5400 = vmatprep.subr.bf16.mxu0 0
      %5401 = vmatpush1.bf16.msra.mxu0 0
      %5402 = vmatprep.subr.bf16.mxu0 0
      %5403 = vmatpush1.bf16.msra.mxu0 0
      %5404 = vmatprep.subr.bf16.mxu0 0
      %5405 = vmatpush1.bf16.msra.mxu0 0
      %5406 = vmatprep.mubr.bf16.mxu0 0
      %5407 = vmatmul.mubr.bf16.gmra.mrb[0].mxu0 %v1123
      %v5408 = vpop.f32.mrb[0].mxu0
      %v5409 = vadd.f32 %v1095, %v5408
      %v5410 = vpop.f32.mrb[0].mxu0
      %v5411 = vadd.f32 %v1095, %v5410
      %v5412 = vpop.f32.mrb[0].mxu0
      %v5413 = vadd.f32 %v1100, %v5412
      %v5414 = vpop.f32.mrb[0].mxu0
      %v5415 = vadd.f32 %v1100, %v5414
      %5416 = vmatprep.mubr.bf16.mxu0 0
      %5417 = vmatmul.mubr.bf16.gmra.mrb[0].mxu0 %v1126
      %v5418 = vpop.f32.mrb[0].mxu0
      %v5419 = vadd.f32 %v1105, %v5418
      %v5420 = vpop.f32.mrb[0].mxu0
      %v5421 = vadd.f32 %v1105, %v5420
      %v5422 = vpop.f32.mrb[0].mxu0
      %v5423 = vadd.f32 %v1110, %v5422
      %v5424 = vpop.f32.mrb[0].mxu0
      %v5425 = vadd.f32 %v1110, %v5424
      %5426 = vdwg.mxu0
      %v5427 = vtanh.pop %v5250
      %v5428 = vtanh.pop %v5252
      %v5429 = vtanh.pop %v5303
      %v5430 = vtanh.pop %v5305
      %v5431 = vtanh.pop %v5356
      %v5432 = vtanh.pop %v5358
      %v5433 = vtanh.pop %v5409
      %v5434 = vtanh.pop %v5411
      %v5435 = vtanh.pop %v5254
      %v5436 = vtanh.pop %v5256
      %v5437 = vtanh.pop %v5307
      %v5438 = vtanh.pop %v5309
      %v5439 = vtanh.pop %v5360
      %v5440 = vtanh.pop %v5362
      %v5441 = vtanh.pop %v5413
      %v5442 = vtanh.pop %v5415
      %v5443 = vtanh.pop %v5260
      %v5444 = vtanh.pop %v5262
      %v5445 = vtanh.pop %v5313
      %v5446 = vtanh.pop %v5315
      %v5447 = vtanh.pop %v5366
      %v5448 = vtanh.pop %v5368
      %v5449 = vtanh.pop %v5419
      %v5450 = vtanh.pop %v5421
      %v5451 = vtanh.pop %v5264
      %v5452 = vtanh.pop %v5266
      %v5453 = vtanh.pop %v5317
      %v5454 = vtanh.pop %v5319
      %v5455 = vtanh.pop %v5370
      %v5456 = vtanh.pop %v5372
      %v5457 = vtanh.pop %v5423
      %v5458 = vtanh.pop %v5425
      %v5459 = vpack.c.bf16 %v5435, %v5427
      %v5460 = vpack.c.bf16 %v5436, %v5428
      %v5461 = vpack.c.bf16 %v5437, %v5429
      %v5462 = vpack.c.bf16 %v5438, %v5430
      %v5463 = vpack.c.bf16 %v5439, %v5431
      %v5464 = vpack.c.bf16 %v5440, %v5432
      %v5465 = vpack.c.bf16 %v5441, %v5433
      %v5466 = vpack.c.bf16 %v5442, %v5434
      %v5467 = vpack.c.bf16 %v5451, %v5443
      %v5468 = vpack.c.bf16 %v5452, %v5444
      %v5469 = vpack.c.bf16 %v5453, %v5445
      %v5470 = vpack.c.bf16 %v5454, %v5446
      %v5471 = vpack.c.bf16 %v5455, %v5447
      %v5472 = vpack.c.bf16 %v5456, %v5448
      %v5473 = vpack.c.bf16 %v5457, %v5449
      %v5474 = vpack.c.bf16 %v5458, %v5450
      %5475 = vmatprep.subr.bf16.mxu0 %v5460
      %5476 = vmatpush1.bf16.msra.mxu0 %v5459
      %5477 = vmatprep.subr.bf16.mxu0 %v5468
      %5478 = vmatpush1.bf16.msra.mxu0 %v5467
      %5479 = vmatprep.subr.bf16.mxu0 0
      %5480 = vmatpush1.bf16.msra.mxu0 0
      %5481 = vmatprep.subr.bf16.mxu0 0
      %5482 = vmatpush1.bf16.msra.mxu0 0
      %5483 = vmatprep.subr.bf16.mxu0 0
      %5484 = vmatpush1.bf16.msra.mxu0 0
      %5485 = vmatprep.subr.bf16.mxu0 0
      %5486 = vmatpush1.bf16.msra.mxu0 0
      %5487 = vmatprep.subr.bf16.mxu0 0
      %5488 = vmatpush1.bf16.msra.mxu0 0
      %5489 = vmatprep.subr.bf16.mxu0 0
      %5490 = vmatpush1.bf16.msra.mxu0 0
      %5491 = vmatprep.subr.bf16.mxu0 0
      %5492 = vmatpush1.bf16.msra.mxu0 0
      %5493 = vmatprep.subr.bf16.mxu0 0
      %5494 = vmatpush1.bf16.msra.mxu0 0
      %5495 = vmatprep.subr.bf16.mxu0 0
      %5496 = vmatpush1.bf16.msra.mxu0 0
      %5497 = vmatprep.subr.bf16.mxu0 0
      %5498 = vmatpush1.bf16.msra.mxu0 0
      %5499 = vmatprep.subr.bf16.mxu0 0
      %5500 = vmatpush1.bf16.msra.mxu0 0
      %5501 = vmatprep.subr.bf16.mxu0 0
      %5502 = vmatpush1.bf16.msra.mxu0 0
      %5503 = vmatprep.subr.bf16.mxu0 0
      %5504 = vmatpush1.bf16.msra.mxu0 0
      %5505 = vmatprep.subr.bf16.mxu0 0
      %5506 = vmatpush1.bf16.msra.mxu0 0
      %5507 = vmatprep.mubr.bf16.mxu0 0
      %5508 = vmatmul.mubr.bf16.gmra.mrb[0].mxu0 %v1419
      %v5509 = vpop.f32.mrb[0].mxu0
      %v5510 = vadd.f32 %v1391, %v5509
      %v5511 = vpop.f32.mrb[0].mxu0
      %v5512 = vadd.f32 %v1391, %v5511
      %v5513 = vpop.f32.mrb[0].mxu0
      %v5514 = vadd.f32 %v1396, %v5513
      %v5515 = vpop.f32.mrb[0].mxu0
      %v5516 = vadd.f32 %v1396, %v5515
      %5517 = vmatprep.mubr.bf16.mxu0 0
      %5518 = vmatmul.mubr.bf16.gmra.mrb[0].mxu0 %v1422
      %v5519 = vpop.f32.mrb[0].mxu0
      %v5520 = vadd.f32 %v1401, %v5519
      %v5521 = vpop.f32.mrb[0].mxu0
      %v5522 = vadd.f32 %v1401, %v5521
      %v5523 = vpop.f32.mrb[0].mxu0
      %v5524 = vadd.f32 %v1406, %v5523
      %v5525 = vpop.f32.mrb[0].mxu0
      %v5526 = vadd.f32 %v1406, %v5525
      %5527 = vdwg.mxu0
      %5528 = vmatprep.subr.bf16.mxu0 %v5462
      %5529 = vmatpush1.bf16.msra.mxu0 %v5461
      %5530 = vmatprep.subr.bf16.mxu0 %v5470
      %5531 = vmatpush1.bf16.msra.mxu0 %v5469
      %5532 = vmatprep.subr.bf16.mxu0 0
      %5533 = vmatpush1.bf16.msra.mxu0 0
      %5534 = vmatprep.subr.bf16.mxu0 0
      %5535 = vmatpush1.bf16.msra.mxu0 0
      %5536 = vmatprep.subr.bf16.mxu0 0
      %5537 = vmatpush1.bf16.msra.mxu0 0
      %5538 = vmatprep.subr.bf16.mxu0 0
      %5539 = vmatpush1.bf16.msra.mxu0 0
      %5540 = vmatprep.subr.bf16.mxu0 0
      %5541 = vmatpush1.bf16.msra.mxu0 0
      %5542 = vmatprep.subr.bf16.mxu0 0
      %5543 = vmatpush1.bf16.msra.mxu0 0
      %5544 = vmatprep.subr.bf16.mxu0 0
      %5545 = vmatpush1.bf16.msra.mxu0 0
      %5546 = vmatprep.subr.bf16.mxu0 0
      %5547 = vmatpush1.bf16.msra.mxu0 0
      %5548 = vmatprep.subr.bf16.mxu0 0
      %5549 = vmatpush1.bf16.msra.mxu0 0
      %5550 = vmatprep.subr.bf16.mxu0 0
      %5551 = vmatpush1.bf16.msra.mxu0 0
      %5552 = vmatprep.subr.bf16.mxu0 0
      %5553 = vmatpush1.bf16.msra.mxu0 0
      %5554 = vmatprep.subr.bf16.mxu0 0
      %5555 = vmatpush1.bf16.msra.mxu0 0
      %5556 = vmatprep.subr.bf16.mxu0 0
      %5557 = vmatpush1.bf16.msra.mxu0 0
      %5558 = vmatprep.subr.bf16.mxu0 0
      %5559 = vmatpush1.bf16.msra.mxu0 0
      %5560 = vmatprep.mubr.bf16.mxu0 0
      %5561 = vmatmul.mubr.bf16.gmra.mrb[0].mxu0 %v1419
      %v5562 = vpop.f32.mrb[0].mxu0
      %v5563 = vadd.f32 %v1391, %v5562
      %v5564 = vpop.f32.mrb[0].mxu0
      %v5565 = vadd.f32 %v1391, %v5564
      %v5566 = vpop.f32.mrb[0].mxu0
      %v5567 = vadd.f32 %v1396, %v5566
      %v5568 = vpop.f32.mrb[0].mxu0
      %v5569 = vadd.f32 %v1396, %v5568
      %5570 = vmatprep.mubr.bf16.mxu0 0
      %5571 = vmatmul.mubr.bf16.gmra.mrb[0].mxu0 %v1422
      %v5572 = vpop.f32.mrb[0].mxu0
      %v5573 = vadd.f32 %v1401, %v5572
      %v5574 = vpop.f32.mrb[0].mxu0
      %v5575 = vadd.f32 %v1401, %v5574
      %v5576 = vpop.f32.mrb[0].mxu0
      %v5577 = vadd.f32 %v1406, %v5576
      %v5578 = vpop.f32.mrb[0].mxu0
      %v5579 = vadd.f32 %v1406, %v5578
      %5580 = vdwg.mxu0
      %5581 = vmatprep.subr.bf16.mxu0 %v5464
      %5582 = vmatpush1.bf16.msra.mxu0 %v5463
      %5583 = vmatprep.subr.bf16.mxu0 %v5472
      %5584 = vmatpush1.bf16.msra.mxu0 %v5471
      %5585 = vmatprep.subr.bf16.mxu0 0
      %5586 = vmatpush1.bf16.msra.mxu0 0
      %5587 = vmatprep.subr.bf16.mxu0 0
      %5588 = vmatpush1.bf16.msra.mxu0 0
      %5589 = vmatprep.subr.bf16.mxu0 0
      %5590 = vmatpush1.bf16.msra.mxu0 0
      %5591 = vmatprep.subr.bf16.mxu0 0
      %5592 = vmatpush1.bf16.msra.mxu0 0
      %5593 = vmatprep.subr.bf16.mxu0 0
      %5594 = vmatpush1.bf16.msra.mxu0 0
      %5595 = vmatprep.subr.bf16.mxu0 0
      %5596 = vmatpush1.bf16.msra.mxu0 0
      %5597 = vmatprep.subr.bf16.mxu0 0
      %5598 = vmatpush1.bf16.msra.mxu0 0
      %5599 = vmatprep.subr.bf16.mxu0 0
      %5600 = vmatpush1.bf16.msra.mxu0 0
      %5601 = vmatprep.subr.bf16.mxu0 0
      %5602 = vmatpush1.bf16.msra.mxu0 0
      %5603 = vmatprep.subr.bf16.mxu0 0
      %5604 = vmatpush1.bf16.msra.mxu0 0
      %5605 = vmatprep.subr.bf16.mxu0 0
      %5606 = vmatpush1.bf16.msra.mxu0 0
      %5607 = vmatprep.subr.bf16.mxu0 0
      %5608 = vmatpush1.bf16.msra.mxu0 0
      %5609 = vmatprep.subr.bf16.mxu0 0
      %5610 = vmatpush1.bf16.msra.mxu0 0
      %5611 = vmatprep.subr.bf16.mxu0 0
      %5612 = vmatpush1.bf16.msra.mxu0 0
      %5613 = vmatprep.mubr.bf16.mxu0 0
      %5614 = vmatmul.mubr.bf16.gmra.mrb[0].mxu0 %v1419
      %v5615 = vpop.f32.mrb[0].mxu0
      %v5616 = vadd.f32 %v1391, %v5615
      %v5617 = vpop.f32.mrb[0].mxu0
      %v5618 = vadd.f32 %v1391, %v5617
      %v5619 = vpop.f32.mrb[0].mxu0
      %v5620 = vadd.f32 %v1396, %v5619
      %v5621 = vpop.f32.mrb[0].mxu0
      %v5622 = vadd.f32 %v1396, %v5621
      %5623 = vmatprep.mubr.bf16.mxu0 0
      %5624 = vmatmul.mubr.bf16.gmra.mrb[0].mxu0 %v1422
      %v5625 = vpop.f32.mrb[0].mxu0
      %v5626 = vadd.f32 %v1401, %v5625
      %v5627 = vpop.f32.mrb[0].mxu0
      %v5628 = vadd.f32 %v1401, %v5627
      %v5629 = vpop.f32.mrb[0].mxu0
      %v5630 = vadd.f32 %v1406, %v5629
      %v5631 = vpop.f32.mrb[0].mxu0
      %v5632 = vadd.f32 %v1406, %v5631
      %5633 = vdwg.mxu0
      %5634 = vmatprep.subr.bf16.mxu0 %v5466
      %5635 = vmatpush1.bf16.msra.mxu0 %v5465
      %5636 = vmatprep.subr.bf16.mxu0 %v5474
      %5637 = vmatpush1.bf16.msra.mxu0 %v5473
      %5638 = vmatprep.subr.bf16.mxu0 0
      %5639 = vmatpush1.bf16.msra.mxu0 0
      %5640 = vmatprep.subr.bf16.mxu0 0
      %5641 = vmatpush1.bf16.msra.mxu0 0
      %5642 = vmatprep.subr.bf16.mxu0 0
      %5643 = vmatpush1.bf16.msra.mxu0 0
      %5644 = vmatprep.subr.bf16.mxu0 0
      %5645 = vmatpush1.bf16.msra.mxu0 0
      %5646 = vmatprep.subr.bf16.mxu0 0
      %5647 = vmatpush1.bf16.msra.mxu0 0
      %5648 = vmatprep.subr.bf16.mxu0 0
      %5649 = vmatpush1.bf16.msra.mxu0 0
      %5650 = vmatprep.subr.bf16.mxu0 0
      %5651 = vmatpush1.bf16.msra.mxu0 0
      %5652 = vmatprep.subr.bf16.mxu0 0
      %5653 = vmatpush1.bf16.msra.mxu0 0
      %5654 = vmatprep.subr.bf16.mxu0 0
      %5655 = vmatpush1.bf16.msra.mxu0 0
      %5656 = vmatprep.subr.bf16.mxu0 0
      %5657 = vmatpush1.bf16.msra.mxu0 0
      %5658 = vmatprep.subr.bf16.mxu0 0
      %5659 = vmatpush1.bf16.msra.mxu0 0
      %5660 = vmatprep.subr.bf16.mxu0 0
      %5661 = vmatpush1.bf16.msra.mxu0 0
      %5662 = vmatprep.subr.bf16.mxu0 0
      %5663 = vmatpush1.bf16.msra.mxu0 0
      %5664 = vmatprep.subr.bf16.mxu0 0
      %5665 = vmatpush1.bf16.msra.mxu0 0
      %5666 = vmatprep.mubr.bf16.mxu0 0
      %5667 = vmatmul.mubr.bf16.gmra.mrb[0].mxu0 %v1419
      %v5668 = vpop.f32.mrb[0].mxu0
      %v5669 = vadd.f32 %v1391, %v5668
      %v5670 = vpop.f32.mrb[0].mxu0
      %v5671 = vadd.f32 %v1391, %v5670
      %v5672 = vpop.f32.mrb[0].mxu0
      %v5673 = vadd.f32 %v1396, %v5672
      %v5674 = vpop.f32.mrb[0].mxu0
      %v5675 = vadd.f32 %v1396, %v5674
      %5676 = vmatprep.mubr.bf16.mxu0 0
      %5677 = vmatmul.mubr.bf16.gmra.mrb[0].mxu0 %v1422
      %v5678 = vpop.f32.mrb[0].mxu0
      %v5679 = vadd.f32 %v1401, %v5678
      %v5680 = vpop.f32.mrb[0].mxu0
      %v5681 = vadd.f32 %v1401, %v5680
      %v5682 = vpop.f32.mrb[0].mxu0
      %v5683 = vadd.f32 %v1406, %v5682
      %v5684 = vpop.f32.mrb[0].mxu0
      %v5685 = vadd.f32 %v1406, %v5684
      %5686 = vdwg.mxu0
      %v5687 = vtanh.pop %v5510
      %v5688 = vtanh.pop %v5512
      %v5689 = vtanh.pop %v5563
      %v5690 = vtanh.pop %v5565
      %v5691 = vtanh.pop %v5616
      %v5692 = vtanh.pop %v5618
      %v5693 = vtanh.pop %v5669
      %v5694 = vtanh.pop %v5671
      %v5695 = vtanh.pop %v5514
      %v5696 = vtanh.pop %v5516
      %v5697 = vtanh.pop %v5567
      %v5698 = vtanh.pop %v5569
      %v5699 = vtanh.pop %v5620
      %v5700 = vtanh.pop %v5622
      %v5701 = vtanh.pop %v5673
      %v5702 = vtanh.pop %v5675
      %v5703 = vtanh.pop %v5520
      %v5704 = vtanh.pop %v5522
      %v5705 = vtanh.pop %v5573
      %v5706 = vtanh.pop %v5575
      %v5707 = vtanh.pop %v5626
      %v5708 = vtanh.pop %v5628
      %v5709 = vtanh.pop %v5679
      %v5710 = vtanh.pop %v5681
      %v5711 = vtanh.pop %v5524
      %v5712 = vtanh.pop %v5526
      %v5713 = vtanh.pop %v5577
      %v5714 = vtanh.pop %v5579
      %v5715 = vtanh.pop %v5630
      %v5716 = vtanh.pop %v5632
      %v5717 = vtanh.pop %v5683
      %v5718 = vtanh.pop %v5685
      %v5719 = vmul.f32 %v1671, %v5687
      %v5720 = vmul.f32 %v1671, %v5688
      %v5721 = vmul.f32 %v1671, %v5689
      %v5722 = vmul.f32 %v1671, %v5690
      %v5723 = vmul.f32 %v1671, %v5691
      %v5724 = vmul.f32 %v1671, %v5692
      %v5725 = vmul.f32 %v1671, %v5693
      %v5726 = vmul.f32 %v1671, %v5694
      %v5727 = vmul.f32 %v1676, %v5695
      %v5728 = vmul.f32 %v1676, %v5696
      %v5729 = vmul.f32 %v1676, %v5697
      %v5730 = vmul.f32 %v1676, %v5698
      %v5731 = vmul.f32 %v1676, %v5699
      %v5732 = vmul.f32 %v1676, %v5700
      %v5733 = vmul.f32 %v1676, %v5701
      %v5734 = vmul.f32 %v1676, %v5702
      %v5735 = vmul.f32 %v1681, %v5703
      %v5736 = vmul.f32 %v1681, %v5704
      %v5737 = vmul.f32 %v1681, %v5705
      %v5738 = vmul.f32 %v1681, %v5706
      %v5739 = vmul.f32 %v1681, %v5707
      %v5740 = vmul.f32 %v1681, %v5708
      %v5741 = vmul.f32 %v1681, %v5709
      %v5742 = vmul.f32 %v1681, %v5710
      %v5743 = vmul.f32 %v1686, %v5711
      %v5744 = vmul.f32 %v1686, %v5712
      %v5745 = vmul.f32 %v1686, %v5713
      %v5746 = vmul.f32 %v1686, %v5714
      %v5747 = vmul.f32 %v1686, %v5715
      %v5748 = vmul.f32 %v1686, %v5716
      %v5749 = vmul.f32 %v1686, %v5717
      %v5750 = vmul.f32 %v1686, %v5718
      %v5751 = vadd.f32 %v5719, %v5727
      %v5752 = vadd.f32 %v5751, %v5735
      %v5753 = vadd.f32 %v5752, %v5743
      %v5754 = vrot.slane %v5753, 4
      %v5755 = vadd.f32 %v5753, %v5754
      %v5756 = vrot.slane %v5755, 2
      %v5757 = vadd.f32 %v5755, %v5756
      %v5758 = vrot.slane %v5757, 1
      %v5759 = vadd.f32 %v5757, %v5758
      %v5760 = vadd.f32 %v5720, %v5728
      %v5761 = vadd.f32 %v5760, %v5736
      %v5762 = vadd.f32 %v5761, %v5744
      %v5763 = vrot.slane %v5762, 4
      %v5764 = vadd.f32 %v5762, %v5763
      %v5765 = vrot.slane %v5764, 2
      %v5766 = vadd.f32 %v5764, %v5765
      %v5767 = vrot.slane %v5766, 1
      %v5768 = vadd.f32 %v5766, %v5767
      %v5769 = vadd.f32 %v5721, %v5729
      %v5770 = vadd.f32 %v5769, %v5737
      %v5771 = vadd.f32 %v5770, %v5745
      %v5772 = vrot.slane %v5771, 4
      %v5773 = vadd.f32 %v5771, %v5772
      %v5774 = vrot.slane %v5773, 2
      %v5775 = vadd.f32 %v5773, %v5774
      %v5776 = vrot.slane %v5775, 1
      %v5777 = vadd.f32 %v5775, %v5776
      %v5778 = vadd.f32 %v5722, %v5730
      %v5779 = vadd.f32 %v5778, %v5738
      %v5780 = vadd.f32 %v5779, %v5746
      %v5781 = vrot.slane %v5780, 4
      %v5782 = vadd.f32 %v5780, %v5781
      %v5783 = vrot.slane %v5782, 2
      %v5784 = vadd.f32 %v5782, %v5783
      %v5785 = vrot.slane %v5784, 1
      %v5786 = vadd.f32 %v5784, %v5785
      %v5787 = vadd.f32 %v5723, %v5731
      %v5788 = vadd.f32 %v5787, %v5739
      %v5789 = vadd.f32 %v5788, %v5747
      %v5790 = vrot.slane %v5789, 4
      %v5791 = vadd.f32 %v5789, %v5790
      %v5792 = vrot.slane %v5791, 2
      %v5793 = vadd.f32 %v5791, %v5792
      %v5794 = vrot.slane %v5793, 1
      %v5795 = vadd.f32 %v5793, %v5794
      %v5796 = vadd.f32 %v5724, %v5732
      %v5797 = vadd.f32 %v5796, %v5740
      %v5798 = vadd.f32 %v5797, %v5748
      %v5799 = vrot.slane %v5798, 4
      %v5800 = vadd.f32 %v5798, %v5799
      %v5801 = vrot.slane %v5800, 2
      %v5802 = vadd.f32 %v5800, %v5801
      %v5803 = vrot.slane %v5802, 1
      %v5804 = vadd.f32 %v5802, %v5803
      %v5805 = vadd.f32 %v5725, %v5733
      %v5806 = vadd.f32 %v5805, %v5741
      %v5807 = vadd.f32 %v5806, %v5749
      %v5808 = vrot.slane %v5807, 4
      %v5809 = vadd.f32 %v5807, %v5808
      %v5810 = vrot.slane %v5809, 2
      %v5811 = vadd.f32 %v5809, %v5810
      %v5812 = vrot.slane %v5811, 1
      %v5813 = vadd.f32 %v5811, %v5812
      %v5814 = vadd.f32 %v5726, %v5734
      %v5815 = vadd.f32 %v5814, %v5742
      %v5816 = vadd.f32 %v5815, %v5750
      %v5817 = vrot.slane %v5816, 4
      %v5818 = vadd.f32 %v5816, %v5817
      %v5819 = vrot.slane %v5818, 2
      %v5820 = vadd.f32 %v5818, %v5819
      %v5821 = vrot.slane %v5820, 1
      %v5822 = vadd.f32 %v5820, %v5821
      %v5823 = vadd.f32 %v5759, %v1800
      %v5824 = vadd.f32 %v5768, %v1800
      %v5825 = vadd.f32 %v5777, %v1800
      %v5826 = vadd.f32 %v5786, %v1800
      %v5827 = vadd.f32 %v5795, %v1800
      %v5828 = vadd.f32 %v5804, %v1800
      %v5829 = vadd.f32 %v5813, %v1800
      %v5830 = vadd.f32 %v5822, %v1800
      %v5839 = vcombine.low %v5823, %v5824
      %v5840 = vcombine.low %v5825, %v5826
      %v5841 = vcombine.low %v5827, %v5828
      %v5842 = vcombine.low %v5829, %v5830
      %v5844 = vunpack.c.l.s4 1966171168
      %v5845 = vunpack.c.0.s8 %v5844
      %v5846 = vlaneseq
      %v5847 = vshrl.u32 %v5846, 7
      %v5848 = vsub.s32 %v5845, %v5847
      %v5849 = vrot.slane %v5839, %v5848
      %v5851 = vunpack.c.l.s4 1966171168
      %v5852 = vunpack.c.0.s8 %v5851
      %v5853 = vlaneseq
      %v5854 = vshrl.u32 %v5853, 7
      %v5855 = vsub.s32 %v5852, %v5854
      %v5856 = vrot.slane %v5840, %v5855
      %v5858 = vunpack.c.l.s4 1966171168
      %v5859 = vunpack.c.0.s8 %v5858
      %v5860 = vlaneseq
      %v5861 = vshrl.u32 %v5860, 7
      %v5862 = vsub.s32 %v5859, %v5861
      %v5863 = vrot.slane %v5841, %v5862
      %v5865 = vunpack.c.l.s4 1966171168
      %v5866 = vunpack.c.0.s8 %v5865
      %v5867 = vlaneseq
      %v5868 = vshrl.u32 %v5867, 7
      %v5869 = vsub.s32 %v5866, %v5868
      %v5870 = vrot.slane %v5842, %v5869
      %v5871 = vcombine.low %v5849, %v5856
      %v5872 = vcombine.low %v5863, %v5870
      %v5874 = vunpack.c.l.s4 1966171168
      %v5875 = vunpack.c.0.s8 %v5874
      %v5876 = vlaneseq
      %v5877 = vshrl.u32 %v5876, 7
      %v5878 = vsub.s32 %v5875, %v5877
      %v5879 = vrot.slane %v5871, %v5878
      %v5881 = vunpack.c.l.s4 1966171168
      %v5882 = vunpack.c.0.s8 %v5881
      %v5883 = vlaneseq
      %v5884 = vshrl.u32 %v5883, 7
      %v5885 = vsub.s32 %v5882, %v5884
      %v5886 = vrot.slane %v5872, %v5885
      %v5887 = vcombine.low %v5879, %v5886
      %s5889 = scalar_lea.vmem %s253, 3
      %5890 = vst [vmem:[%s5889] ss:$8 sm:$0xf] %v5887
      %5891 = vst [vmem:[%s5889] ss:$8 sm:$0xf0] %v5887
      %v5892 = vlaneseq
      %v5893 = vshrl.u32 %v5892, 7
      %v5894 = vsub.s32 4, %v5893
      %v5895 = vrot.slane %v307, %v5894
      %v5896 = vlaneseq
      %v5897 = vshrl.u32 %v5896, 7
      %v5898 = vsub.s32 4, %v5897
      %v5899 = vrot.slane %v308, %v5898
      %v5900 = vlaneseq
      %v5901 = vshrl.u32 %v5900, 7
      %v5902 = vsub.s32 4, %v5901
      %v5903 = vrot.slane %v309, %v5902
      %v5904 = vlaneseq
      %v5905 = vshrl.u32 %v5904, 7
      %v5906 = vsub.s32 4, %v5905
      %v5907 = vrot.slane %v310, %v5906
      %v5908 = vlaneseq
      %v5909 = vshrl.u32 %v5908, 7
      %v5910 = vsub.s32 4, %v5909
      %v5911 = vrot.slane %v311, %v5910
      %v5912 = vlaneseq
      %v5913 = vshrl.u32 %v5912, 7
      %v5914 = vsub.s32 4, %v5913
      %v5915 = vrot.slane %v312, %v5914
      %v5916 = vlaneseq
      %v5917 = vshrl.u32 %v5916, 7
      %v5918 = vsub.s32 4, %v5917
      %v5919 = vrot.slane %v313, %v5918
      %v5920 = vlaneseq
      %v5921 = vshrl.u32 %v5920, 7
      %v5922 = vsub.s32 4, %v5921
      %v5923 = vrot.slane %v314, %v5922
      %v5924 = vmul.f32 %v318, %v5895
      %v5925 = vmul.f32 %v318, %v5899
      %v5926 = vmul.f32 %v318, %v5903
      %v5927 = vmul.f32 %v318, %v5907
      %v5928 = vmul.f32 %v318, %v5911
      %v5929 = vmul.f32 %v318, %v5915
      %v5930 = vmul.f32 %v318, %v5919
      %v5931 = vmul.f32 %v318, %v5923
      %v5932 = vmul.f32 %v323, %v5895
      %v5933 = vmul.f32 %v323, %v5899
      %v5934 = vmul.f32 %v323, %v5903
      %v5935 = vmul.f32 %v323, %v5907
      %v5936 = vmul.f32 %v323, %v5911
      %v5937 = vmul.f32 %v323, %v5915
      %v5938 = vmul.f32 %v323, %v5919
      %v5939 = vmul.f32 %v323, %v5923
      %v5940 = vmul.f32 %v328, %v5895
      %v5941 = vmul.f32 %v328, %v5899
      %v5942 = vmul.f32 %v328, %v5903
      %v5943 = vmul.f32 %v328, %v5907
      %v5944 = vmul.f32 %v328, %v5911
      %v5945 = vmul.f32 %v328, %v5915
      %v5946 = vmul.f32 %v328, %v5919
      %v5947 = vmul.f32 %v328, %v5923
      %v5948 = vmul.f32 %v333, %v5895
      %v5949 = vmul.f32 %v333, %v5899
      %v5950 = vmul.f32 %v333, %v5903
      %v5951 = vmul.f32 %v333, %v5907
      %v5952 = vmul.f32 %v333, %v5911
      %v5953 = vmul.f32 %v333, %v5915
      %v5954 = vmul.f32 %v333, %v5919
      %v5955 = vmul.f32 %v333, %v5923
      %v5956 = vadd.f32 %v5924, %v402
      %v5957 = vadd.f32 %v5925, %v402
      %v5958 = vadd.f32 %v5926, %v402
      %v5959 = vadd.f32 %v5927, %v402
      %v5960 = vadd.f32 %v5928, %v402
      %v5961 = vadd.f32 %v5929, %v402
      %v5962 = vadd.f32 %v5930, %v402
      %v5963 = vadd.f32 %v5931, %v402
      %v5964 = vadd.f32 %v5932, %v407
      %v5965 = vadd.f32 %v5933, %v407
      %v5966 = vadd.f32 %v5934, %v407
      %v5967 = vadd.f32 %v5935, %v407
      %v5968 = vadd.f32 %v5936, %v407
      %v5969 = vadd.f32 %v5937, %v407
      %v5970 = vadd.f32 %v5938, %v407
      %v5971 = vadd.f32 %v5939, %v407
      %v5972 = vadd.f32 %v5940, %v412
      %v5973 = vadd.f32 %v5941, %v412
      %v5974 = vadd.f32 %v5942, %v412
      %v5975 = vadd.f32 %v5943, %v412
      %v5976 = vadd.f32 %v5944, %v412
      %v5977 = vadd.f32 %v5945, %v412
      %v5978 = vadd.f32 %v5946, %v412
      %v5979 = vadd.f32 %v5947, %v412
      %v5980 = vadd.f32 %v5948, %v417
      %v5981 = vadd.f32 %v5949, %v417
      %v5982 = vadd.f32 %v5950, %v417
      %v5983 = vadd.f32 %v5951, %v417
      %v5984 = vadd.f32 %v5952, %v417
      %v5985 = vadd.f32 %v5953, %v417
      %v5986 = vadd.f32 %v5954, %v417
      %v5987 = vadd.f32 %v5955, %v417
      %v5988 = vtanh.pop %v5956
      %v5989 = vtanh.pop %v5957
      %v5990 = vtanh.pop %v5958
      %v5991 = vtanh.pop %v5959
      %v5992 = vtanh.pop %v5960
      %v5993 = vtanh.pop %v5961
      %v5994 = vtanh.pop %v5962
      %v5995 = vtanh.pop %v5963
      %v5996 = vtanh.pop %v5964
      %v5997 = vtanh.pop %v5965
      %v5998 = vtanh.pop %v5966
      %v5999 = vtanh.pop %v5967
      %v6000 = vtanh.pop %v5968
      %v6001 = vtanh.pop %v5969
      %v6002 = vtanh.pop %v5970
      %v6003 = vtanh.pop %v5971
      %v6004 = vtanh.pop %v5972
      %v6005 = vtanh.pop %v5973
      %v6006 = vtanh.pop %v5974
      %v6007 = vtanh.pop %v5975
      %v6008 = vtanh.pop %v5976
      %v6009 = vtanh.pop %v5977
      %v6010 = vtanh.pop %v5978
      %v6011 = vtanh.pop %v5979
      %v6012 = vtanh.pop %v5980
      %v6013 = vtanh.pop %v5981
      %v6014 = vtanh.pop %v5982
      %v6015 = vtanh.pop %v5983
      %v6016 = vtanh.pop %v5984
      %v6017 = vtanh.pop %v5985
      %v6018 = vtanh.pop %v5986
      %v6019 = vtanh.pop %v5987
      %v6020 = vpack.c.bf16 %v5996, %v5988
      %v6021 = vpack.c.bf16 %v5997, %v5989
      %v6022 = vpack.c.bf16 %v5998, %v5990
      %v6023 = vpack.c.bf16 %v5999, %v5991
      %v6024 = vpack.c.bf16 %v6000, %v5992
      %v6025 = vpack.c.bf16 %v6001, %v5993
      %v6026 = vpack.c.bf16 %v6002, %v5994
      %v6027 = vpack.c.bf16 %v6003, %v5995
      %v6028 = vpack.c.bf16 %v6012, %v6004
      %v6029 = vpack.c.bf16 %v6013, %v6005
      %v6030 = vpack.c.bf16 %v6014, %v6006
      %v6031 = vpack.c.bf16 %v6015, %v6007
      %v6032 = vpack.c.bf16 %v6016, %v6008
      %v6033 = vpack.c.bf16 %v6017, %v6009
      %v6034 = vpack.c.bf16 %v6018, %v6010
      %v6035 = vpack.c.bf16 %v6019, %v6011
      %6036 = vmatprep.subr.bf16.mxu0 %v6021
      %6037 = vmatpush1.bf16.msra.mxu0 %v6020
      %6038 = vmatprep.subr.bf16.mxu0 %v6029
      %6039 = vmatpush1.bf16.msra.mxu0 %v6028
      %6040 = vmatprep.subr.bf16.mxu0 0
      %6041 = vmatpush1.bf16.msra.mxu0 0
      %6042 = vmatprep.subr.bf16.mxu0 0
      %6043 = vmatpush1.bf16.msra.mxu0 0
      %6044 = vmatprep.subr.bf16.mxu0 0
      %6045 = vmatpush1.bf16.msra.mxu0 0
      %6046 = vmatprep.subr.bf16.mxu0 0
      %6047 = vmatpush1.bf16.msra.mxu0 0
      %6048 = vmatprep.subr.bf16.mxu0 0
      %6049 = vmatpush1.bf16.msra.mxu0 0
      %6050 = vmatprep.subr.bf16.mxu0 0
      %6051 = vmatpush1.bf16.msra.mxu0 0
      %6052 = vmatprep.subr.bf16.mxu0 0
      %6053 = vmatpush1.bf16.msra.mxu0 0
      %6054 = vmatprep.subr.bf16.mxu0 0
      %6055 = vmatpush1.bf16.msra.mxu0 0
      %6056 = vmatprep.subr.bf16.mxu0 0
      %6057 = vmatpush1.bf16.msra.mxu0 0
      %6058 = vmatprep.subr.bf16.mxu0 0
      %6059 = vmatpush1.bf16.msra.mxu0 0
      %6060 = vmatprep.subr.bf16.mxu0 0
      %6061 = vmatpush1.bf16.msra.mxu0 0
      %6062 = vmatprep.subr.bf16.mxu0 0
      %6063 = vmatpush1.bf16.msra.mxu0 0
      %6064 = vmatprep.subr.bf16.mxu0 0
      %6065 = vmatpush1.bf16.msra.mxu0 0
      %6066 = vmatprep.subr.bf16.mxu0 0
      %6067 = vmatpush1.bf16.msra.mxu0 0
      %6068 = vmatprep.mubr.bf16.mxu0 0
      %6069 = vmatmul.mubr.bf16.gmra.mrb[0].mxu0 %v531
      %v6070 = vpop.f32.mrb[0].mxu0
      %v6071 = vadd.f32 %v502, %v6070
      %v6072 = vpop.f32.mrb[0].mxu0
      %v6073 = vadd.f32 %v502, %v6072
      %v6074 = vpop.f32.mrb[0].mxu0
      %v6075 = vadd.f32 %v507, %v6074
      %v6076 = vpop.f32.mrb[0].mxu0
      %v6077 = vadd.f32 %v507, %v6076
      %6078 = vmatprep.mubr.bf16.mxu0 0
      %6079 = vmatmul.mubr.bf16.gmra.mrb[0].mxu0 %v534
      %v6080 = vpop.f32.mrb[0].mxu0
      %v6081 = vadd.f32 %v512, %v6080
      %v6082 = vpop.f32.mrb[0].mxu0
      %v6083 = vadd.f32 %v512, %v6082
      %v6084 = vpop.f32.mrb[0].mxu0
      %v6085 = vadd.f32 %v517, %v6084
      %v6086 = vpop.f32.mrb[0].mxu0
      %v6087 = vadd.f32 %v517, %v6086
      %6088 = vdwg.mxu0
      %6089 = vmatprep.subr.bf16.mxu0 %v6023
      %6090 = vmatpush1.bf16.msra.mxu0 %v6022
      %6091 = vmatprep.subr.bf16.mxu0 %v6031
      %6092 = vmatpush1.bf16.msra.mxu0 %v6030
      %6093 = vmatprep.subr.bf16.mxu0 0
      %6094 = vmatpush1.bf16.msra.mxu0 0
      %6095 = vmatprep.subr.bf16.mxu0 0
      %6096 = vmatpush1.bf16.msra.mxu0 0
      %6097 = vmatprep.subr.bf16.mxu0 0
      %6098 = vmatpush1.bf16.msra.mxu0 0
      %6099 = vmatprep.subr.bf16.mxu0 0
      %6100 = vmatpush1.bf16.msra.mxu0 0
      %6101 = vmatprep.subr.bf16.mxu0 0
      %6102 = vmatpush1.bf16.msra.mxu0 0
      %6103 = vmatprep.subr.bf16.mxu0 0
      %6104 = vmatpush1.bf16.msra.mxu0 0
      %6105 = vmatprep.subr.bf16.mxu0 0
      %6106 = vmatpush1.bf16.msra.mxu0 0
      %6107 = vmatprep.subr.bf16.mxu0 0
      %6108 = vmatpush1.bf16.msra.mxu0 0
      %6109 = vmatprep.subr.bf16.mxu0 0
      %6110 = vmatpush1.bf16.msra.mxu0 0
      %6111 = vmatprep.subr.bf16.mxu0 0
      %6112 = vmatpush1.bf16.msra.mxu0 0
      %6113 = vmatprep.subr.bf16.mxu0 0
      %6114 = vmatpush1.bf16.msra.mxu0 0
      %6115 = vmatprep.subr.bf16.mxu0 0
      %6116 = vmatpush1.bf16.msra.mxu0 0
      %6117 = vmatprep.subr.bf16.mxu0 0
      %6118 = vmatpush1.bf16.msra.mxu0 0
      %6119 = vmatprep.subr.bf16.mxu0 0
      %6120 = vmatpush1.bf16.msra.mxu0 0
      %6121 = vmatprep.mubr.bf16.mxu0 0
      %6122 = vmatmul.mubr.bf16.gmra.mrb[0].mxu0 %v531
      %v6123 = vpop.f32.mrb[0].mxu0
      %v6124 = vadd.f32 %v502, %v6123
      %v6125 = vpop.f32.mrb[0].mxu0
      %v6126 = vadd.f32 %v502, %v6125
      %v6127 = vpop.f32.mrb[0].mxu0
      %v6128 = vadd.f32 %v507, %v6127
      %v6129 = vpop.f32.mrb[0].mxu0
      %v6130 = vadd.f32 %v507, %v6129
      %6131 = vmatprep.mubr.bf16.mxu0 0
      %6132 = vmatmul.mubr.bf16.gmra.mrb[0].mxu0 %v534
      %v6133 = vpop.f32.mrb[0].mxu0
      %v6134 = vadd.f32 %v512, %v6133
      %v6135 = vpop.f32.mrb[0].mxu0
      %v6136 = vadd.f32 %v512, %v6135
      %v6137 = vpop.f32.mrb[0].mxu0
      %v6138 = vadd.f32 %v517, %v6137
      %v6139 = vpop.f32.mrb[0].mxu0
      %v6140 = vadd.f32 %v517, %v6139
      %6141 = vdwg.mxu0
      %6142 = vmatprep.subr.bf16.mxu0 %v6025
      %6143 = vmatpush1.bf16.msra.mxu0 %v6024
      %6144 = vmatprep.subr.bf16.mxu0 %v6033
      %6145 = vmatpush1.bf16.msra.mxu0 %v6032
      %6146 = vmatprep.subr.bf16.mxu0 0
      %6147 = vmatpush1.bf16.msra.mxu0 0
      %6148 = vmatprep.subr.bf16.mxu0 0
      %6149 = vmatpush1.bf16.msra.mxu0 0
      %6150 = vmatprep.subr.bf16.mxu0 0
      %6151 = vmatpush1.bf16.msra.mxu0 0
      %6152 = vmatprep.subr.bf16.mxu0 0
      %6153 = vmatpush1.bf16.msra.mxu0 0
      %6154 = vmatprep.subr.bf16.mxu0 0
      %6155 = vmatpush1.bf16.msra.mxu0 0
      %6156 = vmatprep.subr.bf16.mxu0 0
      %6157 = vmatpush1.bf16.msra.mxu0 0
      %6158 = vmatprep.subr.bf16.mxu0 0
      %6159 = vmatpush1.bf16.msra.mxu0 0
      %6160 = vmatprep.subr.bf16.mxu0 0
      %6161 = vmatpush1.bf16.msra.mxu0 0
      %6162 = vmatprep.subr.bf16.mxu0 0
      %6163 = vmatpush1.bf16.msra.mxu0 0
      %6164 = vmatprep.subr.bf16.mxu0 0
      %6165 = vmatpush1.bf16.msra.mxu0 0
      %6166 = vmatprep.subr.bf16.mxu0 0
      %6167 = vmatpush1.bf16.msra.mxu0 0
      %6168 = vmatprep.subr.bf16.mxu0 0
      %6169 = vmatpush1.bf16.msra.mxu0 0
      %6170 = vmatprep.subr.bf16.mxu0 0
      %6171 = vmatpush1.bf16.msra.mxu0 0
      %6172 = vmatprep.subr.bf16.mxu0 0
      %6173 = vmatpush1.bf16.msra.mxu0 0
      %6174 = vmatprep.mubr.bf16.mxu0 0
      %6175 = vmatmul.mubr.bf16.gmra.mrb[0].mxu0 %v531
      %v6176 = vpop.f32.mrb[0].mxu0
      %v6177 = vadd.f32 %v502, %v6176
      %v6178 = vpop.f32.mrb[0].mxu0
      %v6179 = vadd.f32 %v502, %v6178
      %v6180 = vpop.f32.mrb[0].mxu0
      %v6181 = vadd.f32 %v507, %v6180
      %v6182 = vpop.f32.mrb[0].mxu0
      %v6183 = vadd.f32 %v507, %v6182
      %6184 = vmatprep.mubr.bf16.mxu0 0
      %6185 = vmatmul.mubr.bf16.gmra.mrb[0].mxu0 %v534
      %v6186 = vpop.f32.mrb[0].mxu0
      %v6187 = vadd.f32 %v512, %v6186
      %v6188 = vpop.f32.mrb[0].mxu0
      %v6189 = vadd.f32 %v512, %v6188
      %v6190 = vpop.f32.mrb[0].mxu0
      %v6191 = vadd.f32 %v517, %v6190
      %v6192 = vpop.f32.mrb[0].mxu0
      %v6193 = vadd.f32 %v517, %v6192
      %6194 = vdwg.mxu0
      %6195 = vmatprep.subr.bf16.mxu0 %v6027
      %6196 = vmatpush1.bf16.msra.mxu0 %v6026
      %6197 = vmatprep.subr.bf16.mxu0 %v6035
      %6198 = vmatpush1.bf16.msra.mxu0 %v6034
      %6199 = vmatprep.subr.bf16.mxu0 0
      %6200 = vmatpush1.bf16.msra.mxu0 0
      %6201 = vmatprep.subr.bf16.mxu0 0
      %6202 = vmatpush1.bf16.msra.mxu0 0
      %6203 = vmatprep.subr.bf16.mxu0 0
      %6204 = vmatpush1.bf16.msra.mxu0 0
      %6205 = vmatprep.subr.bf16.mxu0 0
      %6206 = vmatpush1.bf16.msra.mxu0 0
      %6207 = vmatprep.subr.bf16.mxu0 0
      %6208 = vmatpush1.bf16.msra.mxu0 0
      %6209 = vmatprep.subr.bf16.mxu0 0
      %6210 = vmatpush1.bf16.msra.mxu0 0
      %6211 = vmatprep.subr.bf16.mxu0 0
      %6212 = vmatpush1.bf16.msra.mxu0 0
      %6213 = vmatprep.subr.bf16.mxu0 0
      %6214 = vmatpush1.bf16.msra.mxu0 0
      %6215 = vmatprep.subr.bf16.mxu0 0
      %6216 = vmatpush1.bf16.msra.mxu0 0
      %6217 = vmatprep.subr.bf16.mxu0 0
      %6218 = vmatpush1.bf16.msra.mxu0 0
      %6219 = vmatprep.subr.bf16.mxu0 0
      %6220 = vmatpush1.bf16.msra.mxu0 0
      %6221 = vmatprep.subr.bf16.mxu0 0
      %6222 = vmatpush1.bf16.msra.mxu0 0
      %6223 = vmatprep.subr.bf16.mxu0 0
      %6224 = vmatpush1.bf16.msra.mxu0 0
      %6225 = vmatprep.subr.bf16.mxu0 0
      %6226 = vmatpush1.bf16.msra.mxu0 0
      %6227 = vmatprep.mubr.bf16.mxu0 0
      %6228 = vmatmul.mubr.bf16.gmra.mrb[0].mxu0 %v531
      %v6229 = vpop.f32.mrb[0].mxu0
      %v6230 = vadd.f32 %v502, %v6229
      %v6231 = vpop.f32.mrb[0].mxu0
      %v6232 = vadd.f32 %v502, %v6231
      %v6233 = vpop.f32.mrb[0].mxu0
      %v6234 = vadd.f32 %v507, %v6233
      %v6235 = vpop.f32.mrb[0].mxu0
      %v6236 = vadd.f32 %v507, %v6235
      %6237 = vmatprep.mubr.bf16.mxu0 0
      %6238 = vmatmul.mubr.bf16.gmra.mrb[0].mxu0 %v534
      %v6239 = vpop.f32.mrb[0].mxu0
      %v6240 = vadd.f32 %v512, %v6239
      %v6241 = vpop.f32.mrb[0].mxu0
      %v6242 = vadd.f32 %v512, %v6241
      %v6243 = vpop.f32.mrb[0].mxu0
      %v6244 = vadd.f32 %v517, %v6243
      %v6245 = vpop.f32.mrb[0].mxu0
      %v6246 = vadd.f32 %v517, %v6245
      %6247 = vdwg.mxu0
      %v6248 = vtanh.pop %v6071
      %v6249 = vtanh.pop %v6073
      %v6250 = vtanh.pop %v6124
      %v6251 = vtanh.pop %v6126
      %v6252 = vtanh.pop %v6177
      %v6253 = vtanh.pop %v6179
      %v6254 = vtanh.pop %v6230
      %v6255 = vtanh.pop %v6232
      %v6256 = vtanh.pop %v6075
      %v6257 = vtanh.pop %v6077
      %v6258 = vtanh.pop %v6128
      %v6259 = vtanh.pop %v6130
      %v6260 = vtanh.pop %v6181
      %v6261 = vtanh.pop %v6183
      %v6262 = vtanh.pop %v6234
      %v6263 = vtanh.pop %v6236
      %v6264 = vtanh.pop %v6081
      %v6265 = vtanh.pop %v6083
      %v6266 = vtanh.pop %v6134
      %v6267 = vtanh.pop %v6136
      %v6268 = vtanh.pop %v6187
      %v6269 = vtanh.pop %v6189
      %v6270 = vtanh.pop %v6240
      %v6271 = vtanh.pop %v6242
      %v6272 = vtanh.pop %v6085
      %v6273 = vtanh.pop %v6087
      %v6274 = vtanh.pop %v6138
      %v6275 = vtanh.pop %v6140
      %v6276 = vtanh.pop %v6191
      %v6277 = vtanh.pop %v6193
      %v6278 = vtanh.pop %v6244
      %v6279 = vtanh.pop %v6246
      %v6280 = vpack.c.bf16 %v6256, %v6248
      %v6281 = vpack.c.bf16 %v6257, %v6249
      %v6282 = vpack.c.bf16 %v6258, %v6250
      %v6283 = vpack.c.bf16 %v6259, %v6251
      %v6284 = vpack.c.bf16 %v6260, %v6252
      %v6285 = vpack.c.bf16 %v6261, %v6253
      %v6286 = vpack.c.bf16 %v6262, %v6254
      %v6287 = vpack.c.bf16 %v6263, %v6255
      %v6288 = vpack.c.bf16 %v6272, %v6264
      %v6289 = vpack.c.bf16 %v6273, %v6265
      %v6290 = vpack.c.bf16 %v6274, %v6266
      %v6291 = vpack.c.bf16 %v6275, %v6267
      %v6292 = vpack.c.bf16 %v6276, %v6268
      %v6293 = vpack.c.bf16 %v6277, %v6269
      %v6294 = vpack.c.bf16 %v6278, %v6270
      %v6295 = vpack.c.bf16 %v6279, %v6271
      %6296 = vmatprep.subr.bf16.mxu0 %v6281
      %6297 = vmatpush1.bf16.msra.mxu0 %v6280
      %6298 = vmatprep.subr.bf16.mxu0 %v6289
      %6299 = vmatpush1.bf16.msra.mxu0 %v6288
      %6300 = vmatprep.subr.bf16.mxu0 0
      %6301 = vmatpush1.bf16.msra.mxu0 0
      %6302 = vmatprep.subr.bf16.mxu0 0
      %6303 = vmatpush1.bf16.msra.mxu0 0
      %6304 = vmatprep.subr.bf16.mxu0 0
      %6305 = vmatpush1.bf16.msra.mxu0 0
      %6306 = vmatprep.subr.bf16.mxu0 0
      %6307 = vmatpush1.bf16.msra.mxu0 0
      %6308 = vmatprep.subr.bf16.mxu0 0
      %6309 = vmatpush1.bf16.msra.mxu0 0
      %6310 = vmatprep.subr.bf16.mxu0 0
      %6311 = vmatpush1.bf16.msra.mxu0 0
      %6312 = vmatprep.subr.bf16.mxu0 0
      %6313 = vmatpush1.bf16.msra.mxu0 0
      %6314 = vmatprep.subr.bf16.mxu0 0
      %6315 = vmatpush1.bf16.msra.mxu0 0
      %6316 = vmatprep.subr.bf16.mxu0 0
      %6317 = vmatpush1.bf16.msra.mxu0 0
      %6318 = vmatprep.subr.bf16.mxu0 0
      %6319 = vmatpush1.bf16.msra.mxu0 0
      %6320 = vmatprep.subr.bf16.mxu0 0
      %6321 = vmatpush1.bf16.msra.mxu0 0
      %6322 = vmatprep.subr.bf16.mxu0 0
      %6323 = vmatpush1.bf16.msra.mxu0 0
      %6324 = vmatprep.subr.bf16.mxu0 0
      %6325 = vmatpush1.bf16.msra.mxu0 0
      %6326 = vmatprep.subr.bf16.mxu0 0
      %6327 = vmatpush1.bf16.msra.mxu0 0
      %6328 = vmatprep.mubr.bf16.mxu0 0
      %6329 = vmatmul.mubr.bf16.gmra.mrb[0].mxu0 %v827
      %v6330 = vpop.f32.mrb[0].mxu0
      %v6331 = vadd.f32 %v799, %v6330
      %v6332 = vpop.f32.mrb[0].mxu0
      %v6333 = vadd.f32 %v799, %v6332
      %v6334 = vpop.f32.mrb[0].mxu0
      %v6335 = vadd.f32 %v804, %v6334
      %v6336 = vpop.f32.mrb[0].mxu0
      %v6337 = vadd.f32 %v804, %v6336
      %6338 = vmatprep.mubr.bf16.mxu0 0
      %6339 = vmatmul.mubr.bf16.gmra.mrb[0].mxu0 %v830
      %v6340 = vpop.f32.mrb[0].mxu0
      %v6341 = vadd.f32 %v809, %v6340
      %v6342 = vpop.f32.mrb[0].mxu0
      %v6343 = vadd.f32 %v809, %v6342
      %v6344 = vpop.f32.mrb[0].mxu0
      %v6345 = vadd.f32 %v814, %v6344
      %v6346 = vpop.f32.mrb[0].mxu0
      %v6347 = vadd.f32 %v814, %v6346
      %6348 = vdwg.mxu0
      %6349 = vmatprep.subr.bf16.mxu0 %v6283
      %6350 = vmatpush1.bf16.msra.mxu0 %v6282
      %6351 = vmatprep.subr.bf16.mxu0 %v6291
      %6352 = vmatpush1.bf16.msra.mxu0 %v6290
      %6353 = vmatprep.subr.bf16.mxu0 0
      %6354 = vmatpush1.bf16.msra.mxu0 0
      %6355 = vmatprep.subr.bf16.mxu0 0
      %6356 = vmatpush1.bf16.msra.mxu0 0
      %6357 = vmatprep.subr.bf16.mxu0 0
      %6358 = vmatpush1.bf16.msra.mxu0 0
      %6359 = vmatprep.subr.bf16.mxu0 0
      %6360 = vmatpush1.bf16.msra.mxu0 0
      %6361 = vmatprep.subr.bf16.mxu0 0
      %6362 = vmatpush1.bf16.msra.mxu0 0
      %6363 = vmatprep.subr.bf16.mxu0 0
      %6364 = vmatpush1.bf16.msra.mxu0 0
      %6365 = vmatprep.subr.bf16.mxu0 0
      %6366 = vmatpush1.bf16.msra.mxu0 0
      %6367 = vmatprep.subr.bf16.mxu0 0
      %6368 = vmatpush1.bf16.msra.mxu0 0
      %6369 = vmatprep.subr.bf16.mxu0 0
      %6370 = vmatpush1.bf16.msra.mxu0 0
      %6371 = vmatprep.subr.bf16.mxu0 0
      %6372 = vmatpush1.bf16.msra.mxu0 0
      %6373 = vmatprep.subr.bf16.mxu0 0
      %6374 = vmatpush1.bf16.msra.mxu0 0
      %6375 = vmatprep.subr.bf16.mxu0 0
      %6376 = vmatpush1.bf16.msra.mxu0 0
      %6377 = vmatprep.subr.bf16.mxu0 0
      %6378 = vmatpush1.bf16.msra.mxu0 0
      %6379 = vmatprep.subr.bf16.mxu0 0
      %6380 = vmatpush1.bf16.msra.mxu0 0
      %6381 = vmatprep.mubr.bf16.mxu0 0
      %6382 = vmatmul.mubr.bf16.gmra.mrb[0].mxu0 %v827
      %v6383 = vpop.f32.mrb[0].mxu0
      %v6384 = vadd.f32 %v799, %v6383
      %v6385 = vpop.f32.mrb[0].mxu0
      %v6386 = vadd.f32 %v799, %v6385
      %v6387 = vpop.f32.mrb[0].mxu0
      %v6388 = vadd.f32 %v804, %v6387
      %v6389 = vpop.f32.mrb[0].mxu0
      %v6390 = vadd.f32 %v804, %v6389
      %6391 = vmatprep.mubr.bf16.mxu0 0
      %6392 = vmatmul.mubr.bf16.gmra.mrb[0].mxu0 %v830
      %v6393 = vpop.f32.mrb[0].mxu0
      %v6394 = vadd.f32 %v809, %v6393
      %v6395 = vpop.f32.mrb[0].mxu0
      %v6396 = vadd.f32 %v809, %v6395
      %v6397 = vpop.f32.mrb[0].mxu0
      %v6398 = vadd.f32 %v814, %v6397
      %v6399 = vpop.f32.mrb[0].mxu0
      %v6400 = vadd.f32 %v814, %v6399
      %6401 = vdwg.mxu0
      %6402 = vmatprep.subr.bf16.mxu0 %v6285
      %6403 = vmatpush1.bf16.msra.mxu0 %v6284
      %6404 = vmatprep.subr.bf16.mxu0 %v6293
      %6405 = vmatpush1.bf16.msra.mxu0 %v6292
      %6406 = vmatprep.subr.bf16.mxu0 0
      %6407 = vmatpush1.bf16.msra.mxu0 0
      %6408 = vmatprep.subr.bf16.mxu0 0
      %6409 = vmatpush1.bf16.msra.mxu0 0
      %6410 = vmatprep.subr.bf16.mxu0 0
      %6411 = vmatpush1.bf16.msra.mxu0 0
      %6412 = vmatprep.subr.bf16.mxu0 0
      %6413 = vmatpush1.bf16.msra.mxu0 0
      %6414 = vmatprep.subr.bf16.mxu0 0
      %6415 = vmatpush1.bf16.msra.mxu0 0
      %6416 = vmatprep.subr.bf16.mxu0 0
      %6417 = vmatpush1.bf16.msra.mxu0 0
      %6418 = vmatprep.subr.bf16.mxu0 0
      %6419 = vmatpush1.bf16.msra.mxu0 0
      %6420 = vmatprep.subr.bf16.mxu0 0
      %6421 = vmatpush1.bf16.msra.mxu0 0
      %6422 = vmatprep.subr.bf16.mxu0 0
      %6423 = vmatpush1.bf16.msra.mxu0 0
      %6424 = vmatprep.subr.bf16.mxu0 0
      %6425 = vmatpush1.bf16.msra.mxu0 0
      %6426 = vmatprep.subr.bf16.mxu0 0
      %6427 = vmatpush1.bf16.msra.mxu0 0
      %6428 = vmatprep.subr.bf16.mxu0 0
      %6429 = vmatpush1.bf16.msra.mxu0 0
      %6430 = vmatprep.subr.bf16.mxu0 0
      %6431 = vmatpush1.bf16.msra.mxu0 0
      %6432 = vmatprep.subr.bf16.mxu0 0
      %6433 = vmatpush1.bf16.msra.mxu0 0
      %6434 = vmatprep.mubr.bf16.mxu0 0
      %6435 = vmatmul.mubr.bf16.gmra.mrb[0].mxu0 %v827
      %v6436 = vpop.f32.mrb[0].mxu0
      %v6437 = vadd.f32 %v799, %v6436
      %v6438 = vpop.f32.mrb[0].mxu0
      %v6439 = vadd.f32 %v799, %v6438
      %v6440 = vpop.f32.mrb[0].mxu0
      %v6441 = vadd.f32 %v804, %v6440
      %v6442 = vpop.f32.mrb[0].mxu0
      %v6443 = vadd.f32 %v804, %v6442
      %6444 = vmatprep.mubr.bf16.mxu0 0
      %6445 = vmatmul.mubr.bf16.gmra.mrb[0].mxu0 %v830
      %v6446 = vpop.f32.mrb[0].mxu0
      %v6447 = vadd.f32 %v809, %v6446
      %v6448 = vpop.f32.mrb[0].mxu0
      %v6449 = vadd.f32 %v809, %v6448
      %v6450 = vpop.f32.mrb[0].mxu0
      %v6451 = vadd.f32 %v814, %v6450
      %v6452 = vpop.f32.mrb[0].mxu0
      %v6453 = vadd.f32 %v814, %v6452
      %6454 = vdwg.mxu0
      %6455 = vmatprep.subr.bf16.mxu0 %v6287
      %6456 = vmatpush1.bf16.msra.mxu0 %v6286
      %6457 = vmatprep.subr.bf16.mxu0 %v6295
      %6458 = vmatpush1.bf16.msra.mxu0 %v6294
      %6459 = vmatprep.subr.bf16.mxu0 0
      %6460 = vmatpush1.bf16.msra.mxu0 0
      %6461 = vmatprep.subr.bf16.mxu0 0
      %6462 = vmatpush1.bf16.msra.mxu0 0
      %6463 = vmatprep.subr.bf16.mxu0 0
      %6464 = vmatpush1.bf16.msra.mxu0 0
      %6465 = vmatprep.subr.bf16.mxu0 0
      %6466 = vmatpush1.bf16.msra.mxu0 0
      %6467 = vmatprep.subr.bf16.mxu0 0
      %6468 = vmatpush1.bf16.msra.mxu0 0
      %6469 = vmatprep.subr.bf16.mxu0 0
      %6470 = vmatpush1.bf16.msra.mxu0 0
      %6471 = vmatprep.subr.bf16.mxu0 0
      %6472 = vmatpush1.bf16.msra.mxu0 0
      %6473 = vmatprep.subr.bf16.mxu0 0
      %6474 = vmatpush1.bf16.msra.mxu0 0
      %6475 = vmatprep.subr.bf16.mxu0 0
      %6476 = vmatpush1.bf16.msra.mxu0 0
      %6477 = vmatprep.subr.bf16.mxu0 0
      %6478 = vmatpush1.bf16.msra.mxu0 0
      %6479 = vmatprep.subr.bf16.mxu0 0
      %6480 = vmatpush1.bf16.msra.mxu0 0
      %6481 = vmatprep.subr.bf16.mxu0 0
      %6482 = vmatpush1.bf16.msra.mxu0 0
      %6483 = vmatprep.subr.bf16.mxu0 0
      %6484 = vmatpush1.bf16.msra.mxu0 0
      %6485 = vmatprep.subr.bf16.mxu0 0
      %6486 = vmatpush1.bf16.msra.mxu0 0
      %6487 = vmatprep.mubr.bf16.mxu0 0
      %6488 = vmatmul.mubr.bf16.gmra.mrb[0].mxu0 %v827
      %v6489 = vpop.f32.mrb[0].mxu0
      %v6490 = vadd.f32 %v799, %v6489
      %v6491 = vpop.f32.mrb[0].mxu0
      %v6492 = vadd.f32 %v799, %v6491
      %v6493 = vpop.f32.mrb[0].mxu0
      %v6494 = vadd.f32 %v804, %v6493
      %v6495 = vpop.f32.mrb[0].mxu0
      %v6496 = vadd.f32 %v804, %v6495
      %6497 = vmatprep.mubr.bf16.mxu0 0
      %6498 = vmatmul.mubr.bf16.gmra.mrb[0].mxu0 %v830
      %v6499 = vpop.f32.mrb[0].mxu0
      %v6500 = vadd.f32 %v809, %v6499
      %v6501 = vpop.f32.mrb[0].mxu0
      %v6502 = vadd.f32 %v809, %v6501
      %v6503 = vpop.f32.mrb[0].mxu0
      %v6504 = vadd.f32 %v814, %v6503
      %v6505 = vpop.f32.mrb[0].mxu0
      %v6506 = vadd.f32 %v814, %v6505
      %6507 = vdwg.mxu0
      %v6508 = vtanh.pop %v6331
      %v6509 = vtanh.pop %v6333
      %v6510 = vtanh.pop %v6384
      %v6511 = vtanh.pop %v6386
      %v6512 = vtanh.pop %v6437
      %v6513 = vtanh.pop %v6439
      %v6514 = vtanh.pop %v6490
      %v6515 = vtanh.pop %v6492
      %v6516 = vtanh.pop %v6335
      %v6517 = vtanh.pop %v6337
      %v6518 = vtanh.pop %v6388
      %v6519 = vtanh.pop %v6390
      %v6520 = vtanh.pop %v6441
      %v6521 = vtanh.pop %v6443
      %v6522 = vtanh.pop %v6494
      %v6523 = vtanh.pop %v6496
      %v6524 = vtanh.pop %v6341
      %v6525 = vtanh.pop %v6343
      %v6526 = vtanh.pop %v6394
      %v6527 = vtanh.pop %v6396
      %v6528 = vtanh.pop %v6447
      %v6529 = vtanh.pop %v6449
      %v6530 = vtanh.pop %v6500
      %v6531 = vtanh.pop %v6502
      %v6532 = vtanh.pop %v6345
      %v6533 = vtanh.pop %v6347
      %v6534 = vtanh.pop %v6398
      %v6535 = vtanh.pop %v6400
      %v6536 = vtanh.pop %v6451
      %v6537 = vtanh.pop %v6453
      %v6538 = vtanh.pop %v6504
      %v6539 = vtanh.pop %v6506
      %v6540 = vpack.c.bf16 %v6516, %v6508
      %v6541 = vpack.c.bf16 %v6517, %v6509
      %v6542 = vpack.c.bf16 %v6518, %v6510
      %v6543 = vpack.c.bf16 %v6519, %v6511
      %v6544 = vpack.c.bf16 %v6520, %v6512
      %v6545 = vpack.c.bf16 %v6521, %v6513
      %v6546 = vpack.c.bf16 %v6522, %v6514
      %v6547 = vpack.c.bf16 %v6523, %v6515
      %v6548 = vpack.c.bf16 %v6532, %v6524
      %v6549 = vpack.c.bf16 %v6533, %v6525
      %v6550 = vpack.c.bf16 %v6534, %v6526
      %v6551 = vpack.c.bf16 %v6535, %v6527
      %v6552 = vpack.c.bf16 %v6536, %v6528
      %v6553 = vpack.c.bf16 %v6537, %v6529
      %v6554 = vpack.c.bf16 %v6538, %v6530
      %v6555 = vpack.c.bf16 %v6539, %v6531
      %6556 = vmatprep.subr.bf16.mxu0 %v6541
      %6557 = vmatpush1.bf16.msra.mxu0 %v6540
      %6558 = vmatprep.subr.bf16.mxu0 %v6549
      %6559 = vmatpush1.bf16.msra.mxu0 %v6548
      %6560 = vmatprep.subr.bf16.mxu0 0
      %6561 = vmatpush1.bf16.msra.mxu0 0
      %6562 = vmatprep.subr.bf16.mxu0 0
      %6563 = vmatpush1.bf16.msra.mxu0 0
      %6564 = vmatprep.subr.bf16.mxu0 0
      %6565 = vmatpush1.bf16.msra.mxu0 0
      %6566 = vmatprep.subr.bf16.mxu0 0
      %6567 = vmatpush1.bf16.msra.mxu0 0
      %6568 = vmatprep.subr.bf16.mxu0 0
      %6569 = vmatpush1.bf16.msra.mxu0 0
      %6570 = vmatprep.subr.bf16.mxu0 0
      %6571 = vmatpush1.bf16.msra.mxu0 0
      %6572 = vmatprep.subr.bf16.mxu0 0
      %6573 = vmatpush1.bf16.msra.mxu0 0
      %6574 = vmatprep.subr.bf16.mxu0 0
      %6575 = vmatpush1.bf16.msra.mxu0 0
      %6576 = vmatprep.subr.bf16.mxu0 0
      %6577 = vmatpush1.bf16.msra.mxu0 0
      %6578 = vmatprep.subr.bf16.mxu0 0
      %6579 = vmatpush1.bf16.msra.mxu0 0
      %6580 = vmatprep.subr.bf16.mxu0 0
      %6581 = vmatpush1.bf16.msra.mxu0 0
      %6582 = vmatprep.subr.bf16.mxu0 0
      %6583 = vmatpush1.bf16.msra.mxu0 0
      %6584 = vmatprep.subr.bf16.mxu0 0
      %6585 = vmatpush1.bf16.msra.mxu0 0
      %6586 = vmatprep.subr.bf16.mxu0 0
      %6587 = vmatpush1.bf16.msra.mxu0 0
      %6588 = vmatprep.mubr.bf16.mxu0 0
      %6589 = vmatmul.mubr.bf16.gmra.mrb[0].mxu0 %v1123
      %v6590 = vpop.f32.mrb[0].mxu0
      %v6591 = vadd.f32 %v1095, %v6590
      %v6592 = vpop.f32.mrb[0].mxu0
      %v6593 = vadd.f32 %v1095, %v6592
      %v6594 = vpop.f32.mrb[0].mxu0
      %v6595 = vadd.f32 %v1100, %v6594
      %v6596 = vpop.f32.mrb[0].mxu0
      %v6597 = vadd.f32 %v1100, %v6596
      %6598 = vmatprep.mubr.bf16.mxu0 0
      %6599 = vmatmul.mubr.bf16.gmra.mrb[0].mxu0 %v1126
      %v6600 = vpop.f32.mrb[0].mxu0
      %v6601 = vadd.f32 %v1105, %v6600
      %v6602 = vpop.f32.mrb[0].mxu0
      %v6603 = vadd.f32 %v1105, %v6602
      %v6604 = vpop.f32.mrb[0].mxu0
      %v6605 = vadd.f32 %v1110, %v6604
      %v6606 = vpop.f32.mrb[0].mxu0
      %v6607 = vadd.f32 %v1110, %v6606
      %6608 = vdwg.mxu0
      %6609 = vmatprep.subr.bf16.mxu0 %v6543
      %6610 = vmatpush1.bf16.msra.mxu0 %v6542
      %6611 = vmatprep.subr.bf16.mxu0 %v6551
      %6612 = vmatpush1.bf16.msra.mxu0 %v6550
      %6613 = vmatprep.subr.bf16.mxu0 0
      %6614 = vmatpush1.bf16.msra.mxu0 0
      %6615 = vmatprep.subr.bf16.mxu0 0
      %6616 = vmatpush1.bf16.msra.mxu0 0
      %6617 = vmatprep.subr.bf16.mxu0 0
      %6618 = vmatpush1.bf16.msra.mxu0 0
      %6619 = vmatprep.subr.bf16.mxu0 0
      %6620 = vmatpush1.bf16.msra.mxu0 0
      %6621 = vmatprep.subr.bf16.mxu0 0
      %6622 = vmatpush1.bf16.msra.mxu0 0
      %6623 = vmatprep.subr.bf16.mxu0 0
      %6624 = vmatpush1.bf16.msra.mxu0 0
      %6625 = vmatprep.subr.bf16.mxu0 0
      %6626 = vmatpush1.bf16.msra.mxu0 0
      %6627 = vmatprep.subr.bf16.mxu0 0
      %6628 = vmatpush1.bf16.msra.mxu0 0
      %6629 = vmatprep.subr.bf16.mxu0 0
      %6630 = vmatpush1.bf16.msra.mxu0 0
      %6631 = vmatprep.subr.bf16.mxu0 0
      %6632 = vmatpush1.bf16.msra.mxu0 0
      %6633 = vmatprep.subr.bf16.mxu0 0
      %6634 = vmatpush1.bf16.msra.mxu0 0
      %6635 = vmatprep.subr.bf16.mxu0 0
      %6636 = vmatpush1.bf16.msra.mxu0 0
      %6637 = vmatprep.subr.bf16.mxu0 0
      %6638 = vmatpush1.bf16.msra.mxu0 0
      %6639 = vmatprep.subr.bf16.mxu0 0
      %6640 = vmatpush1.bf16.msra.mxu0 0
      %6641 = vmatprep.mubr.bf16.mxu0 0
      %6642 = vmatmul.mubr.bf16.gmra.mrb[0].mxu0 %v1123
      %v6643 = vpop.f32.mrb[0].mxu0
      %v6644 = vadd.f32 %v1095, %v6643
      %v6645 = vpop.f32.mrb[0].mxu0
      %v6646 = vadd.f32 %v1095, %v6645
      %v6647 = vpop.f32.mrb[0].mxu0
      %v6648 = vadd.f32 %v1100, %v6647
      %v6649 = vpop.f32.mrb[0].mxu0
      %v6650 = vadd.f32 %v1100, %v6649
      %6651 = vmatprep.mubr.bf16.mxu0 0
      %6652 = vmatmul.mubr.bf16.gmra.mrb[0].mxu0 %v1126
      %v6653 = vpop.f32.mrb[0].mxu0
      %v6654 = vadd.f32 %v1105, %v6653
      %v6655 = vpop.f32.mrb[0].mxu0
      %v6656 = vadd.f32 %v1105, %v6655
      %v6657 = vpop.f32.mrb[0].mxu0
      %v6658 = vadd.f32 %v1110, %v6657
      %v6659 = vpop.f32.mrb[0].mxu0
      %v6660 = vadd.f32 %v1110, %v6659
      %6661 = vdwg.mxu0
      %6662 = vmatprep.subr.bf16.mxu0 %v6545
      %6663 = vmatpush1.bf16.msra.mxu0 %v6544
      %6664 = vmatprep.subr.bf16.mxu0 %v6553
      %6665 = vmatpush1.bf16.msra.mxu0 %v6552
      %6666 = vmatprep.subr.bf16.mxu0 0
      %6667 = vmatpush1.bf16.msra.mxu0 0
      %6668 = vmatprep.subr.bf16.mxu0 0
      %6669 = vmatpush1.bf16.msra.mxu0 0
      %6670 = vmatprep.subr.bf16.mxu0 0
      %6671 = vmatpush1.bf16.msra.mxu0 0
      %6672 = vmatprep.subr.bf16.mxu0 0
      %6673 = vmatpush1.bf16.msra.mxu0 0
      %6674 = vmatprep.subr.bf16.mxu0 0
      %6675 = vmatpush1.bf16.msra.mxu0 0
      %6676 = vmatprep.subr.bf16.mxu0 0
      %6677 = vmatpush1.bf16.msra.mxu0 0
      %6678 = vmatprep.subr.bf16.mxu0 0
      %6679 = vmatpush1.bf16.msra.mxu0 0
      %6680 = vmatprep.subr.bf16.mxu0 0
      %6681 = vmatpush1.bf16.msra.mxu0 0
      %6682 = vmatprep.subr.bf16.mxu0 0
      %6683 = vmatpush1.bf16.msra.mxu0 0
      %6684 = vmatprep.subr.bf16.mxu0 0
      %6685 = vmatpush1.bf16.msra.mxu0 0
      %6686 = vmatprep.subr.bf16.mxu0 0
      %6687 = vmatpush1.bf16.msra.mxu0 0
      %6688 = vmatprep.subr.bf16.mxu0 0
      %6689 = vmatpush1.bf16.msra.mxu0 0
      %6690 = vmatprep.subr.bf16.mxu0 0
      %6691 = vmatpush1.bf16.msra.mxu0 0
      %6692 = vmatprep.subr.bf16.mxu0 0
      %6693 = vmatpush1.bf16.msra.mxu0 0
      %6694 = vmatprep.mubr.bf16.mxu0 0
      %6695 = vmatmul.mubr.bf16.gmra.mrb[0].mxu0 %v1123
      %v6696 = vpop.f32.mrb[0].mxu0
      %v6697 = vadd.f32 %v1095, %v6696
      %v6698 = vpop.f32.mrb[0].mxu0
      %v6699 = vadd.f32 %v1095, %v6698
      %v6700 = vpop.f32.mrb[0].mxu0
      %v6701 = vadd.f32 %v1100, %v6700
      %v6702 = vpop.f32.mrb[0].mxu0
      %v6703 = vadd.f32 %v1100, %v6702
      %6704 = vmatprep.mubr.bf16.mxu0 0
      %6705 = vmatmul.mubr.bf16.gmra.mrb[0].mxu0 %v1126
      %v6706 = vpop.f32.mrb[0].mxu0
      %v6707 = vadd.f32 %v1105, %v6706
      %v6708 = vpop.f32.mrb[0].mxu0
      %v6709 = vadd.f32 %v1105, %v6708
      %v6710 = vpop.f32.mrb[0].mxu0
      %v6711 = vadd.f32 %v1110, %v6710
      %v6712 = vpop.f32.mrb[0].mxu0
      %v6713 = vadd.f32 %v1110, %v6712
      %6714 = vdwg.mxu0
      %6715 = vmatprep.subr.bf16.mxu0 %v6547
      %6716 = vmatpush1.bf16.msra.mxu0 %v6546
      %6717 = vmatprep.subr.bf16.mxu0 %v6555
      %6718 = vmatpush1.bf16.msra.mxu0 %v6554
      %6719 = vmatprep.subr.bf16.mxu0 0
      %6720 = vmatpush1.bf16.msra.mxu0 0
      %6721 = vmatprep.subr.bf16.mxu0 0
      %6722 = vmatpush1.bf16.msra.mxu0 0
      %6723 = vmatprep.subr.bf16.mxu0 0
      %6724 = vmatpush1.bf16.msra.mxu0 0
      %6725 = vmatprep.subr.bf16.mxu0 0
      %6726 = vmatpush1.bf16.msra.mxu0 0
      %6727 = vmatprep.subr.bf16.mxu0 0
      %6728 = vmatpush1.bf16.msra.mxu0 0
      %6729 = vmatprep.subr.bf16.mxu0 0
      %6730 = vmatpush1.bf16.msra.mxu0 0
      %6731 = vmatprep.subr.bf16.mxu0 0
      %6732 = vmatpush1.bf16.msra.mxu0 0
      %6733 = vmatprep.subr.bf16.mxu0 0
      %6734 = vmatpush1.bf16.msra.mxu0 0
      %6735 = vmatprep.subr.bf16.mxu0 0
      %6736 = vmatpush1.bf16.msra.mxu0 0
      %6737 = vmatprep.subr.bf16.mxu0 0
      %6738 = vmatpush1.bf16.msra.mxu0 0
      %6739 = vmatprep.subr.bf16.mxu0 0
      %6740 = vmatpush1.bf16.msra.mxu0 0
      %6741 = vmatprep.subr.bf16.mxu0 0
      %6742 = vmatpush1.bf16.msra.mxu0 0
      %6743 = vmatprep.subr.bf16.mxu0 0
      %6744 = vmatpush1.bf16.msra.mxu0 0
      %6745 = vmatprep.subr.bf16.mxu0 0
      %6746 = vmatpush1.bf16.msra.mxu0 0
      %6747 = vmatprep.mubr.bf16.mxu0 0
      %6748 = vmatmul.mubr.bf16.gmra.mrb[0].mxu0 %v1123
      %v6749 = vpop.f32.mrb[0].mxu0
      %v6750 = vadd.f32 %v1095, %v6749
      %v6751 = vpop.f32.mrb[0].mxu0
      %v6752 = vadd.f32 %v1095, %v6751
      %v6753 = vpop.f32.mrb[0].mxu0
      %v6754 = vadd.f32 %v1100, %v6753
      %v6755 = vpop.f32.mrb[0].mxu0
      %v6756 = vadd.f32 %v1100, %v6755
      %6757 = vmatprep.mubr.bf16.mxu0 0
      %6758 = vmatmul.mubr.bf16.gmra.mrb[0].mxu0 %v1126
      %v6759 = vpop.f32.mrb[0].mxu0
      %v6760 = vadd.f32 %v1105, %v6759
      %v6761 = vpop.f32.mrb[0].mxu0
      %v6762 = vadd.f32 %v1105, %v6761
      %v6763 = vpop.f32.mrb[0].mxu0
      %v6764 = vadd.f32 %v1110, %v6763
      %v6765 = vpop.f32.mrb[0].mxu0
      %v6766 = vadd.f32 %v1110, %v6765
      %6767 = vdwg.mxu0
      %v6768 = vtanh.pop %v6591
      %v6769 = vtanh.pop %v6593
      %v6770 = vtanh.pop %v6644
      %v6771 = vtanh.pop %v6646
      %v6772 = vtanh.pop %v6697
      %v6773 = vtanh.pop %v6699
      %v6774 = vtanh.pop %v6750
      %v6775 = vtanh.pop %v6752
      %v6776 = vtanh.pop %v6595
      %v6777 = vtanh.pop %v6597
      %v6778 = vtanh.pop %v6648
      %v6779 = vtanh.pop %v6650
      %v6780 = vtanh.pop %v6701
      %v6781 = vtanh.pop %v6703
      %v6782 = vtanh.pop %v6754
      %v6783 = vtanh.pop %v6756
      %v6784 = vtanh.pop %v6601
      %v6785 = vtanh.pop %v6603
      %v6786 = vtanh.pop %v6654
      %v6787 = vtanh.pop %v6656
      %v6788 = vtanh.pop %v6707
      %v6789 = vtanh.pop %v6709
      %v6790 = vtanh.pop %v6760
      %v6791 = vtanh.pop %v6762
      %v6792 = vtanh.pop %v6605
      %v6793 = vtanh.pop %v6607
      %v6794 = vtanh.pop %v6658
      %v6795 = vtanh.pop %v6660
      %v6796 = vtanh.pop %v6711
      %v6797 = vtanh.pop %v6713
      %v6798 = vtanh.pop %v6764
      %v6799 = vtanh.pop %v6766
      %v6800 = vpack.c.bf16 %v6776, %v6768
      %v6801 = vpack.c.bf16 %v6777, %v6769
      %v6802 = vpack.c.bf16 %v6778, %v6770
      %v6803 = vpack.c.bf16 %v6779, %v6771
      %v6804 = vpack.c.bf16 %v6780, %v6772
      %v6805 = vpack.c.bf16 %v6781, %v6773
      %v6806 = vpack.c.bf16 %v6782, %v6774
      %v6807 = vpack.c.bf16 %v6783, %v6775
      %v6808 = vpack.c.bf16 %v6792, %v6784
      %v6809 = vpack.c.bf16 %v6793, %v6785
      %v6810 = vpack.c.bf16 %v6794, %v6786
      %v6811 = vpack.c.bf16 %v6795, %v6787
      %v6812 = vpack.c.bf16 %v6796, %v6788
      %v6813 = vpack.c.bf16 %v6797, %v6789
      %v6814 = vpack.c.bf16 %v6798, %v6790
      %v6815 = vpack.c.bf16 %v6799, %v6791
      %6816 = vmatprep.subr.bf16.mxu0 %v6801
      %6817 = vmatpush1.bf16.msra.mxu0 %v6800
      %6818 = vmatprep.subr.bf16.mxu0 %v6809
      %6819 = vmatpush1.bf16.msra.mxu0 %v6808
      %6820 = vmatprep.subr.bf16.mxu0 0
      %6821 = vmatpush1.bf16.msra.mxu0 0
      %6822 = vmatprep.subr.bf16.mxu0 0
      %6823 = vmatpush1.bf16.msra.mxu0 0
      %6824 = vmatprep.subr.bf16.mxu0 0
      %6825 = vmatpush1.bf16.msra.mxu0 0
      %6826 = vmatprep.subr.bf16.mxu0 0
      %6827 = vmatpush1.bf16.msra.mxu0 0
      %6828 = vmatprep.subr.bf16.mxu0 0
      %6829 = vmatpush1.bf16.msra.mxu0 0
      %6830 = vmatprep.subr.bf16.mxu0 0
      %6831 = vmatpush1.bf16.msra.mxu0 0
      %6832 = vmatprep.subr.bf16.mxu0 0
      %6833 = vmatpush1.bf16.msra.mxu0 0
      %6834 = vmatprep.subr.bf16.mxu0 0
      %6835 = vmatpush1.bf16.msra.mxu0 0
      %6836 = vmatprep.subr.bf16.mxu0 0
      %6837 = vmatpush1.bf16.msra.mxu0 0
      %6838 = vmatprep.subr.bf16.mxu0 0
      %6839 = vmatpush1.bf16.msra.mxu0 0
      %6840 = vmatprep.subr.bf16.mxu0 0
      %6841 = vmatpush1.bf16.msra.mxu0 0
      %6842 = vmatprep.subr.bf16.mxu0 0
      %6843 = vmatpush1.bf16.msra.mxu0 0
      %6844 = vmatprep.subr.bf16.mxu0 0
      %6845 = vmatpush1.bf16.msra.mxu0 0
      %6846 = vmatprep.subr.bf16.mxu0 0
      %6847 = vmatpush1.bf16.msra.mxu0 0
      %6848 = vmatprep.mubr.bf16.mxu0 0
      %6849 = vmatmul.mubr.bf16.gmra.mrb[0].mxu0 %v1419
      %v6850 = vpop.f32.mrb[0].mxu0
      %v6851 = vadd.f32 %v1391, %v6850
      %v6852 = vpop.f32.mrb[0].mxu0
      %v6853 = vadd.f32 %v1391, %v6852
      %v6854 = vpop.f32.mrb[0].mxu0
      %v6855 = vadd.f32 %v1396, %v6854
      %v6856 = vpop.f32.mrb[0].mxu0
      %v6857 = vadd.f32 %v1396, %v6856
      %6858 = vmatprep.mubr.bf16.mxu0 0
      %6859 = vmatmul.mubr.bf16.gmra.mrb[0].mxu0 %v1422
      %v6860 = vpop.f32.mrb[0].mxu0
      %v6861 = vadd.f32 %v1401, %v6860
      %v6862 = vpop.f32.mrb[0].mxu0
      %v6863 = vadd.f32 %v1401, %v6862
      %v6864 = vpop.f32.mrb[0].mxu0
      %v6865 = vadd.f32 %v1406, %v6864
      %v6866 = vpop.f32.mrb[0].mxu0
      %v6867 = vadd.f32 %v1406, %v6866
      %6868 = vdwg.mxu0
      %6869 = vmatprep.subr.bf16.mxu0 %v6803
      %6870 = vmatpush1.bf16.msra.mxu0 %v6802
      %6871 = vmatprep.subr.bf16.mxu0 %v6811
      %6872 = vmatpush1.bf16.msra.mxu0 %v6810
      %6873 = vmatprep.subr.bf16.mxu0 0
      %6874 = vmatpush1.bf16.msra.mxu0 0
      %6875 = vmatprep.subr.bf16.mxu0 0
      %6876 = vmatpush1.bf16.msra.mxu0 0
      %6877 = vmatprep.subr.bf16.mxu0 0
      %6878 = vmatpush1.bf16.msra.mxu0 0
      %6879 = vmatprep.subr.bf16.mxu0 0
      %6880 = vmatpush1.bf16.msra.mxu0 0
      %6881 = vmatprep.subr.bf16.mxu0 0
      %6882 = vmatpush1.bf16.msra.mxu0 0
      %6883 = vmatprep.subr.bf16.mxu0 0
      %6884 = vmatpush1.bf16.msra.mxu0 0
      %6885 = vmatprep.subr.bf16.mxu0 0
      %6886 = vmatpush1.bf16.msra.mxu0 0
      %6887 = vmatprep.subr.bf16.mxu0 0
      %6888 = vmatpush1.bf16.msra.mxu0 0
      %6889 = vmatprep.subr.bf16.mxu0 0
      %6890 = vmatpush1.bf16.msra.mxu0 0
      %6891 = vmatprep.subr.bf16.mxu0 0
      %6892 = vmatpush1.bf16.msra.mxu0 0
      %6893 = vmatprep.subr.bf16.mxu0 0
      %6894 = vmatpush1.bf16.msra.mxu0 0
      %6895 = vmatprep.subr.bf16.mxu0 0
      %6896 = vmatpush1.bf16.msra.mxu0 0
      %6897 = vmatprep.subr.bf16.mxu0 0
      %6898 = vmatpush1.bf16.msra.mxu0 0
      %6899 = vmatprep.subr.bf16.mxu0 0
      %6900 = vmatpush1.bf16.msra.mxu0 0
      %6901 = vmatprep.mubr.bf16.mxu0 0
      %6902 = vmatmul.mubr.bf16.gmra.mrb[0].mxu0 %v1419
      %v6903 = vpop.f32.mrb[0].mxu0
      %v6904 = vadd.f32 %v1391, %v6903
      %v6905 = vpop.f32.mrb[0].mxu0
      %v6906 = vadd.f32 %v1391, %v6905
      %v6907 = vpop.f32.mrb[0].mxu0
      %v6908 = vadd.f32 %v1396, %v6907
      %v6909 = vpop.f32.mrb[0].mxu0
      %v6910 = vadd.f32 %v1396, %v6909
      %6911 = vmatprep.mubr.bf16.mxu0 0
      %6912 = vmatmul.mubr.bf16.gmra.mrb[0].mxu0 %v1422
      %v6913 = vpop.f32.mrb[0].mxu0
      %v6914 = vadd.f32 %v1401, %v6913
      %v6915 = vpop.f32.mrb[0].mxu0
      %v6916 = vadd.f32 %v1401, %v6915
      %v6917 = vpop.f32.mrb[0].mxu0
      %v6918 = vadd.f32 %v1406, %v6917
      %v6919 = vpop.f32.mrb[0].mxu0
      %v6920 = vadd.f32 %v1406, %v6919
      %6921 = vdwg.mxu0
      %6922 = vmatprep.subr.bf16.mxu0 %v6805
      %6923 = vmatpush1.bf16.msra.mxu0 %v6804
      %6924 = vmatprep.subr.bf16.mxu0 %v6813
      %6925 = vmatpush1.bf16.msra.mxu0 %v6812
      %6926 = vmatprep.subr.bf16.mxu0 0
      %6927 = vmatpush1.bf16.msra.mxu0 0
      %6928 = vmatprep.subr.bf16.mxu0 0
      %6929 = vmatpush1.bf16.msra.mxu0 0
      %6930 = vmatprep.subr.bf16.mxu0 0
      %6931 = vmatpush1.bf16.msra.mxu0 0
      %6932 = vmatprep.subr.bf16.mxu0 0
      %6933 = vmatpush1.bf16.msra.mxu0 0
      %6934 = vmatprep.subr.bf16.mxu0 0
      %6935 = vmatpush1.bf16.msra.mxu0 0
      %6936 = vmatprep.subr.bf16.mxu0 0
      %6937 = vmatpush1.bf16.msra.mxu0 0
      %6938 = vmatprep.subr.bf16.mxu0 0
      %6939 = vmatpush1.bf16.msra.mxu0 0
      %6940 = vmatprep.subr.bf16.mxu0 0
      %6941 = vmatpush1.bf16.msra.mxu0 0
      %6942 = vmatprep.subr.bf16.mxu0 0
      %6943 = vmatpush1.bf16.msra.mxu0 0
      %6944 = vmatprep.subr.bf16.mxu0 0
      %6945 = vmatpush1.bf16.msra.mxu0 0
      %6946 = vmatprep.subr.bf16.mxu0 0
      %6947 = vmatpush1.bf16.msra.mxu0 0
      %6948 = vmatprep.subr.bf16.mxu0 0
      %6949 = vmatpush1.bf16.msra.mxu0 0
      %6950 = vmatprep.subr.bf16.mxu0 0
      %6951 = vmatpush1.bf16.msra.mxu0 0
      %6952 = vmatprep.subr.bf16.mxu0 0
      %6953 = vmatpush1.bf16.msra.mxu0 0
      %6954 = vmatprep.mubr.bf16.mxu0 0
      %6955 = vmatmul.mubr.bf16.gmra.mrb[0].mxu0 %v1419
      %v6956 = vpop.f32.mrb[0].mxu0
      %v6957 = vadd.f32 %v1391, %v6956
      %v6958 = vpop.f32.mrb[0].mxu0
      %v6959 = vadd.f32 %v1391, %v6958
      %v6960 = vpop.f32.mrb[0].mxu0
      %v6961 = vadd.f32 %v1396, %v6960
      %v6962 = vpop.f32.mrb[0].mxu0
      %v6963 = vadd.f32 %v1396, %v6962
      %6964 = vmatprep.mubr.bf16.mxu0 0
      %6965 = vmatmul.mubr.bf16.gmra.mrb[0].mxu0 %v1422
      %v6966 = vpop.f32.mrb[0].mxu0
      %v6967 = vadd.f32 %v1401, %v6966
      %v6968 = vpop.f32.mrb[0].mxu0
      %v6969 = vadd.f32 %v1401, %v6968
      %v6970 = vpop.f32.mrb[0].mxu0
      %v6971 = vadd.f32 %v1406, %v6970
      %v6972 = vpop.f32.mrb[0].mxu0
      %v6973 = vadd.f32 %v1406, %v6972
      %6974 = vdwg.mxu0
      %6975 = vmatprep.subr.bf16.mxu0 %v6807
      %6976 = vmatpush1.bf16.msra.mxu0 %v6806
      %6977 = vmatprep.subr.bf16.mxu0 %v6815
      %6978 = vmatpush1.bf16.msra.mxu0 %v6814
      %6979 = vmatprep.subr.bf16.mxu0 0
      %6980 = vmatpush1.bf16.msra.mxu0 0
      %6981 = vmatprep.subr.bf16.mxu0 0
      %6982 = vmatpush1.bf16.msra.mxu0 0
      %6983 = vmatprep.subr.bf16.mxu0 0
      %6984 = vmatpush1.bf16.msra.mxu0 0
      %6985 = vmatprep.subr.bf16.mxu0 0
      %6986 = vmatpush1.bf16.msra.mxu0 0
      %6987 = vmatprep.subr.bf16.mxu0 0
      %6988 = vmatpush1.bf16.msra.mxu0 0
      %6989 = vmatprep.subr.bf16.mxu0 0
      %6990 = vmatpush1.bf16.msra.mxu0 0
      %6991 = vmatprep.subr.bf16.mxu0 0
      %6992 = vmatpush1.bf16.msra.mxu0 0
      %6993 = vmatprep.subr.bf16.mxu0 0
      %6994 = vmatpush1.bf16.msra.mxu0 0
      %6995 = vmatprep.subr.bf16.mxu0 0
      %6996 = vmatpush1.bf16.msra.mxu0 0
      %6997 = vmatprep.subr.bf16.mxu0 0
      %6998 = vmatpush1.bf16.msra.mxu0 0
      %6999 = vmatprep.subr.bf16.mxu0 0
      %7000 = vmatpush1.bf16.msra.mxu0 0
      %7001 = vmatprep.subr.bf16.mxu0 0
      %7002 = vmatpush1.bf16.msra.mxu0 0
      %7003 = vmatprep.subr.bf16.mxu0 0
      %7004 = vmatpush1.bf16.msra.mxu0 0
      %7005 = vmatprep.subr.bf16.mxu0 0
      %7006 = vmatpush1.bf16.msra.mxu0 0
      %7007 = vmatprep.mubr.bf16.mxu0 0
      %7008 = vmatmul.mubr.bf16.gmra.mrb[0].mxu0 %v1419
      %v7009 = vpop.f32.mrb[0].mxu0
      %v7010 = vadd.f32 %v1391, %v7009
      %v7011 = vpop.f32.mrb[0].mxu0
      %v7012 = vadd.f32 %v1391, %v7011
      %v7013 = vpop.f32.mrb[0].mxu0
      %v7014 = vadd.f32 %v1396, %v7013
      %v7015 = vpop.f32.mrb[0].mxu0
      %v7016 = vadd.f32 %v1396, %v7015
      %7017 = vmatprep.mubr.bf16.mxu0 0
      %7018 = vmatmul.mubr.bf16.gmra.mrb[0].mxu0 %v1422
      %v7019 = vpop.f32.mrb[0].mxu0
      %v7020 = vadd.f32 %v1401, %v7019
      %v7021 = vpop.f32.mrb[0].mxu0
      %v7022 = vadd.f32 %v1401, %v7021
      %v7023 = vpop.f32.mrb[0].mxu0
      %v7024 = vadd.f32 %v1406, %v7023
      %v7025 = vpop.f32.mrb[0].mxu0
      %v7026 = vadd.f32 %v1406, %v7025
      %7027 = vdwg.mxu0
      %v7028 = vtanh.pop %v6851
      %v7029 = vtanh.pop %v6853
      %v7030 = vtanh.pop %v6904
      %v7031 = vtanh.pop %v6906
      %v7032 = vtanh.pop %v6957
      %v7033 = vtanh.pop %v6959
      %v7034 = vtanh.pop %v7010
      %v7035 = vtanh.pop %v7012
      %v7036 = vtanh.pop %v6855
      %v7037 = vtanh.pop %v6857
      %v7038 = vtanh.pop %v6908
      %v7039 = vtanh.pop %v6910
      %v7040 = vtanh.pop %v6961
      %v7041 = vtanh.pop %v6963
      %v7042 = vtanh.pop %v7014
      %v7043 = vtanh.pop %v7016
      %v7044 = vtanh.pop %v6861
      %v7045 = vtanh.pop %v6863
      %v7046 = vtanh.pop %v6914
      %v7047 = vtanh.pop %v6916
      %v7048 = vtanh.pop %v6967
      %v7049 = vtanh.pop %v6969
      %v7050 = vtanh.pop %v7020
      %v7051 = vtanh.pop %v7022
      %v7052 = vtanh.pop %v6865
      %v7053 = vtanh.pop %v6867
      %v7054 = vtanh.pop %v6918
      %v7055 = vtanh.pop %v6920
      %v7056 = vtanh.pop %v6971
      %v7057 = vtanh.pop %v6973
      %v7058 = vtanh.pop %v7024
      %v7059 = vtanh.pop %v7026
      %v7060 = vmul.f32 %v1671, %v7028
      %v7061 = vmul.f32 %v1671, %v7029
      %v7062 = vmul.f32 %v1671, %v7030
      %v7063 = vmul.f32 %v1671, %v7031
      %v7064 = vmul.f32 %v1671, %v7032
      %v7065 = vmul.f32 %v1671, %v7033
      %v7066 = vmul.f32 %v1671, %v7034
      %v7067 = vmul.f32 %v1671, %v7035
      %v7068 = vmul.f32 %v1676, %v7036
      %v7069 = vmul.f32 %v1676, %v7037
      %v7070 = vmul.f32 %v1676, %v7038
      %v7071 = vmul.f32 %v1676, %v7039
      %v7072 = vmul.f32 %v1676, %v7040
      %v7073 = vmul.f32 %v1676, %v7041
      %v7074 = vmul.f32 %v1676, %v7042
      %v7075 = vmul.f32 %v1676, %v7043
      %v7076 = vmul.f32 %v1681, %v7044
      %v7077 = vmul.f32 %v1681, %v7045
      %v7078 = vmul.f32 %v1681, %v7046
      %v7079 = vmul.f32 %v1681, %v7047
      %v7080 = vmul.f32 %v1681, %v7048
      %v7081 = vmul.f32 %v1681, %v7049
      %v7082 = vmul.f32 %v1681, %v7050
      %v7083 = vmul.f32 %v1681, %v7051
      %v7084 = vmul.f32 %v1686, %v7052
      %v7085 = vmul.f32 %v1686, %v7053
      %v7086 = vmul.f32 %v1686, %v7054
      %v7087 = vmul.f32 %v1686, %v7055
      %v7088 = vmul.f32 %v1686, %v7056
      %v7089 = vmul.f32 %v1686, %v7057
      %v7090 = vmul.f32 %v1686, %v7058
      %v7091 = vmul.f32 %v1686, %v7059
      %v7092 = vadd.f32 %v7060, %v7068
      %v7093 = vadd.f32 %v7092, %v7076
      %v7094 = vadd.f32 %v7093, %v7084
      %v7095 = vrot.slane %v7094, 4
      %v7096 = vadd.f32 %v7094, %v7095
      %v7097 = vrot.slane %v7096, 2
      %v7098 = vadd.f32 %v7096, %v7097
      %v7099 = vrot.slane %v7098, 1
      %v7100 = vadd.f32 %v7098, %v7099
      %v7101 = vadd.f32 %v7061, %v7069
      %v7102 = vadd.f32 %v7101, %v7077
      %v7103 = vadd.f32 %v7102, %v7085
      %v7104 = vrot.slane %v7103, 4
      %v7105 = vadd.f32 %v7103, %v7104
      %v7106 = vrot.slane %v7105, 2
      %v7107 = vadd.f32 %v7105, %v7106
      %v7108 = vrot.slane %v7107, 1
      %v7109 = vadd.f32 %v7107, %v7108
      %v7110 = vadd.f32 %v7062, %v7070
      %v7111 = vadd.f32 %v7110, %v7078
      %v7112 = vadd.f32 %v7111, %v7086
      %v7113 = vrot.slane %v7112, 4
      %v7114 = vadd.f32 %v7112, %v7113
      %v7115 = vrot.slane %v7114, 2
      %v7116 = vadd.f32 %v7114, %v7115
      %v7117 = vrot.slane %v7116, 1
      %v7118 = vadd.f32 %v7116, %v7117
      %v7119 = vadd.f32 %v7063, %v7071
      %v7120 = vadd.f32 %v7119, %v7079
      %v7121 = vadd.f32 %v7120, %v7087
      %v7122 = vrot.slane %v7121, 4
      %v7123 = vadd.f32 %v7121, %v7122
      %v7124 = vrot.slane %v7123, 2
      %v7125 = vadd.f32 %v7123, %v7124
      %v7126 = vrot.slane %v7125, 1
      %v7127 = vadd.f32 %v7125, %v7126
      %v7128 = vadd.f32 %v7064, %v7072
      %v7129 = vadd.f32 %v7128, %v7080
      %v7130 = vadd.f32 %v7129, %v7088
      %v7131 = vrot.slane %v7130, 4
      %v7132 = vadd.f32 %v7130, %v7131
      %v7133 = vrot.slane %v7132, 2
      %v7134 = vadd.f32 %v7132, %v7133
      %v7135 = vrot.slane %v7134, 1
      %v7136 = vadd.f32 %v7134, %v7135
      %v7137 = vadd.f32 %v7065, %v7073
      %v7138 = vadd.f32 %v7137, %v7081
      %v7139 = vadd.f32 %v7138, %v7089
      %v7140 = vrot.slane %v7139, 4
      %v7141 = vadd.f32 %v7139, %v7140
      %v7142 = vrot.slane %v7141, 2
      %v7143 = vadd.f32 %v7141, %v7142
      %v7144 = vrot.slane %v7143, 1
      %v7145 = vadd.f32 %v7143, %v7144
      %v7146 = vadd.f32 %v7066, %v7074
      %v7147 = vadd.f32 %v7146, %v7082
      %v7148 = vadd.f32 %v7147, %v7090
      %v7149 = vrot.slane %v7148, 4
      %v7150 = vadd.f32 %v7148, %v7149
      %v7151 = vrot.slane %v7150, 2
      %v7152 = vadd.f32 %v7150, %v7151
      %v7153 = vrot.slane %v7152, 1
      %v7154 = vadd.f32 %v7152, %v7153
      %v7155 = vadd.f32 %v7067, %v7075
      %v7156 = vadd.f32 %v7155, %v7083
      %v7157 = vadd.f32 %v7156, %v7091
      %v7158 = vrot.slane %v7157, 4
      %v7159 = vadd.f32 %v7157, %v7158
      %v7160 = vrot.slane %v7159, 2
      %v7161 = vadd.f32 %v7159, %v7160
      %v7162 = vrot.slane %v7161, 1
      %v7163 = vadd.f32 %v7161, %v7162
      %v7164 = vadd.f32 %v7100, %v1800
      %v7165 = vadd.f32 %v7109, %v1800
      %v7166 = vadd.f32 %v7118, %v1800
      %v7167 = vadd.f32 %v7127, %v1800
      %v7168 = vadd.f32 %v7136, %v1800
      %v7169 = vadd.f32 %v7145, %v1800
      %v7170 = vadd.f32 %v7154, %v1800
      %v7171 = vadd.f32 %v7163, %v1800
      %v7180 = vcombine.low %v7164, %v7165
      %v7181 = vcombine.low %v7166, %v7167
      %v7182 = vcombine.low %v7168, %v7169
      %v7183 = vcombine.low %v7170, %v7171
      %v7185 = vunpack.c.l.s4 1966171168
      %v7186 = vunpack.c.0.s8 %v7185
      %v7187 = vlaneseq
      %v7188 = vshrl.u32 %v7187, 7
      %v7189 = vsub.s32 %v7186, %v7188
      %v7190 = vrot.slane %v7180, %v7189
      %v7192 = vunpack.c.l.s4 1966171168
      %v7193 = vunpack.c.0.s8 %v7192
      %v7194 = vlaneseq
      %v7195 = vshrl.u32 %v7194, 7
      %v7196 = vsub.s32 %v7193, %v7195
      %v7197 = vrot.slane %v7181, %v7196
      %v7199 = vunpack.c.l.s4 1966171168
      %v7200 = vunpack.c.0.s8 %v7199
      %v7201 = vlaneseq
      %v7202 = vshrl.u32 %v7201, 7
      %v7203 = vsub.s32 %v7200, %v7202
      %v7204 = vrot.slane %v7182, %v7203
      %v7206 = vunpack.c.l.s4 1966171168
      %v7207 = vunpack.c.0.s8 %v7206
      %v7208 = vlaneseq
      %v7209 = vshrl.u32 %v7208, 7
      %v7210 = vsub.s32 %v7207, %v7209
      %v7211 = vrot.slane %v7183, %v7210
      %v7212 = vcombine.low %v7190, %v7197
      %v7213 = vcombine.low %v7204, %v7211
      %v7215 = vunpack.c.l.s4 1966171168
      %v7216 = vunpack.c.0.s8 %v7215
      %v7217 = vlaneseq
      %v7218 = vshrl.u32 %v7217, 7
      %v7219 = vsub.s32 %v7216, %v7218
      %v7220 = vrot.slane %v7212, %v7219
      %v7222 = vunpack.c.l.s4 1966171168
      %v7223 = vunpack.c.0.s8 %v7222
      %v7224 = vlaneseq
      %v7225 = vshrl.u32 %v7224, 7
      %v7226 = vsub.s32 %v7223, %v7225
      %v7227 = vrot.slane %v7213, %v7226
      %v7228 = vcombine.low %v7220, %v7227
      %s7230 = scalar_lea.vmem %s253, 4
      %7231 = vst [vmem:[%s7230] ss:$8 sm:$0xf] %v7228
      %7232 = vst [vmem:[%s7230] ss:$8 sm:$0xf0] %v7228
      %v7233 = vlaneseq
      %v7234 = vshrl.u32 %v7233, 7
      %v7235 = vsub.s32 5, %v7234
      %v7236 = vrot.slane %v307, %v7235
      %v7237 = vlaneseq
      %v7238 = vshrl.u32 %v7237, 7
      %v7239 = vsub.s32 5, %v7238
      %v7240 = vrot.slane %v308, %v7239
      %v7241 = vlaneseq
      %v7242 = vshrl.u32 %v7241, 7
      %v7243 = vsub.s32 5, %v7242
      %v7244 = vrot.slane %v309, %v7243
      %v7245 = vlaneseq
      %v7246 = vshrl.u32 %v7245, 7
      %v7247 = vsub.s32 5, %v7246
      %v7248 = vrot.slane %v310, %v7247
      %v7249 = vlaneseq
      %v7250 = vshrl.u32 %v7249, 7
      %v7251 = vsub.s32 5, %v7250
      %v7252 = vrot.slane %v311, %v7251
      %v7253 = vlaneseq
      %v7254 = vshrl.u32 %v7253, 7
      %v7255 = vsub.s32 5, %v7254
      %v7256 = vrot.slane %v312, %v7255
      %v7257 = vlaneseq
      %v7258 = vshrl.u32 %v7257, 7
      %v7259 = vsub.s32 5, %v7258
      %v7260 = vrot.slane %v313, %v7259
      %v7261 = vlaneseq
      %v7262 = vshrl.u32 %v7261, 7
      %v7263 = vsub.s32 5, %v7262
      %v7264 = vrot.slane %v314, %v7263
      %v7265 = vmul.f32 %v318, %v7236
      %v7266 = vmul.f32 %v318, %v7240
      %v7267 = vmul.f32 %v318, %v7244
      %v7268 = vmul.f32 %v318, %v7248
      %v7269 = vmul.f32 %v318, %v7252
      %v7270 = vmul.f32 %v318, %v7256
      %v7271 = vmul.f32 %v318, %v7260
      %v7272 = vmul.f32 %v318, %v7264
      %v7273 = vmul.f32 %v323, %v7236
      %v7274 = vmul.f32 %v323, %v7240
      %v7275 = vmul.f32 %v323, %v7244
      %v7276 = vmul.f32 %v323, %v7248
      %v7277 = vmul.f32 %v323, %v7252
      %v7278 = vmul.f32 %v323, %v7256
      %v7279 = vmul.f32 %v323, %v7260
      %v7280 = vmul.f32 %v323, %v7264
      %v7281 = vmul.f32 %v328, %v7236
      %v7282 = vmul.f32 %v328, %v7240
      %v7283 = vmul.f32 %v328, %v7244
      %v7284 = vmul.f32 %v328, %v7248
      %v7285 = vmul.f32 %v328, %v7252
      %v7286 = vmul.f32 %v328, %v7256
      %v7287 = vmul.f32 %v328, %v7260
      %v7288 = vmul.f32 %v328, %v7264
      %v7289 = vmul.f32 %v333, %v7236
      %v7290 = vmul.f32 %v333, %v7240
      %v7291 = vmul.f32 %v333, %v7244
      %v7292 = vmul.f32 %v333, %v7248
      %v7293 = vmul.f32 %v333, %v7252
      %v7294 = vmul.f32 %v333, %v7256
      %v7295 = vmul.f32 %v333, %v7260
      %v7296 = vmul.f32 %v333, %v7264
      %v7297 = vadd.f32 %v7265, %v402
      %v7298 = vadd.f32 %v7266, %v402
      %v7299 = vadd.f32 %v7267, %v402
      %v7300 = vadd.f32 %v7268, %v402
      %v7301 = vadd.f32 %v7269, %v402
      %v7302 = vadd.f32 %v7270, %v402
      %v7303 = vadd.f32 %v7271, %v402
      %v7304 = vadd.f32 %v7272, %v402
      %v7305 = vadd.f32 %v7273, %v407
      %v7306 = vadd.f32 %v7274, %v407
      %v7307 = vadd.f32 %v7275, %v407
      %v7308 = vadd.f32 %v7276, %v407
      %v7309 = vadd.f32 %v7277, %v407
      %v7310 = vadd.f32 %v7278, %v407
      %v7311 = vadd.f32 %v7279, %v407
      %v7312 = vadd.f32 %v7280, %v407
      %v7313 = vadd.f32 %v7281, %v412
      %v7314 = vadd.f32 %v7282, %v412
      %v7315 = vadd.f32 %v7283, %v412
      %v7316 = vadd.f32 %v7284, %v412
      %v7317 = vadd.f32 %v7285, %v412
      %v7318 = vadd.f32 %v7286, %v412
      %v7319 = vadd.f32 %v7287, %v412
      %v7320 = vadd.f32 %v7288, %v412
      %v7321 = vadd.f32 %v7289, %v417
      %v7322 = vadd.f32 %v7290, %v417
      %v7323 = vadd.f32 %v7291, %v417
      %v7324 = vadd.f32 %v7292, %v417
      %v7325 = vadd.f32 %v7293, %v417
      %v7326 = vadd.f32 %v7294, %v417
      %v7327 = vadd.f32 %v7295, %v417
      %v7328 = vadd.f32 %v7296, %v417
      %v7329 = vtanh.pop %v7297
      %v7330 = vtanh.pop %v7298
      %v7331 = vtanh.pop %v7299
      %v7332 = vtanh.pop %v7300
      %v7333 = vtanh.pop %v7301
      %v7334 = vtanh.pop %v7302
      %v7335 = vtanh.pop %v7303
      %v7336 = vtanh.pop %v7304
      %v7337 = vtanh.pop %v7305
      %v7338 = vtanh.pop %v7306
      %v7339 = vtanh.pop %v7307
      %v7340 = vtanh.pop %v7308
      %v7341 = vtanh.pop %v7309
      %v7342 = vtanh.pop %v7310
      %v7343 = vtanh.pop %v7311
      %v7344 = vtanh.pop %v7312
      %v7345 = vtanh.pop %v7313
      %v7346 = vtanh.pop %v7314
      %v7347 = vtanh.pop %v7315
      %v7348 = vtanh.pop %v7316
      %v7349 = vtanh.pop %v7317
      %v7350 = vtanh.pop %v7318
      %v7351 = vtanh.pop %v7319
      %v7352 = vtanh.pop %v7320
      %v7353 = vtanh.pop %v7321
      %v7354 = vtanh.pop %v7322
      %v7355 = vtanh.pop %v7323
      %v7356 = vtanh.pop %v7324
      %v7357 = vtanh.pop %v7325
      %v7358 = vtanh.pop %v7326
      %v7359 = vtanh.pop %v7327
      %v7360 = vtanh.pop %v7328
      %v7361 = vpack.c.bf16 %v7337, %v7329
      %v7362 = vpack.c.bf16 %v7338, %v7330
      %v7363 = vpack.c.bf16 %v7339, %v7331
      %v7364 = vpack.c.bf16 %v7340, %v7332
      %v7365 = vpack.c.bf16 %v7341, %v7333
      %v7366 = vpack.c.bf16 %v7342, %v7334
      %v7367 = vpack.c.bf16 %v7343, %v7335
      %v7368 = vpack.c.bf16 %v7344, %v7336
      %v7369 = vpack.c.bf16 %v7353, %v7345
      %v7370 = vpack.c.bf16 %v7354, %v7346
      %v7371 = vpack.c.bf16 %v7355, %v7347
      %v7372 = vpack.c.bf16 %v7356, %v7348
      %v7373 = vpack.c.bf16 %v7357, %v7349
      %v7374 = vpack.c.bf16 %v7358, %v7350
      %v7375 = vpack.c.bf16 %v7359, %v7351
      %v7376 = vpack.c.bf16 %v7360, %v7352
      %7377 = vmatprep.subr.bf16.mxu0 %v7362
      %7378 = vmatpush1.bf16.msra.mxu0 %v7361
      %7379 = vmatprep.subr.bf16.mxu0 %v7370
      %7380 = vmatpush1.bf16.msra.mxu0 %v7369
      %7381 = vmatprep.subr.bf16.mxu0 0
      %7382 = vmatpush1.bf16.msra.mxu0 0
      %7383 = vmatprep.subr.bf16.mxu0 0
      %7384 = vmatpush1.bf16.msra.mxu0 0
      %7385 = vmatprep.subr.bf16.mxu0 0
      %7386 = vmatpush1.bf16.msra.mxu0 0
      %7387 = vmatprep.subr.bf16.mxu0 0
      %7388 = vmatpush1.bf16.msra.mxu0 0
      %7389 = vmatprep.subr.bf16.mxu0 0
      %7390 = vmatpush1.bf16.msra.mxu0 0
      %7391 = vmatprep.subr.bf16.mxu0 0
      %7392 = vmatpush1.bf16.msra.mxu0 0
      %7393 = vmatprep.subr.bf16.mxu0 0
      %7394 = vmatpush1.bf16.msra.mxu0 0
      %7395 = vmatprep.subr.bf16.mxu0 0
      %7396 = vmatpush1.bf16.msra.mxu0 0
      %7397 = vmatprep.subr.bf16.mxu0 0
      %7398 = vmatpush1.bf16.msra.mxu0 0
      %7399 = vmatprep.subr.bf16.mxu0 0
      %7400 = vmatpush1.bf16.msra.mxu0 0
      %7401 = vmatprep.subr.bf16.mxu0 0
      %7402 = vmatpush1.bf16.msra.mxu0 0
      %7403 = vmatprep.subr.bf16.mxu0 0
      %7404 = vmatpush1.bf16.msra.mxu0 0
      %7405 = vmatprep.subr.bf16.mxu0 0
      %7406 = vmatpush1.bf16.msra.mxu0 0
      %7407 = vmatprep.subr.bf16.mxu0 0
      %7408 = vmatpush1.bf16.msra.mxu0 0
      %7409 = vmatprep.mubr.bf16.mxu0 0
      %7410 = vmatmul.mubr.bf16.gmra.mrb[0].mxu0 %v531
      %v7411 = vpop.f32.mrb[0].mxu0
      %v7412 = vadd.f32 %v502, %v7411
      %v7413 = vpop.f32.mrb[0].mxu0
      %v7414 = vadd.f32 %v502, %v7413
      %v7415 = vpop.f32.mrb[0].mxu0
      %v7416 = vadd.f32 %v507, %v7415
      %v7417 = vpop.f32.mrb[0].mxu0
      %v7418 = vadd.f32 %v507, %v7417
      %7419 = vmatprep.mubr.bf16.mxu0 0
      %7420 = vmatmul.mubr.bf16.gmra.mrb[0].mxu0 %v534
      %v7421 = vpop.f32.mrb[0].mxu0
      %v7422 = vadd.f32 %v512, %v7421
      %v7423 = vpop.f32.mrb[0].mxu0
      %v7424 = vadd.f32 %v512, %v7423
      %v7425 = vpop.f32.mrb[0].mxu0
      %v7426 = vadd.f32 %v517, %v7425
      %v7427 = vpop.f32.mrb[0].mxu0
      %v7428 = vadd.f32 %v517, %v7427
      %7429 = vdwg.mxu0
      %7430 = vmatprep.subr.bf16.mxu0 %v7364
      %7431 = vmatpush1.bf16.msra.mxu0 %v7363
      %7432 = vmatprep.subr.bf16.mxu0 %v7372
      %7433 = vmatpush1.bf16.msra.mxu0 %v7371
      %7434 = vmatprep.subr.bf16.mxu0 0
      %7435 = vmatpush1.bf16.msra.mxu0 0
      %7436 = vmatprep.subr.bf16.mxu0 0
      %7437 = vmatpush1.bf16.msra.mxu0 0
      %7438 = vmatprep.subr.bf16.mxu0 0
      %7439 = vmatpush1.bf16.msra.mxu0 0
      %7440 = vmatprep.subr.bf16.mxu0 0
      %7441 = vmatpush1.bf16.msra.mxu0 0
      %7442 = vmatprep.subr.bf16.mxu0 0
      %7443 = vmatpush1.bf16.msra.mxu0 0
      %7444 = vmatprep.subr.bf16.mxu0 0
      %7445 = vmatpush1.bf16.msra.mxu0 0
      %7446 = vmatprep.subr.bf16.mxu0 0
      %7447 = vmatpush1.bf16.msra.mxu0 0
      %7448 = vmatprep.subr.bf16.mxu0 0
      %7449 = vmatpush1.bf16.msra.mxu0 0
      %7450 = vmatprep.subr.bf16.mxu0 0
      %7451 = vmatpush1.bf16.msra.mxu0 0
      %7452 = vmatprep.subr.bf16.mxu0 0
      %7453 = vmatpush1.bf16.msra.mxu0 0
      %7454 = vmatprep.subr.bf16.mxu0 0
      %7455 = vmatpush1.bf16.msra.mxu0 0
      %7456 = vmatprep.subr.bf16.mxu0 0
      %7457 = vmatpush1.bf16.msra.mxu0 0
      %7458 = vmatprep.subr.bf16.mxu0 0
      %7459 = vmatpush1.bf16.msra.mxu0 0
      %7460 = vmatprep.subr.bf16.mxu0 0
      %7461 = vmatpush1.bf16.msra.mxu0 0
      %7462 = vmatprep.mubr.bf16.mxu0 0
      %7463 = vmatmul.mubr.bf16.gmra.mrb[0].mxu0 %v531
      %v7464 = vpop.f32.mrb[0].mxu0
      %v7465 = vadd.f32 %v502, %v7464
      %v7466 = vpop.f32.mrb[0].mxu0
      %v7467 = vadd.f32 %v502, %v7466
      %v7468 = vpop.f32.mrb[0].mxu0
      %v7469 = vadd.f32 %v507, %v7468
      %v7470 = vpop.f32.mrb[0].mxu0
      %v7471 = vadd.f32 %v507, %v7470
      %7472 = vmatprep.mubr.bf16.mxu0 0
      %7473 = vmatmul.mubr.bf16.gmra.mrb[0].mxu0 %v534
      %v7474 = vpop.f32.mrb[0].mxu0
      %v7475 = vadd.f32 %v512, %v7474
      %v7476 = vpop.f32.mrb[0].mxu0
      %v7477 = vadd.f32 %v512, %v7476
      %v7478 = vpop.f32.mrb[0].mxu0
      %v7479 = vadd.f32 %v517, %v7478
      %v7480 = vpop.f32.mrb[0].mxu0
      %v7481 = vadd.f32 %v517, %v7480
      %7482 = vdwg.mxu0
      %7483 = vmatprep.subr.bf16.mxu0 %v7366
      %7484 = vmatpush1.bf16.msra.mxu0 %v7365
      %7485 = vmatprep.subr.bf16.mxu0 %v7374
      %7486 = vmatpush1.bf16.msra.mxu0 %v7373
      %7487 = vmatprep.subr.bf16.mxu0 0
      %7488 = vmatpush1.bf16.msra.mxu0 0
      %7489 = vmatprep.subr.bf16.mxu0 0
      %7490 = vmatpush1.bf16.msra.mxu0 0
      %7491 = vmatprep.subr.bf16.mxu0 0
      %7492 = vmatpush1.bf16.msra.mxu0 0
      %7493 = vmatprep.subr.bf16.mxu0 0
      %7494 = vmatpush1.bf16.msra.mxu0 0
      %7495 = vmatprep.subr.bf16.mxu0 0
      %7496 = vmatpush1.bf16.msra.mxu0 0
      %7497 = vmatprep.subr.bf16.mxu0 0
      %7498 = vmatpush1.bf16.msra.mxu0 0
      %7499 = vmatprep.subr.bf16.mxu0 0
      %7500 = vmatpush1.bf16.msra.mxu0 0
      %7501 = vmatprep.subr.bf16.mxu0 0
      %7502 = vmatpush1.bf16.msra.mxu0 0
      %7503 = vmatprep.subr.bf16.mxu0 0
      %7504 = vmatpush1.bf16.msra.mxu0 0
      %7505 = vmatprep.subr.bf16.mxu0 0
      %7506 = vmatpush1.bf16.msra.mxu0 0
      %7507 = vmatprep.subr.bf16.mxu0 0
      %7508 = vmatpush1.bf16.msra.mxu0 0
      %7509 = vmatprep.subr.bf16.mxu0 0
      %7510 = vmatpush1.bf16.msra.mxu0 0
      %7511 = vmatprep.subr.bf16.mxu0 0
      %7512 = vmatpush1.bf16.msra.mxu0 0
      %7513 = vmatprep.subr.bf16.mxu0 0
      %7514 = vmatpush1.bf16.msra.mxu0 0
      %7515 = vmatprep.mubr.bf16.mxu0 0
      %7516 = vmatmul.mubr.bf16.gmra.mrb[0].mxu0 %v531
      %v7517 = vpop.f32.mrb[0].mxu0
      %v7518 = vadd.f32 %v502, %v7517
      %v7519 = vpop.f32.mrb[0].mxu0
      %v7520 = vadd.f32 %v502, %v7519
      %v7521 = vpop.f32.mrb[0].mxu0
      %v7522 = vadd.f32 %v507, %v7521
      %v7523 = vpop.f32.mrb[0].mxu0
      %v7524 = vadd.f32 %v507, %v7523
      %7525 = vmatprep.mubr.bf16.mxu0 0
      %7526 = vmatmul.mubr.bf16.gmra.mrb[0].mxu0 %v534
      %v7527 = vpop.f32.mrb[0].mxu0
      %v7528 = vadd.f32 %v512, %v7527
      %v7529 = vpop.f32.mrb[0].mxu0
      %v7530 = vadd.f32 %v512, %v7529
      %v7531 = vpop.f32.mrb[0].mxu0
      %v7532 = vadd.f32 %v517, %v7531
      %v7533 = vpop.f32.mrb[0].mxu0
      %v7534 = vadd.f32 %v517, %v7533
      %7535 = vdwg.mxu0
      %7536 = vmatprep.subr.bf16.mxu0 %v7368
      %7537 = vmatpush1.bf16.msra.mxu0 %v7367
      %7538 = vmatprep.subr.bf16.mxu0 %v7376
      %7539 = vmatpush1.bf16.msra.mxu0 %v7375
      %7540 = vmatprep.subr.bf16.mxu0 0
      %7541 = vmatpush1.bf16.msra.mxu0 0
      %7542 = vmatprep.subr.bf16.mxu0 0
      %7543 = vmatpush1.bf16.msra.mxu0 0
      %7544 = vmatprep.subr.bf16.mxu0 0
      %7545 = vmatpush1.bf16.msra.mxu0 0
      %7546 = vmatprep.subr.bf16.mxu0 0
      %7547 = vmatpush1.bf16.msra.mxu0 0
      %7548 = vmatprep.subr.bf16.mxu0 0
      %7549 = vmatpush1.bf16.msra.mxu0 0
      %7550 = vmatprep.subr.bf16.mxu0 0
      %7551 = vmatpush1.bf16.msra.mxu0 0
      %7552 = vmatprep.subr.bf16.mxu0 0
      %7553 = vmatpush1.bf16.msra.mxu0 0
      %7554 = vmatprep.subr.bf16.mxu0 0
      %7555 = vmatpush1.bf16.msra.mxu0 0
      %7556 = vmatprep.subr.bf16.mxu0 0
      %7557 = vmatpush1.bf16.msra.mxu0 0
      %7558 = vmatprep.subr.bf16.mxu0 0
      %7559 = vmatpush1.bf16.msra.mxu0 0
      %7560 = vmatprep.subr.bf16.mxu0 0
      %7561 = vmatpush1.bf16.msra.mxu0 0
      %7562 = vmatprep.subr.bf16.mxu0 0
      %7563 = vmatpush1.bf16.msra.mxu0 0
      %7564 = vmatprep.subr.bf16.mxu0 0
      %7565 = vmatpush1.bf16.msra.mxu0 0
      %7566 = vmatprep.subr.bf16.mxu0 0
      %7567 = vmatpush1.bf16.msra.mxu0 0
      %7568 = vmatprep.mubr.bf16.mxu0 0
      %7569 = vmatmul.mubr.bf16.gmra.mrb[0].mxu0 %v531
      %v7570 = vpop.f32.mrb[0].mxu0
      %v7571 = vadd.f32 %v502, %v7570
      %v7572 = vpop.f32.mrb[0].mxu0
      %v7573 = vadd.f32 %v502, %v7572
      %v7574 = vpop.f32.mrb[0].mxu0
      %v7575 = vadd.f32 %v507, %v7574
      %v7576 = vpop.f32.mrb[0].mxu0
      %v7577 = vadd.f32 %v507, %v7576
      %7578 = vmatprep.mubr.bf16.mxu0 0
      %7579 = vmatmul.mubr.bf16.gmra.mrb[0].mxu0 %v534
      %v7580 = vpop.f32.mrb[0].mxu0
      %v7581 = vadd.f32 %v512, %v7580
      %v7582 = vpop.f32.mrb[0].mxu0
      %v7583 = vadd.f32 %v512, %v7582
      %v7584 = vpop.f32.mrb[0].mxu0
      %v7585 = vadd.f32 %v517, %v7584
      %v7586 = vpop.f32.mrb[0].mxu0
      %v7587 = vadd.f32 %v517, %v7586
      %7588 = vdwg.mxu0
      %v7589 = vtanh.pop %v7412
      %v7590 = vtanh.pop %v7414
      %v7591 = vtanh.pop %v7465
      %v7592 = vtanh.pop %v7467
      %v7593 = vtanh.pop %v7518
      %v7594 = vtanh.pop %v7520
      %v7595 = vtanh.pop %v7571
      %v7596 = vtanh.pop %v7573
      %v7597 = vtanh.pop %v7416
      %v7598 = vtanh.pop %v7418
      %v7599 = vtanh.pop %v7469
      %v7600 = vtanh.pop %v7471
      %v7601 = vtanh.pop %v7522
      %v7602 = vtanh.pop %v7524
      %v7603 = vtanh.pop %v7575
      %v7604 = vtanh.pop %v7577
      %v7605 = vtanh.pop %v7422
      %v7606 = vtanh.pop %v7424
      %v7607 = vtanh.pop %v7475
      %v7608 = vtanh.pop %v7477
      %v7609 = vtanh.pop %v7528
      %v7610 = vtanh.pop %v7530
      %v7611 = vtanh.pop %v7581
      %v7612 = vtanh.pop %v7583
      %v7613 = vtanh.pop %v7426
      %v7614 = vtanh.pop %v7428
      %v7615 = vtanh.pop %v7479
      %v7616 = vtanh.pop %v7481
      %v7617 = vtanh.pop %v7532
      %v7618 = vtanh.pop %v7534
      %v7619 = vtanh.pop %v7585
      %v7620 = vtanh.pop %v7587
      %v7621 = vpack.c.bf16 %v7597, %v7589
      %v7622 = vpack.c.bf16 %v7598, %v7590
      %v7623 = vpack.c.bf16 %v7599, %v7591
      %v7624 = vpack.c.bf16 %v7600, %v7592
      %v7625 = vpack.c.bf16 %v7601, %v7593
      %v7626 = vpack.c.bf16 %v7602, %v7594
      %v7627 = vpack.c.bf16 %v7603, %v7595
      %v7628 = vpack.c.bf16 %v7604, %v7596
      %v7629 = vpack.c.bf16 %v7613, %v7605
      %v7630 = vpack.c.bf16 %v7614, %v7606
      %v7631 = vpack.c.bf16 %v7615, %v7607
      %v7632 = vpack.c.bf16 %v7616, %v7608
      %v7633 = vpack.c.bf16 %v7617, %v7609
      %v7634 = vpack.c.bf16 %v7618, %v7610
      %v7635 = vpack.c.bf16 %v7619, %v7611
      %v7636 = vpack.c.bf16 %v7620, %v7612
      %7637 = vmatprep.subr.bf16.mxu0 %v7622
      %7638 = vmatpush1.bf16.msra.mxu0 %v7621
      %7639 = vmatprep.subr.bf16.mxu0 %v7630
      %7640 = vmatpush1.bf16.msra.mxu0 %v7629
      %7641 = vmatprep.subr.bf16.mxu0 0
      %7642 = vmatpush1.bf16.msra.mxu0 0
      %7643 = vmatprep.subr.bf16.mxu0 0
      %7644 = vmatpush1.bf16.msra.mxu0 0
      %7645 = vmatprep.subr.bf16.mxu0 0
      %7646 = vmatpush1.bf16.msra.mxu0 0
      %7647 = vmatprep.subr.bf16.mxu0 0
      %7648 = vmatpush1.bf16.msra.mxu0 0
      %7649 = vmatprep.subr.bf16.mxu0 0
      %7650 = vmatpush1.bf16.msra.mxu0 0
      %7651 = vmatprep.subr.bf16.mxu0 0
      %7652 = vmatpush1.bf16.msra.mxu0 0
      %7653 = vmatprep.subr.bf16.mxu0 0
      %7654 = vmatpush1.bf16.msra.mxu0 0
      %7655 = vmatprep.subr.bf16.mxu0 0
      %7656 = vmatpush1.bf16.msra.mxu0 0
      %7657 = vmatprep.subr.bf16.mxu0 0
      %7658 = vmatpush1.bf16.msra.mxu0 0
      %7659 = vmatprep.subr.bf16.mxu0 0
      %7660 = vmatpush1.bf16.msra.mxu0 0
      %7661 = vmatprep.subr.bf16.mxu0 0
      %7662 = vmatpush1.bf16.msra.mxu0 0
      %7663 = vmatprep.subr.bf16.mxu0 0
      %7664 = vmatpush1.bf16.msra.mxu0 0
      %7665 = vmatprep.subr.bf16.mxu0 0
      %7666 = vmatpush1.bf16.msra.mxu0 0
      %7667 = vmatprep.subr.bf16.mxu0 0
      %7668 = vmatpush1.bf16.msra.mxu0 0
      %7669 = vmatprep.mubr.bf16.mxu0 0
      %7670 = vmatmul.mubr.bf16.gmra.mrb[0].mxu0 %v827
      %v7671 = vpop.f32.mrb[0].mxu0
      %v7672 = vadd.f32 %v799, %v7671
      %v7673 = vpop.f32.mrb[0].mxu0
      %v7674 = vadd.f32 %v799, %v7673
      %v7675 = vpop.f32.mrb[0].mxu0
      %v7676 = vadd.f32 %v804, %v7675
      %v7677 = vpop.f32.mrb[0].mxu0
      %v7678 = vadd.f32 %v804, %v7677
      %7679 = vmatprep.mubr.bf16.mxu0 0
      %7680 = vmatmul.mubr.bf16.gmra.mrb[0].mxu0 %v830
      %v7681 = vpop.f32.mrb[0].mxu0
      %v7682 = vadd.f32 %v809, %v7681
      %v7683 = vpop.f32.mrb[0].mxu0
      %v7684 = vadd.f32 %v809, %v7683
      %v7685 = vpop.f32.mrb[0].mxu0
      %v7686 = vadd.f32 %v814, %v7685
      %v7687 = vpop.f32.mrb[0].mxu0
      %v7688 = vadd.f32 %v814, %v7687
      %7689 = vdwg.mxu0
      %7690 = vmatprep.subr.bf16.mxu0 %v7624
      %7691 = vmatpush1.bf16.msra.mxu0 %v7623
      %7692 = vmatprep.subr.bf16.mxu0 %v7632
      %7693 = vmatpush1.bf16.msra.mxu0 %v7631
      %7694 = vmatprep.subr.bf16.mxu0 0
      %7695 = vmatpush1.bf16.msra.mxu0 0
      %7696 = vmatprep.subr.bf16.mxu0 0
      %7697 = vmatpush1.bf16.msra.mxu0 0
      %7698 = vmatprep.subr.bf16.mxu0 0
      %7699 = vmatpush1.bf16.msra.mxu0 0
      %7700 = vmatprep.subr.bf16.mxu0 0
      %7701 = vmatpush1.bf16.msra.mxu0 0
      %7702 = vmatprep.subr.bf16.mxu0 0
      %7703 = vmatpush1.bf16.msra.mxu0 0
      %7704 = vmatprep.subr.bf16.mxu0 0
      %7705 = vmatpush1.bf16.msra.mxu0 0
      %7706 = vmatprep.subr.bf16.mxu0 0
      %7707 = vmatpush1.bf16.msra.mxu0 0
      %7708 = vmatprep.subr.bf16.mxu0 0
      %7709 = vmatpush1.bf16.msra.mxu0 0
      %7710 = vmatprep.subr.bf16.mxu0 0
      %7711 = vmatpush1.bf16.msra.mxu0 0
      %7712 = vmatprep.subr.bf16.mxu0 0
      %7713 = vmatpush1.bf16.msra.mxu0 0
      %7714 = vmatprep.subr.bf16.mxu0 0
      %7715 = vmatpush1.bf16.msra.mxu0 0
      %7716 = vmatprep.subr.bf16.mxu0 0
      %7717 = vmatpush1.bf16.msra.mxu0 0
      %7718 = vmatprep.subr.bf16.mxu0 0
      %7719 = vmatpush1.bf16.msra.mxu0 0
      %7720 = vmatprep.subr.bf16.mxu0 0
      %7721 = vmatpush1.bf16.msra.mxu0 0
      %7722 = vmatprep.mubr.bf16.mxu0 0
      %7723 = vmatmul.mubr.bf16.gmra.mrb[0].mxu0 %v827
      %v7724 = vpop.f32.mrb[0].mxu0
      %v7725 = vadd.f32 %v799, %v7724
      %v7726 = vpop.f32.mrb[0].mxu0
      %v7727 = vadd.f32 %v799, %v7726
      %v7728 = vpop.f32.mrb[0].mxu0
      %v7729 = vadd.f32 %v804, %v7728
      %v7730 = vpop.f32.mrb[0].mxu0
      %v7731 = vadd.f32 %v804, %v7730
      %7732 = vmatprep.mubr.bf16.mxu0 0
      %7733 = vmatmul.mubr.bf16.gmra.mrb[0].mxu0 %v830
      %v7734 = vpop.f32.mrb[0].mxu0
      %v7735 = vadd.f32 %v809, %v7734
      %v7736 = vpop.f32.mrb[0].mxu0
      %v7737 = vadd.f32 %v809, %v7736
      %v7738 = vpop.f32.mrb[0].mxu0
      %v7739 = vadd.f32 %v814, %v7738
      %v7740 = vpop.f32.mrb[0].mxu0
      %v7741 = vadd.f32 %v814, %v7740
      %7742 = vdwg.mxu0
      %7743 = vmatprep.subr.bf16.mxu0 %v7626
      %7744 = vmatpush1.bf16.msra.mxu0 %v7625
      %7745 = vmatprep.subr.bf16.mxu0 %v7634
      %7746 = vmatpush1.bf16.msra.mxu0 %v7633
      %7747 = vmatprep.subr.bf16.mxu0 0
      %7748 = vmatpush1.bf16.msra.mxu0 0
      %7749 = vmatprep.subr.bf16.mxu0 0
      %7750 = vmatpush1.bf16.msra.mxu0 0
      %7751 = vmatprep.subr.bf16.mxu0 0
      %7752 = vmatpush1.bf16.msra.mxu0 0
      %7753 = vmatprep.subr.bf16.mxu0 0
      %7754 = vmatpush1.bf16.msra.mxu0 0
      %7755 = vmatprep.subr.bf16.mxu0 0
      %7756 = vmatpush1.bf16.msra.mxu0 0
      %7757 = vmatprep.subr.bf16.mxu0 0
      %7758 = vmatpush1.bf16.msra.mxu0 0
      %7759 = vmatprep.subr.bf16.mxu0 0
      %7760 = vmatpush1.bf16.msra.mxu0 0
      %7761 = vmatprep.subr.bf16.mxu0 0
      %7762 = vmatpush1.bf16.msra.mxu0 0
      %7763 = vmatprep.subr.bf16.mxu0 0
      %7764 = vmatpush1.bf16.msra.mxu0 0
      %7765 = vmatprep.subr.bf16.mxu0 0
      %7766 = vmatpush1.bf16.msra.mxu0 0
      %7767 = vmatprep.subr.bf16.mxu0 0
      %7768 = vmatpush1.bf16.msra.mxu0 0
      %7769 = vmatprep.subr.bf16.mxu0 0
      %7770 = vmatpush1.bf16.msra.mxu0 0
      %7771 = vmatprep.subr.bf16.mxu0 0
      %7772 = vmatpush1.bf16.msra.mxu0 0
      %7773 = vmatprep.subr.bf16.mxu0 0
      %7774 = vmatpush1.bf16.msra.mxu0 0
      %7775 = vmatprep.mubr.bf16.mxu0 0
      %7776 = vmatmul.mubr.bf16.gmra.mrb[0].mxu0 %v827
      %v7777 = vpop.f32.mrb[0].mxu0
      %v7778 = vadd.f32 %v799, %v7777
      %v7779 = vpop.f32.mrb[0].mxu0
      %v7780 = vadd.f32 %v799, %v7779
      %v7781 = vpop.f32.mrb[0].mxu0
      %v7782 = vadd.f32 %v804, %v7781
      %v7783 = vpop.f32.mrb[0].mxu0
      %v7784 = vadd.f32 %v804, %v7783
      %7785 = vmatprep.mubr.bf16.mxu0 0
      %7786 = vmatmul.mubr.bf16.gmra.mrb[0].mxu0 %v830
      %v7787 = vpop.f32.mrb[0].mxu0
      %v7788 = vadd.f32 %v809, %v7787
      %v7789 = vpop.f32.mrb[0].mxu0
      %v7790 = vadd.f32 %v809, %v7789
      %v7791 = vpop.f32.mrb[0].mxu0
      %v7792 = vadd.f32 %v814, %v7791
      %v7793 = vpop.f32.mrb[0].mxu0
      %v7794 = vadd.f32 %v814, %v7793
      %7795 = vdwg.mxu0
      %7796 = vmatprep.subr.bf16.mxu0 %v7628
      %7797 = vmatpush1.bf16.msra.mxu0 %v7627
      %7798 = vmatprep.subr.bf16.mxu0 %v7636
      %7799 = vmatpush1.bf16.msra.mxu0 %v7635
      %7800 = vmatprep.subr.bf16.mxu0 0
      %7801 = vmatpush1.bf16.msra.mxu0 0
      %7802 = vmatprep.subr.bf16.mxu0 0
      %7803 = vmatpush1.bf16.msra.mxu0 0
      %7804 = vmatprep.subr.bf16.mxu0 0
      %7805 = vmatpush1.bf16.msra.mxu0 0
      %7806 = vmatprep.subr.bf16.mxu0 0
      %7807 = vmatpush1.bf16.msra.mxu0 0
      %7808 = vmatprep.subr.bf16.mxu0 0
      %7809 = vmatpush1.bf16.msra.mxu0 0
      %7810 = vmatprep.subr.bf16.mxu0 0
      %7811 = vmatpush1.bf16.msra.mxu0 0
      %7812 = vmatprep.subr.bf16.mxu0 0
      %7813 = vmatpush1.bf16.msra.mxu0 0
      %7814 = vmatprep.subr.bf16.mxu0 0
      %7815 = vmatpush1.bf16.msra.mxu0 0
      %7816 = vmatprep.subr.bf16.mxu0 0
      %7817 = vmatpush1.bf16.msra.mxu0 0
      %7818 = vmatprep.subr.bf16.mxu0 0
      %7819 = vmatpush1.bf16.msra.mxu0 0
      %7820 = vmatprep.subr.bf16.mxu0 0
      %7821 = vmatpush1.bf16.msra.mxu0 0
      %7822 = vmatprep.subr.bf16.mxu0 0
      %7823 = vmatpush1.bf16.msra.mxu0 0
      %7824 = vmatprep.subr.bf16.mxu0 0
      %7825 = vmatpush1.bf16.msra.mxu0 0
      %7826 = vmatprep.subr.bf16.mxu0 0
      %7827 = vmatpush1.bf16.msra.mxu0 0
      %7828 = vmatprep.mubr.bf16.mxu0 0
      %7829 = vmatmul.mubr.bf16.gmra.mrb[0].mxu0 %v827
      %v7830 = vpop.f32.mrb[0].mxu0
      %v7831 = vadd.f32 %v799, %v7830
      %v7832 = vpop.f32.mrb[0].mxu0
      %v7833 = vadd.f32 %v799, %v7832
      %v7834 = vpop.f32.mrb[0].mxu0
      %v7835 = vadd.f32 %v804, %v7834
      %v7836 = vpop.f32.mrb[0].mxu0
      %v7837 = vadd.f32 %v804, %v7836
      %7838 = vmatprep.mubr.bf16.mxu0 0
      %7839 = vmatmul.mubr.bf16.gmra.mrb[0].mxu0 %v830
      %v7840 = vpop.f32.mrb[0].mxu0
      %v7841 = vadd.f32 %v809, %v7840
      %v7842 = vpop.f32.mrb[0].mxu0
      %v7843 = vadd.f32 %v809, %v7842
      %v7844 = vpop.f32.mrb[0].mxu0
      %v7845 = vadd.f32 %v814, %v7844
      %v7846 = vpop.f32.mrb[0].mxu0
      %v7847 = vadd.f32 %v814, %v7846
      %7848 = vdwg.mxu0
      %v7849 = vtanh.pop %v7672
      %v7850 = vtanh.pop %v7674
      %v7851 = vtanh.pop %v7725
      %v7852 = vtanh.pop %v7727
      %v7853 = vtanh.pop %v7778
      %v7854 = vtanh.pop %v7780
      %v7855 = vtanh.pop %v7831
      %v7856 = vtanh.pop %v7833
      %v7857 = vtanh.pop %v7676
      %v7858 = vtanh.pop %v7678
      %v7859 = vtanh.pop %v7729
      %v7860 = vtanh.pop %v7731
      %v7861 = vtanh.pop %v7782
      %v7862 = vtanh.pop %v7784
      %v7863 = vtanh.pop %v7835
      %v7864 = vtanh.pop %v7837
      %v7865 = vtanh.pop %v7682
      %v7866 = vtanh.pop %v7684
      %v7867 = vtanh.pop %v7735
      %v7868 = vtanh.pop %v7737
      %v7869 = vtanh.pop %v7788
      %v7870 = vtanh.pop %v7790
      %v7871 = vtanh.pop %v7841
      %v7872 = vtanh.pop %v7843
      %v7873 = vtanh.pop %v7686
      %v7874 = vtanh.pop %v7688
      %v7875 = vtanh.pop %v7739
      %v7876 = vtanh.pop %v7741
      %v7877 = vtanh.pop %v7792
      %v7878 = vtanh.pop %v7794
      %v7879 = vtanh.pop %v7845
      %v7880 = vtanh.pop %v7847
      %v7881 = vpack.c.bf16 %v7857, %v7849
      %v7882 = vpack.c.bf16 %v7858, %v7850
      %v7883 = vpack.c.bf16 %v7859, %v7851
      %v7884 = vpack.c.bf16 %v7860, %v7852
      %v7885 = vpack.c.bf16 %v7861, %v7853
      %v7886 = vpack.c.bf16 %v7862, %v7854
      %v7887 = vpack.c.bf16 %v7863, %v7855
      %v7888 = vpack.c.bf16 %v7864, %v7856
      %v7889 = vpack.c.bf16 %v7873, %v7865
      %v7890 = vpack.c.bf16 %v7874, %v7866
      %v7891 = vpack.c.bf16 %v7875, %v7867
      %v7892 = vpack.c.bf16 %v7876, %v7868
      %v7893 = vpack.c.bf16 %v7877, %v7869
      %v7894 = vpack.c.bf16 %v7878, %v7870
      %v7895 = vpack.c.bf16 %v7879, %v7871
      %v7896 = vpack.c.bf16 %v7880, %v7872
      %7897 = vmatprep.subr.bf16.mxu0 %v7882
      %7898 = vmatpush1.bf16.msra.mxu0 %v7881
      %7899 = vmatprep.subr.bf16.mxu0 %v7890
      %7900 = vmatpush1.bf16.msra.mxu0 %v7889
      %7901 = vmatprep.subr.bf16.mxu0 0
      %7902 = vmatpush1.bf16.msra.mxu0 0
      %7903 = vmatprep.subr.bf16.mxu0 0
      %7904 = vmatpush1.bf16.msra.mxu0 0
      %7905 = vmatprep.subr.bf16.mxu0 0
      %7906 = vmatpush1.bf16.msra.mxu0 0
      %7907 = vmatprep.subr.bf16.mxu0 0
      %7908 = vmatpush1.bf16.msra.mxu0 0
      %7909 = vmatprep.subr.bf16.mxu0 0
      %7910 = vmatpush1.bf16.msra.mxu0 0
      %7911 = vmatprep.subr.bf16.mxu0 0
      %7912 = vmatpush1.bf16.msra.mxu0 0
      %7913 = vmatprep.subr.bf16.mxu0 0
      %7914 = vmatpush1.bf16.msra.mxu0 0
      %7915 = vmatprep.subr.bf16.mxu0 0
      %7916 = vmatpush1.bf16.msra.mxu0 0
      %7917 = vmatprep.subr.bf16.mxu0 0
      %7918 = vmatpush1.bf16.msra.mxu0 0
      %7919 = vmatprep.subr.bf16.mxu0 0
      %7920 = vmatpush1.bf16.msra.mxu0 0
      %7921 = vmatprep.subr.bf16.mxu0 0
      %7922 = vmatpush1.bf16.msra.mxu0 0
      %7923 = vmatprep.subr.bf16.mxu0 0
      %7924 = vmatpush1.bf16.msra.mxu0 0
      %7925 = vmatprep.subr.bf16.mxu0 0
      %7926 = vmatpush1.bf16.msra.mxu0 0
      %7927 = vmatprep.subr.bf16.mxu0 0
      %7928 = vmatpush1.bf16.msra.mxu0 0
      %7929 = vmatprep.mubr.bf16.mxu0 0
      %7930 = vmatmul.mubr.bf16.gmra.mrb[0].mxu0 %v1123
      %v7931 = vpop.f32.mrb[0].mxu0
      %v7932 = vadd.f32 %v1095, %v7931
      %v7933 = vpop.f32.mrb[0].mxu0
      %v7934 = vadd.f32 %v1095, %v7933
      %v7935 = vpop.f32.mrb[0].mxu0
      %v7936 = vadd.f32 %v1100, %v7935
      %v7937 = vpop.f32.mrb[0].mxu0
      %v7938 = vadd.f32 %v1100, %v7937
      %7939 = vmatprep.mubr.bf16.mxu0 0
      %7940 = vmatmul.mubr.bf16.gmra.mrb[0].mxu0 %v1126
      %v7941 = vpop.f32.mrb[0].mxu0
      %v7942 = vadd.f32 %v1105, %v7941
      %v7943 = vpop.f32.mrb[0].mxu0
      %v7944 = vadd.f32 %v1105, %v7943
      %v7945 = vpop.f32.mrb[0].mxu0
      %v7946 = vadd.f32 %v1110, %v7945
      %v7947 = vpop.f32.mrb[0].mxu0
      %v7948 = vadd.f32 %v1110, %v7947
      %7949 = vdwg.mxu0
      %7950 = vmatprep.subr.bf16.mxu0 %v7884
      %7951 = vmatpush1.bf16.msra.mxu0 %v7883
      %7952 = vmatprep.subr.bf16.mxu0 %v7892
      %7953 = vmatpush1.bf16.msra.mxu0 %v7891
      %7954 = vmatprep.subr.bf16.mxu0 0
      %7955 = vmatpush1.bf16.msra.mxu0 0
      %7956 = vmatprep.subr.bf16.mxu0 0
      %7957 = vmatpush1.bf16.msra.mxu0 0
      %7958 = vmatprep.subr.bf16.mxu0 0
      %7959 = vmatpush1.bf16.msra.mxu0 0
      %7960 = vmatprep.subr.bf16.mxu0 0
      %7961 = vmatpush1.bf16.msra.mxu0 0
      %7962 = vmatprep.subr.bf16.mxu0 0
      %7963 = vmatpush1.bf16.msra.mxu0 0
      %7964 = vmatprep.subr.bf16.mxu0 0
      %7965 = vmatpush1.bf16.msra.mxu0 0
      %7966 = vmatprep.subr.bf16.mxu0 0
      %7967 = vmatpush1.bf16.msra.mxu0 0
      %7968 = vmatprep.subr.bf16.mxu0 0
      %7969 = vmatpush1.bf16.msra.mxu0 0
      %7970 = vmatprep.subr.bf16.mxu0 0
      %7971 = vmatpush1.bf16.msra.mxu0 0
      %7972 = vmatprep.subr.bf16.mxu0 0
      %7973 = vmatpush1.bf16.msra.mxu0 0
      %7974 = vmatprep.subr.bf16.mxu0 0
      %7975 = vmatpush1.bf16.msra.mxu0 0
      %7976 = vmatprep.subr.bf16.mxu0 0
      %7977 = vmatpush1.bf16.msra.mxu0 0
      %7978 = vmatprep.subr.bf16.mxu0 0
      %7979 = vmatpush1.bf16.msra.mxu0 0
      %7980 = vmatprep.subr.bf16.mxu0 0
      %7981 = vmatpush1.bf16.msra.mxu0 0
      %7982 = vmatprep.mubr.bf16.mxu0 0
      %7983 = vmatmul.mubr.bf16.gmra.mrb[0].mxu0 %v1123
      %v7984 = vpop.f32.mrb[0].mxu0
      %v7985 = vadd.f32 %v1095, %v7984
      %v7986 = vpop.f32.mrb[0].mxu0
      %v7987 = vadd.f32 %v1095, %v7986
      %v7988 = vpop.f32.mrb[0].mxu0
      %v7989 = vadd.f32 %v1100, %v7988
      %v7990 = vpop.f32.mrb[0].mxu0
      %v7991 = vadd.f32 %v1100, %v7990
      %7992 = vmatprep.mubr.bf16.mxu0 0
      %7993 = vmatmul.mubr.bf16.gmra.mrb[0].mxu0 %v1126
      %v7994 = vpop.f32.mrb[0].mxu0
      %v7995 = vadd.f32 %v1105, %v7994
      %v7996 = vpop.f32.mrb[0].mxu0
      %v7997 = vadd.f32 %v1105, %v7996
      %v7998 = vpop.f32.mrb[0].mxu0
      %v7999 = vadd.f32 %v1110, %v7998
      %v8000 = vpop.f32.mrb[0].mxu0
      %v8001 = vadd.f32 %v1110, %v8000
      %8002 = vdwg.mxu0
      %8003 = vmatprep.subr.bf16.mxu0 %v7886
      %8004 = vmatpush1.bf16.msra.mxu0 %v7885
      %8005 = vmatprep.subr.bf16.mxu0 %v7894
      %8006 = vmatpush1.bf16.msra.mxu0 %v7893
      %8007 = vmatprep.subr.bf16.mxu0 0
      %8008 = vmatpush1.bf16.msra.mxu0 0
      %8009 = vmatprep.subr.bf16.mxu0 0
      %8010 = vmatpush1.bf16.msra.mxu0 0
      %8011 = vmatprep.subr.bf16.mxu0 0
      %8012 = vmatpush1.bf16.msra.mxu0 0
      %8013 = vmatprep.subr.bf16.mxu0 0
      %8014 = vmatpush1.bf16.msra.mxu0 0
      %8015 = vmatprep.subr.bf16.mxu0 0
      %8016 = vmatpush1.bf16.msra.mxu0 0
      %8017 = vmatprep.subr.bf16.mxu0 0
      %8018 = vmatpush1.bf16.msra.mxu0 0
      %8019 = vmatprep.subr.bf16.mxu0 0
      %8020 = vmatpush1.bf16.msra.mxu0 0
      %8021 = vmatprep.subr.bf16.mxu0 0
      %8022 = vmatpush1.bf16.msra.mxu0 0
      %8023 = vmatprep.subr.bf16.mxu0 0
      %8024 = vmatpush1.bf16.msra.mxu0 0
      %8025 = vmatprep.subr.bf16.mxu0 0
      %8026 = vmatpush1.bf16.msra.mxu0 0
      %8027 = vmatprep.subr.bf16.mxu0 0
      %8028 = vmatpush1.bf16.msra.mxu0 0
      %8029 = vmatprep.subr.bf16.mxu0 0
      %8030 = vmatpush1.bf16.msra.mxu0 0
      %8031 = vmatprep.subr.bf16.mxu0 0
      %8032 = vmatpush1.bf16.msra.mxu0 0
      %8033 = vmatprep.subr.bf16.mxu0 0
      %8034 = vmatpush1.bf16.msra.mxu0 0
      %8035 = vmatprep.mubr.bf16.mxu0 0
      %8036 = vmatmul.mubr.bf16.gmra.mrb[0].mxu0 %v1123
      %v8037 = vpop.f32.mrb[0].mxu0
      %v8038 = vadd.f32 %v1095, %v8037
      %v8039 = vpop.f32.mrb[0].mxu0
      %v8040 = vadd.f32 %v1095, %v8039
      %v8041 = vpop.f32.mrb[0].mxu0
      %v8042 = vadd.f32 %v1100, %v8041
      %v8043 = vpop.f32.mrb[0].mxu0
      %v8044 = vadd.f32 %v1100, %v8043
      %8045 = vmatprep.mubr.bf16.mxu0 0
      %8046 = vmatmul.mubr.bf16.gmra.mrb[0].mxu0 %v1126
      %v8047 = vpop.f32.mrb[0].mxu0
      %v8048 = vadd.f32 %v1105, %v8047
      %v8049 = vpop.f32.mrb[0].mxu0
      %v8050 = vadd.f32 %v1105, %v8049
      %v8051 = vpop.f32.mrb[0].mxu0
      %v8052 = vadd.f32 %v1110, %v8051
      %v8053 = vpop.f32.mrb[0].mxu0
      %v8054 = vadd.f32 %v1110, %v8053
      %8055 = vdwg.mxu0
      %8056 = vmatprep.subr.bf16.mxu0 %v7888
      %8057 = vmatpush1.bf16.msra.mxu0 %v7887
      %8058 = vmatprep.subr.bf16.mxu0 %v7896
      %8059 = vmatpush1.bf16.msra.mxu0 %v7895
      %8060 = vmatprep.subr.bf16.mxu0 0
      %8061 = vmatpush1.bf16.msra.mxu0 0
      %8062 = vmatprep.subr.bf16.mxu0 0
      %8063 = vmatpush1.bf16.msra.mxu0 0
      %8064 = vmatprep.subr.bf16.mxu0 0
      %8065 = vmatpush1.bf16.msra.mxu0 0
      %8066 = vmatprep.subr.bf16.mxu0 0
      %8067 = vmatpush1.bf16.msra.mxu0 0
      %8068 = vmatprep.subr.bf16.mxu0 0
      %8069 = vmatpush1.bf16.msra.mxu0 0
      %8070 = vmatprep.subr.bf16.mxu0 0
      %8071 = vmatpush1.bf16.msra.mxu0 0
      %8072 = vmatprep.subr.bf16.mxu0 0
      %8073 = vmatpush1.bf16.msra.mxu0 0
      %8074 = vmatprep.subr.bf16.mxu0 0
      %8075 = vmatpush1.bf16.msra.mxu0 0
      %8076 = vmatprep.subr.bf16.mxu0 0
      %8077 = vmatpush1.bf16.msra.mxu0 0
      %8078 = vmatprep.subr.bf16.mxu0 0
      %8079 = vmatpush1.bf16.msra.mxu0 0
      %8080 = vmatprep.subr.bf16.mxu0 0
      %8081 = vmatpush1.bf16.msra.mxu0 0
      %8082 = vmatprep.subr.bf16.mxu0 0
      %8083 = vmatpush1.bf16.msra.mxu0 0
      %8084 = vmatprep.subr.bf16.mxu0 0
      %8085 = vmatpush1.bf16.msra.mxu0 0
      %8086 = vmatprep.subr.bf16.mxu0 0
      %8087 = vmatpush1.bf16.msra.mxu0 0
      %8088 = vmatprep.mubr.bf16.mxu0 0
      %8089 = vmatmul.mubr.bf16.gmra.mrb[0].mxu0 %v1123
      %v8090 = vpop.f32.mrb[0].mxu0
      %v8091 = vadd.f32 %v1095, %v8090
      %v8092 = vpop.f32.mrb[0].mxu0
      %v8093 = vadd.f32 %v1095, %v8092
      %v8094 = vpop.f32.mrb[0].mxu0
      %v8095 = vadd.f32 %v1100, %v8094
      %v8096 = vpop.f32.mrb[0].mxu0
      %v8097 = vadd.f32 %v1100, %v8096
      %8098 = vmatprep.mubr.bf16.mxu0 0
      %8099 = vmatmul.mubr.bf16.gmra.mrb[0].mxu0 %v1126
      %v8100 = vpop.f32.mrb[0].mxu0
      %v8101 = vadd.f32 %v1105, %v8100
      %v8102 = vpop.f32.mrb[0].mxu0
      %v8103 = vadd.f32 %v1105, %v8102
      %v8104 = vpop.f32.mrb[0].mxu0
      %v8105 = vadd.f32 %v1110, %v8104
      %v8106 = vpop.f32.mrb[0].mxu0
      %v8107 = vadd.f32 %v1110, %v8106
      %8108 = vdwg.mxu0
      %v8109 = vtanh.pop %v7932
      %v8110 = vtanh.pop %v7934
      %v8111 = vtanh.pop %v7985
      %v8112 = vtanh.pop %v7987
      %v8113 = vtanh.pop %v8038
      %v8114 = vtanh.pop %v8040
      %v8115 = vtanh.pop %v8091
      %v8116 = vtanh.pop %v8093
      %v8117 = vtanh.pop %v7936
      %v8118 = vtanh.pop %v7938
      %v8119 = vtanh.pop %v7989
      %v8120 = vtanh.pop %v7991
      %v8121 = vtanh.pop %v8042
      %v8122 = vtanh.pop %v8044
      %v8123 = vtanh.pop %v8095
      %v8124 = vtanh.pop %v8097
      %v8125 = vtanh.pop %v7942
      %v8126 = vtanh.pop %v7944
      %v8127 = vtanh.pop %v7995
      %v8128 = vtanh.pop %v7997
      %v8129 = vtanh.pop %v8048
      %v8130 = vtanh.pop %v8050
      %v8131 = vtanh.pop %v8101
      %v8132 = vtanh.pop %v8103
      %v8133 = vtanh.pop %v7946
      %v8134 = vtanh.pop %v7948
      %v8135 = vtanh.pop %v7999
      %v8136 = vtanh.pop %v8001
      %v8137 = vtanh.pop %v8052
      %v8138 = vtanh.pop %v8054
      %v8139 = vtanh.pop %v8105
      %v8140 = vtanh.pop %v8107
      %v8141 = vpack.c.bf16 %v8117, %v8109
      %v8142 = vpack.c.bf16 %v8118, %v8110
      %v8143 = vpack.c.bf16 %v8119, %v8111
      %v8144 = vpack.c.bf16 %v8120, %v8112
      %v8145 = vpack.c.bf16 %v8121, %v8113
      %v8146 = vpack.c.bf16 %v8122, %v8114
      %v8147 = vpack.c.bf16 %v8123, %v8115
      %v8148 = vpack.c.bf16 %v8124, %v8116
      %v8149 = vpack.c.bf16 %v8133, %v8125
      %v8150 = vpack.c.bf16 %v8134, %v8126
      %v8151 = vpack.c.bf16 %v8135, %v8127
      %v8152 = vpack.c.bf16 %v8136, %v8128
      %v8153 = vpack.c.bf16 %v8137, %v8129
      %v8154 = vpack.c.bf16 %v8138, %v8130
      %v8155 = vpack.c.bf16 %v8139, %v8131
      %v8156 = vpack.c.bf16 %v8140, %v8132
      %8157 = vmatprep.subr.bf16.mxu0 %v8142
      %8158 = vmatpush1.bf16.msra.mxu0 %v8141
      %8159 = vmatprep.subr.bf16.mxu0 %v8150
      %8160 = vmatpush1.bf16.msra.mxu0 %v8149
      %8161 = vmatprep.subr.bf16.mxu0 0
      %8162 = vmatpush1.bf16.msra.mxu0 0
      %8163 = vmatprep.subr.bf16.mxu0 0
      %8164 = vmatpush1.bf16.msra.mxu0 0
      %8165 = vmatprep.subr.bf16.mxu0 0
      %8166 = vmatpush1.bf16.msra.mxu0 0
      %8167 = vmatprep.subr.bf16.mxu0 0
      %8168 = vmatpush1.bf16.msra.mxu0 0
      %8169 = vmatprep.subr.bf16.mxu0 0
      %8170 = vmatpush1.bf16.msra.mxu0 0
      %8171 = vmatprep.subr.bf16.mxu0 0
      %8172 = vmatpush1.bf16.msra.mxu0 0
      %8173 = vmatprep.subr.bf16.mxu0 0
      %8174 = vmatpush1.bf16.msra.mxu0 0
      %8175 = vmatprep.subr.bf16.mxu0 0
      %8176 = vmatpush1.bf16.msra.mxu0 0
      %8177 = vmatprep.subr.bf16.mxu0 0
      %8178 = vmatpush1.bf16.msra.mxu0 0
      %8179 = vmatprep.subr.bf16.mxu0 0
      %8180 = vmatpush1.bf16.msra.mxu0 0
      %8181 = vmatprep.subr.bf16.mxu0 0
      %8182 = vmatpush1.bf16.msra.mxu0 0
      %8183 = vmatprep.subr.bf16.mxu0 0
      %8184 = vmatpush1.bf16.msra.mxu0 0
      %8185 = vmatprep.subr.bf16.mxu0 0
      %8186 = vmatpush1.bf16.msra.mxu0 0
      %8187 = vmatprep.subr.bf16.mxu0 0
      %8188 = vmatpush1.bf16.msra.mxu0 0
      %8189 = vmatprep.mubr.bf16.mxu0 0
      %8190 = vmatmul.mubr.bf16.gmra.mrb[0].mxu0 %v1419
      %v8191 = vpop.f32.mrb[0].mxu0
      %v8192 = vadd.f32 %v1391, %v8191
      %v8193 = vpop.f32.mrb[0].mxu0
      %v8194 = vadd.f32 %v1391, %v8193
      %v8195 = vpop.f32.mrb[0].mxu0
      %v8196 = vadd.f32 %v1396, %v8195
      %v8197 = vpop.f32.mrb[0].mxu0
      %v8198 = vadd.f32 %v1396, %v8197
      %8199 = vmatprep.mubr.bf16.mxu0 0
      %8200 = vmatmul.mubr.bf16.gmra.mrb[0].mxu0 %v1422
      %v8201 = vpop.f32.mrb[0].mxu0
      %v8202 = vadd.f32 %v1401, %v8201
      %v8203 = vpop.f32.mrb[0].mxu0
      %v8204 = vadd.f32 %v1401, %v8203
      %v8205 = vpop.f32.mrb[0].mxu0
      %v8206 = vadd.f32 %v1406, %v8205
      %v8207 = vpop.f32.mrb[0].mxu0
      %v8208 = vadd.f32 %v1406, %v8207
      %8209 = vdwg.mxu0
      %8210 = vmatprep.subr.bf16.mxu0 %v8144
      %8211 = vmatpush1.bf16.msra.mxu0 %v8143
      %8212 = vmatprep.subr.bf16.mxu0 %v8152
      %8213 = vmatpush1.bf16.msra.mxu0 %v8151
      %8214 = vmatprep.subr.bf16.mxu0 0
      %8215 = vmatpush1.bf16.msra.mxu0 0
      %8216 = vmatprep.subr.bf16.mxu0 0
      %8217 = vmatpush1.bf16.msra.mxu0 0
      %8218 = vmatprep.subr.bf16.mxu0 0
      %8219 = vmatpush1.bf16.msra.mxu0 0
      %8220 = vmatprep.subr.bf16.mxu0 0
      %8221 = vmatpush1.bf16.msra.mxu0 0
      %8222 = vmatprep.subr.bf16.mxu0 0
      %8223 = vmatpush1.bf16.msra.mxu0 0
      %8224 = vmatprep.subr.bf16.mxu0 0
      %8225 = vmatpush1.bf16.msra.mxu0 0
      %8226 = vmatprep.subr.bf16.mxu0 0
      %8227 = vmatpush1.bf16.msra.mxu0 0
      %8228 = vmatprep.subr.bf16.mxu0 0
      %8229 = vmatpush1.bf16.msra.mxu0 0
      %8230 = vmatprep.subr.bf16.mxu0 0
      %8231 = vmatpush1.bf16.msra.mxu0 0
      %8232 = vmatprep.subr.bf16.mxu0 0
      %8233 = vmatpush1.bf16.msra.mxu0 0
      %8234 = vmatprep.subr.bf16.mxu0 0
      %8235 = vmatpush1.bf16.msra.mxu0 0
      %8236 = vmatprep.subr.bf16.mxu0 0
      %8237 = vmatpush1.bf16.msra.mxu0 0
      %8238 = vmatprep.subr.bf16.mxu0 0
      %8239 = vmatpush1.bf16.msra.mxu0 0
      %8240 = vmatprep.subr.bf16.mxu0 0
      %8241 = vmatpush1.bf16.msra.mxu0 0
      %8242 = vmatprep.mubr.bf16.mxu0 0
      %8243 = vmatmul.mubr.bf16.gmra.mrb[0].mxu0 %v1419
      %v8244 = vpop.f32.mrb[0].mxu0
      %v8245 = vadd.f32 %v1391, %v8244
      %v8246 = vpop.f32.mrb[0].mxu0
      %v8247 = vadd.f32 %v1391, %v8246
      %v8248 = vpop.f32.mrb[0].mxu0
      %v8249 = vadd.f32 %v1396, %v8248
      %v8250 = vpop.f32.mrb[0].mxu0
      %v8251 = vadd.f32 %v1396, %v8250
      %8252 = vmatprep.mubr.bf16.mxu0 0
      %8253 = vmatmul.mubr.bf16.gmra.mrb[0].mxu0 %v1422
      %v8254 = vpop.f32.mrb[0].mxu0
      %v8255 = vadd.f32 %v1401, %v8254
      %v8256 = vpop.f32.mrb[0].mxu0
      %v8257 = vadd.f32 %v1401, %v8256
      %v8258 = vpop.f32.mrb[0].mxu0
      %v8259 = vadd.f32 %v1406, %v8258
      %v8260 = vpop.f32.mrb[0].mxu0
      %v8261 = vadd.f32 %v1406, %v8260
      %8262 = vdwg.mxu0
      %8263 = vmatprep.subr.bf16.mxu0 %v8146
      %8264 = vmatpush1.bf16.msra.mxu0 %v8145
      %8265 = vmatprep.subr.bf16.mxu0 %v8154
      %8266 = vmatpush1.bf16.msra.mxu0 %v8153
      %8267 = vmatprep.subr.bf16.mxu0 0
      %8268 = vmatpush1.bf16.msra.mxu0 0
      %8269 = vmatprep.subr.bf16.mxu0 0
      %8270 = vmatpush1.bf16.msra.mxu0 0
      %8271 = vmatprep.subr.bf16.mxu0 0
      %8272 = vmatpush1.bf16.msra.mxu0 0
      %8273 = vmatprep.subr.bf16.mxu0 0
      %8274 = vmatpush1.bf16.msra.mxu0 0
      %8275 = vmatprep.subr.bf16.mxu0 0
      %8276 = vmatpush1.bf16.msra.mxu0 0
      %8277 = vmatprep.subr.bf16.mxu0 0
      %8278 = vmatpush1.bf16.msra.mxu0 0
      %8279 = vmatprep.subr.bf16.mxu0 0
      %8280 = vmatpush1.bf16.msra.mxu0 0
      %8281 = vmatprep.subr.bf16.mxu0 0
      %8282 = vmatpush1.bf16.msra.mxu0 0
      %8283 = vmatprep.subr.bf16.mxu0 0
      %8284 = vmatpush1.bf16.msra.mxu0 0
      %8285 = vmatprep.subr.bf16.mxu0 0
      %8286 = vmatpush1.bf16.msra.mxu0 0
      %8287 = vmatprep.subr.bf16.mxu0 0
      %8288 = vmatpush1.bf16.msra.mxu0 0
      %8289 = vmatprep.subr.bf16.mxu0 0
      %8290 = vmatpush1.bf16.msra.mxu0 0
      %8291 = vmatprep.subr.bf16.mxu0 0
      %8292 = vmatpush1.bf16.msra.mxu0 0
      %8293 = vmatprep.subr.bf16.mxu0 0
      %8294 = vmatpush1.bf16.msra.mxu0 0
      %8295 = vmatprep.mubr.bf16.mxu0 0
      %8296 = vmatmul.mubr.bf16.gmra.mrb[0].mxu0 %v1419
      %v8297 = vpop.f32.mrb[0].mxu0
      %v8298 = vadd.f32 %v1391, %v8297
      %v8299 = vpop.f32.mrb[0].mxu0
      %v8300 = vadd.f32 %v1391, %v8299
      %v8301 = vpop.f32.mrb[0].mxu0
      %v8302 = vadd.f32 %v1396, %v8301
      %v8303 = vpop.f32.mrb[0].mxu0
      %v8304 = vadd.f32 %v1396, %v8303
      %8305 = vmatprep.mubr.bf16.mxu0 0
      %8306 = vmatmul.mubr.bf16.gmra.mrb[0].mxu0 %v1422
      %v8307 = vpop.f32.mrb[0].mxu0
      %v8308 = vadd.f32 %v1401, %v8307
      %v8309 = vpop.f32.mrb[0].mxu0
      %v8310 = vadd.f32 %v1401, %v8309
      %v8311 = vpop.f32.mrb[0].mxu0
      %v8312 = vadd.f32 %v1406, %v8311
      %v8313 = vpop.f32.mrb[0].mxu0
      %v8314 = vadd.f32 %v1406, %v8313
      %8315 = vdwg.mxu0
      %8316 = vmatprep.subr.bf16.mxu0 %v8148
      %8317 = vmatpush1.bf16.msra.mxu0 %v8147
      %8318 = vmatprep.subr.bf16.mxu0 %v8156
      %8319 = vmatpush1.bf16.msra.mxu0 %v8155
      %8320 = vmatprep.subr.bf16.mxu0 0
      %8321 = vmatpush1.bf16.msra.mxu0 0
      %8322 = vmatprep.subr.bf16.mxu0 0
      %8323 = vmatpush1.bf16.msra.mxu0 0
      %8324 = vmatprep.subr.bf16.mxu0 0
      %8325 = vmatpush1.bf16.msra.mxu0 0
      %8326 = vmatprep.subr.bf16.mxu0 0
      %8327 = vmatpush1.bf16.msra.mxu0 0
      %8328 = vmatprep.subr.bf16.mxu0 0
      %8329 = vmatpush1.bf16.msra.mxu0 0
      %8330 = vmatprep.subr.bf16.mxu0 0
      %8331 = vmatpush1.bf16.msra.mxu0 0
      %8332 = vmatprep.subr.bf16.mxu0 0
      %8333 = vmatpush1.bf16.msra.mxu0 0
      %8334 = vmatprep.subr.bf16.mxu0 0
      %8335 = vmatpush1.bf16.msra.mxu0 0
      %8336 = vmatprep.subr.bf16.mxu0 0
      %8337 = vmatpush1.bf16.msra.mxu0 0
      %8338 = vmatprep.subr.bf16.mxu0 0
      %8339 = vmatpush1.bf16.msra.mxu0 0
      %8340 = vmatprep.subr.bf16.mxu0 0
      %8341 = vmatpush1.bf16.msra.mxu0 0
      %8342 = vmatprep.subr.bf16.mxu0 0
      %8343 = vmatpush1.bf16.msra.mxu0 0
      %8344 = vmatprep.subr.bf16.mxu0 0
      %8345 = vmatpush1.bf16.msra.mxu0 0
      %8346 = vmatprep.subr.bf16.mxu0 0
      %8347 = vmatpush1.bf16.msra.mxu0 0
      %8348 = vmatprep.mubr.bf16.mxu0 0
      %8349 = vmatmul.mubr.bf16.gmra.mrb[0].mxu0 %v1419
      %v8350 = vpop.f32.mrb[0].mxu0
      %v8351 = vadd.f32 %v1391, %v8350
      %v8352 = vpop.f32.mrb[0].mxu0
      %v8353 = vadd.f32 %v1391, %v8352
      %v8354 = vpop.f32.mrb[0].mxu0
      %v8355 = vadd.f32 %v1396, %v8354
      %v8356 = vpop.f32.mrb[0].mxu0
      %v8357 = vadd.f32 %v1396, %v8356
      %8358 = vmatprep.mubr.bf16.mxu0 0
      %8359 = vmatmul.mubr.bf16.gmra.mrb[0].mxu0 %v1422
      %v8360 = vpop.f32.mrb[0].mxu0
      %v8361 = vadd.f32 %v1401, %v8360
      %v8362 = vpop.f32.mrb[0].mxu0
      %v8363 = vadd.f32 %v1401, %v8362
      %v8364 = vpop.f32.mrb[0].mxu0
      %v8365 = vadd.f32 %v1406, %v8364
      %v8366 = vpop.f32.mrb[0].mxu0
      %v8367 = vadd.f32 %v1406, %v8366
      %8368 = vdwg.mxu0
      %v8369 = vtanh.pop %v8192
      %v8370 = vtanh.pop %v8194
      %v8371 = vtanh.pop %v8245
      %v8372 = vtanh.pop %v8247
      %v8373 = vtanh.pop %v8298
      %v8374 = vtanh.pop %v8300
      %v8375 = vtanh.pop %v8351
      %v8376 = vtanh.pop %v8353
      %v8377 = vtanh.pop %v8196
      %v8378 = vtanh.pop %v8198
      %v8379 = vtanh.pop %v8249
      %v8380 = vtanh.pop %v8251
      %v8381 = vtanh.pop %v8302
      %v8382 = vtanh.pop %v8304
      %v8383 = vtanh.pop %v8355
      %v8384 = vtanh.pop %v8357
      %v8385 = vtanh.pop %v8202
      %v8386 = vtanh.pop %v8204
      %v8387 = vtanh.pop %v8255
      %v8388 = vtanh.pop %v8257
      %v8389 = vtanh.pop %v8308
      %v8390 = vtanh.pop %v8310
      %v8391 = vtanh.pop %v8361
      %v8392 = vtanh.pop %v8363
      %v8393 = vtanh.pop %v8206
      %v8394 = vtanh.pop %v8208
      %v8395 = vtanh.pop %v8259
      %v8396 = vtanh.pop %v8261
      %v8397 = vtanh.pop %v8312
      %v8398 = vtanh.pop %v8314
      %v8399 = vtanh.pop %v8365
      %v8400 = vtanh.pop %v8367
      %v8401 = vmul.f32 %v1671, %v8369
      %v8402 = vmul.f32 %v1671, %v8370
      %v8403 = vmul.f32 %v1671, %v8371
      %v8404 = vmul.f32 %v1671, %v8372
      %v8405 = vmul.f32 %v1671, %v8373
      %v8406 = vmul.f32 %v1671, %v8374
      %v8407 = vmul.f32 %v1671, %v8375
      %v8408 = vmul.f32 %v1671, %v8376
      %v8409 = vmul.f32 %v1676, %v8377
      %v8410 = vmul.f32 %v1676, %v8378
      %v8411 = vmul.f32 %v1676, %v8379
      %v8412 = vmul.f32 %v1676, %v8380
      %v8413 = vmul.f32 %v1676, %v8381
      %v8414 = vmul.f32 %v1676, %v8382
      %v8415 = vmul.f32 %v1676, %v8383
      %v8416 = vmul.f32 %v1676, %v8384
      %v8417 = vmul.f32 %v1681, %v8385
      %v8418 = vmul.f32 %v1681, %v8386
      %v8419 = vmul.f32 %v1681, %v8387
      %v8420 = vmul.f32 %v1681, %v8388
      %v8421 = vmul.f32 %v1681, %v8389
      %v8422 = vmul.f32 %v1681, %v8390
      %v8423 = vmul.f32 %v1681, %v8391
      %v8424 = vmul.f32 %v1681, %v8392
      %v8425 = vmul.f32 %v1686, %v8393
      %v8426 = vmul.f32 %v1686, %v8394
      %v8427 = vmul.f32 %v1686, %v8395
      %v8428 = vmul.f32 %v1686, %v8396
      %v8429 = vmul.f32 %v1686, %v8397
      %v8430 = vmul.f32 %v1686, %v8398
      %v8431 = vmul.f32 %v1686, %v8399
      %v8432 = vmul.f32 %v1686, %v8400
      %v8433 = vadd.f32 %v8401, %v8409
      %v8434 = vadd.f32 %v8433, %v8417
      %v8435 = vadd.f32 %v8434, %v8425
      %v8436 = vrot.slane %v8435, 4
      %v8437 = vadd.f32 %v8435, %v8436
      %v8438 = vrot.slane %v8437, 2
      %v8439 = vadd.f32 %v8437, %v8438
      %v8440 = vrot.slane %v8439, 1
      %v8441 = vadd.f32 %v8439, %v8440
      %v8442 = vadd.f32 %v8402, %v8410
      %v8443 = vadd.f32 %v8442, %v8418
      %v8444 = vadd.f32 %v8443, %v8426
      %v8445 = vrot.slane %v8444, 4
      %v8446 = vadd.f32 %v8444, %v8445
      %v8447 = vrot.slane %v8446, 2
      %v8448 = vadd.f32 %v8446, %v8447
      %v8449 = vrot.slane %v8448, 1
      %v8450 = vadd.f32 %v8448, %v8449
      %v8451 = vadd.f32 %v8403, %v8411
      %v8452 = vadd.f32 %v8451, %v8419
      %v8453 = vadd.f32 %v8452, %v8427
      %v8454 = vrot.slane %v8453, 4
      %v8455 = vadd.f32 %v8453, %v8454
      %v8456 = vrot.slane %v8455, 2
      %v8457 = vadd.f32 %v8455, %v8456
      %v8458 = vrot.slane %v8457, 1
      %v8459 = vadd.f32 %v8457, %v8458
      %v8460 = vadd.f32 %v8404, %v8412
      %v8461 = vadd.f32 %v8460, %v8420
      %v8462 = vadd.f32 %v8461, %v8428
      %v8463 = vrot.slane %v8462, 4
      %v8464 = vadd.f32 %v8462, %v8463
      %v8465 = vrot.slane %v8464, 2
      %v8466 = vadd.f32 %v8464, %v8465
      %v8467 = vrot.slane %v8466, 1
      %v8468 = vadd.f32 %v8466, %v8467
      %v8469 = vadd.f32 %v8405, %v8413
      %v8470 = vadd.f32 %v8469, %v8421
      %v8471 = vadd.f32 %v8470, %v8429
      %v8472 = vrot.slane %v8471, 4
      %v8473 = vadd.f32 %v8471, %v8472
      %v8474 = vrot.slane %v8473, 2
      %v8475 = vadd.f32 %v8473, %v8474
      %v8476 = vrot.slane %v8475, 1
      %v8477 = vadd.f32 %v8475, %v8476
      %v8478 = vadd.f32 %v8406, %v8414
      %v8479 = vadd.f32 %v8478, %v8422
      %v8480 = vadd.f32 %v8479, %v8430
      %v8481 = vrot.slane %v8480, 4
      %v8482 = vadd.f32 %v8480, %v8481
      %v8483 = vrot.slane %v8482, 2
      %v8484 = vadd.f32 %v8482, %v8483
      %v8485 = vrot.slane %v8484, 1
      %v8486 = vadd.f32 %v8484, %v8485
      %v8487 = vadd.f32 %v8407, %v8415
      %v8488 = vadd.f32 %v8487, %v8423
      %v8489 = vadd.f32 %v8488, %v8431
      %v8490 = vrot.slane %v8489, 4
      %v8491 = vadd.f32 %v8489, %v8490
      %v8492 = vrot.slane %v8491, 2
      %v8493 = vadd.f32 %v8491, %v8492
      %v8494 = vrot.slane %v8493, 1
      %v8495 = vadd.f32 %v8493, %v8494
      %v8496 = vadd.f32 %v8408, %v8416
      %v8497 = vadd.f32 %v8496, %v8424
      %v8498 = vadd.f32 %v8497, %v8432
      %v8499 = vrot.slane %v8498, 4
      %v8500 = vadd.f32 %v8498, %v8499
      %v8501 = vrot.slane %v8500, 2
      %v8502 = vadd.f32 %v8500, %v8501
      %v8503 = vrot.slane %v8502, 1
      %v8504 = vadd.f32 %v8502, %v8503
      %v8505 = vadd.f32 %v8441, %v1800
      %v8506 = vadd.f32 %v8450, %v1800
      %v8507 = vadd.f32 %v8459, %v1800
      %v8508 = vadd.f32 %v8468, %v1800
      %v8509 = vadd.f32 %v8477, %v1800
      %v8510 = vadd.f32 %v8486, %v1800
      %v8511 = vadd.f32 %v8495, %v1800
      %v8512 = vadd.f32 %v8504, %v1800
      %v8521 = vcombine.low %v8505, %v8506
      %v8522 = vcombine.low %v8507, %v8508
      %v8523 = vcombine.low %v8509, %v8510
      %v8524 = vcombine.low %v8511, %v8512
      %v8526 = vunpack.c.l.s4 1966171168
      %v8527 = vunpack.c.0.s8 %v8526
      %v8528 = vlaneseq
      %v8529 = vshrl.u32 %v8528, 7
      %v8530 = vsub.s32 %v8527, %v8529
      %v8531 = vrot.slane %v8521, %v8530
      %v8533 = vunpack.c.l.s4 1966171168
      %v8534 = vunpack.c.0.s8 %v8533
      %v8535 = vlaneseq
      %v8536 = vshrl.u32 %v8535, 7
      %v8537 = vsub.s32 %v8534, %v8536
      %v8538 = vrot.slane %v8522, %v8537
      %v8540 = vunpack.c.l.s4 1966171168
      %v8541 = vunpack.c.0.s8 %v8540
      %v8542 = vlaneseq
      %v8543 = vshrl.u32 %v8542, 7
      %v8544 = vsub.s32 %v8541, %v8543
      %v8545 = vrot.slane %v8523, %v8544
      %v8547 = vunpack.c.l.s4 1966171168
      %v8548 = vunpack.c.0.s8 %v8547
      %v8549 = vlaneseq
      %v8550 = vshrl.u32 %v8549, 7
      %v8551 = vsub.s32 %v8548, %v8550
      %v8552 = vrot.slane %v8524, %v8551
      %v8553 = vcombine.low %v8531, %v8538
      %v8554 = vcombine.low %v8545, %v8552
      %v8556 = vunpack.c.l.s4 1966171168
      %v8557 = vunpack.c.0.s8 %v8556
      %v8558 = vlaneseq
      %v8559 = vshrl.u32 %v8558, 7
      %v8560 = vsub.s32 %v8557, %v8559
      %v8561 = vrot.slane %v8553, %v8560
      %v8563 = vunpack.c.l.s4 1966171168
      %v8564 = vunpack.c.0.s8 %v8563
      %v8565 = vlaneseq
      %v8566 = vshrl.u32 %v8565, 7
      %v8567 = vsub.s32 %v8564, %v8566
      %v8568 = vrot.slane %v8554, %v8567
      %v8569 = vcombine.low %v8561, %v8568
      %s8571 = scalar_lea.vmem %s253, 5
      %8572 = vst [vmem:[%s8571] ss:$8 sm:$0xf] %v8569
      %8573 = vst [vmem:[%s8571] ss:$8 sm:$0xf0] %v8569
      %v8574 = vlaneseq
      %v8575 = vshrl.u32 %v8574, 7
      %v8576 = vsub.s32 6, %v8575
      %v8577 = vrot.slane %v307, %v8576
      %v8578 = vlaneseq
      %v8579 = vshrl.u32 %v8578, 7
      %v8580 = vsub.s32 6, %v8579
      %v8581 = vrot.slane %v308, %v8580
      %v8582 = vlaneseq
      %v8583 = vshrl.u32 %v8582, 7
      %v8584 = vsub.s32 6, %v8583
      %v8585 = vrot.slane %v309, %v8584
      %v8586 = vlaneseq
      %v8587 = vshrl.u32 %v8586, 7
      %v8588 = vsub.s32 6, %v8587
      %v8589 = vrot.slane %v310, %v8588
      %v8590 = vlaneseq
      %v8591 = vshrl.u32 %v8590, 7
      %v8592 = vsub.s32 6, %v8591
      %v8593 = vrot.slane %v311, %v8592
      %v8594 = vlaneseq
      %v8595 = vshrl.u32 %v8594, 7
      %v8596 = vsub.s32 6, %v8595
      %v8597 = vrot.slane %v312, %v8596
      %v8598 = vlaneseq
      %v8599 = vshrl.u32 %v8598, 7
      %v8600 = vsub.s32 6, %v8599
      %v8601 = vrot.slane %v313, %v8600
      %v8602 = vlaneseq
      %v8603 = vshrl.u32 %v8602, 7
      %v8604 = vsub.s32 6, %v8603
      %v8605 = vrot.slane %v314, %v8604
      %v8606 = vmul.f32 %v318, %v8577
      %v8607 = vmul.f32 %v318, %v8581
      %v8608 = vmul.f32 %v318, %v8585
      %v8609 = vmul.f32 %v318, %v8589
      %v8610 = vmul.f32 %v318, %v8593
      %v8611 = vmul.f32 %v318, %v8597
      %v8612 = vmul.f32 %v318, %v8601
      %v8613 = vmul.f32 %v318, %v8605
      %v8614 = vmul.f32 %v323, %v8577
      %v8615 = vmul.f32 %v323, %v8581
      %v8616 = vmul.f32 %v323, %v8585
      %v8617 = vmul.f32 %v323, %v8589
      %v8618 = vmul.f32 %v323, %v8593
      %v8619 = vmul.f32 %v323, %v8597
      %v8620 = vmul.f32 %v323, %v8601
      %v8621 = vmul.f32 %v323, %v8605
      %v8622 = vmul.f32 %v328, %v8577
      %v8623 = vmul.f32 %v328, %v8581
      %v8624 = vmul.f32 %v328, %v8585
      %v8625 = vmul.f32 %v328, %v8589
      %v8626 = vmul.f32 %v328, %v8593
      %v8627 = vmul.f32 %v328, %v8597
      %v8628 = vmul.f32 %v328, %v8601
      %v8629 = vmul.f32 %v328, %v8605
      %v8630 = vmul.f32 %v333, %v8577
      %v8631 = vmul.f32 %v333, %v8581
      %v8632 = vmul.f32 %v333, %v8585
      %v8633 = vmul.f32 %v333, %v8589
      %v8634 = vmul.f32 %v333, %v8593
      %v8635 = vmul.f32 %v333, %v8597
      %v8636 = vmul.f32 %v333, %v8601
      %v8637 = vmul.f32 %v333, %v8605
      %v8638 = vadd.f32 %v8606, %v402
      %v8639 = vadd.f32 %v8607, %v402
      %v8640 = vadd.f32 %v8608, %v402
      %v8641 = vadd.f32 %v8609, %v402
      %v8642 = vadd.f32 %v8610, %v402
      %v8643 = vadd.f32 %v8611, %v402
      %v8644 = vadd.f32 %v8612, %v402
      %v8645 = vadd.f32 %v8613, %v402
      %v8646 = vadd.f32 %v8614, %v407
      %v8647 = vadd.f32 %v8615, %v407
      %v8648 = vadd.f32 %v8616, %v407
      %v8649 = vadd.f32 %v8617, %v407
      %v8650 = vadd.f32 %v8618, %v407
      %v8651 = vadd.f32 %v8619, %v407
      %v8652 = vadd.f32 %v8620, %v407
      %v8653 = vadd.f32 %v8621, %v407
      %v8654 = vadd.f32 %v8622, %v412
      %v8655 = vadd.f32 %v8623, %v412
      %v8656 = vadd.f32 %v8624, %v412
      %v8657 = vadd.f32 %v8625, %v412
      %v8658 = vadd.f32 %v8626, %v412
      %v8659 = vadd.f32 %v8627, %v412
      %v8660 = vadd.f32 %v8628, %v412
      %v8661 = vadd.f32 %v8629, %v412
      %v8662 = vadd.f32 %v8630, %v417
      %v8663 = vadd.f32 %v8631, %v417
      %v8664 = vadd.f32 %v8632, %v417
      %v8665 = vadd.f32 %v8633, %v417
      %v8666 = vadd.f32 %v8634, %v417
      %v8667 = vadd.f32 %v8635, %v417
      %v8668 = vadd.f32 %v8636, %v417
      %v8669 = vadd.f32 %v8637, %v417
      %v8670 = vtanh.pop %v8638
      %v8671 = vtanh.pop %v8639
      %v8672 = vtanh.pop %v8640
      %v8673 = vtanh.pop %v8641
      %v8674 = vtanh.pop %v8642
      %v8675 = vtanh.pop %v8643
      %v8676 = vtanh.pop %v8644
      %v8677 = vtanh.pop %v8645
      %v8678 = vtanh.pop %v8646
      %v8679 = vtanh.pop %v8647
      %v8680 = vtanh.pop %v8648
      %v8681 = vtanh.pop %v8649
      %v8682 = vtanh.pop %v8650
      %v8683 = vtanh.pop %v8651
      %v8684 = vtanh.pop %v8652
      %v8685 = vtanh.pop %v8653
      %v8686 = vtanh.pop %v8654
      %v8687 = vtanh.pop %v8655
      %v8688 = vtanh.pop %v8656
      %v8689 = vtanh.pop %v8657
      %v8690 = vtanh.pop %v8658
      %v8691 = vtanh.pop %v8659
      %v8692 = vtanh.pop %v8660
      %v8693 = vtanh.pop %v8661
      %v8694 = vtanh.pop %v8662
      %v8695 = vtanh.pop %v8663
      %v8696 = vtanh.pop %v8664
      %v8697 = vtanh.pop %v8665
      %v8698 = vtanh.pop %v8666
      %v8699 = vtanh.pop %v8667
      %v8700 = vtanh.pop %v8668
      %v8701 = vtanh.pop %v8669
      %v8702 = vpack.c.bf16 %v8678, %v8670
      %v8703 = vpack.c.bf16 %v8679, %v8671
      %v8704 = vpack.c.bf16 %v8680, %v8672
      %v8705 = vpack.c.bf16 %v8681, %v8673
      %v8706 = vpack.c.bf16 %v8682, %v8674
      %v8707 = vpack.c.bf16 %v8683, %v8675
      %v8708 = vpack.c.bf16 %v8684, %v8676
      %v8709 = vpack.c.bf16 %v8685, %v8677
      %v8710 = vpack.c.bf16 %v8694, %v8686
      %v8711 = vpack.c.bf16 %v8695, %v8687
      %v8712 = vpack.c.bf16 %v8696, %v8688
      %v8713 = vpack.c.bf16 %v8697, %v8689
      %v8714 = vpack.c.bf16 %v8698, %v8690
      %v8715 = vpack.c.bf16 %v8699, %v8691
      %v8716 = vpack.c.bf16 %v8700, %v8692
      %v8717 = vpack.c.bf16 %v8701, %v8693
      %8718 = vmatprep.subr.bf16.mxu0 %v8703
      %8719 = vmatpush1.bf16.msra.mxu0 %v8702
      %8720 = vmatprep.subr.bf16.mxu0 %v8711
      %8721 = vmatpush1.bf16.msra.mxu0 %v8710
      %8722 = vmatprep.subr.bf16.mxu0 0
      %8723 = vmatpush1.bf16.msra.mxu0 0
      %8724 = vmatprep.subr.bf16.mxu0 0
      %8725 = vmatpush1.bf16.msra.mxu0 0
      %8726 = vmatprep.subr.bf16.mxu0 0
      %8727 = vmatpush1.bf16.msra.mxu0 0
      %8728 = vmatprep.subr.bf16.mxu0 0
      %8729 = vmatpush1.bf16.msra.mxu0 0
      %8730 = vmatprep.subr.bf16.mxu0 0
      %8731 = vmatpush1.bf16.msra.mxu0 0
      %8732 = vmatprep.subr.bf16.mxu0 0
      %8733 = vmatpush1.bf16.msra.mxu0 0
      %8734 = vmatprep.subr.bf16.mxu0 0
      %8735 = vmatpush1.bf16.msra.mxu0 0
      %8736 = vmatprep.subr.bf16.mxu0 0
      %8737 = vmatpush1.bf16.msra.mxu0 0
      %8738 = vmatprep.subr.bf16.mxu0 0
      %8739 = vmatpush1.bf16.msra.mxu0 0
      %8740 = vmatprep.subr.bf16.mxu0 0
      %8741 = vmatpush1.bf16.msra.mxu0 0
      %8742 = vmatprep.subr.bf16.mxu0 0
      %8743 = vmatpush1.bf16.msra.mxu0 0
      %8744 = vmatprep.subr.bf16.mxu0 0
      %8745 = vmatpush1.bf16.msra.mxu0 0
      %8746 = vmatprep.subr.bf16.mxu0 0
      %8747 = vmatpush1.bf16.msra.mxu0 0
      %8748 = vmatprep.subr.bf16.mxu0 0
      %8749 = vmatpush1.bf16.msra.mxu0 0
      %8750 = vmatprep.mubr.bf16.mxu0 0
      %8751 = vmatmul.mubr.bf16.gmra.mrb[0].mxu0 %v531
      %v8752 = vpop.f32.mrb[0].mxu0
      %v8753 = vadd.f32 %v502, %v8752
      %v8754 = vpop.f32.mrb[0].mxu0
      %v8755 = vadd.f32 %v502, %v8754
      %v8756 = vpop.f32.mrb[0].mxu0
      %v8757 = vadd.f32 %v507, %v8756
      %v8758 = vpop.f32.mrb[0].mxu0
      %v8759 = vadd.f32 %v507, %v8758
      %8760 = vmatprep.mubr.bf16.mxu0 0
      %8761 = vmatmul.mubr.bf16.gmra.mrb[0].mxu0 %v534
      %v8762 = vpop.f32.mrb[0].mxu0
      %v8763 = vadd.f32 %v512, %v8762
      %v8764 = vpop.f32.mrb[0].mxu0
      %v8765 = vadd.f32 %v512, %v8764
      %v8766 = vpop.f32.mrb[0].mxu0
      %v8767 = vadd.f32 %v517, %v8766
      %v8768 = vpop.f32.mrb[0].mxu0
      %v8769 = vadd.f32 %v517, %v8768
      %8770 = vdwg.mxu0
      %8771 = vmatprep.subr.bf16.mxu0 %v8705
      %8772 = vmatpush1.bf16.msra.mxu0 %v8704
      %8773 = vmatprep.subr.bf16.mxu0 %v8713
      %8774 = vmatpush1.bf16.msra.mxu0 %v8712
      %8775 = vmatprep.subr.bf16.mxu0 0
      %8776 = vmatpush1.bf16.msra.mxu0 0
      %8777 = vmatprep.subr.bf16.mxu0 0
      %8778 = vmatpush1.bf16.msra.mxu0 0
      %8779 = vmatprep.subr.bf16.mxu0 0
      %8780 = vmatpush1.bf16.msra.mxu0 0
      %8781 = vmatprep.subr.bf16.mxu0 0
      %8782 = vmatpush1.bf16.msra.mxu0 0
      %8783 = vmatprep.subr.bf16.mxu0 0
      %8784 = vmatpush1.bf16.msra.mxu0 0
      %8785 = vmatprep.subr.bf16.mxu0 0
      %8786 = vmatpush1.bf16.msra.mxu0 0
      %8787 = vmatprep.subr.bf16.mxu0 0
      %8788 = vmatpush1.bf16.msra.mxu0 0
      %8789 = vmatprep.subr.bf16.mxu0 0
      %8790 = vmatpush1.bf16.msra.mxu0 0
      %8791 = vmatprep.subr.bf16.mxu0 0
      %8792 = vmatpush1.bf16.msra.mxu0 0
      %8793 = vmatprep.subr.bf16.mxu0 0
      %8794 = vmatpush1.bf16.msra.mxu0 0
      %8795 = vmatprep.subr.bf16.mxu0 0
      %8796 = vmatpush1.bf16.msra.mxu0 0
      %8797 = vmatprep.subr.bf16.mxu0 0
      %8798 = vmatpush1.bf16.msra.mxu0 0
      %8799 = vmatprep.subr.bf16.mxu0 0
      %8800 = vmatpush1.bf16.msra.mxu0 0
      %8801 = vmatprep.subr.bf16.mxu0 0
      %8802 = vmatpush1.bf16.msra.mxu0 0
      %8803 = vmatprep.mubr.bf16.mxu0 0
      %8804 = vmatmul.mubr.bf16.gmra.mrb[0].mxu0 %v531
      %v8805 = vpop.f32.mrb[0].mxu0
      %v8806 = vadd.f32 %v502, %v8805
      %v8807 = vpop.f32.mrb[0].mxu0
      %v8808 = vadd.f32 %v502, %v8807
      %v8809 = vpop.f32.mrb[0].mxu0
      %v8810 = vadd.f32 %v507, %v8809
      %v8811 = vpop.f32.mrb[0].mxu0
      %v8812 = vadd.f32 %v507, %v8811
      %8813 = vmatprep.mubr.bf16.mxu0 0
      %8814 = vmatmul.mubr.bf16.gmra.mrb[0].mxu0 %v534
      %v8815 = vpop.f32.mrb[0].mxu0
      %v8816 = vadd.f32 %v512, %v8815
      %v8817 = vpop.f32.mrb[0].mxu0
      %v8818 = vadd.f32 %v512, %v8817
      %v8819 = vpop.f32.mrb[0].mxu0
      %v8820 = vadd.f32 %v517, %v8819
      %v8821 = vpop.f32.mrb[0].mxu0
      %v8822 = vadd.f32 %v517, %v8821
      %8823 = vdwg.mxu0
      %8824 = vmatprep.subr.bf16.mxu0 %v8707
      %8825 = vmatpush1.bf16.msra.mxu0 %v8706
      %8826 = vmatprep.subr.bf16.mxu0 %v8715
      %8827 = vmatpush1.bf16.msra.mxu0 %v8714
      %8828 = vmatprep.subr.bf16.mxu0 0
      %8829 = vmatpush1.bf16.msra.mxu0 0
      %8830 = vmatprep.subr.bf16.mxu0 0
      %8831 = vmatpush1.bf16.msra.mxu0 0
      %8832 = vmatprep.subr.bf16.mxu0 0
      %8833 = vmatpush1.bf16.msra.mxu0 0
      %8834 = vmatprep.subr.bf16.mxu0 0
      %8835 = vmatpush1.bf16.msra.mxu0 0
      %8836 = vmatprep.subr.bf16.mxu0 0
      %8837 = vmatpush1.bf16.msra.mxu0 0
      %8838 = vmatprep.subr.bf16.mxu0 0
      %8839 = vmatpush1.bf16.msra.mxu0 0
      %8840 = vmatprep.subr.bf16.mxu0 0
      %8841 = vmatpush1.bf16.msra.mxu0 0
      %8842 = vmatprep.subr.bf16.mxu0 0
      %8843 = vmatpush1.bf16.msra.mxu0 0
      %8844 = vmatprep.subr.bf16.mxu0 0
      %8845 = vmatpush1.bf16.msra.mxu0 0
      %8846 = vmatprep.subr.bf16.mxu0 0
      %8847 = vmatpush1.bf16.msra.mxu0 0
      %8848 = vmatprep.subr.bf16.mxu0 0
      %8849 = vmatpush1.bf16.msra.mxu0 0
      %8850 = vmatprep.subr.bf16.mxu0 0
      %8851 = vmatpush1.bf16.msra.mxu0 0
      %8852 = vmatprep.subr.bf16.mxu0 0
      %8853 = vmatpush1.bf16.msra.mxu0 0
      %8854 = vmatprep.subr.bf16.mxu0 0
      %8855 = vmatpush1.bf16.msra.mxu0 0
      %8856 = vmatprep.mubr.bf16.mxu0 0
      %8857 = vmatmul.mubr.bf16.gmra.mrb[0].mxu0 %v531
      %v8858 = vpop.f32.mrb[0].mxu0
      %v8859 = vadd.f32 %v502, %v8858
      %v8860 = vpop.f32.mrb[0].mxu0
      %v8861 = vadd.f32 %v502, %v8860
      %v8862 = vpop.f32.mrb[0].mxu0
      %v8863 = vadd.f32 %v507, %v8862
      %v8864 = vpop.f32.mrb[0].mxu0
      %v8865 = vadd.f32 %v507, %v8864
      %8866 = vmatprep.mubr.bf16.mxu0 0
      %8867 = vmatmul.mubr.bf16.gmra.mrb[0].mxu0 %v534
      %v8868 = vpop.f32.mrb[0].mxu0
      %v8869 = vadd.f32 %v512, %v8868
      %v8870 = vpop.f32.mrb[0].mxu0
      %v8871 = vadd.f32 %v512, %v8870
      %v8872 = vpop.f32.mrb[0].mxu0
      %v8873 = vadd.f32 %v517, %v8872
      %v8874 = vpop.f32.mrb[0].mxu0
      %v8875 = vadd.f32 %v517, %v8874
      %8876 = vdwg.mxu0
      %8877 = vmatprep.subr.bf16.mxu0 %v8709
      %8878 = vmatpush1.bf16.msra.mxu0 %v8708
      %8879 = vmatprep.subr.bf16.mxu0 %v8717
      %8880 = vmatpush1.bf16.msra.mxu0 %v8716
      %8881 = vmatprep.subr.bf16.mxu0 0
      %8882 = vmatpush1.bf16.msra.mxu0 0
      %8883 = vmatprep.subr.bf16.mxu0 0
      %8884 = vmatpush1.bf16.msra.mxu0 0
      %8885 = vmatprep.subr.bf16.mxu0 0
      %8886 = vmatpush1.bf16.msra.mxu0 0
      %8887 = vmatprep.subr.bf16.mxu0 0
      %8888 = vmatpush1.bf16.msra.mxu0 0
      %8889 = vmatprep.subr.bf16.mxu0 0
      %8890 = vmatpush1.bf16.msra.mxu0 0
      %8891 = vmatprep.subr.bf16.mxu0 0
      %8892 = vmatpush1.bf16.msra.mxu0 0
      %8893 = vmatprep.subr.bf16.mxu0 0
      %8894 = vmatpush1.bf16.msra.mxu0 0
      %8895 = vmatprep.subr.bf16.mxu0 0
      %8896 = vmatpush1.bf16.msra.mxu0 0
      %8897 = vmatprep.subr.bf16.mxu0 0
      %8898 = vmatpush1.bf16.msra.mxu0 0
      %8899 = vmatprep.subr.bf16.mxu0 0
      %8900 = vmatpush1.bf16.msra.mxu0 0
      %8901 = vmatprep.subr.bf16.mxu0 0
      %8902 = vmatpush1.bf16.msra.mxu0 0
      %8903 = vmatprep.subr.bf16.mxu0 0
      %8904 = vmatpush1.bf16.msra.mxu0 0
      %8905 = vmatprep.subr.bf16.mxu0 0
      %8906 = vmatpush1.bf16.msra.mxu0 0
      %8907 = vmatprep.subr.bf16.mxu0 0
      %8908 = vmatpush1.bf16.msra.mxu0 0
      %8909 = vmatprep.mubr.bf16.mxu0 0
      %8910 = vmatmul.mubr.bf16.gmra.mrb[0].mxu0 %v531
      %v8911 = vpop.f32.mrb[0].mxu0
      %v8912 = vadd.f32 %v502, %v8911
      %v8913 = vpop.f32.mrb[0].mxu0
      %v8914 = vadd.f32 %v502, %v8913
      %v8915 = vpop.f32.mrb[0].mxu0
      %v8916 = vadd.f32 %v507, %v8915
      %v8917 = vpop.f32.mrb[0].mxu0
      %v8918 = vadd.f32 %v507, %v8917
      %8919 = vmatprep.mubr.bf16.mxu0 0
      %8920 = vmatmul.mubr.bf16.gmra.mrb[0].mxu0 %v534
      %v8921 = vpop.f32.mrb[0].mxu0
      %v8922 = vadd.f32 %v512, %v8921
      %v8923 = vpop.f32.mrb[0].mxu0
      %v8924 = vadd.f32 %v512, %v8923
      %v8925 = vpop.f32.mrb[0].mxu0
      %v8926 = vadd.f32 %v517, %v8925
      %v8927 = vpop.f32.mrb[0].mxu0
      %v8928 = vadd.f32 %v517, %v8927
      %8929 = vdwg.mxu0
      %v8930 = vtanh.pop %v8753
      %v8931 = vtanh.pop %v8755
      %v8932 = vtanh.pop %v8806
      %v8933 = vtanh.pop %v8808
      %v8934 = vtanh.pop %v8859
      %v8935 = vtanh.pop %v8861
      %v8936 = vtanh.pop %v8912
      %v8937 = vtanh.pop %v8914
      %v8938 = vtanh.pop %v8757
      %v8939 = vtanh.pop %v8759
      %v8940 = vtanh.pop %v8810
      %v8941 = vtanh.pop %v8812
      %v8942 = vtanh.pop %v8863
      %v8943 = vtanh.pop %v8865
      %v8944 = vtanh.pop %v8916
      %v8945 = vtanh.pop %v8918
      %v8946 = vtanh.pop %v8763
      %v8947 = vtanh.pop %v8765
      %v8948 = vtanh.pop %v8816
      %v8949 = vtanh.pop %v8818
      %v8950 = vtanh.pop %v8869
      %v8951 = vtanh.pop %v8871
      %v8952 = vtanh.pop %v8922
      %v8953 = vtanh.pop %v8924
      %v8954 = vtanh.pop %v8767
      %v8955 = vtanh.pop %v8769
      %v8956 = vtanh.pop %v8820
      %v8957 = vtanh.pop %v8822
      %v8958 = vtanh.pop %v8873
      %v8959 = vtanh.pop %v8875
      %v8960 = vtanh.pop %v8926
      %v8961 = vtanh.pop %v8928
      %v8962 = vpack.c.bf16 %v8938, %v8930
      %v8963 = vpack.c.bf16 %v8939, %v8931
      %v8964 = vpack.c.bf16 %v8940, %v8932
      %v8965 = vpack.c.bf16 %v8941, %v8933
      %v8966 = vpack.c.bf16 %v8942, %v8934
      %v8967 = vpack.c.bf16 %v8943, %v8935
      %v8968 = vpack.c.bf16 %v8944, %v8936
      %v8969 = vpack.c.bf16 %v8945, %v8937
      %v8970 = vpack.c.bf16 %v8954, %v8946
      %v8971 = vpack.c.bf16 %v8955, %v8947
      %v8972 = vpack.c.bf16 %v8956, %v8948
      %v8973 = vpack.c.bf16 %v8957, %v8949
      %v8974 = vpack.c.bf16 %v8958, %v8950
      %v8975 = vpack.c.bf16 %v8959, %v8951
      %v8976 = vpack.c.bf16 %v8960, %v8952
      %v8977 = vpack.c.bf16 %v8961, %v8953
      %8978 = vmatprep.subr.bf16.mxu0 %v8963
      %8979 = vmatpush1.bf16.msra.mxu0 %v8962
      %8980 = vmatprep.subr.bf16.mxu0 %v8971
      %8981 = vmatpush1.bf16.msra.mxu0 %v8970
      %8982 = vmatprep.subr.bf16.mxu0 0
      %8983 = vmatpush1.bf16.msra.mxu0 0
      %8984 = vmatprep.subr.bf16.mxu0 0
      %8985 = vmatpush1.bf16.msra.mxu0 0
      %8986 = vmatprep.subr.bf16.mxu0 0
      %8987 = vmatpush1.bf16.msra.mxu0 0
      %8988 = vmatprep.subr.bf16.mxu0 0
      %8989 = vmatpush1.bf16.msra.mxu0 0
      %8990 = vmatprep.subr.bf16.mxu0 0
      %8991 = vmatpush1.bf16.msra.mxu0 0
      %8992 = vmatprep.subr.bf16.mxu0 0
      %8993 = vmatpush1.bf16.msra.mxu0 0
      %8994 = vmatprep.subr.bf16.mxu0 0
      %8995 = vmatpush1.bf16.msra.mxu0 0
      %8996 = vmatprep.subr.bf16.mxu0 0
      %8997 = vmatpush1.bf16.msra.mxu0 0
      %8998 = vmatprep.subr.bf16.mxu0 0
      %8999 = vmatpush1.bf16.msra.mxu0 0
      %9000 = vmatprep.subr.bf16.mxu0 0
      %9001 = vmatpush1.bf16.msra.mxu0 0
      %9002 = vmatprep.subr.bf16.mxu0 0
      %9003 = vmatpush1.bf16.msra.mxu0 0
      %9004 = vmatprep.subr.bf16.mxu0 0
      %9005 = vmatpush1.bf16.msra.mxu0 0
      %9006 = vmatprep.subr.bf16.mxu0 0
      %9007 = vmatpush1.bf16.msra.mxu0 0
      %9008 = vmatprep.subr.bf16.mxu0 0
      %9009 = vmatpush1.bf16.msra.mxu0 0
      %9010 = vmatprep.mubr.bf16.mxu0 0
      %9011 = vmatmul.mubr.bf16.gmra.mrb[0].mxu0 %v827
      %v9012 = vpop.f32.mrb[0].mxu0
      %v9013 = vadd.f32 %v799, %v9012
      %v9014 = vpop.f32.mrb[0].mxu0
      %v9015 = vadd.f32 %v799, %v9014
      %v9016 = vpop.f32.mrb[0].mxu0
      %v9017 = vadd.f32 %v804, %v9016
      %v9018 = vpop.f32.mrb[0].mxu0
      %v9019 = vadd.f32 %v804, %v9018
      %9020 = vmatprep.mubr.bf16.mxu0 0
      %9021 = vmatmul.mubr.bf16.gmra.mrb[0].mxu0 %v830
      %v9022 = vpop.f32.mrb[0].mxu0
      %v9023 = vadd.f32 %v809, %v9022
      %v9024 = vpop.f32.mrb[0].mxu0
      %v9025 = vadd.f32 %v809, %v9024
      %v9026 = vpop.f32.mrb[0].mxu0
      %v9027 = vadd.f32 %v814, %v9026
      %v9028 = vpop.f32.mrb[0].mxu0
      %v9029 = vadd.f32 %v814, %v9028
      %9030 = vdwg.mxu0
      %9031 = vmatprep.subr.bf16.mxu0 %v8965
      %9032 = vmatpush1.bf16.msra.mxu0 %v8964
      %9033 = vmatprep.subr.bf16.mxu0 %v8973
      %9034 = vmatpush1.bf16.msra.mxu0 %v8972
      %9035 = vmatprep.subr.bf16.mxu0 0
      %9036 = vmatpush1.bf16.msra.mxu0 0
      %9037 = vmatprep.subr.bf16.mxu0 0
      %9038 = vmatpush1.bf16.msra.mxu0 0
      %9039 = vmatprep.subr.bf16.mxu0 0
      %9040 = vmatpush1.bf16.msra.mxu0 0
      %9041 = vmatprep.subr.bf16.mxu0 0
      %9042 = vmatpush1.bf16.msra.mxu0 0
      %9043 = vmatprep.subr.bf16.mxu0 0
      %9044 = vmatpush1.bf16.msra.mxu0 0
      %9045 = vmatprep.subr.bf16.mxu0 0
      %9046 = vmatpush1.bf16.msra.mxu0 0
      %9047 = vmatprep.subr.bf16.mxu0 0
      %9048 = vmatpush1.bf16.msra.mxu0 0
      %9049 = vmatprep.subr.bf16.mxu0 0
      %9050 = vmatpush1.bf16.msra.mxu0 0
      %9051 = vmatprep.subr.bf16.mxu0 0
      %9052 = vmatpush1.bf16.msra.mxu0 0
      %9053 = vmatprep.subr.bf16.mxu0 0
      %9054 = vmatpush1.bf16.msra.mxu0 0
      %9055 = vmatprep.subr.bf16.mxu0 0
      %9056 = vmatpush1.bf16.msra.mxu0 0
      %9057 = vmatprep.subr.bf16.mxu0 0
      %9058 = vmatpush1.bf16.msra.mxu0 0
      %9059 = vmatprep.subr.bf16.mxu0 0
      %9060 = vmatpush1.bf16.msra.mxu0 0
      %9061 = vmatprep.subr.bf16.mxu0 0
      %9062 = vmatpush1.bf16.msra.mxu0 0
      %9063 = vmatprep.mubr.bf16.mxu0 0
      %9064 = vmatmul.mubr.bf16.gmra.mrb[0].mxu0 %v827
      %v9065 = vpop.f32.mrb[0].mxu0
      %v9066 = vadd.f32 %v799, %v9065
      %v9067 = vpop.f32.mrb[0].mxu0
      %v9068 = vadd.f32 %v799, %v9067
      %v9069 = vpop.f32.mrb[0].mxu0
      %v9070 = vadd.f32 %v804, %v9069
      %v9071 = vpop.f32.mrb[0].mxu0
      %v9072 = vadd.f32 %v804, %v9071
      %9073 = vmatprep.mubr.bf16.mxu0 0
      %9074 = vmatmul.mubr.bf16.gmra.mrb[0].mxu0 %v830
      %v9075 = vpop.f32.mrb[0].mxu0
      %v9076 = vadd.f32 %v809, %v9075
      %v9077 = vpop.f32.mrb[0].mxu0
      %v9078 = vadd.f32 %v809, %v9077
      %v9079 = vpop.f32.mrb[0].mxu0
      %v9080 = vadd.f32 %v814, %v9079
      %v9081 = vpop.f32.mrb[0].mxu0
      %v9082 = vadd.f32 %v814, %v9081
      %9083 = vdwg.mxu0
      %9084 = vmatprep.subr.bf16.mxu0 %v8967
      %9085 = vmatpush1.bf16.msra.mxu0 %v8966
      %9086 = vmatprep.subr.bf16.mxu0 %v8975
      %9087 = vmatpush1.bf16.msra.mxu0 %v8974
      %9088 = vmatprep.subr.bf16.mxu0 0
      %9089 = vmatpush1.bf16.msra.mxu0 0
      %9090 = vmatprep.subr.bf16.mxu0 0
      %9091 = vmatpush1.bf16.msra.mxu0 0
      %9092 = vmatprep.subr.bf16.mxu0 0
      %9093 = vmatpush1.bf16.msra.mxu0 0
      %9094 = vmatprep.subr.bf16.mxu0 0
      %9095 = vmatpush1.bf16.msra.mxu0 0
      %9096 = vmatprep.subr.bf16.mxu0 0
      %9097 = vmatpush1.bf16.msra.mxu0 0
      %9098 = vmatprep.subr.bf16.mxu0 0
      %9099 = vmatpush1.bf16.msra.mxu0 0
      %9100 = vmatprep.subr.bf16.mxu0 0
      %9101 = vmatpush1.bf16.msra.mxu0 0
      %9102 = vmatprep.subr.bf16.mxu0 0
      %9103 = vmatpush1.bf16.msra.mxu0 0
      %9104 = vmatprep.subr.bf16.mxu0 0
      %9105 = vmatpush1.bf16.msra.mxu0 0
      %9106 = vmatprep.subr.bf16.mxu0 0
      %9107 = vmatpush1.bf16.msra.mxu0 0
      %9108 = vmatprep.subr.bf16.mxu0 0
      %9109 = vmatpush1.bf16.msra.mxu0 0
      %9110 = vmatprep.subr.bf16.mxu0 0
      %9111 = vmatpush1.bf16.msra.mxu0 0
      %9112 = vmatprep.subr.bf16.mxu0 0
      %9113 = vmatpush1.bf16.msra.mxu0 0
      %9114 = vmatprep.subr.bf16.mxu0 0
      %9115 = vmatpush1.bf16.msra.mxu0 0
      %9116 = vmatprep.mubr.bf16.mxu0 0
      %9117 = vmatmul.mubr.bf16.gmra.mrb[0].mxu0 %v827
      %v9118 = vpop.f32.mrb[0].mxu0
      %v9119 = vadd.f32 %v799, %v9118
      %v9120 = vpop.f32.mrb[0].mxu0
      %v9121 = vadd.f32 %v799, %v9120
      %v9122 = vpop.f32.mrb[0].mxu0
      %v9123 = vadd.f32 %v804, %v9122
      %v9124 = vpop.f32.mrb[0].mxu0
      %v9125 = vadd.f32 %v804, %v9124
      %9126 = vmatprep.mubr.bf16.mxu0 0
      %9127 = vmatmul.mubr.bf16.gmra.mrb[0].mxu0 %v830
      %v9128 = vpop.f32.mrb[0].mxu0
      %v9129 = vadd.f32 %v809, %v9128
      %v9130 = vpop.f32.mrb[0].mxu0
      %v9131 = vadd.f32 %v809, %v9130
      %v9132 = vpop.f32.mrb[0].mxu0
      %v9133 = vadd.f32 %v814, %v9132
      %v9134 = vpop.f32.mrb[0].mxu0
      %v9135 = vadd.f32 %v814, %v9134
      %9136 = vdwg.mxu0
      %9137 = vmatprep.subr.bf16.mxu0 %v8969
      %9138 = vmatpush1.bf16.msra.mxu0 %v8968
      %9139 = vmatprep.subr.bf16.mxu0 %v8977
      %9140 = vmatpush1.bf16.msra.mxu0 %v8976
      %9141 = vmatprep.subr.bf16.mxu0 0
      %9142 = vmatpush1.bf16.msra.mxu0 0
      %9143 = vmatprep.subr.bf16.mxu0 0
      %9144 = vmatpush1.bf16.msra.mxu0 0
      %9145 = vmatprep.subr.bf16.mxu0 0
      %9146 = vmatpush1.bf16.msra.mxu0 0
      %9147 = vmatprep.subr.bf16.mxu0 0
      %9148 = vmatpush1.bf16.msra.mxu0 0
      %9149 = vmatprep.subr.bf16.mxu0 0
      %9150 = vmatpush1.bf16.msra.mxu0 0
      %9151 = vmatprep.subr.bf16.mxu0 0
      %9152 = vmatpush1.bf16.msra.mxu0 0
      %9153 = vmatprep.subr.bf16.mxu0 0
      %9154 = vmatpush1.bf16.msra.mxu0 0
      %9155 = vmatprep.subr.bf16.mxu0 0
      %9156 = vmatpush1.bf16.msra.mxu0 0
      %9157 = vmatprep.subr.bf16.mxu0 0
      %9158 = vmatpush1.bf16.msra.mxu0 0
      %9159 = vmatprep.subr.bf16.mxu0 0
      %9160 = vmatpush1.bf16.msra.mxu0 0
      %9161 = vmatprep.subr.bf16.mxu0 0
      %9162 = vmatpush1.bf16.msra.mxu0 0
      %9163 = vmatprep.subr.bf16.mxu0 0
      %9164 = vmatpush1.bf16.msra.mxu0 0
      %9165 = vmatprep.subr.bf16.mxu0 0
      %9166 = vmatpush1.bf16.msra.mxu0 0
      %9167 = vmatprep.subr.bf16.mxu0 0
      %9168 = vmatpush1.bf16.msra.mxu0 0
      %9169 = vmatprep.mubr.bf16.mxu0 0
      %9170 = vmatmul.mubr.bf16.gmra.mrb[0].mxu0 %v827
      %v9171 = vpop.f32.mrb[0].mxu0
      %v9172 = vadd.f32 %v799, %v9171
      %v9173 = vpop.f32.mrb[0].mxu0
      %v9174 = vadd.f32 %v799, %v9173
      %v9175 = vpop.f32.mrb[0].mxu0
      %v9176 = vadd.f32 %v804, %v9175
      %v9177 = vpop.f32.mrb[0].mxu0
      %v9178 = vadd.f32 %v804, %v9177
      %9179 = vmatprep.mubr.bf16.mxu0 0
      %9180 = vmatmul.mubr.bf16.gmra.mrb[0].mxu0 %v830
      %v9181 = vpop.f32.mrb[0].mxu0
      %v9182 = vadd.f32 %v809, %v9181
      %v9183 = vpop.f32.mrb[0].mxu0
      %v9184 = vadd.f32 %v809, %v9183
      %v9185 = vpop.f32.mrb[0].mxu0
      %v9186 = vadd.f32 %v814, %v9185
      %v9187 = vpop.f32.mrb[0].mxu0
      %v9188 = vadd.f32 %v814, %v9187
      %9189 = vdwg.mxu0
      %v9190 = vtanh.pop %v9013
      %v9191 = vtanh.pop %v9015
      %v9192 = vtanh.pop %v9066
      %v9193 = vtanh.pop %v9068
      %v9194 = vtanh.pop %v9119
      %v9195 = vtanh.pop %v9121
      %v9196 = vtanh.pop %v9172
      %v9197 = vtanh.pop %v9174
      %v9198 = vtanh.pop %v9017
      %v9199 = vtanh.pop %v9019
      %v9200 = vtanh.pop %v9070
      %v9201 = vtanh.pop %v9072
      %v9202 = vtanh.pop %v9123
      %v9203 = vtanh.pop %v9125
      %v9204 = vtanh.pop %v9176
      %v9205 = vtanh.pop %v9178
      %v9206 = vtanh.pop %v9023
      %v9207 = vtanh.pop %v9025
      %v9208 = vtanh.pop %v9076
      %v9209 = vtanh.pop %v9078
      %v9210 = vtanh.pop %v9129
      %v9211 = vtanh.pop %v9131
      %v9212 = vtanh.pop %v9182
      %v9213 = vtanh.pop %v9184
      %v9214 = vtanh.pop %v9027
      %v9215 = vtanh.pop %v9029
      %v9216 = vtanh.pop %v9080
      %v9217 = vtanh.pop %v9082
      %v9218 = vtanh.pop %v9133
      %v9219 = vtanh.pop %v9135
      %v9220 = vtanh.pop %v9186
      %v9221 = vtanh.pop %v9188
      %v9222 = vpack.c.bf16 %v9198, %v9190
      %v9223 = vpack.c.bf16 %v9199, %v9191
      %v9224 = vpack.c.bf16 %v9200, %v9192
      %v9225 = vpack.c.bf16 %v9201, %v9193
      %v9226 = vpack.c.bf16 %v9202, %v9194
      %v9227 = vpack.c.bf16 %v9203, %v9195
      %v9228 = vpack.c.bf16 %v9204, %v9196
      %v9229 = vpack.c.bf16 %v9205, %v9197
      %v9230 = vpack.c.bf16 %v9214, %v9206
      %v9231 = vpack.c.bf16 %v9215, %v9207
      %v9232 = vpack.c.bf16 %v9216, %v9208
      %v9233 = vpack.c.bf16 %v9217, %v9209
      %v9234 = vpack.c.bf16 %v9218, %v9210
      %v9235 = vpack.c.bf16 %v9219, %v9211
      %v9236 = vpack.c.bf16 %v9220, %v9212
      %v9237 = vpack.c.bf16 %v9221, %v9213
      %9238 = vmatprep.subr.bf16.mxu0 %v9223
      %9239 = vmatpush1.bf16.msra.mxu0 %v9222
      %9240 = vmatprep.subr.bf16.mxu0 %v9231
      %9241 = vmatpush1.bf16.msra.mxu0 %v9230
      %9242 = vmatprep.subr.bf16.mxu0 0
      %9243 = vmatpush1.bf16.msra.mxu0 0
      %9244 = vmatprep.subr.bf16.mxu0 0
      %9245 = vmatpush1.bf16.msra.mxu0 0
      %9246 = vmatprep.subr.bf16.mxu0 0
      %9247 = vmatpush1.bf16.msra.mxu0 0
      %9248 = vmatprep.subr.bf16.mxu0 0
      %9249 = vmatpush1.bf16.msra.mxu0 0
      %9250 = vmatprep.subr.bf16.mxu0 0
      %9251 = vmatpush1.bf16.msra.mxu0 0
      %9252 = vmatprep.subr.bf16.mxu0 0
      %9253 = vmatpush1.bf16.msra.mxu0 0
      %9254 = vmatprep.subr.bf16.mxu0 0
      %9255 = vmatpush1.bf16.msra.mxu0 0
      %9256 = vmatprep.subr.bf16.mxu0 0
      %9257 = vmatpush1.bf16.msra.mxu0 0
      %9258 = vmatprep.subr.bf16.mxu0 0
      %9259 = vmatpush1.bf16.msra.mxu0 0
      %9260 = vmatprep.subr.bf16.mxu0 0
      %9261 = vmatpush1.bf16.msra.mxu0 0
      %9262 = vmatprep.subr.bf16.mxu0 0
      %9263 = vmatpush1.bf16.msra.mxu0 0
      %9264 = vmatprep.subr.bf16.mxu0 0
      %9265 = vmatpush1.bf16.msra.mxu0 0
      %9266 = vmatprep.subr.bf16.mxu0 0
      %9267 = vmatpush1.bf16.msra.mxu0 0
      %9268 = vmatprep.subr.bf16.mxu0 0
      %9269 = vmatpush1.bf16.msra.mxu0 0
      %9270 = vmatprep.mubr.bf16.mxu0 0
      %9271 = vmatmul.mubr.bf16.gmra.mrb[0].mxu0 %v1123
      %v9272 = vpop.f32.mrb[0].mxu0
      %v9273 = vadd.f32 %v1095, %v9272
      %v9274 = vpop.f32.mrb[0].mxu0
      %v9275 = vadd.f32 %v1095, %v9274
      %v9276 = vpop.f32.mrb[0].mxu0
      %v9277 = vadd.f32 %v1100, %v9276
      %v9278 = vpop.f32.mrb[0].mxu0
      %v9279 = vadd.f32 %v1100, %v9278
      %9280 = vmatprep.mubr.bf16.mxu0 0
      %9281 = vmatmul.mubr.bf16.gmra.mrb[0].mxu0 %v1126
      %v9282 = vpop.f32.mrb[0].mxu0
      %v9283 = vadd.f32 %v1105, %v9282
      %v9284 = vpop.f32.mrb[0].mxu0
      %v9285 = vadd.f32 %v1105, %v9284
      %v9286 = vpop.f32.mrb[0].mxu0
      %v9287 = vadd.f32 %v1110, %v9286
      %v9288 = vpop.f32.mrb[0].mxu0
      %v9289 = vadd.f32 %v1110, %v9288
      %9290 = vdwg.mxu0
      %9291 = vmatprep.subr.bf16.mxu0 %v9225
      %9292 = vmatpush1.bf16.msra.mxu0 %v9224
      %9293 = vmatprep.subr.bf16.mxu0 %v9233
      %9294 = vmatpush1.bf16.msra.mxu0 %v9232
      %9295 = vmatprep.subr.bf16.mxu0 0
      %9296 = vmatpush1.bf16.msra.mxu0 0
      %9297 = vmatprep.subr.bf16.mxu0 0
      %9298 = vmatpush1.bf16.msra.mxu0 0
      %9299 = vmatprep.subr.bf16.mxu0 0
      %9300 = vmatpush1.bf16.msra.mxu0 0
      %9301 = vmatprep.subr.bf16.mxu0 0
      %9302 = vmatpush1.bf16.msra.mxu0 0
      %9303 = vmatprep.subr.bf16.mxu0 0
      %9304 = vmatpush1.bf16.msra.mxu0 0
      %9305 = vmatprep.subr.bf16.mxu0 0
      %9306 = vmatpush1.bf16.msra.mxu0 0
      %9307 = vmatprep.subr.bf16.mxu0 0
      %9308 = vmatpush1.bf16.msra.mxu0 0
      %9309 = vmatprep.subr.bf16.mxu0 0
      %9310 = vmatpush1.bf16.msra.mxu0 0
      %9311 = vmatprep.subr.bf16.mxu0 0
      %9312 = vmatpush1.bf16.msra.mxu0 0
      %9313 = vmatprep.subr.bf16.mxu0 0
      %9314 = vmatpush1.bf16.msra.mxu0 0
      %9315 = vmatprep.subr.bf16.mxu0 0
      %9316 = vmatpush1.bf16.msra.mxu0 0
      %9317 = vmatprep.subr.bf16.mxu0 0
      %9318 = vmatpush1.bf16.msra.mxu0 0
      %9319 = vmatprep.subr.bf16.mxu0 0
      %9320 = vmatpush1.bf16.msra.mxu0 0
      %9321 = vmatprep.subr.bf16.mxu0 0
      %9322 = vmatpush1.bf16.msra.mxu0 0
      %9323 = vmatprep.mubr.bf16.mxu0 0
      %9324 = vmatmul.mubr.bf16.gmra.mrb[0].mxu0 %v1123
      %v9325 = vpop.f32.mrb[0].mxu0
      %v9326 = vadd.f32 %v1095, %v9325
      %v9327 = vpop.f32.mrb[0].mxu0
      %v9328 = vadd.f32 %v1095, %v9327
      %v9329 = vpop.f32.mrb[0].mxu0
      %v9330 = vadd.f32 %v1100, %v9329
      %v9331 = vpop.f32.mrb[0].mxu0
      %v9332 = vadd.f32 %v1100, %v9331
      %9333 = vmatprep.mubr.bf16.mxu0 0
      %9334 = vmatmul.mubr.bf16.gmra.mrb[0].mxu0 %v1126
      %v9335 = vpop.f32.mrb[0].mxu0
      %v9336 = vadd.f32 %v1105, %v9335
      %v9337 = vpop.f32.mrb[0].mxu0
      %v9338 = vadd.f32 %v1105, %v9337
      %v9339 = vpop.f32.mrb[0].mxu0
      %v9340 = vadd.f32 %v1110, %v9339
      %v9341 = vpop.f32.mrb[0].mxu0
      %v9342 = vadd.f32 %v1110, %v9341
      %9343 = vdwg.mxu0
      %9344 = vmatprep.subr.bf16.mxu0 %v9227
      %9345 = vmatpush1.bf16.msra.mxu0 %v9226
      %9346 = vmatprep.subr.bf16.mxu0 %v9235
      %9347 = vmatpush1.bf16.msra.mxu0 %v9234
      %9348 = vmatprep.subr.bf16.mxu0 0
      %9349 = vmatpush1.bf16.msra.mxu0 0
      %9350 = vmatprep.subr.bf16.mxu0 0
      %9351 = vmatpush1.bf16.msra.mxu0 0
      %9352 = vmatprep.subr.bf16.mxu0 0
      %9353 = vmatpush1.bf16.msra.mxu0 0
      %9354 = vmatprep.subr.bf16.mxu0 0
      %9355 = vmatpush1.bf16.msra.mxu0 0
      %9356 = vmatprep.subr.bf16.mxu0 0
      %9357 = vmatpush1.bf16.msra.mxu0 0
      %9358 = vmatprep.subr.bf16.mxu0 0
      %9359 = vmatpush1.bf16.msra.mxu0 0
      %9360 = vmatprep.subr.bf16.mxu0 0
      %9361 = vmatpush1.bf16.msra.mxu0 0
      %9362 = vmatprep.subr.bf16.mxu0 0
      %9363 = vmatpush1.bf16.msra.mxu0 0
      %9364 = vmatprep.subr.bf16.mxu0 0
      %9365 = vmatpush1.bf16.msra.mxu0 0
      %9366 = vmatprep.subr.bf16.mxu0 0
      %9367 = vmatpush1.bf16.msra.mxu0 0
      %9368 = vmatprep.subr.bf16.mxu0 0
      %9369 = vmatpush1.bf16.msra.mxu0 0
      %9370 = vmatprep.subr.bf16.mxu0 0
      %9371 = vmatpush1.bf16.msra.mxu0 0
      %9372 = vmatprep.subr.bf16.mxu0 0
      %9373 = vmatpush1.bf16.msra.mxu0 0
      %9374 = vmatprep.subr.bf16.mxu0 0
      %9375 = vmatpush1.bf16.msra.mxu0 0
      %9376 = vmatprep.mubr.bf16.mxu0 0
      %9377 = vmatmul.mubr.bf16.gmra.mrb[0].mxu0 %v1123
      %v9378 = vpop.f32.mrb[0].mxu0
      %v9379 = vadd.f32 %v1095, %v9378
      %v9380 = vpop.f32.mrb[0].mxu0
      %v9381 = vadd.f32 %v1095, %v9380
      %v9382 = vpop.f32.mrb[0].mxu0
      %v9383 = vadd.f32 %v1100, %v9382
      %v9384 = vpop.f32.mrb[0].mxu0
      %v9385 = vadd.f32 %v1100, %v9384
      %9386 = vmatprep.mubr.bf16.mxu0 0
      %9387 = vmatmul.mubr.bf16.gmra.mrb[0].mxu0 %v1126
      %v9388 = vpop.f32.mrb[0].mxu0
      %v9389 = vadd.f32 %v1105, %v9388
      %v9390 = vpop.f32.mrb[0].mxu0
      %v9391 = vadd.f32 %v1105, %v9390
      %v9392 = vpop.f32.mrb[0].mxu0
      %v9393 = vadd.f32 %v1110, %v9392
      %v9394 = vpop.f32.mrb[0].mxu0
      %v9395 = vadd.f32 %v1110, %v9394
      %9396 = vdwg.mxu0
      %9397 = vmatprep.subr.bf16.mxu0 %v9229
      %9398 = vmatpush1.bf16.msra.mxu0 %v9228
      %9399 = vmatprep.subr.bf16.mxu0 %v9237
      %9400 = vmatpush1.bf16.msra.mxu0 %v9236
      %9401 = vmatprep.subr.bf16.mxu0 0
      %9402 = vmatpush1.bf16.msra.mxu0 0
      %9403 = vmatprep.subr.bf16.mxu0 0
      %9404 = vmatpush1.bf16.msra.mxu0 0
      %9405 = vmatprep.subr.bf16.mxu0 0
      %9406 = vmatpush1.bf16.msra.mxu0 0
      %9407 = vmatprep.subr.bf16.mxu0 0
      %9408 = vmatpush1.bf16.msra.mxu0 0
      %9409 = vmatprep.subr.bf16.mxu0 0
      %9410 = vmatpush1.bf16.msra.mxu0 0
      %9411 = vmatprep.subr.bf16.mxu0 0
      %9412 = vmatpush1.bf16.msra.mxu0 0
      %9413 = vmatprep.subr.bf16.mxu0 0
      %9414 = vmatpush1.bf16.msra.mxu0 0
      %9415 = vmatprep.subr.bf16.mxu0 0
      %9416 = vmatpush1.bf16.msra.mxu0 0
      %9417 = vmatprep.subr.bf16.mxu0 0
      %9418 = vmatpush1.bf16.msra.mxu0 0
      %9419 = vmatprep.subr.bf16.mxu0 0
      %9420 = vmatpush1.bf16.msra.mxu0 0
      %9421 = vmatprep.subr.bf16.mxu0 0
      %9422 = vmatpush1.bf16.msra.mxu0 0
      %9423 = vmatprep.subr.bf16.mxu0 0
      %9424 = vmatpush1.bf16.msra.mxu0 0
      %9425 = vmatprep.subr.bf16.mxu0 0
      %9426 = vmatpush1.bf16.msra.mxu0 0
      %9427 = vmatprep.subr.bf16.mxu0 0
      %9428 = vmatpush1.bf16.msra.mxu0 0
      %9429 = vmatprep.mubr.bf16.mxu0 0
      %9430 = vmatmul.mubr.bf16.gmra.mrb[0].mxu0 %v1123
      %v9431 = vpop.f32.mrb[0].mxu0
      %v9432 = vadd.f32 %v1095, %v9431
      %v9433 = vpop.f32.mrb[0].mxu0
      %v9434 = vadd.f32 %v1095, %v9433
      %v9435 = vpop.f32.mrb[0].mxu0
      %v9436 = vadd.f32 %v1100, %v9435
      %v9437 = vpop.f32.mrb[0].mxu0
      %v9438 = vadd.f32 %v1100, %v9437
      %9439 = vmatprep.mubr.bf16.mxu0 0
      %9440 = vmatmul.mubr.bf16.gmra.mrb[0].mxu0 %v1126
      %v9441 = vpop.f32.mrb[0].mxu0
      %v9442 = vadd.f32 %v1105, %v9441
      %v9443 = vpop.f32.mrb[0].mxu0
      %v9444 = vadd.f32 %v1105, %v9443
      %v9445 = vpop.f32.mrb[0].mxu0
      %v9446 = vadd.f32 %v1110, %v9445
      %v9447 = vpop.f32.mrb[0].mxu0
      %v9448 = vadd.f32 %v1110, %v9447
      %9449 = vdwg.mxu0
      %v9450 = vtanh.pop %v9273
      %v9451 = vtanh.pop %v9275
      %v9452 = vtanh.pop %v9326
      %v9453 = vtanh.pop %v9328
      %v9454 = vtanh.pop %v9379
      %v9455 = vtanh.pop %v9381
      %v9456 = vtanh.pop %v9432
      %v9457 = vtanh.pop %v9434
      %v9458 = vtanh.pop %v9277
      %v9459 = vtanh.pop %v9279
      %v9460 = vtanh.pop %v9330
      %v9461 = vtanh.pop %v9332
      %v9462 = vtanh.pop %v9383
      %v9463 = vtanh.pop %v9385
      %v9464 = vtanh.pop %v9436
      %v9465 = vtanh.pop %v9438
      %v9466 = vtanh.pop %v9283
      %v9467 = vtanh.pop %v9285
      %v9468 = vtanh.pop %v9336
      %v9469 = vtanh.pop %v9338
      %v9470 = vtanh.pop %v9389
      %v9471 = vtanh.pop %v9391
      %v9472 = vtanh.pop %v9442
      %v9473 = vtanh.pop %v9444
      %v9474 = vtanh.pop %v9287
      %v9475 = vtanh.pop %v9289
      %v9476 = vtanh.pop %v9340
      %v9477 = vtanh.pop %v9342
      %v9478 = vtanh.pop %v9393
      %v9479 = vtanh.pop %v9395
      %v9480 = vtanh.pop %v9446
      %v9481 = vtanh.pop %v9448
      %v9482 = vpack.c.bf16 %v9458, %v9450
      %v9483 = vpack.c.bf16 %v9459, %v9451
      %v9484 = vpack.c.bf16 %v9460, %v9452
      %v9485 = vpack.c.bf16 %v9461, %v9453
      %v9486 = vpack.c.bf16 %v9462, %v9454
      %v9487 = vpack.c.bf16 %v9463, %v9455
      %v9488 = vpack.c.bf16 %v9464, %v9456
      %v9489 = vpack.c.bf16 %v9465, %v9457
      %v9490 = vpack.c.bf16 %v9474, %v9466
      %v9491 = vpack.c.bf16 %v9475, %v9467
      %v9492 = vpack.c.bf16 %v9476, %v9468
      %v9493 = vpack.c.bf16 %v9477, %v9469
      %v9494 = vpack.c.bf16 %v9478, %v9470
      %v9495 = vpack.c.bf16 %v9479, %v9471
      %v9496 = vpack.c.bf16 %v9480, %v9472
      %v9497 = vpack.c.bf16 %v9481, %v9473
      %9498 = vmatprep.subr.bf16.mxu0 %v9483
      %9499 = vmatpush1.bf16.msra.mxu0 %v9482
      %9500 = vmatprep.subr.bf16.mxu0 %v9491
      %9501 = vmatpush1.bf16.msra.mxu0 %v9490
      %9502 = vmatprep.subr.bf16.mxu0 0
      %9503 = vmatpush1.bf16.msra.mxu0 0
      %9504 = vmatprep.subr.bf16.mxu0 0
      %9505 = vmatpush1.bf16.msra.mxu0 0
      %9506 = vmatprep.subr.bf16.mxu0 0
      %9507 = vmatpush1.bf16.msra.mxu0 0
      %9508 = vmatprep.subr.bf16.mxu0 0
      %9509 = vmatpush1.bf16.msra.mxu0 0
      %9510 = vmatprep.subr.bf16.mxu0 0
      %9511 = vmatpush1.bf16.msra.mxu0 0
      %9512 = vmatprep.subr.bf16.mxu0 0
      %9513 = vmatpush1.bf16.msra.mxu0 0
      %9514 = vmatprep.subr.bf16.mxu0 0
      %9515 = vmatpush1.bf16.msra.mxu0 0
      %9516 = vmatprep.subr.bf16.mxu0 0
      %9517 = vmatpush1.bf16.msra.mxu0 0
      %9518 = vmatprep.subr.bf16.mxu0 0
      %9519 = vmatpush1.bf16.msra.mxu0 0
      %9520 = vmatprep.subr.bf16.mxu0 0
      %9521 = vmatpush1.bf16.msra.mxu0 0
      %9522 = vmatprep.subr.bf16.mxu0 0
      %9523 = vmatpush1.bf16.msra.mxu0 0
      %9524 = vmatprep.subr.bf16.mxu0 0
      %9525 = vmatpush1.bf16.msra.mxu0 0
      %9526 = vmatprep.subr.bf16.mxu0 0
      %9527 = vmatpush1.bf16.msra.mxu0 0
      %9528 = vmatprep.subr.bf16.mxu0 0
      %9529 = vmatpush1.bf16.msra.mxu0 0
      %9530 = vmatprep.mubr.bf16.mxu0 0
      %9531 = vmatmul.mubr.bf16.gmra.mrb[0].mxu0 %v1419
      %v9532 = vpop.f32.mrb[0].mxu0
      %v9533 = vadd.f32 %v1391, %v9532
      %v9534 = vpop.f32.mrb[0].mxu0
      %v9535 = vadd.f32 %v1391, %v9534
      %v9536 = vpop.f32.mrb[0].mxu0
      %v9537 = vadd.f32 %v1396, %v9536
      %v9538 = vpop.f32.mrb[0].mxu0
      %v9539 = vadd.f32 %v1396, %v9538
      %9540 = vmatprep.mubr.bf16.mxu0 0
      %9541 = vmatmul.mubr.bf16.gmra.mrb[0].mxu0 %v1422
      %v9542 = vpop.f32.mrb[0].mxu0
      %v9543 = vadd.f32 %v1401, %v9542
      %v9544 = vpop.f32.mrb[0].mxu0
      %v9545 = vadd.f32 %v1401, %v9544
      %v9546 = vpop.f32.mrb[0].mxu0
      %v9547 = vadd.f32 %v1406, %v9546
      %v9548 = vpop.f32.mrb[0].mxu0
      %v9549 = vadd.f32 %v1406, %v9548
      %9550 = vdwg.mxu0
      %9551 = vmatprep.subr.bf16.mxu0 %v9485
      %9552 = vmatpush1.bf16.msra.mxu0 %v9484
      %9553 = vmatprep.subr.bf16.mxu0 %v9493
      %9554 = vmatpush1.bf16.msra.mxu0 %v9492
      %9555 = vmatprep.subr.bf16.mxu0 0
      %9556 = vmatpush1.bf16.msra.mxu0 0
      %9557 = vmatprep.subr.bf16.mxu0 0
      %9558 = vmatpush1.bf16.msra.mxu0 0
      %9559 = vmatprep.subr.bf16.mxu0 0
      %9560 = vmatpush1.bf16.msra.mxu0 0
      %9561 = vmatprep.subr.bf16.mxu0 0
      %9562 = vmatpush1.bf16.msra.mxu0 0
      %9563 = vmatprep.subr.bf16.mxu0 0
      %9564 = vmatpush1.bf16.msra.mxu0 0
      %9565 = vmatprep.subr.bf16.mxu0 0
      %9566 = vmatpush1.bf16.msra.mxu0 0
      %9567 = vmatprep.subr.bf16.mxu0 0
      %9568 = vmatpush1.bf16.msra.mxu0 0
      %9569 = vmatprep.subr.bf16.mxu0 0
      %9570 = vmatpush1.bf16.msra.mxu0 0
      %9571 = vmatprep.subr.bf16.mxu0 0
      %9572 = vmatpush1.bf16.msra.mxu0 0
      %9573 = vmatprep.subr.bf16.mxu0 0
      %9574 = vmatpush1.bf16.msra.mxu0 0
      %9575 = vmatprep.subr.bf16.mxu0 0
      %9576 = vmatpush1.bf16.msra.mxu0 0
      %9577 = vmatprep.subr.bf16.mxu0 0
      %9578 = vmatpush1.bf16.msra.mxu0 0
      %9579 = vmatprep.subr.bf16.mxu0 0
      %9580 = vmatpush1.bf16.msra.mxu0 0
      %9581 = vmatprep.subr.bf16.mxu0 0
      %9582 = vmatpush1.bf16.msra.mxu0 0
      %9583 = vmatprep.mubr.bf16.mxu0 0
      %9584 = vmatmul.mubr.bf16.gmra.mrb[0].mxu0 %v1419
      %v9585 = vpop.f32.mrb[0].mxu0
      %v9586 = vadd.f32 %v1391, %v9585
      %v9587 = vpop.f32.mrb[0].mxu0
      %v9588 = vadd.f32 %v1391, %v9587
      %v9589 = vpop.f32.mrb[0].mxu0
      %v9590 = vadd.f32 %v1396, %v9589
      %v9591 = vpop.f32.mrb[0].mxu0
      %v9592 = vadd.f32 %v1396, %v9591
      %9593 = vmatprep.mubr.bf16.mxu0 0
      %9594 = vmatmul.mubr.bf16.gmra.mrb[0].mxu0 %v1422
      %v9595 = vpop.f32.mrb[0].mxu0
      %v9596 = vadd.f32 %v1401, %v9595
      %v9597 = vpop.f32.mrb[0].mxu0
      %v9598 = vadd.f32 %v1401, %v9597
      %v9599 = vpop.f32.mrb[0].mxu0
      %v9600 = vadd.f32 %v1406, %v9599
      %v9601 = vpop.f32.mrb[0].mxu0
      %v9602 = vadd.f32 %v1406, %v9601
      %9603 = vdwg.mxu0
      %9604 = vmatprep.subr.bf16.mxu0 %v9487
      %9605 = vmatpush1.bf16.msra.mxu0 %v9486
      %9606 = vmatprep.subr.bf16.mxu0 %v9495
      %9607 = vmatpush1.bf16.msra.mxu0 %v9494
      %9608 = vmatprep.subr.bf16.mxu0 0
      %9609 = vmatpush1.bf16.msra.mxu0 0
      %9610 = vmatprep.subr.bf16.mxu0 0
      %9611 = vmatpush1.bf16.msra.mxu0 0
      %9612 = vmatprep.subr.bf16.mxu0 0
      %9613 = vmatpush1.bf16.msra.mxu0 0
      %9614 = vmatprep.subr.bf16.mxu0 0
      %9615 = vmatpush1.bf16.msra.mxu0 0
      %9616 = vmatprep.subr.bf16.mxu0 0
      %9617 = vmatpush1.bf16.msra.mxu0 0
      %9618 = vmatprep.subr.bf16.mxu0 0
      %9619 = vmatpush1.bf16.msra.mxu0 0
      %9620 = vmatprep.subr.bf16.mxu0 0
      %9621 = vmatpush1.bf16.msra.mxu0 0
      %9622 = vmatprep.subr.bf16.mxu0 0
      %9623 = vmatpush1.bf16.msra.mxu0 0
      %9624 = vmatprep.subr.bf16.mxu0 0
      %9625 = vmatpush1.bf16.msra.mxu0 0
      %9626 = vmatprep.subr.bf16.mxu0 0
      %9627 = vmatpush1.bf16.msra.mxu0 0
      %9628 = vmatprep.subr.bf16.mxu0 0
      %9629 = vmatpush1.bf16.msra.mxu0 0
      %9630 = vmatprep.subr.bf16.mxu0 0
      %9631 = vmatpush1.bf16.msra.mxu0 0
      %9632 = vmatprep.subr.bf16.mxu0 0
      %9633 = vmatpush1.bf16.msra.mxu0 0
      %9634 = vmatprep.subr.bf16.mxu0 0
      %9635 = vmatpush1.bf16.msra.mxu0 0
      %9636 = vmatprep.mubr.bf16.mxu0 0
      %9637 = vmatmul.mubr.bf16.gmra.mrb[0].mxu0 %v1419
      %v9638 = vpop.f32.mrb[0].mxu0
      %v9639 = vadd.f32 %v1391, %v9638
      %v9640 = vpop.f32.mrb[0].mxu0
      %v9641 = vadd.f32 %v1391, %v9640
      %v9642 = vpop.f32.mrb[0].mxu0
      %v9643 = vadd.f32 %v1396, %v9642
      %v9644 = vpop.f32.mrb[0].mxu0
      %v9645 = vadd.f32 %v1396, %v9644
      %9646 = vmatprep.mubr.bf16.mxu0 0
      %9647 = vmatmul.mubr.bf16.gmra.mrb[0].mxu0 %v1422
      %v9648 = vpop.f32.mrb[0].mxu0
      %v9649 = vadd.f32 %v1401, %v9648
      %v9650 = vpop.f32.mrb[0].mxu0
      %v9651 = vadd.f32 %v1401, %v9650
      %v9652 = vpop.f32.mrb[0].mxu0
      %v9653 = vadd.f32 %v1406, %v9652
      %v9654 = vpop.f32.mrb[0].mxu0
      %v9655 = vadd.f32 %v1406, %v9654
      %9656 = vdwg.mxu0
      %9657 = vmatprep.subr.bf16.mxu0 %v9489
      %9658 = vmatpush1.bf16.msra.mxu0 %v9488
      %9659 = vmatprep.subr.bf16.mxu0 %v9497
      %9660 = vmatpush1.bf16.msra.mxu0 %v9496
      %9661 = vmatprep.subr.bf16.mxu0 0
      %9662 = vmatpush1.bf16.msra.mxu0 0
      %9663 = vmatprep.subr.bf16.mxu0 0
      %9664 = vmatpush1.bf16.msra.mxu0 0
      %9665 = vmatprep.subr.bf16.mxu0 0
      %9666 = vmatpush1.bf16.msra.mxu0 0
      %9667 = vmatprep.subr.bf16.mxu0 0
      %9668 = vmatpush1.bf16.msra.mxu0 0
      %9669 = vmatprep.subr.bf16.mxu0 0
      %9670 = vmatpush1.bf16.msra.mxu0 0
      %9671 = vmatprep.subr.bf16.mxu0 0
      %9672 = vmatpush1.bf16.msra.mxu0 0
      %9673 = vmatprep.subr.bf16.mxu0 0
      %9674 = vmatpush1.bf16.msra.mxu0 0
      %9675 = vmatprep.subr.bf16.mxu0 0
      %9676 = vmatpush1.bf16.msra.mxu0 0
      %9677 = vmatprep.subr.bf16.mxu0 0
      %9678 = vmatpush1.bf16.msra.mxu0 0
      %9679 = vmatprep.subr.bf16.mxu0 0
      %9680 = vmatpush1.bf16.msra.mxu0 0
      %9681 = vmatprep.subr.bf16.mxu0 0
      %9682 = vmatpush1.bf16.msra.mxu0 0
      %9683 = vmatprep.subr.bf16.mxu0 0
      %9684 = vmatpush1.bf16.msra.mxu0 0
      %9685 = vmatprep.subr.bf16.mxu0 0
      %9686 = vmatpush1.bf16.msra.mxu0 0
      %9687 = vmatprep.subr.bf16.mxu0 0
      %9688 = vmatpush1.bf16.msra.mxu0 0
      %9689 = vmatprep.mubr.bf16.mxu0 0
      %9690 = vmatmul.mubr.bf16.gmra.mrb[0].mxu0 %v1419
      %v9691 = vpop.f32.mrb[0].mxu0
      %v9692 = vadd.f32 %v1391, %v9691
      %v9693 = vpop.f32.mrb[0].mxu0
      %v9694 = vadd.f32 %v1391, %v9693
      %v9695 = vpop.f32.mrb[0].mxu0
      %v9696 = vadd.f32 %v1396, %v9695
      %v9697 = vpop.f32.mrb[0].mxu0
      %v9698 = vadd.f32 %v1396, %v9697
      %9699 = vmatprep.mubr.bf16.mxu0 0
      %9700 = vmatmul.mubr.bf16.gmra.mrb[0].mxu0 %v1422
      %v9701 = vpop.f32.mrb[0].mxu0
      %v9702 = vadd.f32 %v1401, %v9701
      %v9703 = vpop.f32.mrb[0].mxu0
      %v9704 = vadd.f32 %v1401, %v9703
      %v9705 = vpop.f32.mrb[0].mxu0
      %v9706 = vadd.f32 %v1406, %v9705
      %v9707 = vpop.f32.mrb[0].mxu0
      %v9708 = vadd.f32 %v1406, %v9707
      %9709 = vdwg.mxu0
      %v9710 = vtanh.pop %v9533
      %v9711 = vtanh.pop %v9535
      %v9712 = vtanh.pop %v9586
      %v9713 = vtanh.pop %v9588
      %v9714 = vtanh.pop %v9639
      %v9715 = vtanh.pop %v9641
      %v9716 = vtanh.pop %v9692
      %v9717 = vtanh.pop %v9694
      %v9718 = vtanh.pop %v9537
      %v9719 = vtanh.pop %v9539
      %v9720 = vtanh.pop %v9590
      %v9721 = vtanh.pop %v9592
      %v9722 = vtanh.pop %v9643
      %v9723 = vtanh.pop %v9645
      %v9724 = vtanh.pop %v9696
      %v9725 = vtanh.pop %v9698
      %v9726 = vtanh.pop %v9543
      %v9727 = vtanh.pop %v9545
      %v9728 = vtanh.pop %v9596
      %v9729 = vtanh.pop %v9598
      %v9730 = vtanh.pop %v9649
      %v9731 = vtanh.pop %v9651
      %v9732 = vtanh.pop %v9702
      %v9733 = vtanh.pop %v9704
      %v9734 = vtanh.pop %v9547
      %v9735 = vtanh.pop %v9549
      %v9736 = vtanh.pop %v9600
      %v9737 = vtanh.pop %v9602
      %v9738 = vtanh.pop %v9653
      %v9739 = vtanh.pop %v9655
      %v9740 = vtanh.pop %v9706
      %v9741 = vtanh.pop %v9708
      %v9742 = vmul.f32 %v1671, %v9710
      %v9743 = vmul.f32 %v1671, %v9711
      %v9744 = vmul.f32 %v1671, %v9712
      %v9745 = vmul.f32 %v1671, %v9713
      %v9746 = vmul.f32 %v1671, %v9714
      %v9747 = vmul.f32 %v1671, %v9715
      %v9748 = vmul.f32 %v1671, %v9716
      %v9749 = vmul.f32 %v1671, %v9717
      %v9750 = vmul.f32 %v1676, %v9718
      %v9751 = vmul.f32 %v1676, %v9719
      %v9752 = vmul.f32 %v1676, %v9720
      %v9753 = vmul.f32 %v1676, %v9721
      %v9754 = vmul.f32 %v1676, %v9722
      %v9755 = vmul.f32 %v1676, %v9723
      %v9756 = vmul.f32 %v1676, %v9724
      %v9757 = vmul.f32 %v1676, %v9725
      %v9758 = vmul.f32 %v1681, %v9726
      %v9759 = vmul.f32 %v1681, %v9727
      %v9760 = vmul.f32 %v1681, %v9728
      %v9761 = vmul.f32 %v1681, %v9729
      %v9762 = vmul.f32 %v1681, %v9730
      %v9763 = vmul.f32 %v1681, %v9731
      %v9764 = vmul.f32 %v1681, %v9732
      %v9765 = vmul.f32 %v1681, %v9733
      %v9766 = vmul.f32 %v1686, %v9734
      %v9767 = vmul.f32 %v1686, %v9735
      %v9768 = vmul.f32 %v1686, %v9736
      %v9769 = vmul.f32 %v1686, %v9737
      %v9770 = vmul.f32 %v1686, %v9738
      %v9771 = vmul.f32 %v1686, %v9739
      %v9772 = vmul.f32 %v1686, %v9740
      %v9773 = vmul.f32 %v1686, %v9741
      %v9774 = vadd.f32 %v9742, %v9750
      %v9775 = vadd.f32 %v9774, %v9758
      %v9776 = vadd.f32 %v9775, %v9766
      %v9777 = vrot.slane %v9776, 4
      %v9778 = vadd.f32 %v9776, %v9777
      %v9779 = vrot.slane %v9778, 2
      %v9780 = vadd.f32 %v9778, %v9779
      %v9781 = vrot.slane %v9780, 1
      %v9782 = vadd.f32 %v9780, %v9781
      %v9783 = vadd.f32 %v9743, %v9751
      %v9784 = vadd.f32 %v9783, %v9759
      %v9785 = vadd.f32 %v9784, %v9767
      %v9786 = vrot.slane %v9785, 4
      %v9787 = vadd.f32 %v9785, %v9786
      %v9788 = vrot.slane %v9787, 2
      %v9789 = vadd.f32 %v9787, %v9788
      %v9790 = vrot.slane %v9789, 1
      %v9791 = vadd.f32 %v9789, %v9790
      %v9792 = vadd.f32 %v9744, %v9752
      %v9793 = vadd.f32 %v9792, %v9760
      %v9794 = vadd.f32 %v9793, %v9768
      %v9795 = vrot.slane %v9794, 4
      %v9796 = vadd.f32 %v9794, %v9795
      %v9797 = vrot.slane %v9796, 2
      %v9798 = vadd.f32 %v9796, %v9797
      %v9799 = vrot.slane %v9798, 1
      %v9800 = vadd.f32 %v9798, %v9799
      %v9801 = vadd.f32 %v9745, %v9753
      %v9802 = vadd.f32 %v9801, %v9761
      %v9803 = vadd.f32 %v9802, %v9769
      %v9804 = vrot.slane %v9803, 4
      %v9805 = vadd.f32 %v9803, %v9804
      %v9806 = vrot.slane %v9805, 2
      %v9807 = vadd.f32 %v9805, %v9806
      %v9808 = vrot.slane %v9807, 1
      %v9809 = vadd.f32 %v9807, %v9808
      %v9810 = vadd.f32 %v9746, %v9754
      %v9811 = vadd.f32 %v9810, %v9762
      %v9812 = vadd.f32 %v9811, %v9770
      %v9813 = vrot.slane %v9812, 4
      %v9814 = vadd.f32 %v9812, %v9813
      %v9815 = vrot.slane %v9814, 2
      %v9816 = vadd.f32 %v9814, %v9815
      %v9817 = vrot.slane %v9816, 1
      %v9818 = vadd.f32 %v9816, %v9817
      %v9819 = vadd.f32 %v9747, %v9755
      %v9820 = vadd.f32 %v9819, %v9763
      %v9821 = vadd.f32 %v9820, %v9771
      %v9822 = vrot.slane %v9821, 4
      %v9823 = vadd.f32 %v9821, %v9822
      %v9824 = vrot.slane %v9823, 2
      %v9825 = vadd.f32 %v9823, %v9824
      %v9826 = vrot.slane %v9825, 1
      %v9827 = vadd.f32 %v9825, %v9826
      %v9828 = vadd.f32 %v9748, %v9756
      %v9829 = vadd.f32 %v9828, %v9764
      %v9830 = vadd.f32 %v9829, %v9772
      %v9831 = vrot.slane %v9830, 4
      %v9832 = vadd.f32 %v9830, %v9831
      %v9833 = vrot.slane %v9832, 2
      %v9834 = vadd.f32 %v9832, %v9833
      %v9835 = vrot.slane %v9834, 1
      %v9836 = vadd.f32 %v9834, %v9835
      %v9837 = vadd.f32 %v9749, %v9757
      %v9838 = vadd.f32 %v9837, %v9765
      %v9839 = vadd.f32 %v9838, %v9773
      %v9840 = vrot.slane %v9839, 4
      %v9841 = vadd.f32 %v9839, %v9840
      %v9842 = vrot.slane %v9841, 2
      %v9843 = vadd.f32 %v9841, %v9842
      %v9844 = vrot.slane %v9843, 1
      %v9845 = vadd.f32 %v9843, %v9844
      %v9846 = vadd.f32 %v9782, %v1800
      %v9847 = vadd.f32 %v9791, %v1800
      %v9848 = vadd.f32 %v9800, %v1800
      %v9849 = vadd.f32 %v9809, %v1800
      %v9850 = vadd.f32 %v9818, %v1800
      %v9851 = vadd.f32 %v9827, %v1800
      %v9852 = vadd.f32 %v9836, %v1800
      %v9853 = vadd.f32 %v9845, %v1800
      %v9862 = vcombine.low %v9846, %v9847
      %v9863 = vcombine.low %v9848, %v9849
      %v9864 = vcombine.low %v9850, %v9851
      %v9865 = vcombine.low %v9852, %v9853
      %v9867 = vunpack.c.l.s4 1966171168
      %v9868 = vunpack.c.0.s8 %v9867
      %v9869 = vlaneseq
      %v9870 = vshrl.u32 %v9869, 7
      %v9871 = vsub.s32 %v9868, %v9870
      %v9872 = vrot.slane %v9862, %v9871
      %v9874 = vunpack.c.l.s4 1966171168
      %v9875 = vunpack.c.0.s8 %v9874
      %v9876 = vlaneseq
      %v9877 = vshrl.u32 %v9876, 7
      %v9878 = vsub.s32 %v9875, %v9877
      %v9879 = vrot.slane %v9863, %v9878
      %v9881 = vunpack.c.l.s4 1966171168
      %v9882 = vunpack.c.0.s8 %v9881
      %v9883 = vlaneseq
      %v9884 = vshrl.u32 %v9883, 7
      %v9885 = vsub.s32 %v9882, %v9884
      %v9886 = vrot.slane %v9864, %v9885
      %v9888 = vunpack.c.l.s4 1966171168
      %v9889 = vunpack.c.0.s8 %v9888
      %v9890 = vlaneseq
      %v9891 = vshrl.u32 %v9890, 7
      %v9892 = vsub.s32 %v9889, %v9891
      %v9893 = vrot.slane %v9865, %v9892
      %v9894 = vcombine.low %v9872, %v9879
      %v9895 = vcombine.low %v9886, %v9893
      %v9897 = vunpack.c.l.s4 1966171168
      %v9898 = vunpack.c.0.s8 %v9897
      %v9899 = vlaneseq
      %v9900 = vshrl.u32 %v9899, 7
      %v9901 = vsub.s32 %v9898, %v9900
      %v9902 = vrot.slane %v9894, %v9901
      %v9904 = vunpack.c.l.s4 1966171168
      %v9905 = vunpack.c.0.s8 %v9904
      %v9906 = vlaneseq
      %v9907 = vshrl.u32 %v9906, 7
      %v9908 = vsub.s32 %v9905, %v9907
      %v9909 = vrot.slane %v9895, %v9908
      %v9910 = vcombine.low %v9902, %v9909
      %s9912 = scalar_lea.vmem %s253, 6
      %9913 = vst [vmem:[%s9912] ss:$8 sm:$0xf] %v9910
      %9914 = vst [vmem:[%s9912] ss:$8 sm:$0xf0] %v9910
      %v9915 = vlaneseq
      %v9916 = vshrl.u32 %v9915, 7
      %v9917 = vsub.s32 7, %v9916
      %v9918 = vrot.slane %v307, %v9917
      %v9919 = vlaneseq
      %v9920 = vshrl.u32 %v9919, 7
      %v9921 = vsub.s32 7, %v9920
      %v9922 = vrot.slane %v308, %v9921
      %v9923 = vlaneseq
      %v9924 = vshrl.u32 %v9923, 7
      %v9925 = vsub.s32 7, %v9924
      %v9926 = vrot.slane %v309, %v9925
      %v9927 = vlaneseq
      %v9928 = vshrl.u32 %v9927, 7
      %v9929 = vsub.s32 7, %v9928
      %v9930 = vrot.slane %v310, %v9929
      %v9931 = vlaneseq
      %v9932 = vshrl.u32 %v9931, 7
      %v9933 = vsub.s32 7, %v9932
      %v9934 = vrot.slane %v311, %v9933
      %v9935 = vlaneseq
      %v9936 = vshrl.u32 %v9935, 7
      %v9937 = vsub.s32 7, %v9936
      %v9938 = vrot.slane %v312, %v9937
      %v9939 = vlaneseq
      %v9940 = vshrl.u32 %v9939, 7
      %v9941 = vsub.s32 7, %v9940
      %v9942 = vrot.slane %v313, %v9941
      %v9943 = vlaneseq
      %v9944 = vshrl.u32 %v9943, 7
      %v9945 = vsub.s32 7, %v9944
      %v9946 = vrot.slane %v314, %v9945
      %v9947 = vmul.f32 %v318, %v9918
      %v9948 = vmul.f32 %v318, %v9922
      %v9949 = vmul.f32 %v318, %v9926
      %v9950 = vmul.f32 %v318, %v9930
      %v9951 = vmul.f32 %v318, %v9934
      %v9952 = vmul.f32 %v318, %v9938
      %v9953 = vmul.f32 %v318, %v9942
      %v9954 = vmul.f32 %v318, %v9946
      %v9955 = vmul.f32 %v323, %v9918
      %v9956 = vmul.f32 %v323, %v9922
      %v9957 = vmul.f32 %v323, %v9926
      %v9958 = vmul.f32 %v323, %v9930
      %v9959 = vmul.f32 %v323, %v9934
      %v9960 = vmul.f32 %v323, %v9938
      %v9961 = vmul.f32 %v323, %v9942
      %v9962 = vmul.f32 %v323, %v9946
      %v9963 = vmul.f32 %v328, %v9918
      %v9964 = vmul.f32 %v328, %v9922
      %v9965 = vmul.f32 %v328, %v9926
      %v9966 = vmul.f32 %v328, %v9930
      %v9967 = vmul.f32 %v328, %v9934
      %v9968 = vmul.f32 %v328, %v9938
      %v9969 = vmul.f32 %v328, %v9942
      %v9970 = vmul.f32 %v328, %v9946
      %v9971 = vmul.f32 %v333, %v9918
      %v9972 = vmul.f32 %v333, %v9922
      %v9973 = vmul.f32 %v333, %v9926
      %v9974 = vmul.f32 %v333, %v9930
      %v9975 = vmul.f32 %v333, %v9934
      %v9976 = vmul.f32 %v333, %v9938
      %v9977 = vmul.f32 %v333, %v9942
      %v9978 = vmul.f32 %v333, %v9946
      %v9979 = vadd.f32 %v9947, %v402
      %v9980 = vadd.f32 %v9948, %v402
      %v9981 = vadd.f32 %v9949, %v402
      %v9982 = vadd.f32 %v9950, %v402
      %v9983 = vadd.f32 %v9951, %v402
      %v9984 = vadd.f32 %v9952, %v402
      %v9985 = vadd.f32 %v9953, %v402
      %v9986 = vadd.f32 %v9954, %v402
      %v9987 = vadd.f32 %v9955, %v407
      %v9988 = vadd.f32 %v9956, %v407
      %v9989 = vadd.f32 %v9957, %v407
      %v9990 = vadd.f32 %v9958, %v407
      %v9991 = vadd.f32 %v9959, %v407
      %v9992 = vadd.f32 %v9960, %v407
      %v9993 = vadd.f32 %v9961, %v407
      %v9994 = vadd.f32 %v9962, %v407
      %v9995 = vadd.f32 %v9963, %v412
      %v9996 = vadd.f32 %v9964, %v412
      %v9997 = vadd.f32 %v9965, %v412
      %v9998 = vadd.f32 %v9966, %v412
      %v9999 = vadd.f32 %v9967, %v412
      %v10000 = vadd.f32 %v9968, %v412
      %v10001 = vadd.f32 %v9969, %v412
      %v10002 = vadd.f32 %v9970, %v412
      %v10003 = vadd.f32 %v9971, %v417
      %v10004 = vadd.f32 %v9972, %v417
      %v10005 = vadd.f32 %v9973, %v417
      %v10006 = vadd.f32 %v9974, %v417
      %v10007 = vadd.f32 %v9975, %v417
      %v10008 = vadd.f32 %v9976, %v417
      %v10009 = vadd.f32 %v9977, %v417
      %v10010 = vadd.f32 %v9978, %v417
      %v10011 = vtanh.pop %v9979
      %v10012 = vtanh.pop %v9980
      %v10013 = vtanh.pop %v9981
      %v10014 = vtanh.pop %v9982
      %v10015 = vtanh.pop %v9983
      %v10016 = vtanh.pop %v9984
      %v10017 = vtanh.pop %v9985
      %v10018 = vtanh.pop %v9986
      %v10019 = vtanh.pop %v9987
      %v10020 = vtanh.pop %v9988
      %v10021 = vtanh.pop %v9989
      %v10022 = vtanh.pop %v9990
      %v10023 = vtanh.pop %v9991
      %v10024 = vtanh.pop %v9992
      %v10025 = vtanh.pop %v9993
      %v10026 = vtanh.pop %v9994
      %v10027 = vtanh.pop %v9995
      %v10028 = vtanh.pop %v9996
      %v10029 = vtanh.pop %v9997
      %v10030 = vtanh.pop %v9998
      %v10031 = vtanh.pop %v9999
      %v10032 = vtanh.pop %v10000
      %v10033 = vtanh.pop %v10001
      %v10034 = vtanh.pop %v10002
      %v10035 = vtanh.pop %v10003
      %v10036 = vtanh.pop %v10004
      %v10037 = vtanh.pop %v10005
      %v10038 = vtanh.pop %v10006
      %v10039 = vtanh.pop %v10007
      %v10040 = vtanh.pop %v10008
      %v10041 = vtanh.pop %v10009
      %v10042 = vtanh.pop %v10010
      %v10043 = vpack.c.bf16 %v10019, %v10011
      %v10044 = vpack.c.bf16 %v10020, %v10012
      %v10045 = vpack.c.bf16 %v10021, %v10013
      %v10046 = vpack.c.bf16 %v10022, %v10014
      %v10047 = vpack.c.bf16 %v10023, %v10015
      %v10048 = vpack.c.bf16 %v10024, %v10016
      %v10049 = vpack.c.bf16 %v10025, %v10017
      %v10050 = vpack.c.bf16 %v10026, %v10018
      %v10051 = vpack.c.bf16 %v10035, %v10027
      %v10052 = vpack.c.bf16 %v10036, %v10028
      %v10053 = vpack.c.bf16 %v10037, %v10029
      %v10054 = vpack.c.bf16 %v10038, %v10030
      %v10055 = vpack.c.bf16 %v10039, %v10031
      %v10056 = vpack.c.bf16 %v10040, %v10032
      %v10057 = vpack.c.bf16 %v10041, %v10033
      %v10058 = vpack.c.bf16 %v10042, %v10034
      %10059 = vmatprep.subr.bf16.mxu0 %v10044
      %10060 = vmatpush1.bf16.msra.mxu0 %v10043
      %10061 = vmatprep.subr.bf16.mxu0 %v10052
      %10062 = vmatpush1.bf16.msra.mxu0 %v10051
      %10063 = vmatprep.subr.bf16.mxu0 0
      %10064 = vmatpush1.bf16.msra.mxu0 0
      %10065 = vmatprep.subr.bf16.mxu0 0
      %10066 = vmatpush1.bf16.msra.mxu0 0
      %10067 = vmatprep.subr.bf16.mxu0 0
      %10068 = vmatpush1.bf16.msra.mxu0 0
      %10069 = vmatprep.subr.bf16.mxu0 0
      %10070 = vmatpush1.bf16.msra.mxu0 0
      %10071 = vmatprep.subr.bf16.mxu0 0
      %10072 = vmatpush1.bf16.msra.mxu0 0
      %10073 = vmatprep.subr.bf16.mxu0 0
      %10074 = vmatpush1.bf16.msra.mxu0 0
      %10075 = vmatprep.subr.bf16.mxu0 0
      %10076 = vmatpush1.bf16.msra.mxu0 0
      %10077 = vmatprep.subr.bf16.mxu0 0
      %10078 = vmatpush1.bf16.msra.mxu0 0
      %10079 = vmatprep.subr.bf16.mxu0 0
      %10080 = vmatpush1.bf16.msra.mxu0 0
      %10081 = vmatprep.subr.bf16.mxu0 0
      %10082 = vmatpush1.bf16.msra.mxu0 0
      %10083 = vmatprep.subr.bf16.mxu0 0
      %10084 = vmatpush1.bf16.msra.mxu0 0
      %10085 = vmatprep.subr.bf16.mxu0 0
      %10086 = vmatpush1.bf16.msra.mxu0 0
      %10087 = vmatprep.subr.bf16.mxu0 0
      %10088 = vmatpush1.bf16.msra.mxu0 0
      %10089 = vmatprep.subr.bf16.mxu0 0
      %10090 = vmatpush1.bf16.msra.mxu0 0
      %10091 = vmatprep.mubr.bf16.mxu0 0
      %10092 = vmatmul.mubr.bf16.gmra.mrb[0].mxu0 %v531
      %v10093 = vpop.f32.mrb[0].mxu0
      %v10094 = vadd.f32 %v502, %v10093
      %v10095 = vpop.f32.mrb[0].mxu0
      %v10096 = vadd.f32 %v502, %v10095
      %v10097 = vpop.f32.mrb[0].mxu0
      %v10098 = vadd.f32 %v507, %v10097
      %v10099 = vpop.f32.mrb[0].mxu0
      %v10100 = vadd.f32 %v507, %v10099
      %10101 = vmatprep.mubr.bf16.mxu0 0
      %10102 = vmatmul.mubr.bf16.gmra.mrb[0].mxu0 %v534
      %v10103 = vpop.f32.mrb[0].mxu0
      %v10104 = vadd.f32 %v512, %v10103
      %v10105 = vpop.f32.mrb[0].mxu0
      %v10106 = vadd.f32 %v512, %v10105
      %v10107 = vpop.f32.mrb[0].mxu0
      %v10108 = vadd.f32 %v517, %v10107
      %v10109 = vpop.f32.mrb[0].mxu0
      %v10110 = vadd.f32 %v517, %v10109
      %10111 = vdwg.mxu0
      %10112 = vmatprep.subr.bf16.mxu0 %v10046
      %10113 = vmatpush1.bf16.msra.mxu0 %v10045
      %10114 = vmatprep.subr.bf16.mxu0 %v10054
      %10115 = vmatpush1.bf16.msra.mxu0 %v10053
      %10116 = vmatprep.subr.bf16.mxu0 0
      %10117 = vmatpush1.bf16.msra.mxu0 0
      %10118 = vmatprep.subr.bf16.mxu0 0
      %10119 = vmatpush1.bf16.msra.mxu0 0
      %10120 = vmatprep.subr.bf16.mxu0 0
      %10121 = vmatpush1.bf16.msra.mxu0 0
      %10122 = vmatprep.subr.bf16.mxu0 0
      %10123 = vmatpush1.bf16.msra.mxu0 0
      %10124 = vmatprep.subr.bf16.mxu0 0
      %10125 = vmatpush1.bf16.msra.mxu0 0
      %10126 = vmatprep.subr.bf16.mxu0 0
      %10127 = vmatpush1.bf16.msra.mxu0 0
      %10128 = vmatprep.subr.bf16.mxu0 0
      %10129 = vmatpush1.bf16.msra.mxu0 0
      %10130 = vmatprep.subr.bf16.mxu0 0
      %10131 = vmatpush1.bf16.msra.mxu0 0
      %10132 = vmatprep.subr.bf16.mxu0 0
      %10133 = vmatpush1.bf16.msra.mxu0 0
      %10134 = vmatprep.subr.bf16.mxu0 0
      %10135 = vmatpush1.bf16.msra.mxu0 0
      %10136 = vmatprep.subr.bf16.mxu0 0
      %10137 = vmatpush1.bf16.msra.mxu0 0
      %10138 = vmatprep.subr.bf16.mxu0 0
      %10139 = vmatpush1.bf16.msra.mxu0 0
      %10140 = vmatprep.subr.bf16.mxu0 0
      %10141 = vmatpush1.bf16.msra.mxu0 0
      %10142 = vmatprep.subr.bf16.mxu0 0
      %10143 = vmatpush1.bf16.msra.mxu0 0
      %10144 = vmatprep.mubr.bf16.mxu0 0
      %10145 = vmatmul.mubr.bf16.gmra.mrb[0].mxu0 %v531
      %v10146 = vpop.f32.mrb[0].mxu0
      %v10147 = vadd.f32 %v502, %v10146
      %v10148 = vpop.f32.mrb[0].mxu0
      %v10149 = vadd.f32 %v502, %v10148
      %v10150 = vpop.f32.mrb[0].mxu0
      %v10151 = vadd.f32 %v507, %v10150
      %v10152 = vpop.f32.mrb[0].mxu0
      %v10153 = vadd.f32 %v507, %v10152
      %10154 = vmatprep.mubr.bf16.mxu0 0
      %10155 = vmatmul.mubr.bf16.gmra.mrb[0].mxu0 %v534
      %v10156 = vpop.f32.mrb[0].mxu0
      %v10157 = vadd.f32 %v512, %v10156
      %v10158 = vpop.f32.mrb[0].mxu0
      %v10159 = vadd.f32 %v512, %v10158
      %v10160 = vpop.f32.mrb[0].mxu0
      %v10161 = vadd.f32 %v517, %v10160
      %v10162 = vpop.f32.mrb[0].mxu0
      %v10163 = vadd.f32 %v517, %v10162
      %10164 = vdwg.mxu0
      %10165 = vmatprep.subr.bf16.mxu0 %v10048
      %10166 = vmatpush1.bf16.msra.mxu0 %v10047
      %10167 = vmatprep.subr.bf16.mxu0 %v10056
      %10168 = vmatpush1.bf16.msra.mxu0 %v10055
      %10169 = vmatprep.subr.bf16.mxu0 0
      %10170 = vmatpush1.bf16.msra.mxu0 0
      %10171 = vmatprep.subr.bf16.mxu0 0
      %10172 = vmatpush1.bf16.msra.mxu0 0
      %10173 = vmatprep.subr.bf16.mxu0 0
      %10174 = vmatpush1.bf16.msra.mxu0 0
      %10175 = vmatprep.subr.bf16.mxu0 0
      %10176 = vmatpush1.bf16.msra.mxu0 0
      %10177 = vmatprep.subr.bf16.mxu0 0
      %10178 = vmatpush1.bf16.msra.mxu0 0
      %10179 = vmatprep.subr.bf16.mxu0 0
      %10180 = vmatpush1.bf16.msra.mxu0 0
      %10181 = vmatprep.subr.bf16.mxu0 0
      %10182 = vmatpush1.bf16.msra.mxu0 0
      %10183 = vmatprep.subr.bf16.mxu0 0
      %10184 = vmatpush1.bf16.msra.mxu0 0
      %10185 = vmatprep.subr.bf16.mxu0 0
      %10186 = vmatpush1.bf16.msra.mxu0 0
      %10187 = vmatprep.subr.bf16.mxu0 0
      %10188 = vmatpush1.bf16.msra.mxu0 0
      %10189 = vmatprep.subr.bf16.mxu0 0
      %10190 = vmatpush1.bf16.msra.mxu0 0
      %10191 = vmatprep.subr.bf16.mxu0 0
      %10192 = vmatpush1.bf16.msra.mxu0 0
      %10193 = vmatprep.subr.bf16.mxu0 0
      %10194 = vmatpush1.bf16.msra.mxu0 0
      %10195 = vmatprep.subr.bf16.mxu0 0
      %10196 = vmatpush1.bf16.msra.mxu0 0
      %10197 = vmatprep.mubr.bf16.mxu0 0
      %10198 = vmatmul.mubr.bf16.gmra.mrb[0].mxu0 %v531
      %v10199 = vpop.f32.mrb[0].mxu0
      %v10200 = vadd.f32 %v502, %v10199
      %v10201 = vpop.f32.mrb[0].mxu0
      %v10202 = vadd.f32 %v502, %v10201
      %v10203 = vpop.f32.mrb[0].mxu0
      %v10204 = vadd.f32 %v507, %v10203
      %v10205 = vpop.f32.mrb[0].mxu0
      %v10206 = vadd.f32 %v507, %v10205
      %10207 = vmatprep.mubr.bf16.mxu0 0
      %10208 = vmatmul.mubr.bf16.gmra.mrb[0].mxu0 %v534
      %v10209 = vpop.f32.mrb[0].mxu0
      %v10210 = vadd.f32 %v512, %v10209
      %v10211 = vpop.f32.mrb[0].mxu0
      %v10212 = vadd.f32 %v512, %v10211
      %v10213 = vpop.f32.mrb[0].mxu0
      %v10214 = vadd.f32 %v517, %v10213
      %v10215 = vpop.f32.mrb[0].mxu0
      %v10216 = vadd.f32 %v517, %v10215
      %10217 = vdwg.mxu0
      %10218 = vmatprep.subr.bf16.mxu0 %v10050
      %10219 = vmatpush1.bf16.msra.mxu0 %v10049
      %10220 = vmatprep.subr.bf16.mxu0 %v10058
      %10221 = vmatpush1.bf16.msra.mxu0 %v10057
      %10222 = vmatprep.subr.bf16.mxu0 0
      %10223 = vmatpush1.bf16.msra.mxu0 0
      %10224 = vmatprep.subr.bf16.mxu0 0
      %10225 = vmatpush1.bf16.msra.mxu0 0
      %10226 = vmatprep.subr.bf16.mxu0 0
      %10227 = vmatpush1.bf16.msra.mxu0 0
      %10228 = vmatprep.subr.bf16.mxu0 0
      %10229 = vmatpush1.bf16.msra.mxu0 0
      %10230 = vmatprep.subr.bf16.mxu0 0
      %10231 = vmatpush1.bf16.msra.mxu0 0
      %10232 = vmatprep.subr.bf16.mxu0 0
      %10233 = vmatpush1.bf16.msra.mxu0 0
      %10234 = vmatprep.subr.bf16.mxu0 0
      %10235 = vmatpush1.bf16.msra.mxu0 0
      %10236 = vmatprep.subr.bf16.mxu0 0
      %10237 = vmatpush1.bf16.msra.mxu0 0
      %10238 = vmatprep.subr.bf16.mxu0 0
      %10239 = vmatpush1.bf16.msra.mxu0 0
      %10240 = vmatprep.subr.bf16.mxu0 0
      %10241 = vmatpush1.bf16.msra.mxu0 0
      %10242 = vmatprep.subr.bf16.mxu0 0
      %10243 = vmatpush1.bf16.msra.mxu0 0
      %10244 = vmatprep.subr.bf16.mxu0 0
      %10245 = vmatpush1.bf16.msra.mxu0 0
      %10246 = vmatprep.subr.bf16.mxu0 0
      %10247 = vmatpush1.bf16.msra.mxu0 0
      %10248 = vmatprep.subr.bf16.mxu0 0
      %10249 = vmatpush1.bf16.msra.mxu0 0
      %10250 = vmatprep.mubr.bf16.mxu0 0
      %10251 = vmatmul.mubr.bf16.gmra.mrb[0].mxu0 %v531
      %v10252 = vpop.f32.mrb[0].mxu0
      %v10253 = vadd.f32 %v502, %v10252
      %v10254 = vpop.f32.mrb[0].mxu0
      %v10255 = vadd.f32 %v502, %v10254
      %v10256 = vpop.f32.mrb[0].mxu0
      %v10257 = vadd.f32 %v507, %v10256
      %v10258 = vpop.f32.mrb[0].mxu0
      %v10259 = vadd.f32 %v507, %v10258
      %10260 = vmatprep.mubr.bf16.mxu0 0
      %10261 = vmatmul.mubr.bf16.gmra.mrb[0].mxu0 %v534
      %v10262 = vpop.f32.mrb[0].mxu0
      %v10263 = vadd.f32 %v512, %v10262
      %v10264 = vpop.f32.mrb[0].mxu0
      %v10265 = vadd.f32 %v512, %v10264
      %v10266 = vpop.f32.mrb[0].mxu0
      %v10267 = vadd.f32 %v517, %v10266
      %v10268 = vpop.f32.mrb[0].mxu0
      %v10269 = vadd.f32 %v517, %v10268
      %10270 = vdwg.mxu0
      %v10271 = vtanh.pop %v10094
      %v10272 = vtanh.pop %v10096
      %v10273 = vtanh.pop %v10147
      %v10274 = vtanh.pop %v10149
      %v10275 = vtanh.pop %v10200
      %v10276 = vtanh.pop %v10202
      %v10277 = vtanh.pop %v10253
      %v10278 = vtanh.pop %v10255
      %v10279 = vtanh.pop %v10098
      %v10280 = vtanh.pop %v10100
      %v10281 = vtanh.pop %v10151
      %v10282 = vtanh.pop %v10153
      %v10283 = vtanh.pop %v10204
      %v10284 = vtanh.pop %v10206
      %v10285 = vtanh.pop %v10257
      %v10286 = vtanh.pop %v10259
      %v10287 = vtanh.pop %v10104
      %v10288 = vtanh.pop %v10106
      %v10289 = vtanh.pop %v10157
      %v10290 = vtanh.pop %v10159
      %v10291 = vtanh.pop %v10210
      %v10292 = vtanh.pop %v10212
      %v10293 = vtanh.pop %v10263
      %v10294 = vtanh.pop %v10265
      %v10295 = vtanh.pop %v10108
      %v10296 = vtanh.pop %v10110
      %v10297 = vtanh.pop %v10161
      %v10298 = vtanh.pop %v10163
      %v10299 = vtanh.pop %v10214
      %v10300 = vtanh.pop %v10216
      %v10301 = vtanh.pop %v10267
      %v10302 = vtanh.pop %v10269
      %v10303 = vpack.c.bf16 %v10279, %v10271
      %v10304 = vpack.c.bf16 %v10280, %v10272
      %v10305 = vpack.c.bf16 %v10281, %v10273
      %v10306 = vpack.c.bf16 %v10282, %v10274
      %v10307 = vpack.c.bf16 %v10283, %v10275
      %v10308 = vpack.c.bf16 %v10284, %v10276
      %v10309 = vpack.c.bf16 %v10285, %v10277
      %v10310 = vpack.c.bf16 %v10286, %v10278
      %v10311 = vpack.c.bf16 %v10295, %v10287
      %v10312 = vpack.c.bf16 %v10296, %v10288
      %v10313 = vpack.c.bf16 %v10297, %v10289
      %v10314 = vpack.c.bf16 %v10298, %v10290
      %v10315 = vpack.c.bf16 %v10299, %v10291
      %v10316 = vpack.c.bf16 %v10300, %v10292
      %v10317 = vpack.c.bf16 %v10301, %v10293
      %v10318 = vpack.c.bf16 %v10302, %v10294
      %10319 = vmatprep.subr.bf16.mxu0 %v10304
      %10320 = vmatpush1.bf16.msra.mxu0 %v10303
      %10321 = vmatprep.subr.bf16.mxu0 %v10312
      %10322 = vmatpush1.bf16.msra.mxu0 %v10311
      %10323 = vmatprep.subr.bf16.mxu0 0
      %10324 = vmatpush1.bf16.msra.mxu0 0
      %10325 = vmatprep.subr.bf16.mxu0 0
      %10326 = vmatpush1.bf16.msra.mxu0 0
      %10327 = vmatprep.subr.bf16.mxu0 0
      %10328 = vmatpush1.bf16.msra.mxu0 0
      %10329 = vmatprep.subr.bf16.mxu0 0
      %10330 = vmatpush1.bf16.msra.mxu0 0
      %10331 = vmatprep.subr.bf16.mxu0 0
      %10332 = vmatpush1.bf16.msra.mxu0 0
      %10333 = vmatprep.subr.bf16.mxu0 0
      %10334 = vmatpush1.bf16.msra.mxu0 0
      %10335 = vmatprep.subr.bf16.mxu0 0
      %10336 = vmatpush1.bf16.msra.mxu0 0
      %10337 = vmatprep.subr.bf16.mxu0 0
      %10338 = vmatpush1.bf16.msra.mxu0 0
      %10339 = vmatprep.subr.bf16.mxu0 0
      %10340 = vmatpush1.bf16.msra.mxu0 0
      %10341 = vmatprep.subr.bf16.mxu0 0
      %10342 = vmatpush1.bf16.msra.mxu0 0
      %10343 = vmatprep.subr.bf16.mxu0 0
      %10344 = vmatpush1.bf16.msra.mxu0 0
      %10345 = vmatprep.subr.bf16.mxu0 0
      %10346 = vmatpush1.bf16.msra.mxu0 0
      %10347 = vmatprep.subr.bf16.mxu0 0
      %10348 = vmatpush1.bf16.msra.mxu0 0
      %10349 = vmatprep.subr.bf16.mxu0 0
      %10350 = vmatpush1.bf16.msra.mxu0 0
      %10351 = vmatprep.mubr.bf16.mxu0 0
      %10352 = vmatmul.mubr.bf16.gmra.mrb[0].mxu0 %v827
      %v10353 = vpop.f32.mrb[0].mxu0
      %v10354 = vadd.f32 %v799, %v10353
      %v10355 = vpop.f32.mrb[0].mxu0
      %v10356 = vadd.f32 %v799, %v10355
      %v10357 = vpop.f32.mrb[0].mxu0
      %v10358 = vadd.f32 %v804, %v10357
      %v10359 = vpop.f32.mrb[0].mxu0
      %v10360 = vadd.f32 %v804, %v10359
      %10361 = vmatprep.mubr.bf16.mxu0 0
      %10362 = vmatmul.mubr.bf16.gmra.mrb[0].mxu0 %v830
      %v10363 = vpop.f32.mrb[0].mxu0
      %v10364 = vadd.f32 %v809, %v10363
      %v10365 = vpop.f32.mrb[0].mxu0
      %v10366 = vadd.f32 %v809, %v10365
      %v10367 = vpop.f32.mrb[0].mxu0
      %v10368 = vadd.f32 %v814, %v10367
      %v10369 = vpop.f32.mrb[0].mxu0
      %v10370 = vadd.f32 %v814, %v10369
      %10371 = vdwg.mxu0
      %10372 = vmatprep.subr.bf16.mxu0 %v10306
      %10373 = vmatpush1.bf16.msra.mxu0 %v10305
      %10374 = vmatprep.subr.bf16.mxu0 %v10314
      %10375 = vmatpush1.bf16.msra.mxu0 %v10313
      %10376 = vmatprep.subr.bf16.mxu0 0
      %10377 = vmatpush1.bf16.msra.mxu0 0
      %10378 = vmatprep.subr.bf16.mxu0 0
      %10379 = vmatpush1.bf16.msra.mxu0 0
      %10380 = vmatprep.subr.bf16.mxu0 0
      %10381 = vmatpush1.bf16.msra.mxu0 0
      %10382 = vmatprep.subr.bf16.mxu0 0
      %10383 = vmatpush1.bf16.msra.mxu0 0
      %10384 = vmatprep.subr.bf16.mxu0 0
      %10385 = vmatpush1.bf16.msra.mxu0 0
      %10386 = vmatprep.subr.bf16.mxu0 0
      %10387 = vmatpush1.bf16.msra.mxu0 0
      %10388 = vmatprep.subr.bf16.mxu0 0
      %10389 = vmatpush1.bf16.msra.mxu0 0
      %10390 = vmatprep.subr.bf16.mxu0 0
      %10391 = vmatpush1.bf16.msra.mxu0 0
      %10392 = vmatprep.subr.bf16.mxu0 0
      %10393 = vmatpush1.bf16.msra.mxu0 0
      %10394 = vmatprep.subr.bf16.mxu0 0
      %10395 = vmatpush1.bf16.msra.mxu0 0
      %10396 = vmatprep.subr.bf16.mxu0 0
      %10397 = vmatpush1.bf16.msra.mxu0 0
      %10398 = vmatprep.subr.bf16.mxu0 0
      %10399 = vmatpush1.bf16.msra.mxu0 0
      %10400 = vmatprep.subr.bf16.mxu0 0
      %10401 = vmatpush1.bf16.msra.mxu0 0
      %10402 = vmatprep.subr.bf16.mxu0 0
      %10403 = vmatpush1.bf16.msra.mxu0 0
      %10404 = vmatprep.mubr.bf16.mxu0 0
      %10405 = vmatmul.mubr.bf16.gmra.mrb[0].mxu0 %v827
      %v10406 = vpop.f32.mrb[0].mxu0
      %v10407 = vadd.f32 %v799, %v10406
      %v10408 = vpop.f32.mrb[0].mxu0
      %v10409 = vadd.f32 %v799, %v10408
      %v10410 = vpop.f32.mrb[0].mxu0
      %v10411 = vadd.f32 %v804, %v10410
      %v10412 = vpop.f32.mrb[0].mxu0
      %v10413 = vadd.f32 %v804, %v10412
      %10414 = vmatprep.mubr.bf16.mxu0 0
      %10415 = vmatmul.mubr.bf16.gmra.mrb[0].mxu0 %v830
      %v10416 = vpop.f32.mrb[0].mxu0
      %v10417 = vadd.f32 %v809, %v10416
      %v10418 = vpop.f32.mrb[0].mxu0
      %v10419 = vadd.f32 %v809, %v10418
      %v10420 = vpop.f32.mrb[0].mxu0
      %v10421 = vadd.f32 %v814, %v10420
      %v10422 = vpop.f32.mrb[0].mxu0
      %v10423 = vadd.f32 %v814, %v10422
      %10424 = vdwg.mxu0
      %10425 = vmatprep.subr.bf16.mxu0 %v10308
      %10426 = vmatpush1.bf16.msra.mxu0 %v10307
      %10427 = vmatprep.subr.bf16.mxu0 %v10316
      %10428 = vmatpush1.bf16.msra.mxu0 %v10315
      %10429 = vmatprep.subr.bf16.mxu0 0
      %10430 = vmatpush1.bf16.msra.mxu0 0
      %10431 = vmatprep.subr.bf16.mxu0 0
      %10432 = vmatpush1.bf16.msra.mxu0 0
      %10433 = vmatprep.subr.bf16.mxu0 0
      %10434 = vmatpush1.bf16.msra.mxu0 0
      %10435 = vmatprep.subr.bf16.mxu0 0
      %10436 = vmatpush1.bf16.msra.mxu0 0
      %10437 = vmatprep.subr.bf16.mxu0 0
      %10438 = vmatpush1.bf16.msra.mxu0 0
      %10439 = vmatprep.subr.bf16.mxu0 0
      %10440 = vmatpush1.bf16.msra.mxu0 0
      %10441 = vmatprep.subr.bf16.mxu0 0
      %10442 = vmatpush1.bf16.msra.mxu0 0
      %10443 = vmatprep.subr.bf16.mxu0 0
      %10444 = vmatpush1.bf16.msra.mxu0 0
      %10445 = vmatprep.subr.bf16.mxu0 0
      %10446 = vmatpush1.bf16.msra.mxu0 0
      %10447 = vmatprep.subr.bf16.mxu0 0
      %10448 = vmatpush1.bf16.msra.mxu0 0
      %10449 = vmatprep.subr.bf16.mxu0 0
      %10450 = vmatpush1.bf16.msra.mxu0 0
      %10451 = vmatprep.subr.bf16.mxu0 0
      %10452 = vmatpush1.bf16.msra.mxu0 0
      %10453 = vmatprep.subr.bf16.mxu0 0
      %10454 = vmatpush1.bf16.msra.mxu0 0
      %10455 = vmatprep.subr.bf16.mxu0 0
      %10456 = vmatpush1.bf16.msra.mxu0 0
      %10457 = vmatprep.mubr.bf16.mxu0 0
      %10458 = vmatmul.mubr.bf16.gmra.mrb[0].mxu0 %v827
      %v10459 = vpop.f32.mrb[0].mxu0
      %v10460 = vadd.f32 %v799, %v10459
      %v10461 = vpop.f32.mrb[0].mxu0
      %v10462 = vadd.f32 %v799, %v10461
      %v10463 = vpop.f32.mrb[0].mxu0
      %v10464 = vadd.f32 %v804, %v10463
      %v10465 = vpop.f32.mrb[0].mxu0
      %v10466 = vadd.f32 %v804, %v10465
      %10467 = vmatprep.mubr.bf16.mxu0 0
      %10468 = vmatmul.mubr.bf16.gmra.mrb[0].mxu0 %v830
      %v10469 = vpop.f32.mrb[0].mxu0
      %v10470 = vadd.f32 %v809, %v10469
      %v10471 = vpop.f32.mrb[0].mxu0
      %v10472 = vadd.f32 %v809, %v10471
      %v10473 = vpop.f32.mrb[0].mxu0
      %v10474 = vadd.f32 %v814, %v10473
      %v10475 = vpop.f32.mrb[0].mxu0
      %v10476 = vadd.f32 %v814, %v10475
      %10477 = vdwg.mxu0
      %10478 = vmatprep.subr.bf16.mxu0 %v10310
      %10479 = vmatpush1.bf16.msra.mxu0 %v10309
      %10480 = vmatprep.subr.bf16.mxu0 %v10318
      %10481 = vmatpush1.bf16.msra.mxu0 %v10317
      %10482 = vmatprep.subr.bf16.mxu0 0
      %10483 = vmatpush1.bf16.msra.mxu0 0
      %10484 = vmatprep.subr.bf16.mxu0 0
      %10485 = vmatpush1.bf16.msra.mxu0 0
      %10486 = vmatprep.subr.bf16.mxu0 0
      %10487 = vmatpush1.bf16.msra.mxu0 0
      %10488 = vmatprep.subr.bf16.mxu0 0
      %10489 = vmatpush1.bf16.msra.mxu0 0
      %10490 = vmatprep.subr.bf16.mxu0 0
      %10491 = vmatpush1.bf16.msra.mxu0 0
      %10492 = vmatprep.subr.bf16.mxu0 0
      %10493 = vmatpush1.bf16.msra.mxu0 0
      %10494 = vmatprep.subr.bf16.mxu0 0
      %10495 = vmatpush1.bf16.msra.mxu0 0
      %10496 = vmatprep.subr.bf16.mxu0 0
      %10497 = vmatpush1.bf16.msra.mxu0 0
      %10498 = vmatprep.subr.bf16.mxu0 0
      %10499 = vmatpush1.bf16.msra.mxu0 0
      %10500 = vmatprep.subr.bf16.mxu0 0
      %10501 = vmatpush1.bf16.msra.mxu0 0
      %10502 = vmatprep.subr.bf16.mxu0 0
      %10503 = vmatpush1.bf16.msra.mxu0 0
      %10504 = vmatprep.subr.bf16.mxu0 0
      %10505 = vmatpush1.bf16.msra.mxu0 0
      %10506 = vmatprep.subr.bf16.mxu0 0
      %10507 = vmatpush1.bf16.msra.mxu0 0
      %10508 = vmatprep.subr.bf16.mxu0 0
      %10509 = vmatpush1.bf16.msra.mxu0 0
      %10510 = vmatprep.mubr.bf16.mxu0 0
      %10511 = vmatmul.mubr.bf16.gmra.mrb[0].mxu0 %v827
      %v10512 = vpop.f32.mrb[0].mxu0
      %v10513 = vadd.f32 %v799, %v10512
      %v10514 = vpop.f32.mrb[0].mxu0
      %v10515 = vadd.f32 %v799, %v10514
      %v10516 = vpop.f32.mrb[0].mxu0
      %v10517 = vadd.f32 %v804, %v10516
      %v10518 = vpop.f32.mrb[0].mxu0
      %v10519 = vadd.f32 %v804, %v10518
      %10520 = vmatprep.mubr.bf16.mxu0 0
      %10521 = vmatmul.mubr.bf16.gmra.mrb[0].mxu0 %v830
      %v10522 = vpop.f32.mrb[0].mxu0
      %v10523 = vadd.f32 %v809, %v10522
      %v10524 = vpop.f32.mrb[0].mxu0
      %v10525 = vadd.f32 %v809, %v10524
      %v10526 = vpop.f32.mrb[0].mxu0
      %v10527 = vadd.f32 %v814, %v10526
      %v10528 = vpop.f32.mrb[0].mxu0
      %v10529 = vadd.f32 %v814, %v10528
      %10530 = vdwg.mxu0
      %v10531 = vtanh.pop %v10354
      %v10532 = vtanh.pop %v10356
      %v10533 = vtanh.pop %v10407
      %v10534 = vtanh.pop %v10409
      %v10535 = vtanh.pop %v10460
      %v10536 = vtanh.pop %v10462
      %v10537 = vtanh.pop %v10513
      %v10538 = vtanh.pop %v10515
      %v10539 = vtanh.pop %v10358
      %v10540 = vtanh.pop %v10360
      %v10541 = vtanh.pop %v10411
      %v10542 = vtanh.pop %v10413
      %v10543 = vtanh.pop %v10464
      %v10544 = vtanh.pop %v10466
      %v10545 = vtanh.pop %v10517
      %v10546 = vtanh.pop %v10519
      %v10547 = vtanh.pop %v10364
      %v10548 = vtanh.pop %v10366
      %v10549 = vtanh.pop %v10417
      %v10550 = vtanh.pop %v10419
      %v10551 = vtanh.pop %v10470
      %v10552 = vtanh.pop %v10472
      %v10553 = vtanh.pop %v10523
      %v10554 = vtanh.pop %v10525
      %v10555 = vtanh.pop %v10368
      %v10556 = vtanh.pop %v10370
      %v10557 = vtanh.pop %v10421
      %v10558 = vtanh.pop %v10423
      %v10559 = vtanh.pop %v10474
      %v10560 = vtanh.pop %v10476
      %v10561 = vtanh.pop %v10527
      %v10562 = vtanh.pop %v10529
      %v10563 = vpack.c.bf16 %v10539, %v10531
      %v10564 = vpack.c.bf16 %v10540, %v10532
      %v10565 = vpack.c.bf16 %v10541, %v10533
      %v10566 = vpack.c.bf16 %v10542, %v10534
      %v10567 = vpack.c.bf16 %v10543, %v10535
      %v10568 = vpack.c.bf16 %v10544, %v10536
      %v10569 = vpack.c.bf16 %v10545, %v10537
      %v10570 = vpack.c.bf16 %v10546, %v10538
      %v10571 = vpack.c.bf16 %v10555, %v10547
      %v10572 = vpack.c.bf16 %v10556, %v10548
      %v10573 = vpack.c.bf16 %v10557, %v10549
      %v10574 = vpack.c.bf16 %v10558, %v10550
      %v10575 = vpack.c.bf16 %v10559, %v10551
      %v10576 = vpack.c.bf16 %v10560, %v10552
      %v10577 = vpack.c.bf16 %v10561, %v10553
      %v10578 = vpack.c.bf16 %v10562, %v10554
      %10579 = vmatprep.subr.bf16.mxu0 %v10564
      %10580 = vmatpush1.bf16.msra.mxu0 %v10563
      %10581 = vmatprep.subr.bf16.mxu0 %v10572
      %10582 = vmatpush1.bf16.msra.mxu0 %v10571
      %10583 = vmatprep.subr.bf16.mxu0 0
      %10584 = vmatpush1.bf16.msra.mxu0 0
      %10585 = vmatprep.subr.bf16.mxu0 0
      %10586 = vmatpush1.bf16.msra.mxu0 0
      %10587 = vmatprep.subr.bf16.mxu0 0
      %10588 = vmatpush1.bf16.msra.mxu0 0
      %10589 = vmatprep.subr.bf16.mxu0 0
      %10590 = vmatpush1.bf16.msra.mxu0 0
      %10591 = vmatprep.subr.bf16.mxu0 0
      %10592 = vmatpush1.bf16.msra.mxu0 0
      %10593 = vmatprep.subr.bf16.mxu0 0
      %10594 = vmatpush1.bf16.msra.mxu0 0
      %10595 = vmatprep.subr.bf16.mxu0 0
      %10596 = vmatpush1.bf16.msra.mxu0 0
      %10597 = vmatprep.subr.bf16.mxu0 0
      %10598 = vmatpush1.bf16.msra.mxu0 0
      %10599 = vmatprep.subr.bf16.mxu0 0
      %10600 = vmatpush1.bf16.msra.mxu0 0
      %10601 = vmatprep.subr.bf16.mxu0 0
      %10602 = vmatpush1.bf16.msra.mxu0 0
      %10603 = vmatprep.subr.bf16.mxu0 0
      %10604 = vmatpush1.bf16.msra.mxu0 0
      %10605 = vmatprep.subr.bf16.mxu0 0
      %10606 = vmatpush1.bf16.msra.mxu0 0
      %10607 = vmatprep.subr.bf16.mxu0 0
      %10608 = vmatpush1.bf16.msra.mxu0 0
      %10609 = vmatprep.subr.bf16.mxu0 0
      %10610 = vmatpush1.bf16.msra.mxu0 0
      %10611 = vmatprep.mubr.bf16.mxu0 0
      %10612 = vmatmul.mubr.bf16.gmra.mrb[0].mxu0 %v1123
      %v10613 = vpop.f32.mrb[0].mxu0
      %v10614 = vadd.f32 %v1095, %v10613
      %v10615 = vpop.f32.mrb[0].mxu0
      %v10616 = vadd.f32 %v1095, %v10615
      %v10617 = vpop.f32.mrb[0].mxu0
      %v10618 = vadd.f32 %v1100, %v10617
      %v10619 = vpop.f32.mrb[0].mxu0
      %v10620 = vadd.f32 %v1100, %v10619
      %10621 = vmatprep.mubr.bf16.mxu0 0
      %10622 = vmatmul.mubr.bf16.gmra.mrb[0].mxu0 %v1126
      %v10623 = vpop.f32.mrb[0].mxu0
      %v10624 = vadd.f32 %v1105, %v10623
      %v10625 = vpop.f32.mrb[0].mxu0
      %v10626 = vadd.f32 %v1105, %v10625
      %v10627 = vpop.f32.mrb[0].mxu0
      %v10628 = vadd.f32 %v1110, %v10627
      %v10629 = vpop.f32.mrb[0].mxu0
      %v10630 = vadd.f32 %v1110, %v10629
      %10631 = vdwg.mxu0
      %10632 = vmatprep.subr.bf16.mxu0 %v10566
      %10633 = vmatpush1.bf16.msra.mxu0 %v10565
      %10634 = vmatprep.subr.bf16.mxu0 %v10574
      %10635 = vmatpush1.bf16.msra.mxu0 %v10573
      %10636 = vmatprep.subr.bf16.mxu0 0
      %10637 = vmatpush1.bf16.msra.mxu0 0
      %10638 = vmatprep.subr.bf16.mxu0 0
      %10639 = vmatpush1.bf16.msra.mxu0 0
      %10640 = vmatprep.subr.bf16.mxu0 0
      %10641 = vmatpush1.bf16.msra.mxu0 0
      %10642 = vmatprep.subr.bf16.mxu0 0
      %10643 = vmatpush1.bf16.msra.mxu0 0
      %10644 = vmatprep.subr.bf16.mxu0 0
      %10645 = vmatpush1.bf16.msra.mxu0 0
      %10646 = vmatprep.subr.bf16.mxu0 0
      %10647 = vmatpush1.bf16.msra.mxu0 0
      %10648 = vmatprep.subr.bf16.mxu0 0
      %10649 = vmatpush1.bf16.msra.mxu0 0
      %10650 = vmatprep.subr.bf16.mxu0 0
      %10651 = vmatpush1.bf16.msra.mxu0 0
      %10652 = vmatprep.subr.bf16.mxu0 0
      %10653 = vmatpush1.bf16.msra.mxu0 0
      %10654 = vmatprep.subr.bf16.mxu0 0
      %10655 = vmatpush1.bf16.msra.mxu0 0
      %10656 = vmatprep.subr.bf16.mxu0 0
      %10657 = vmatpush1.bf16.msra.mxu0 0
      %10658 = vmatprep.subr.bf16.mxu0 0
      %10659 = vmatpush1.bf16.msra.mxu0 0
      %10660 = vmatprep.subr.bf16.mxu0 0
      %10661 = vmatpush1.bf16.msra.mxu0 0
      %10662 = vmatprep.subr.bf16.mxu0 0
      %10663 = vmatpush1.bf16.msra.mxu0 0
      %10664 = vmatprep.mubr.bf16.mxu0 0
      %10665 = vmatmul.mubr.bf16.gmra.mrb[0].mxu0 %v1123
      %v10666 = vpop.f32.mrb[0].mxu0
      %v10667 = vadd.f32 %v1095, %v10666
      %v10668 = vpop.f32.mrb[0].mxu0
      %v10669 = vadd.f32 %v1095, %v10668
      %v10670 = vpop.f32.mrb[0].mxu0
      %v10671 = vadd.f32 %v1100, %v10670
      %v10672 = vpop.f32.mrb[0].mxu0
      %v10673 = vadd.f32 %v1100, %v10672
      %10674 = vmatprep.mubr.bf16.mxu0 0
      %10675 = vmatmul.mubr.bf16.gmra.mrb[0].mxu0 %v1126
      %v10676 = vpop.f32.mrb[0].mxu0
      %v10677 = vadd.f32 %v1105, %v10676
      %v10678 = vpop.f32.mrb[0].mxu0
      %v10679 = vadd.f32 %v1105, %v10678
      %v10680 = vpop.f32.mrb[0].mxu0
      %v10681 = vadd.f32 %v1110, %v10680
      %v10682 = vpop.f32.mrb[0].mxu0
      %v10683 = vadd.f32 %v1110, %v10682
      %10684 = vdwg.mxu0
      %10685 = vmatprep.subr.bf16.mxu0 %v10568
      %10686 = vmatpush1.bf16.msra.mxu0 %v10567
      %10687 = vmatprep.subr.bf16.mxu0 %v10576
      %10688 = vmatpush1.bf16.msra.mxu0 %v10575
      %10689 = vmatprep.subr.bf16.mxu0 0
      %10690 = vmatpush1.bf16.msra.mxu0 0
      %10691 = vmatprep.subr.bf16.mxu0 0
      %10692 = vmatpush1.bf16.msra.mxu0 0
      %10693 = vmatprep.subr.bf16.mxu0 0
      %10694 = vmatpush1.bf16.msra.mxu0 0
      %10695 = vmatprep.subr.bf16.mxu0 0
      %10696 = vmatpush1.bf16.msra.mxu0 0
      %10697 = vmatprep.subr.bf16.mxu0 0
      %10698 = vmatpush1.bf16.msra.mxu0 0
      %10699 = vmatprep.subr.bf16.mxu0 0
      %10700 = vmatpush1.bf16.msra.mxu0 0
      %10701 = vmatprep.subr.bf16.mxu0 0
      %10702 = vmatpush1.bf16.msra.mxu0 0
      %10703 = vmatprep.subr.bf16.mxu0 0
      %10704 = vmatpush1.bf16.msra.mxu0 0
      %10705 = vmatprep.subr.bf16.mxu0 0
      %10706 = vmatpush1.bf16.msra.mxu0 0
      %10707 = vmatprep.subr.bf16.mxu0 0
      %10708 = vmatpush1.bf16.msra.mxu0 0
      %10709 = vmatprep.subr.bf16.mxu0 0
      %10710 = vmatpush1.bf16.msra.mxu0 0
      %10711 = vmatprep.subr.bf16.mxu0 0
      %10712 = vmatpush1.bf16.msra.mxu0 0
      %10713 = vmatprep.subr.bf16.mxu0 0
      %10714 = vmatpush1.bf16.msra.mxu0 0
      %10715 = vmatprep.subr.bf16.mxu0 0
      %10716 = vmatpush1.bf16.msra.mxu0 0
      %10717 = vmatprep.mubr.bf16.mxu0 0
      %10718 = vmatmul.mubr.bf16.gmra.mrb[0].mxu0 %v1123
      %v10719 = vpop.f32.mrb[0].mxu0
      %v10720 = vadd.f32 %v1095, %v10719
      %v10721 = vpop.f32.mrb[0].mxu0
      %v10722 = vadd.f32 %v1095, %v10721
      %v10723 = vpop.f32.mrb[0].mxu0
      %v10724 = vadd.f32 %v1100, %v10723
      %v10725 = vpop.f32.mrb[0].mxu0
      %v10726 = vadd.f32 %v1100, %v10725
      %10727 = vmatprep.mubr.bf16.mxu0 0
      %10728 = vmatmul.mubr.bf16.gmra.mrb[0].mxu0 %v1126
      %v10729 = vpop.f32.mrb[0].mxu0
      %v10730 = vadd.f32 %v1105, %v10729
      %v10731 = vpop.f32.mrb[0].mxu0
      %v10732 = vadd.f32 %v1105, %v10731
      %v10733 = vpop.f32.mrb[0].mxu0
      %v10734 = vadd.f32 %v1110, %v10733
      %v10735 = vpop.f32.mrb[0].mxu0
      %v10736 = vadd.f32 %v1110, %v10735
      %10737 = vdwg.mxu0
      %10738 = vmatprep.subr.bf16.mxu0 %v10570
      %10739 = vmatpush1.bf16.msra.mxu0 %v10569
      %10740 = vmatprep.subr.bf16.mxu0 %v10578
      %10741 = vmatpush1.bf16.msra.mxu0 %v10577
      %10742 = vmatprep.subr.bf16.mxu0 0
      %10743 = vmatpush1.bf16.msra.mxu0 0
      %10744 = vmatprep.subr.bf16.mxu0 0
      %10745 = vmatpush1.bf16.msra.mxu0 0
      %10746 = vmatprep.subr.bf16.mxu0 0
      %10747 = vmatpush1.bf16.msra.mxu0 0
      %10748 = vmatprep.subr.bf16.mxu0 0
      %10749 = vmatpush1.bf16.msra.mxu0 0
      %10750 = vmatprep.subr.bf16.mxu0 0
      %10751 = vmatpush1.bf16.msra.mxu0 0
      %10752 = vmatprep.subr.bf16.mxu0 0
      %10753 = vmatpush1.bf16.msra.mxu0 0
      %10754 = vmatprep.subr.bf16.mxu0 0
      %10755 = vmatpush1.bf16.msra.mxu0 0
      %10756 = vmatprep.subr.bf16.mxu0 0
      %10757 = vmatpush1.bf16.msra.mxu0 0
      %10758 = vmatprep.subr.bf16.mxu0 0
      %10759 = vmatpush1.bf16.msra.mxu0 0
      %10760 = vmatprep.subr.bf16.mxu0 0
      %10761 = vmatpush1.bf16.msra.mxu0 0
      %10762 = vmatprep.subr.bf16.mxu0 0
      %10763 = vmatpush1.bf16.msra.mxu0 0
      %10764 = vmatprep.subr.bf16.mxu0 0
      %10765 = vmatpush1.bf16.msra.mxu0 0
      %10766 = vmatprep.subr.bf16.mxu0 0
      %10767 = vmatpush1.bf16.msra.mxu0 0
      %10768 = vmatprep.subr.bf16.mxu0 0
      %10769 = vmatpush1.bf16.msra.mxu0 0
      %10770 = vmatprep.mubr.bf16.mxu0 0
      %10771 = vmatmul.mubr.bf16.gmra.mrb[0].mxu0 %v1123
      %v10772 = vpop.f32.mrb[0].mxu0
      %v10773 = vadd.f32 %v1095, %v10772
      %v10774 = vpop.f32.mrb[0].mxu0
      %v10775 = vadd.f32 %v1095, %v10774
      %v10776 = vpop.f32.mrb[0].mxu0
      %v10777 = vadd.f32 %v1100, %v10776
      %v10778 = vpop.f32.mrb[0].mxu0
      %v10779 = vadd.f32 %v1100, %v10778
      %10780 = vmatprep.mubr.bf16.mxu0 0
      %10781 = vmatmul.mubr.bf16.gmra.mrb[0].mxu0 %v1126
      %v10782 = vpop.f32.mrb[0].mxu0
      %v10783 = vadd.f32 %v1105, %v10782
      %v10784 = vpop.f32.mrb[0].mxu0
      %v10785 = vadd.f32 %v1105, %v10784
      %v10786 = vpop.f32.mrb[0].mxu0
      %v10787 = vadd.f32 %v1110, %v10786
      %v10788 = vpop.f32.mrb[0].mxu0
      %v10789 = vadd.f32 %v1110, %v10788
      %10790 = vdwg.mxu0
      %v10791 = vtanh.pop %v10614
      %v10792 = vtanh.pop %v10616
      %v10793 = vtanh.pop %v10667
      %v10794 = vtanh.pop %v10669
      %v10795 = vtanh.pop %v10720
      %v10796 = vtanh.pop %v10722
      %v10797 = vtanh.pop %v10773
      %v10798 = vtanh.pop %v10775
      %v10799 = vtanh.pop %v10618
      %v10800 = vtanh.pop %v10620
      %v10801 = vtanh.pop %v10671
      %v10802 = vtanh.pop %v10673
      %v10803 = vtanh.pop %v10724
      %v10804 = vtanh.pop %v10726
      %v10805 = vtanh.pop %v10777
      %v10806 = vtanh.pop %v10779
      %v10807 = vtanh.pop %v10624
      %v10808 = vtanh.pop %v10626
      %v10809 = vtanh.pop %v10677
      %v10810 = vtanh.pop %v10679
      %v10811 = vtanh.pop %v10730
      %v10812 = vtanh.pop %v10732
      %v10813 = vtanh.pop %v10783
      %v10814 = vtanh.pop %v10785
      %v10815 = vtanh.pop %v10628
      %v10816 = vtanh.pop %v10630
      %v10817 = vtanh.pop %v10681
      %v10818 = vtanh.pop %v10683
      %v10819 = vtanh.pop %v10734
      %v10820 = vtanh.pop %v10736
      %v10821 = vtanh.pop %v10787
      %v10822 = vtanh.pop %v10789
      %v10823 = vpack.c.bf16 %v10799, %v10791
      %v10824 = vpack.c.bf16 %v10800, %v10792
      %v10825 = vpack.c.bf16 %v10801, %v10793
      %v10826 = vpack.c.bf16 %v10802, %v10794
      %v10827 = vpack.c.bf16 %v10803, %v10795
      %v10828 = vpack.c.bf16 %v10804, %v10796
      %v10829 = vpack.c.bf16 %v10805, %v10797
      %v10830 = vpack.c.bf16 %v10806, %v10798
      %v10831 = vpack.c.bf16 %v10815, %v10807
      %v10832 = vpack.c.bf16 %v10816, %v10808
      %v10833 = vpack.c.bf16 %v10817, %v10809
      %v10834 = vpack.c.bf16 %v10818, %v10810
      %v10835 = vpack.c.bf16 %v10819, %v10811
      %v10836 = vpack.c.bf16 %v10820, %v10812
      %v10837 = vpack.c.bf16 %v10821, %v10813
      %v10838 = vpack.c.bf16 %v10822, %v10814
      %10839 = vmatprep.subr.bf16.mxu0 %v10824
      %10840 = vmatpush1.bf16.msra.mxu0 %v10823
      %10841 = vmatprep.subr.bf16.mxu0 %v10832
      %10842 = vmatpush1.bf16.msra.mxu0 %v10831
      %10843 = vmatprep.subr.bf16.mxu0 0
      %10844 = vmatpush1.bf16.msra.mxu0 0
      %10845 = vmatprep.subr.bf16.mxu0 0
      %10846 = vmatpush1.bf16.msra.mxu0 0
      %10847 = vmatprep.subr.bf16.mxu0 0
      %10848 = vmatpush1.bf16.msra.mxu0 0
      %10849 = vmatprep.subr.bf16.mxu0 0
      %10850 = vmatpush1.bf16.msra.mxu0 0
      %10851 = vmatprep.subr.bf16.mxu0 0
      %10852 = vmatpush1.bf16.msra.mxu0 0
      %10853 = vmatprep.subr.bf16.mxu0 0
      %10854 = vmatpush1.bf16.msra.mxu0 0
      %10855 = vmatprep.subr.bf16.mxu0 0
      %10856 = vmatpush1.bf16.msra.mxu0 0
      %10857 = vmatprep.subr.bf16.mxu0 0
      %10858 = vmatpush1.bf16.msra.mxu0 0
      %10859 = vmatprep.subr.bf16.mxu0 0
      %10860 = vmatpush1.bf16.msra.mxu0 0
      %10861 = vmatprep.subr.bf16.mxu0 0
      %10862 = vmatpush1.bf16.msra.mxu0 0
      %10863 = vmatprep.subr.bf16.mxu0 0
      %10864 = vmatpush1.bf16.msra.mxu0 0
      %10865 = vmatprep.subr.bf16.mxu0 0
      %10866 = vmatpush1.bf16.msra.mxu0 0
      %10867 = vmatprep.subr.bf16.mxu0 0
      %10868 = vmatpush1.bf16.msra.mxu0 0
      %10869 = vmatprep.subr.bf16.mxu0 0
      %10870 = vmatpush1.bf16.msra.mxu0 0
      %10871 = vmatprep.mubr.bf16.mxu0 0
      %10872 = vmatmul.mubr.bf16.gmra.mrb[0].mxu0 %v1419
      %v10873 = vpop.f32.mrb[0].mxu0
      %v10874 = vadd.f32 %v1391, %v10873
      %v10875 = vpop.f32.mrb[0].mxu0
      %v10876 = vadd.f32 %v1391, %v10875
      %v10877 = vpop.f32.mrb[0].mxu0
      %v10878 = vadd.f32 %v1396, %v10877
      %v10879 = vpop.f32.mrb[0].mxu0
      %v10880 = vadd.f32 %v1396, %v10879
      %10881 = vmatprep.mubr.bf16.mxu0 0
      %10882 = vmatmul.mubr.bf16.gmra.mrb[0].mxu0 %v1422
      %v10883 = vpop.f32.mrb[0].mxu0
      %v10884 = vadd.f32 %v1401, %v10883
      %v10885 = vpop.f32.mrb[0].mxu0
      %v10886 = vadd.f32 %v1401, %v10885
      %v10887 = vpop.f32.mrb[0].mxu0
      %v10888 = vadd.f32 %v1406, %v10887
      %v10889 = vpop.f32.mrb[0].mxu0
      %v10890 = vadd.f32 %v1406, %v10889
      %10891 = vdwg.mxu0
      %10892 = vmatprep.subr.bf16.mxu0 %v10826
      %10893 = vmatpush1.bf16.msra.mxu0 %v10825
      %10894 = vmatprep.subr.bf16.mxu0 %v10834
      %10895 = vmatpush1.bf16.msra.mxu0 %v10833
      %10896 = vmatprep.subr.bf16.mxu0 0
      %10897 = vmatpush1.bf16.msra.mxu0 0
      %10898 = vmatprep.subr.bf16.mxu0 0
      %10899 = vmatpush1.bf16.msra.mxu0 0
      %10900 = vmatprep.subr.bf16.mxu0 0
      %10901 = vmatpush1.bf16.msra.mxu0 0
      %10902 = vmatprep.subr.bf16.mxu0 0
      %10903 = vmatpush1.bf16.msra.mxu0 0
      %10904 = vmatprep.subr.bf16.mxu0 0
      %10905 = vmatpush1.bf16.msra.mxu0 0
      %10906 = vmatprep.subr.bf16.mxu0 0
      %10907 = vmatpush1.bf16.msra.mxu0 0
      %10908 = vmatprep.subr.bf16.mxu0 0
      %10909 = vmatpush1.bf16.msra.mxu0 0
      %10910 = vmatprep.subr.bf16.mxu0 0
      %10911 = vmatpush1.bf16.msra.mxu0 0
      %10912 = vmatprep.subr.bf16.mxu0 0
      %10913 = vmatpush1.bf16.msra.mxu0 0
      %10914 = vmatprep.subr.bf16.mxu0 0
      %10915 = vmatpush1.bf16.msra.mxu0 0
      %10916 = vmatprep.subr.bf16.mxu0 0
      %10917 = vmatpush1.bf16.msra.mxu0 0
      %10918 = vmatprep.subr.bf16.mxu0 0
      %10919 = vmatpush1.bf16.msra.mxu0 0
      %10920 = vmatprep.subr.bf16.mxu0 0
      %10921 = vmatpush1.bf16.msra.mxu0 0
      %10922 = vmatprep.subr.bf16.mxu0 0
      %10923 = vmatpush1.bf16.msra.mxu0 0
      %10924 = vmatprep.mubr.bf16.mxu0 0
      %10925 = vmatmul.mubr.bf16.gmra.mrb[0].mxu0 %v1419
      %v10926 = vpop.f32.mrb[0].mxu0
      %v10927 = vadd.f32 %v1391, %v10926
      %v10928 = vpop.f32.mrb[0].mxu0
      %v10929 = vadd.f32 %v1391, %v10928
      %v10930 = vpop.f32.mrb[0].mxu0
      %v10931 = vadd.f32 %v1396, %v10930
      %v10932 = vpop.f32.mrb[0].mxu0
      %v10933 = vadd.f32 %v1396, %v10932
      %10934 = vmatprep.mubr.bf16.mxu0 0
      %10935 = vmatmul.mubr.bf16.gmra.mrb[0].mxu0 %v1422
      %v10936 = vpop.f32.mrb[0].mxu0
      %v10937 = vadd.f32 %v1401, %v10936
      %v10938 = vpop.f32.mrb[0].mxu0
      %v10939 = vadd.f32 %v1401, %v10938
      %v10940 = vpop.f32.mrb[0].mxu0
      %v10941 = vadd.f32 %v1406, %v10940
      %v10942 = vpop.f32.mrb[0].mxu0
      %v10943 = vadd.f32 %v1406, %v10942
      %10944 = vdwg.mxu0
      %10945 = vmatprep.subr.bf16.mxu0 %v10828
      %10946 = vmatpush1.bf16.msra.mxu0 %v10827
      %10947 = vmatprep.subr.bf16.mxu0 %v10836
      %10948 = vmatpush1.bf16.msra.mxu0 %v10835
      %10949 = vmatprep.subr.bf16.mxu0 0
      %10950 = vmatpush1.bf16.msra.mxu0 0
      %10951 = vmatprep.subr.bf16.mxu0 0
      %10952 = vmatpush1.bf16.msra.mxu0 0
      %10953 = vmatprep.subr.bf16.mxu0 0
      %10954 = vmatpush1.bf16.msra.mxu0 0
      %10955 = vmatprep.subr.bf16.mxu0 0
      %10956 = vmatpush1.bf16.msra.mxu0 0
      %10957 = vmatprep.subr.bf16.mxu0 0
      %10958 = vmatpush1.bf16.msra.mxu0 0
      %10959 = vmatprep.subr.bf16.mxu0 0
      %10960 = vmatpush1.bf16.msra.mxu0 0
      %10961 = vmatprep.subr.bf16.mxu0 0
      %10962 = vmatpush1.bf16.msra.mxu0 0
      %10963 = vmatprep.subr.bf16.mxu0 0
      %10964 = vmatpush1.bf16.msra.mxu0 0
      %10965 = vmatprep.subr.bf16.mxu0 0
      %10966 = vmatpush1.bf16.msra.mxu0 0
      %10967 = vmatprep.subr.bf16.mxu0 0
      %10968 = vmatpush1.bf16.msra.mxu0 0
      %10969 = vmatprep.subr.bf16.mxu0 0
      %10970 = vmatpush1.bf16.msra.mxu0 0
      %10971 = vmatprep.subr.bf16.mxu0 0
      %10972 = vmatpush1.bf16.msra.mxu0 0
      %10973 = vmatprep.subr.bf16.mxu0 0
      %10974 = vmatpush1.bf16.msra.mxu0 0
      %10975 = vmatprep.subr.bf16.mxu0 0
      %10976 = vmatpush1.bf16.msra.mxu0 0
      %10977 = vmatprep.mubr.bf16.mxu0 0
      %10978 = vmatmul.mubr.bf16.gmra.mrb[0].mxu0 %v1419
      %v10979 = vpop.f32.mrb[0].mxu0
      %v10980 = vadd.f32 %v1391, %v10979
      %v10981 = vpop.f32.mrb[0].mxu0
      %v10982 = vadd.f32 %v1391, %v10981
      %v10983 = vpop.f32.mrb[0].mxu0
      %v10984 = vadd.f32 %v1396, %v10983
      %v10985 = vpop.f32.mrb[0].mxu0
      %v10986 = vadd.f32 %v1396, %v10985
      %10987 = vmatprep.mubr.bf16.mxu0 0
      %10988 = vmatmul.mubr.bf16.gmra.mrb[0].mxu0 %v1422
      %v10989 = vpop.f32.mrb[0].mxu0
      %v10990 = vadd.f32 %v1401, %v10989
      %v10991 = vpop.f32.mrb[0].mxu0
      %v10992 = vadd.f32 %v1401, %v10991
      %v10993 = vpop.f32.mrb[0].mxu0
      %v10994 = vadd.f32 %v1406, %v10993
      %v10995 = vpop.f32.mrb[0].mxu0
      %v10996 = vadd.f32 %v1406, %v10995
      %10997 = vdwg.mxu0
      %10998 = vmatprep.subr.bf16.mxu0 %v10830
      %10999 = vmatpush1.bf16.msra.mxu0 %v10829
      %11000 = vmatprep.subr.bf16.mxu0 %v10838
      %11001 = vmatpush1.bf16.msra.mxu0 %v10837
      %11002 = vmatprep.subr.bf16.mxu0 0
      %11003 = vmatpush1.bf16.msra.mxu0 0
      %11004 = vmatprep.subr.bf16.mxu0 0
      %11005 = vmatpush1.bf16.msra.mxu0 0
      %11006 = vmatprep.subr.bf16.mxu0 0
      %11007 = vmatpush1.bf16.msra.mxu0 0
      %11008 = vmatprep.subr.bf16.mxu0 0
      %11009 = vmatpush1.bf16.msra.mxu0 0
      %11010 = vmatprep.subr.bf16.mxu0 0
      %11011 = vmatpush1.bf16.msra.mxu0 0
      %11012 = vmatprep.subr.bf16.mxu0 0
      %11013 = vmatpush1.bf16.msra.mxu0 0
      %11014 = vmatprep.subr.bf16.mxu0 0
      %11015 = vmatpush1.bf16.msra.mxu0 0
      %11016 = vmatprep.subr.bf16.mxu0 0
      %11017 = vmatpush1.bf16.msra.mxu0 0
      %11018 = vmatprep.subr.bf16.mxu0 0
      %11019 = vmatpush1.bf16.msra.mxu0 0
      %11020 = vmatprep.subr.bf16.mxu0 0
      %11021 = vmatpush1.bf16.msra.mxu0 0
      %11022 = vmatprep.subr.bf16.mxu0 0
      %11023 = vmatpush1.bf16.msra.mxu0 0
      %11024 = vmatprep.subr.bf16.mxu0 0
      %11025 = vmatpush1.bf16.msra.mxu0 0
      %11026 = vmatprep.subr.bf16.mxu0 0
      %11027 = vmatpush1.bf16.msra.mxu0 0
      %11028 = vmatprep.subr.bf16.mxu0 0
      %11029 = vmatpush1.bf16.msra.mxu0 0
      %11030 = vmatprep.mubr.bf16.mxu0 0
      %11031 = vmatmul.mubr.bf16.gmra.mrb[0].mxu0 %v1419
      %v11032 = vpop.f32.mrb[0].mxu0
      %v11033 = vadd.f32 %v1391, %v11032
      %v11034 = vpop.f32.mrb[0].mxu0
      %v11035 = vadd.f32 %v1391, %v11034
      %v11036 = vpop.f32.mrb[0].mxu0
      %v11037 = vadd.f32 %v1396, %v11036
      %v11038 = vpop.f32.mrb[0].mxu0
      %v11039 = vadd.f32 %v1396, %v11038
      %11040 = vmatprep.mubr.bf16.mxu0 0
      %11041 = vmatmul.mubr.bf16.gmra.mrb[0].mxu0 %v1422
      %v11042 = vpop.f32.mrb[0].mxu0
      %v11043 = vadd.f32 %v1401, %v11042
      %v11044 = vpop.f32.mrb[0].mxu0
      %v11045 = vadd.f32 %v1401, %v11044
      %v11046 = vpop.f32.mrb[0].mxu0
      %v11047 = vadd.f32 %v1406, %v11046
      %v11048 = vpop.f32.mrb[0].mxu0
      %v11049 = vadd.f32 %v1406, %v11048
      %11050 = vdwg.mxu0
      %v11051 = vtanh.pop %v10874
      %v11052 = vtanh.pop %v10876
      %v11053 = vtanh.pop %v10927
      %v11054 = vtanh.pop %v10929
      %v11055 = vtanh.pop %v10980
      %v11056 = vtanh.pop %v10982
      %v11057 = vtanh.pop %v11033
      %v11058 = vtanh.pop %v11035
      %v11059 = vtanh.pop %v10878
      %v11060 = vtanh.pop %v10880
      %v11061 = vtanh.pop %v10931
      %v11062 = vtanh.pop %v10933
      %v11063 = vtanh.pop %v10984
      %v11064 = vtanh.pop %v10986
      %v11065 = vtanh.pop %v11037
      %v11066 = vtanh.pop %v11039
      %v11067 = vtanh.pop %v10884
      %v11068 = vtanh.pop %v10886
      %v11069 = vtanh.pop %v10937
      %v11070 = vtanh.pop %v10939
      %v11071 = vtanh.pop %v10990
      %v11072 = vtanh.pop %v10992
      %v11073 = vtanh.pop %v11043
      %v11074 = vtanh.pop %v11045
      %v11075 = vtanh.pop %v10888
      %v11076 = vtanh.pop %v10890
      %v11077 = vtanh.pop %v10941
      %v11078 = vtanh.pop %v10943
      %v11079 = vtanh.pop %v10994
      %v11080 = vtanh.pop %v10996
      %v11081 = vtanh.pop %v11047
      %v11082 = vtanh.pop %v11049
      %v11083 = vmul.f32 %v1671, %v11051
      %v11084 = vmul.f32 %v1671, %v11052
      %v11085 = vmul.f32 %v1671, %v11053
      %v11086 = vmul.f32 %v1671, %v11054
      %v11087 = vmul.f32 %v1671, %v11055
      %v11088 = vmul.f32 %v1671, %v11056
      %v11089 = vmul.f32 %v1671, %v11057
      %v11090 = vmul.f32 %v1671, %v11058
      %v11091 = vmul.f32 %v1676, %v11059
      %v11092 = vmul.f32 %v1676, %v11060
      %v11093 = vmul.f32 %v1676, %v11061
      %v11094 = vmul.f32 %v1676, %v11062
      %v11095 = vmul.f32 %v1676, %v11063
      %v11096 = vmul.f32 %v1676, %v11064
      %v11097 = vmul.f32 %v1676, %v11065
      %v11098 = vmul.f32 %v1676, %v11066
      %v11099 = vmul.f32 %v1681, %v11067
      %v11100 = vmul.f32 %v1681, %v11068
      %v11101 = vmul.f32 %v1681, %v11069
      %v11102 = vmul.f32 %v1681, %v11070
      %v11103 = vmul.f32 %v1681, %v11071
      %v11104 = vmul.f32 %v1681, %v11072
      %v11105 = vmul.f32 %v1681, %v11073
      %v11106 = vmul.f32 %v1681, %v11074
      %v11107 = vmul.f32 %v1686, %v11075
      %v11108 = vmul.f32 %v1686, %v11076
      %v11109 = vmul.f32 %v1686, %v11077
      %v11110 = vmul.f32 %v1686, %v11078
      %v11111 = vmul.f32 %v1686, %v11079
      %v11112 = vmul.f32 %v1686, %v11080
      %v11113 = vmul.f32 %v1686, %v11081
      %v11114 = vmul.f32 %v1686, %v11082
      %v11115 = vadd.f32 %v11083, %v11091
      %v11116 = vadd.f32 %v11115, %v11099
      %v11117 = vadd.f32 %v11116, %v11107
      %v11118 = vrot.slane %v11117, 4
      %v11119 = vadd.f32 %v11117, %v11118
      %v11120 = vrot.slane %v11119, 2
      %v11121 = vadd.f32 %v11119, %v11120
      %v11122 = vrot.slane %v11121, 1
      %v11123 = vadd.f32 %v11121, %v11122
      %v11124 = vadd.f32 %v11084, %v11092
      %v11125 = vadd.f32 %v11124, %v11100
      %v11126 = vadd.f32 %v11125, %v11108
      %v11127 = vrot.slane %v11126, 4
      %v11128 = vadd.f32 %v11126, %v11127
      %v11129 = vrot.slane %v11128, 2
      %v11130 = vadd.f32 %v11128, %v11129
      %v11131 = vrot.slane %v11130, 1
      %v11132 = vadd.f32 %v11130, %v11131
      %v11133 = vadd.f32 %v11085, %v11093
      %v11134 = vadd.f32 %v11133, %v11101
      %v11135 = vadd.f32 %v11134, %v11109
      %v11136 = vrot.slane %v11135, 4
      %v11137 = vadd.f32 %v11135, %v11136
      %v11138 = vrot.slane %v11137, 2
      %v11139 = vadd.f32 %v11137, %v11138
      %v11140 = vrot.slane %v11139, 1
      %v11141 = vadd.f32 %v11139, %v11140
      %v11142 = vadd.f32 %v11086, %v11094
      %v11143 = vadd.f32 %v11142, %v11102
      %v11144 = vadd.f32 %v11143, %v11110
      %v11145 = vrot.slane %v11144, 4
      %v11146 = vadd.f32 %v11144, %v11145
      %v11147 = vrot.slane %v11146, 2
      %v11148 = vadd.f32 %v11146, %v11147
      %v11149 = vrot.slane %v11148, 1
      %v11150 = vadd.f32 %v11148, %v11149
      %v11151 = vadd.f32 %v11087, %v11095
      %v11152 = vadd.f32 %v11151, %v11103
      %v11153 = vadd.f32 %v11152, %v11111
      %v11154 = vrot.slane %v11153, 4
      %v11155 = vadd.f32 %v11153, %v11154
      %v11156 = vrot.slane %v11155, 2
      %v11157 = vadd.f32 %v11155, %v11156
      %v11158 = vrot.slane %v11157, 1
      %v11159 = vadd.f32 %v11157, %v11158
      %v11160 = vadd.f32 %v11088, %v11096
      %v11161 = vadd.f32 %v11160, %v11104
      %v11162 = vadd.f32 %v11161, %v11112
      %v11163 = vrot.slane %v11162, 4
      %v11164 = vadd.f32 %v11162, %v11163
      %v11165 = vrot.slane %v11164, 2
      %v11166 = vadd.f32 %v11164, %v11165
      %v11167 = vrot.slane %v11166, 1
      %v11168 = vadd.f32 %v11166, %v11167
      %v11169 = vadd.f32 %v11089, %v11097
      %v11170 = vadd.f32 %v11169, %v11105
      %v11171 = vadd.f32 %v11170, %v11113
      %v11172 = vrot.slane %v11171, 4
      %v11173 = vadd.f32 %v11171, %v11172
      %v11174 = vrot.slane %v11173, 2
      %v11175 = vadd.f32 %v11173, %v11174
      %v11176 = vrot.slane %v11175, 1
      %v11177 = vadd.f32 %v11175, %v11176
      %v11178 = vadd.f32 %v11090, %v11098
      %v11179 = vadd.f32 %v11178, %v11106
      %v11180 = vadd.f32 %v11179, %v11114
      %v11181 = vrot.slane %v11180, 4
      %v11182 = vadd.f32 %v11180, %v11181
      %v11183 = vrot.slane %v11182, 2
      %v11184 = vadd.f32 %v11182, %v11183
      %v11185 = vrot.slane %v11184, 1
      %v11186 = vadd.f32 %v11184, %v11185
      %v11187 = vadd.f32 %v11123, %v1800
      %v11188 = vadd.f32 %v11132, %v1800
      %v11189 = vadd.f32 %v11141, %v1800
      %v11190 = vadd.f32 %v11150, %v1800
      %v11191 = vadd.f32 %v11159, %v1800
      %v11192 = vadd.f32 %v11168, %v1800
      %v11193 = vadd.f32 %v11177, %v1800
      %v11194 = vadd.f32 %v11186, %v1800
      %v11203 = vcombine.low %v11187, %v11188
      %v11204 = vcombine.low %v11189, %v11190
      %v11205 = vcombine.low %v11191, %v11192
      %v11206 = vcombine.low %v11193, %v11194
      %v11208 = vunpack.c.l.s4 1966171168
      %v11209 = vunpack.c.0.s8 %v11208
      %v11210 = vlaneseq
      %v11211 = vshrl.u32 %v11210, 7
      %v11212 = vsub.s32 %v11209, %v11211
      %v11213 = vrot.slane %v11203, %v11212
      %v11215 = vunpack.c.l.s4 1966171168
      %v11216 = vunpack.c.0.s8 %v11215
      %v11217 = vlaneseq
      %v11218 = vshrl.u32 %v11217, 7
      %v11219 = vsub.s32 %v11216, %v11218
      %v11220 = vrot.slane %v11204, %v11219
      %v11222 = vunpack.c.l.s4 1966171168
      %v11223 = vunpack.c.0.s8 %v11222
      %v11224 = vlaneseq
      %v11225 = vshrl.u32 %v11224, 7
      %v11226 = vsub.s32 %v11223, %v11225
      %v11227 = vrot.slane %v11205, %v11226
      %v11229 = vunpack.c.l.s4 1966171168
      %v11230 = vunpack.c.0.s8 %v11229
      %v11231 = vlaneseq
      %v11232 = vshrl.u32 %v11231, 7
      %v11233 = vsub.s32 %v11230, %v11232
      %v11234 = vrot.slane %v11206, %v11233
      %v11235 = vcombine.low %v11213, %v11220
      %v11236 = vcombine.low %v11227, %v11234
      %v11238 = vunpack.c.l.s4 1966171168
      %v11239 = vunpack.c.0.s8 %v11238
      %v11240 = vlaneseq
      %v11241 = vshrl.u32 %v11240, 7
      %v11242 = vsub.s32 %v11239, %v11241
      %v11243 = vrot.slane %v11235, %v11242
      %v11245 = vunpack.c.l.s4 1966171168
      %v11246 = vunpack.c.0.s8 %v11245
      %v11247 = vlaneseq
      %v11248 = vshrl.u32 %v11247, 7
      %v11249 = vsub.s32 %v11246, %v11248
      %v11250 = vrot.slane %v11236, %v11249
      %v11251 = vcombine.low %v11243, %v11250
      %s11253 = scalar_lea.vmem %s253, 7
      %11254 = vst [vmem:[%s11253] ss:$8 sm:$0xf] %v11251
      %11255 = vst [vmem:[%s11253] ss:$8 sm:$0xf0] %v11251
      %p11256 = scmp.lt.s32.totalorder %s19, 1
      %s11257 = scalar_select %p11256, %s19, 1
      %s11258 = smul.addr %s11257, 8
      %s11259 = smul.addr %s11258, 8
      %s11260 = scalar_lea.vmem %s6, %s11259
      // Predicated region
      $region45: #{pinn_forward.1} parent=43 // pred_check
        %p11261 = pneg %p168
      $region46: #{pinn_forward.1} parent=43 // pred_check_branch
        %11263 = sbr.rel (%p11261) target = $region48
      $region47: #{pinn_forward.1} parent=43 // pred_region
        _
      $region48: #{pinn_forward.1} parent=43 // pred_fallthru
        _
    $region44: #{pinn_forward.1} parent=5 // pred_fallthru
      _
    %p11264 = scmp.le.s32.totalorder 2, %s14
    // Predicated region
    $region49: #{pinn_forward.1} parent=5 // pred_check
      %p11265 = pneg %p11264
    $region50: #{pinn_forward.1} parent=5 // pred_check_branch
      %11267 = sbr.rel (%p11265) target = $region52
    $region51: #{pinn_forward.1} parent=5 // pred_region
      %s11268 = ssub.s32 %s14, 2
      // Predicated region
      $region53: #{pinn_forward.1} parent=51 // pred_check
        %p11269 = pneg %p174
      $region54: #{pinn_forward.1} parent=51 // pred_check_branch
        %11271 = sbr.rel (%p11269) target = $region56
      $region55: #{pinn_forward.1} parent=51 // pred_region
        %p11272 = scmp.lt.s32.totalorder %s20, 1
        %s11273 = scalar_select %p11272, %s20, 1
        %s11274 = smul.addr %s11273, 8
        %s11275 = smul.addr %s11274, 8
        %s11276 = scalar_lea.vmem %s6, %s11275
      $region56: #{pinn_forward.1} parent=51 // pred_fallthru
        _
    $region52: #{pinn_forward.1} parent=5 // pred_fallthru
      _
  $region6: #{pinn_forward.1} parent=0 // loop_footer
    %s18 = sadd.s32 1, %s14
  $region7: #{pinn_forward.1} parent=0 // loop_footer_branch
    %13 = sbr.rel target = $region3
  $region8: #{pinn_forward.1} parent=0 // loop_exit
    _

</llo_original>
